<compile_context>
chip_gen: v6e
topology: v6e:2x2x1
jax: 0.10.0
libtpu: 0.0.40
codegen_flags: <defaults>
</compile_context>

<pallas_src>
import functools

import jax
import jax.numpy as jnp
from jax import lax
from jax.experimental import pallas as pl
from jax.experimental.pallas import tpu as pltpu


_LN_EPS = 1e-5  # torch.nn.LayerNorm default


# -----------------------------------------------------------------------------
# In-kernel building blocks (operate on VMEM-resident values)
# -----------------------------------------------------------------------------
def _layer_norm(x2, gamma, beta, eps):
    """x2: (M, D); gamma/beta: (1, D). LayerNorm over last axis (torch semantics)."""
    mu = jnp.mean(x2, axis=-1, keepdims=True)
    var = jnp.mean((x2 - mu) ** 2, axis=-1, keepdims=True)
    return (x2 - mu) * lax.rsqrt(var + eps) * gamma + beta


def _ffn(x2, w1, b1, w2, b2):
    """x2: (M, D) -> relu(x2 @ w1 + b1) @ w2 + b2, intermediate stays in VMEM."""
    h = jnp.maximum(jnp.dot(x2, w1, preferred_element_type=jnp.float32) + b1, 0.0)
    return jnp.dot(h, w2, preferred_element_type=jnp.float32) + b2


def _mha(xq3, xkv3, wq, bq, wkv, bkv, wo, bo, num_heads):
    """Multi-head attention, fully in-kernel.

    xq3: (B, Sq, D), xkv3: (B, Sk, D).  wq: (D, D), wkv: (D, 2D), wo: (D, D).
    Returns (B*Sq, D).
    """
    B, Sq, D = xq3.shape
    Sk = xkv3.shape[1]
    Dh = D // num_heads
    scale = 1.0 / (Dh ** 0.5)

    # Q projection and fused K|V projection (one matmul each).
    q2 = jnp.dot(xq3.reshape(B * Sq, D), wq, preferred_element_type=jnp.float32) + bq
    kv2 = jnp.dot(xkv3.reshape(B * Sk, D), wkv, preferred_element_type=jnp.float32) + bkv

    q3 = q2.reshape(B, Sq, D)
    k3 = kv2[:, :D].reshape(B, Sk, D)
    v3 = kv2[:, D:].reshape(B, Sk, D)

    out = None
    for h in range(num_heads):  # static unrolled head loop; heads = lane slices
        lo, hi = h * Dh, (h + 1) * Dh
        s = jnp.einsum("bqd,bkd->bqk", q3[:, :, lo:hi], k3[:, :, lo:hi],
                       preferred_element_type=jnp.float32) * scale
        m = jnp.max(s, axis=-1, keepdims=True)
        p = jnp.exp(s - m)
        denom = jnp.sum(p, axis=-1, keepdims=True)
        ctx = jnp.einsum("bqk,bkd->bqd", p, v3[:, :, lo:hi],
                         preferred_element_type=jnp.float32)
        # Deferred softmax normalization; reciprocal goes to the EUP slot.
        ctx = ctx * pl.reciprocal(denom, approx=True)
        # Fold output projection into the head loop: concat(o_h) @ Wo == sum_h o_h @ Wo_h.
        oh = jnp.dot(ctx.reshape(B * Sq, Dh), wo[lo:hi, :],
                     preferred_element_type=jnp.float32)
        out = oh if out is None else out + oh
    return out + bo


# -----------------------------------------------------------------------------
# Fused stacked-layer Pallas kernels (grid axis = layer index)
# -----------------------------------------------------------------------------
def _encoder_stack_kernel(x_ref,
                          wq_ref, bq_ref, wkv_ref, bkv_ref, wo_ref, bo_ref,
                          ln1g_ref, ln1b_ref,
                          fw1_ref, fb1_ref, fw2_ref, fb2_ref,
                          ln2g_ref, ln2b_ref,
                          o_ref, act_ref, *, num_heads, eps):
    layer = pl.program_id(0)
    n_layers = pl.num_programs(0)

    @pl.when(layer == 0)
    def _():  # load the embedded+PE source once; then it lives in VMEM scratch
        act_ref[...] = x_ref[...]

    x3 = act_ref[...]                                  # (B, S, D)
    B, S, D = x3.shape
    x2 = x3.reshape(B * S, D)

    attn = _mha(x3, x3, wq_ref[...], bq_ref[...], wkv_ref[...], bkv_ref[...],
                wo_ref[...], bo_ref[...], num_heads)
    x2 = _layer_norm(x2 + attn, ln1g_ref[...], ln1b_ref[...], eps)   # residual + LN fused

    ff = _ffn(x2, fw1_ref[...], fb1_ref[...], fw2_ref[...], fb2_ref[...])
    x2 = _layer_norm(x2 + ff, ln2g_ref[...], ln2b_ref[...], eps)

    act_ref[...] = x2.reshape(B, S, D)

    @pl.when(layer == n_layers - 1)
    def _():
        o_ref[...] = act_ref[...]


def _decoder_stack_kernel(x_ref, enc_ref,
                          sa_wq_ref, sa_bq_ref, sa_wkv_ref, sa_bkv_ref, sa_wo_ref, sa_bo_ref,
                          ln1g_ref, ln1b_ref,
                          ca_wq_ref, ca_bq_ref, ca_wkv_ref, ca_bkv_ref, ca_wo_ref, ca_bo_ref,
                          ln2g_ref, ln2b_ref,
                          fw1_ref, fb1_ref, fw2_ref, fb2_ref,
                          ln3g_ref, ln3b_ref,
                          o_ref, act_ref, *, num_heads, eps):
    layer = pl.program_id(0)
    n_layers = pl.num_programs(0)

    @pl.when(layer == 0)
    def _():
        act_ref[...] = x_ref[...]

    x3 = act_ref[...]                                  # (B, St, D)
    enc3 = enc_ref[...]                                # (B, Ss, D)
    B, S, D = x3.shape
    x2 = x3.reshape(B * S, D)

    sa = _mha(x3, x3, sa_wq_ref[...], sa_bq_ref[...], sa_wkv_ref[...], sa_bkv_ref[...],
              sa_wo_ref[...], sa_bo_ref[...], num_heads)
    x2 = _layer_norm(x2 + sa, ln1g_ref[...], ln1b_ref[...], eps)

    ca = _mha(x2.reshape(B, S, D), enc3,
              ca_wq_ref[...], ca_bq_ref[...], ca_wkv_ref[...], ca_bkv_ref[...],
              ca_wo_ref[...], ca_bo_ref[...], num_heads)
    x2 = _layer_norm(x2 + ca, ln2g_ref[...], ln2b_ref[...], eps)

    ff = _ffn(x2, fw1_ref[...], fb1_ref[...], fw2_ref[...], fb2_ref[...])
    x2 = _layer_norm(x2 + ff, ln3g_ref[...], ln3b_ref[...], eps)

    act_ref[...] = x2.reshape(B, S, D)

    @pl.when(layer == n_layers - 1)
    def _():
        o_ref[...] = act_ref[...]


def _final_kernel(x_ref, w_ref, b_ref, o_ref):
    logits = jnp.dot(x_ref[...], w_ref[...], preferred_element_type=jnp.float32) + b_ref[...]
    m = jnp.max(logits, axis=-1, keepdims=True)
    s = logits - m
    lse = jnp.log(jnp.sum(jnp.exp(s), axis=-1, keepdims=True))
    o_ref[...] = s - lse


# -----------------------------------------------------------------------------
# Python wrappers around the pallas_calls
# -----------------------------------------------------------------------------
_ENC_KEYS = ("wq", "bq", "wkv", "bkv", "wo", "bo",
             "ln1_g", "ln1_b",
             "fw1", "fb1", "fw2", "fb2",
             "ln2_g", "ln2_b")

_DEC_KEYS = ("sa_wq", "sa_bq", "sa_wkv", "sa_bkv", "sa_wo", "sa_bo",
             "ln1_g", "ln1_b",
             "ca_wq", "ca_bq", "ca_wkv", "ca_bkv", "ca_wo", "ca_bo",
             "ln2_g", "ln2_b",
             "fw1", "fb1", "fw2", "fb2",
             "ln3_g", "ln3_b")


def _layer_stacked_spec(arr):
    """BlockSpec for a (L, ...) stacked parameter: pick layer `l`, squeeze the L dim."""
    trailing = arr.shape[1:]
    nt = len(trailing)
    return pl.BlockSpec((None,) + trailing, lambda l, _nt=nt: (l,) + (0,) * _nt)


def _constant_spec(arr):
    """BlockSpec for a full-array input whose block does not change across layers."""
    nd = arr.ndim
    return pl.BlockSpec(arr.shape, lambda l, _nd=nd: (0,) * _nd)


def encoder_stack(x, p, num_heads):
    B, S, D = x.shape
    n_layers = p["wq"].shape[0]
    in_specs = [_constant_spec(x)] + [_layer_stacked_spec(p[k]) for k in _ENC_KEYS]
    return pl.pallas_call(
        functools.partial(_encoder_stack_kernel, num_heads=num_heads, eps=_LN_EPS),
        out_shape=jax.ShapeDtypeStruct((B, S, D), jnp.float32),
        grid_spec=pltpu.PrefetchScalarGridSpec(
            num_scalar_prefetch=0,
            grid=(n_layers,),
            in_specs=in_specs,
            out_specs=pl.BlockSpec((B, S, D), lambda l: (0, 0, 0)),
            scratch_shapes=[pltpu.VMEM((B, S, D), jnp.float32)],
        ),
        compiler_params=pltpu.CompilerParams(dimension_semantics=("arbitrary",)),
    )(x, *[p[k] for k in _ENC_KEYS])


def decoder_stack(x, enc_out, p, num_heads):
    B, S, D = x.shape
    n_layers = p["sa_wq"].shape[0]
    in_specs = ([_constant_spec(x), _constant_spec(enc_out)]
                + [_layer_stacked_spec(p[k]) for k in _DEC_KEYS])
    return pl.pallas_call(
        functools.partial(_decoder_stack_kernel, num_heads=num_heads, eps=_LN_EPS),
        out_shape=jax.ShapeDtypeStruct((B, S, D), jnp.float32),
        grid_spec=pltpu.PrefetchScalarGridSpec(
            num_scalar_prefetch=0,
            grid=(n_layers,),
            in_specs=in_specs,
            out_specs=pl.BlockSpec((B, S, D), lambda l: (0, 0, 0)),
            scratch_shapes=[pltpu.VMEM((B, S, D), jnp.float32)],
        ),
        compiler_params=pltpu.CompilerParams(dimension_semantics=("arbitrary",)),
    )(x, enc_out, *[p[k] for k in _DEC_KEYS])


def final_linear_log_softmax(x2, w, b):
    """x2: (M, D) -> log_softmax(x2 @ w + b) : (M, V)."""
    M, D = x2.shape
    V = w.shape[1]
    return pl.pallas_call(
        _final_kernel,
        out_shape=jax.ShapeDtypeStruct((M, V), jnp.float32),
    )(x2, w, b)


# -----------------------------------------------------------------------------
# Model forward (glue in plain JAX)
# -----------------------------------------------------------------------------
def positional_encoding(max_len, d_model):
    pos = jnp.arange(max_len, dtype=jnp.float32)[:, None]
    i = jnp.arange(0, d_model, 2, dtype=jnp.float32)
    div = jnp.exp(-jnp.log(10000.0) * i / d_model)
    pe = jnp.zeros((max_len, d_model), jnp.float32)
    pe = pe.at[:, 0::2].set(jnp.sin(pos * div))
    pe = pe.at[:, 1::2].set(jnp.cos(pos * div))
    return pe


def transformer_forward(params, source, target, *, num_heads):
    emb = params["embedding"]
    pe = params["pe"]

    src = emb[source] + pe[: source.shape[1]][None, :, :]
    enc = encoder_stack(src, params["encoders"], num_heads)

    tgt = emb[target] + pe[: target.shape[1]][None, :, :]
    dec = decoder_stack(tgt, enc, params["decoders"], num_heads)

    B, S, D = dec.shape
    out = final_linear_log_softmax(dec.reshape(B * S, D), params["wf"], params["bf"])
    return out.reshape(B, S, -1)


# -----------------------------------------------------------------------------
# Deterministic parameter init (PyTorch-like uniform init, fused KV weights,
# per-layer params stacked along a leading layer axis)
# -----------------------------------------------------------------------------
def init_params(key, vocab_size, d_model, n_enc, n_dec, d_ff, max_len=50):
    keys = list(jax.random.split(key, 256))
    kidx = [0]

    def nk():
        k = keys[kidx[0]]
        kidx[0] += 1
        return k

    def lin(fan_in, fan_out):
        lim = 1.0 / (fan_in ** 0.5)
        w = jax.random.uniform(nk(), (fan_in, fan_out), jnp.float32, -lim, lim)
        b = jax.random.uniform(nk(), (1, fan_out), jnp.float32, -lim, lim)
        return w, b

    def attn_params(prefix=""):
        wq, bq = lin(d_model, d_model)
        wk, bk = lin(d_model, d_model)
        wv, bv = lin(d_model, d_model)
        wo, bo = lin(d_model, d_model)
        return {
            prefix + "wq": wq, prefix + "bq": bq,
            prefix + "wkv": jnp.concatenate([wk, wv], axis=1),
            prefix + "bkv": jnp.concatenate([bk, bv], axis=1),
            prefix + "wo": wo, prefix + "bo": bo,
        }

    def ffn_params():
        w1, b1 = lin(d_model, d_ff)
        w2, b2 = lin(d_ff, d_model)
        return {"fw1": w1, "fb1": b1, "fw2": w2, "fb2": b2}

    def ln_params(name):
        return {name + "_g": jnp.ones((1, d_model), jnp.float32),
                name + "_b": jnp.zeros((1, d_model), jnp.float32)}

    def stack_layers(layer_list):
        return jax.tree_util.tree_map(lambda *xs: jnp.stack(xs, axis=0), *layer_list)

    params = {}
    params["embedding"] = jax.random.normal(nk(), (vocab_size, d_model), jnp.float32)
    params["pe"] = positional_encoding(max_len, d_model)

    encoders = []
    for _ in range(n_enc):
        lp = {}
        lp.update(attn_params())
        lp.update(ffn_params())
        lp.update(ln_params("ln1"))
        lp.update(ln_params("ln2"))
        encoders.append(lp)
    params["encoders"] = stack_layers(encoders)

    decoders = []
    for _ in range(n_dec):
        lp = {}
        lp.update(attn_params("sa_"))
        lp.update(attn_params("ca_"))
        lp.update(ffn_params())
        lp.update(ln_params("ln1"))
        lp.update(ln_params("ln2"))
        lp.update(ln_params("ln3"))
        decoders.append(lp)
    params["decoders"] = stack_layers(decoders)

    wf, bf = lin(d_model, vocab_size)
    params["wf"] = wf
    params["bf"] = bf
    return params


# -----------------------------------------------------------------------------
# Main
# -----------------------------------------------------------------------------
if __name__ == "__main__":
    vocab_size = 64
    d_model = 32
    n_encoder_layers = 2
    n_decoder_layers = 2
    num_heads = 4
    d_ff = 4 * d_model

    B, S_src, S_tgt = 2, 8, 8

    root = jax.random.PRNGKey(0)
    k_params, k_src, k_tgt = jax.random.split(root, 3)

    params = init_params(k_params, vocab_size, d_model,
                         n_encoder_layers, n_decoder_layers, d_ff)

    source = jax.random.randint(k_src, (B, S_src), 1, vocab_size, dtype=jnp.int32)
    target = jax.random.randint(k_tgt, (B, S_tgt), 1, vocab_size, dtype=jnp.int32)

    fwd = jax.jit(functools.partial(transformer_forward, num_heads=num_heads))
    out = fwd(params, source, target)
    out = jax.block_until_ready(out)

    assert out.shape == (B, S_tgt, vocab_size), out.shape
    # log_softmax rows should sum (in prob space) to 1
    assert jnp.allclose(jnp.sum(jnp.exp(out), axis=-1), 1.0, atol=1e-3)
    print("KERNEL_OK")
</pallas_src>

<mosaic_0001>
module attributes {stable_mosaic.version = 11 : i64} {
  func.func @_final_kernel(%arg0: memref<16x32xf32, #tpu.memory_space<vmem>>, %arg1: memref<32x64xf32, #tpu.memory_space<vmem>>, %arg2: memref<1x64xf32, #tpu.memory_space<vmem>>, %arg3: memref<16x64xf32, #tpu.memory_space<vmem>>) attributes {dimension_semantics = [], scalar_prefetch = 0 : i64, scratch_operands = 0 : i64, tpu.core_type = #tpu.core_type<tc>} {
    %c0 = arith.constant 0 : index
    %c0_0 = arith.constant 0 : index
    %0 = vector.load %arg0[%c0, %c0_0] : memref<16x32xf32, #tpu.memory_space<vmem>>, vector<16x32xf32>
    %c0_1 = arith.constant 0 : index
    %c0_2 = arith.constant 0 : index
    %1 = vector.load %arg1[%c0_1, %c0_2] : memref<32x64xf32, #tpu.memory_space<vmem>>, vector<32x64xf32>
    %cst = arith.constant dense<0.000000e+00> : vector<16x64xf32>
    %2 = tpu.matmul %0, %1, %cst {dimension_numbers = #tpu.dot_dimension_numbers<[1], [0], [0], [1], [0, 0, 1, 1], [], []>} : vector<16x32xf32>, vector<32x64xf32>, vector<16x64xf32> -> vector<16x64xf32>
    %c0_3 = arith.constant 0 : index
    %c0_4 = arith.constant 0 : index
    %3 = vector.load %arg2[%c0_3, %c0_4] : memref<1x64xf32, #tpu.memory_space<vmem>>, vector<1x64xf32>
    %4 = vector.broadcast %3 : vector<1x64xf32> to vector<16x64xf32>
    %5 = arith.addf %2, %4 : vector<16x64xf32>
    %cst_5 = arith.constant dense<0xFF800000> : vector<16xf32>
    %6 = vector.multi_reduction <maximumf>, %5, %cst_5 [1] : vector<16x64xf32> to vector<16xf32>
    %7 = vector.shape_cast %6 : vector<16xf32> to vector<16x1xf32>
    %8 = vector.broadcast %7 : vector<16x1xf32> to vector<16x64xf32>
    %9 = arith.subf %5, %8 : vector<16x64xf32>
    %10 = math.exp %9 : vector<16x64xf32>
    %cst_6 = arith.constant dense<0.000000e+00> : vector<16xf32>
    %11 = vector.multi_reduction <add>, %10, %cst_6 [1] : vector<16x64xf32> to vector<16xf32>
    %12 = vector.shape_cast %11 : vector<16xf32> to vector<16x1xf32>
    %13 = math.log %12 : vector<16x1xf32>
    %14 = vector.broadcast %13 : vector<16x1xf32> to vector<16x64xf32>
    %15 = arith.subf %9, %14 : vector<16x64xf32>
    %c0_7 = arith.constant 0 : index
    %c0_8 = arith.constant 0 : index
    %16 = vector.load %arg3[%c0_7, %c0_8] : memref<16x64xf32, #tpu.memory_space<vmem>>, vector<16x64xf32>
    tpu.vector_store %arg3[%c0_7, %c0_8], %15 {strides = array<i32>} : memref<16x64xf32, #tpu.memory_space<vmem>>, vector<16x64xf32>,
    return
  }
}

module attributes {stable_mosaic.version = 11 : i64} {
  func.func @_decoder_stack_kernel(%arg0: i32, %arg1: memref<2x8x32xf32, #tpu.memory_space<vmem>>, %arg2: memref<2x8x32xf32, #tpu.memory_space<vmem>>, %arg3: memref<1x32x32xf32, #tpu.memory_space<vmem>>, %arg4: memref<1x1x32xf32, #tpu.memory_space<vmem>>, %arg5: memref<1x32x64xf32, #tpu.memory_space<vmem>>, %arg6: memref<1x1x64xf32, #tpu.memory_space<vmem>>, %arg7: memref<1x32x32xf32, #tpu.memory_space<vmem>>, %arg8: memref<1x1x32xf32, #tpu.memory_space<vmem>>, %arg9: memref<1x1x32xf32, #tpu.memory_space<vmem>>, %arg10: memref<1x1x32xf32, #tpu.memory_space<vmem>>, %arg11: memref<1x32x32xf32, #tpu.memory_space<vmem>>, %arg12: memref<1x1x32xf32, #tpu.memory_space<vmem>>, %arg13: memref<1x32x64xf32, #tpu.memory_space<vmem>>, %arg14: memref<1x1x64xf32, #tpu.memory_space<vmem>>, %arg15: memref<1x32x32xf32, #tpu.memory_space<vmem>>, %arg16: memref<1x1x32xf32, #tpu.memory_space<vmem>>, %arg17: memref<1x1x32xf32, #tpu.memory_space<vmem>>, %arg18: memref<1x1x32xf32, #tpu.memory_space<vmem>>, %arg19: memref<1x32x128xf32, #tpu.memory_space<vmem>>, %arg20: memref<1x1x128xf32, #tpu.memory_space<vmem>>, %arg21: memref<1x128x32xf32, #tpu.memory_space<vmem>>, %arg22: memref<1x1x32xf32, #tpu.memory_space<vmem>>, %arg23: memref<1x1x32xf32, #tpu.memory_space<vmem>>, %arg24: memref<1x1x32xf32, #tpu.memory_space<vmem>>, %arg25: memref<2x8x32xf32, #tpu.memory_space<vmem>>, %arg26: memref<2x8x32xf32, #tpu.memory_space<vmem>>) attributes {dimension_semantics = [#tpu.dimension_semantics<arbitrary>], iteration_bounds = array<i64: 2>, scalar_prefetch = 0 : i64, scratch_operands = 1 : i64, tpu.core_type = #tpu.core_type<tc>, window_params = [{pipeline_mode = #tpu.pipeline_mode<synchronous>, transform_indices = @transform_0, window_bounds = array<i64: 2, 8, 32>}, {pipeline_mode = #tpu.pipeline_mode<synchronous>, transform_indices = @transform_1, window_bounds = array<i64: 2, 8, 32>}, {transform_indices = @transform_2, window_bounds = array<i64: 1, 32, 32>}, {transform_indices = @transform_3, window_bounds = array<i64: 1, 1, 32>}, {transform_indices = @transform_4, window_bounds = array<i64: 1, 32, 64>}, {transform_indices = @transform_5, window_bounds = array<i64: 1, 1, 64>}, {transform_indices = @transform_6, window_bounds = array<i64: 1, 32, 32>}, {transform_indices = @transform_7, window_bounds = array<i64: 1, 1, 32>}, {transform_indices = @transform_8, window_bounds = array<i64: 1, 1, 32>}, {transform_indices = @transform_9, window_bounds = array<i64: 1, 1, 32>}, {transform_indices = @transform_10, window_bounds = array<i64: 1, 32, 32>}, {transform_indices = @transform_11, window_bounds = array<i64: 1, 1, 32>}, {transform_indices = @transform_12, window_bounds = array<i64: 1, 32, 64>}, {transform_indices = @transform_13, window_bounds = array<i64: 1, 1, 64>}, {transform_indices = @transform_14, window_bounds = array<i64: 1, 32, 32>}, {transform_indices = @transform_15, window_bounds = array<i64: 1, 1, 32>}, {transform_indices = @transform_16, window_bounds = array<i64: 1, 1, 32>}, {transform_indices = @transform_17, window_bounds = array<i64: 1, 1, 32>}, {transform_indices = @transform_18, window_bounds = array<i64: 1, 32, 128>}, {transform_indices = @transform_19, window_bounds = array<i64: 1, 1, 128>}, {transform_indices = @transform_20, window_bounds = array<i64: 1, 128, 32>}, {transform_indices = @transform_21, window_bounds = array<i64: 1, 1, 32>}, {transform_indices = @transform_22, window_bounds = array<i64: 1, 1, 32>}, {transform_indices = @transform_23, window_bounds = array<i64: 1, 1, 32>}, {pipeline_mode = #tpu.pipeline_mode<synchronous>, transform_indices = @transform_24, window_bounds = array<i64: 2, 8, 32>}]} {
    %c0_i32 = arith.constant 0 : i32
    %0 = arith.cmpi eq, %arg0, %c0_i32 : i32
    %1 = arith.extui %0 : i1 to i32
    %c0_i32_0 = arith.constant 0 : i32
    %2 = arith.cmpi ne, %1, %c0_i32_0 : i32
    scf.if %2 {
      %c0_145 = arith.constant 0 : index
      %c0_146 = arith.constant 0 : index
      %c0_147 = arith.constant 0 : index
      %329 = vector.load %arg1[%c0_145, %c0_146, %c0_147] : memref<2x8x32xf32, #tpu.memory_space<vmem>>, vector<2x8x32xf32>
      %c0_148 = arith.constant 0 : index
      %c0_149 = arith.constant 0 : index
      %c0_150 = arith.constant 0 : index
      %330 = vector.load %arg26[%c0_148, %c0_149, %c0_150] : memref<2x8x32xf32, #tpu.memory_space<vmem>>, vector<2x8x32xf32>
      tpu.vector_store %arg26[%c0_148, %c0_149, %c0_150], %329 {strides = array<i32>} : memref<2x8x32xf32, #tpu.memory_space<vmem>>, vector<2x8x32xf32>,
    } else {
    }
    %c0 = arith.constant 0 : index
    %c0_1 = arith.constant 0 : index
    %c0_2 = arith.constant 0 : index
    %3 = vector.load %arg26[%c0, %c0_1, %c0_2] : memref<2x8x32xf32, #tpu.memory_space<vmem>>, vector<2x8x32xf32>
    %c0_3 = arith.constant 0 : index
    %c0_4 = arith.constant 0 : index
    %c0_5 = arith.constant 0 : index
    %4 = vector.load %arg2[%c0_3, %c0_4, %c0_5] : memref<2x8x32xf32, #tpu.memory_space<vmem>>, vector<2x8x32xf32>
    %5 = vector.shape_cast %3 : vector<2x8x32xf32> to vector<16x32xf32>
    %c0_6 = arith.constant 0 : index
    %c0_7 = arith.constant 0 : index
    %c0_8 = arith.constant 0 : index
    %6 = vector.load %arg3[%c0_6, %c0_7, %c0_8] : memref<1x32x32xf32, #tpu.memory_space<vmem>>, vector<1x32x32xf32>
    %7 = vector.shape_cast %6 : vector<1x32x32xf32> to vector<32x32xf32>
    %c0_9 = arith.constant 0 : index
    %c0_10 = arith.constant 0 : index
    %c0_11 = arith.constant 0 : index
    %8 = vector.load %arg4[%c0_9, %c0_10, %c0_11] : memref<1x1x32xf32, #tpu.memory_space<vmem>>, vector<1x1x32xf32>
    %9 = vector.shape_cast %8 : vector<1x1x32xf32> to vector<1x32xf32>
    %c0_12 = arith.constant 0 : index
    %c0_13 = arith.constant 0 : index
    %c0_14 = arith.constant 0 : index
    %10 = vector.load %arg5[%c0_12, %c0_13, %c0_14] : memref<1x32x64xf32, #tpu.memory_space<vmem>>, vector<1x32x64xf32>
    %11 = vector.shape_cast %10 : vector<1x32x64xf32> to vector<32x64xf32>
    %c0_15 = arith.constant 0 : index
    %c0_16 = arith.constant 0 : index
    %c0_17 = arith.constant 0 : index
    %12 = vector.load %arg6[%c0_15, %c0_16, %c0_17] : memref<1x1x64xf32, #tpu.memory_space<vmem>>, vector<1x1x64xf32>
    %13 = vector.shape_cast %12 : vector<1x1x64xf32> to vector<1x64xf32>
    %c0_18 = arith.constant 0 : index
    %c0_19 = arith.constant 0 : index
    %c0_20 = arith.constant 0 : index
    %14 = vector.load %arg7[%c0_18, %c0_19, %c0_20] : memref<1x32x32xf32, #tpu.memory_space<vmem>>, vector<1x32x32xf32>
    %15 = vector.shape_cast %14 : vector<1x32x32xf32> to vector<32x32xf32>
    %c0_21 = arith.constant 0 : index
    %c0_22 = arith.constant 0 : index
    %c0_23 = arith.constant 0 : index
    %16 = vector.load %arg8[%c0_21, %c0_22, %c0_23] : memref<1x1x32xf32, #tpu.memory_space<vmem>>, vector<1x1x32xf32>
    %17 = vector.shape_cast %16 : vector<1x1x32xf32> to vector<1x32xf32>
    %18 = vector.shape_cast %3 : vector<2x8x32xf32> to vector<16x32xf32>
    %cst = arith.constant dense<0.000000e+00> : vector<16x32xf32>
    %19 = tpu.matmul %18, %7, %cst {dimension_numbers = #tpu.dot_dimension_numbers<[1], [0], [0], [1], [0, 0, 1, 1], [], []>} : vector<16x32xf32>, vector<32x32xf32>, vector<16x32xf32> -> vector<16x32xf32>
    %20 = vector.broadcast %9 : vector<1x32xf32> to vector<16x32xf32>
    %21 = arith.addf %19, %20 : vector<16x32xf32>
    %22 = vector.shape_cast %3 : vector<2x8x32xf32> to vector<16x32xf32>
    %cst_24 = arith.constant dense<0.000000e+00> : vector<16x64xf32>
    %23 = tpu.matmul %22, %11, %cst_24 {dimension_numbers = #tpu.dot_dimension_numbers<[1], [0], [0], [1], [0, 0, 1, 1], [], []>} : vector<16x32xf32>, vector<32x64xf32>, vector<16x64xf32> -> vector<16x64xf32>
    %24 = vector.broadcast %13 : vector<1x64xf32> to vector<16x64xf32>
    %25 = arith.addf %23, %24 : vector<16x64xf32>
    %26 = vector.shape_cast %21 : vector<16x32xf32> to vector<2x8x32xf32>
    %27 = vector.extract_strided_slice %25 {offsets = [0, 0], sizes = [16, 32], strides = [1, 1]} : vector<16x64xf32> to vector<16x32xf32>
    %28 = vector.shape_cast %27 : vector<16x32xf32> to vector<2x8x32xf32>
    %29 = vector.extract_strided_slice %25 {offsets = [0, 32], sizes = [16, 32], strides = [1, 1]} : vector<16x64xf32> to vector<16x32xf32>
    %30 = vector.shape_cast %29 : vector<16x32xf32> to vector<2x8x32xf32>
    %31 = vector.extract_strided_slice %26 {offsets = [0, 0, 0], sizes = [2, 8, 8], strides = [1, 1, 1]} : vector<2x8x32xf32> to vector<2x8x8xf32>
    %32 = vector.extract_strided_slice %28 {offsets = [0, 0, 0], sizes = [2, 8, 8], strides = [1, 1, 1]} : vector<2x8x32xf32> to vector<2x8x8xf32>
    "tpu.trace_start"() <{level = 10 : i32, message = "bqd,bkd->bqk"}> : () -> ()
    %cst_25 = arith.constant dense<0.000000e+00> : vector<2x8x8xf32>
    %33 = tpu.matmul %31, %32, %cst_25 {dimension_numbers = #tpu.dot_dimension_numbers<[2], [2], [1], [1], [0, 0, 0, 1, 1, 1], [0], [0]>} : vector<2x8x8xf32>, vector<2x8x8xf32>, vector<2x8x8xf32> -> vector<2x8x8xf32>
    "tpu.trace_stop"() : () -> ()
    %cst_26 = arith.constant 0.353553385 : f32
    %34 = vector.broadcast %cst_26 : f32 to vector<2x8x8xf32>
    %35 = arith.mulf %33, %34 : vector<2x8x8xf32>
    %cst_27 = arith.constant dense<0xFF800000> : vector<2x8xf32>
    %36 = vector.multi_reduction <maximumf>, %35, %cst_27 [2] : vector<2x8x8xf32> to vector<2x8xf32>
    %37 = vector.shape_cast %36 : vector<2x8xf32> to vector<2x8x1xf32>
    %38 = vector.broadcast %37 : vector<2x8x1xf32> to vector<2x8x8xf32>
    %39 = arith.subf %35, %38 : vector<2x8x8xf32>
    %40 = math.exp %39 : vector<2x8x8xf32>
    %cst_28 = arith.constant dense<0.000000e+00> : vector<2x8xf32>
    %41 = vector.multi_reduction <add>, %40, %cst_28 [2] : vector<2x8x8xf32> to vector<2x8xf32>
    %42 = vector.shape_cast %41 : vector<2x8xf32> to vector<2x8x1xf32>
    %43 = vector.extract_strided_slice %30 {offsets = [0, 0, 0], sizes = [2, 8, 8], strides = [1, 1, 1]} : vector<2x8x32xf32> to vector<2x8x8xf32>
    "tpu.trace_start"() <{level = 10 : i32, message = "bqk,bkd->bqd"}> : () -> ()
    %cst_29 = arith.constant dense<0.000000e+00> : vector<2x8x8xf32>
    %44 = tpu.matmul %40, %43, %cst_29 {dimension_numbers = #tpu.dot_dimension_numbers<[2], [1], [1], [2], [0, 0, 0, 1, 1, 2], [0], [0]>} : vector<2x8x8xf32>, vector<2x8x8xf32>, vector<2x8x8xf32> -> vector<2x8x8xf32>
    "tpu.trace_stop"() : () -> ()
    %45 = tpu.reciprocal %42 {approx = true} : vector<2x8x1xf32> -> vector<2x8x1xf32>
    %46 = vector.broadcast %45 : vector<2x8x1xf32> to vector<2x8x8xf32>
    %47 = arith.mulf %44, %46 : vector<2x8x8xf32>
    %48 = vector.shape_cast %47 : vector<2x8x8xf32> to vector<16x8xf32>
    %49 = vector.extract_strided_slice %15 {offsets = [0, 0], sizes = [8, 32], strides = [1, 1]} : vector<32x32xf32> to vector<8x32xf32>
    %cst_30 = arith.constant dense<0.000000e+00> : vector<16x32xf32>
    %50 = tpu.matmul %48, %49, %cst_30 {dimension_numbers = #tpu.dot_dimension_numbers<[1], [0], [0], [1], [0, 0, 1, 1], [], []>} : vector<16x8xf32>, vector<8x32xf32>, vector<16x32xf32> -> vector<16x32xf32>
    %51 = vector.extract_strided_slice %26 {offsets = [0, 0, 8], sizes = [2, 8, 8], strides = [1, 1, 1]} : vector<2x8x32xf32> to vector<2x8x8xf32>
    %52 = vector.extract_strided_slice %28 {offsets = [0, 0, 8], sizes = [2, 8, 8], strides = [1, 1, 1]} : vector<2x8x32xf32> to vector<2x8x8xf32>
    "tpu.trace_start"() <{level = 10 : i32, message = "bqd,bkd->bqk"}> : () -> ()
    %cst_31 = arith.constant dense<0.000000e+00> : vector<2x8x8xf32>
    %53 = tpu.matmul %51, %52, %cst_31 {dimension_numbers = #tpu.dot_dimension_numbers<[2], [2], [1], [1], [0, 0, 0, 1, 1, 1], [0], [0]>} : vector<2x8x8xf32>, vector<2x8x8xf32>, vector<2x8x8xf32> -> vector<2x8x8xf32>
    "tpu.trace_stop"() : () -> ()
    %cst_32 = arith.constant 0.353553385 : f32
    %54 = vector.broadcast %cst_32 : f32 to vector<2x8x8xf32>
    %55 = arith.mulf %53, %54 : vector<2x8x8xf32>
    %cst_33 = arith.constant dense<0xFF800000> : vector<2x8xf32>
    %56 = vector.multi_reduction <maximumf>, %55, %cst_33 [2] : vector<2x8x8xf32> to vector<2x8xf32>
    %57 = vector.shape_cast %56 : vector<2x8xf32> to vector<2x8x1xf32>
    %58 = vector.broadcast %57 : vector<2x8x1xf32> to vector<2x8x8xf32>
    %59 = arith.subf %55, %58 : vector<2x8x8xf32>
    %60 = math.exp %59 : vector<2x8x8xf32>
    %cst_34 = arith.constant dense<0.000000e+00> : vector<2x8xf32>
    %61 = vector.multi_reduction <add>, %60, %cst_34 [2] : vector<2x8x8xf32> to vector<2x8xf32>
    %62 = vector.shape_cast %61 : vector<2x8xf32> to vector<2x8x1xf32>
    %63 = vector.extract_strided_slice %30 {offsets = [0, 0, 8], sizes = [2, 8, 8], strides = [1, 1, 1]} : vector<2x8x32xf32> to vector<2x8x8xf32>
    "tpu.trace_start"() <{level = 10 : i32, message = "bqk,bkd->bqd"}> : () -> ()
    %cst_35 = arith.constant dense<0.000000e+00> : vector<2x8x8xf32>
    %64 = tpu.matmul %60, %63, %cst_35 {dimension_numbers = #tpu.dot_dimension_numbers<[2], [1], [1], [2], [0, 0, 0, 1, 1, 2], [0], [0]>} : vector<2x8x8xf32>, vector<2x8x8xf32>, vector<2x8x8xf32> -> vector<2x8x8xf32>
    "tpu.trace_stop"() : () -> ()
    %65 = tpu.reciprocal %62 {approx = true} : vector<2x8x1xf32> -> vector<2x8x1xf32>
    %66 = vector.broadcast %65 : vector<2x8x1xf32> to vector<2x8x8xf32>
    %67 = arith.mulf %64, %66 : vector<2x8x8xf32>
    %68 = vector.shape_cast %67 : vector<2x8x8xf32> to vector<16x8xf32>
    %69 = vector.extract_strided_slice %15 {offsets = [8, 0], sizes = [8, 32], strides = [1, 1]} : vector<32x32xf32> to vector<8x32xf32>
    %cst_36 = arith.constant dense<0.000000e+00> : vector<16x32xf32>
    %70 = tpu.matmul %68, %69, %cst_36 {dimension_numbers = #tpu.dot_dimension_numbers<[1], [0], [0], [1], [0, 0, 1, 1], [], []>} : vector<16x8xf32>, vector<8x32xf32>, vector<16x32xf32> -> vector<16x32xf32>
    %71 = arith.addf %50, %70 : vector<16x32xf32>
    %72 = vector.extract_strided_slice %26 {offsets = [0, 0, 16], sizes = [2, 8, 8], strides = [1, 1, 1]} : vector<2x8x32xf32> to vector<2x8x8xf32>
    %73 = vector.extract_strided_slice %28 {offsets = [0, 0, 16], sizes = [2, 8, 8], strides = [1, 1, 1]} : vector<2x8x32xf32> to vector<2x8x8xf32>
    "tpu.trace_start"() <{level = 10 : i32, message = "bqd,bkd->bqk"}> : () -> ()
    %cst_37 = arith.constant dense<0.000000e+00> : vector<2x8x8xf32>
    %74 = tpu.matmul %72, %73, %cst_37 {dimension_numbers = #tpu.dot_dimension_numbers<[2], [2], [1], [1], [0, 0, 0, 1, 1, 1], [0], [0]>} : vector<2x8x8xf32>, vector<2x8x8xf32>, vector<2x8x8xf32> -> vector<2x8x8xf32>
    "tpu.trace_stop"() : () -> ()
    %cst_38 = arith.constant 0.353553385 : f32
    %75 = vector.broadcast %cst_38 : f32 to vector<2x8x8xf32>
    %76 = arith.mulf %74, %75 : vector<2x8x8xf32>
    %cst_39 = arith.constant dense<0xFF800000> : vector<2x8xf32>
    %77 = vector.multi_reduction <maximumf>, %76, %cst_39 [2] : vector<2x8x8xf32> to vector<2x8xf32>
    %78 = vector.shape_cast %77 : vector<2x8xf32> to vector<2x8x1xf32>
    %79 = vector.broadcast %78 : vector<2x8x1xf32> to vector<2x8x8xf32>
    %80 = arith.subf %76, %79 : vector<2x8x8xf32>
    %81 = math.exp %80 : vector<2x8x8xf32>
    %cst_40 = arith.constant dense<0.000000e+00> : vector<2x8xf32>
    %82 = vector.multi_reduction <add>, %81, %cst_40 [2] : vector<2x8x8xf32> to vector<2x8xf32>
    %83 = vector.shape_cast %82 : vector<2x8xf32> to vector<2x8x1xf32>
    %84 = vector.extract_strided_slice %30 {offsets = [0, 0, 16], sizes = [2, 8, 8], strides = [1, 1, 1]} : vector<2x8x32xf32> to vector<2x8x8xf32>
    "tpu.trace_start"() <{level = 10 : i32, message = "bqk,bkd->bqd"}> : () -> ()
    %cst_41 = arith.constant dense<0.000000e+00> : vector<2x8x8xf32>
    %85 = tpu.matmul %81, %84, %cst_41 {dimension_numbers = #tpu.dot_dimension_numbers<[2], [1], [1], [2], [0, 0, 0, 1, 1, 2], [0], [0]>} : vector<2x8x8xf32>, vector<2x8x8xf32>, vector<2x8x8xf32> -> vector<2x8x8xf32>
    "tpu.trace_stop"() : () -> ()
    %86 = tpu.reciprocal %83 {approx = true} : vector<2x8x1xf32> -> vector<2x8x1xf32>
    %87 = vector.broadcast %86 : vector<2x8x1xf32> to vector<2x8x8xf32>
    %88 = arith.mulf %85, %87 : vector<2x8x8xf32>
    %89 = vector.shape_cast %88 : vector<2x8x8xf32> to vector<16x8xf32>
    %90 = vector.extract_strided_slice %15 {offsets = [16, 0], sizes = [8, 32], strides = [1, 1]} : vector<32x32xf32> to vector<8x32xf32>
    %cst_42 = arith.constant dense<0.000000e+00> : vector<16x32xf32>
    %91 = tpu.matmul %89, %90, %cst_42 {dimension_numbers = #tpu.dot_dimension_numbers<[1], [0], [0], [1], [0, 0, 1, 1], [], []>} : vector<16x8xf32>, vector<8x32xf32>, vector<16x32xf32> -> vector<16x32xf32>
    %92 = arith.addf %71, %91 : vector<16x32xf32>
    %93 = vector.extract_strided_slice %26 {offsets = [0, 0, 24], sizes = [2, 8, 8], strides = [1, 1, 1]} : vector<2x8x32xf32> to vector<2x8x8xf32>
    %94 = vector.extract_strided_slice %28 {offsets = [0, 0, 24], sizes = [2, 8, 8], strides = [1, 1, 1]} : vector<2x8x32xf32> to vector<2x8x8xf32>
    "tpu.trace_start"() <{level = 10 : i32, message = "bqd,bkd->bqk"}> : () -> ()
    %cst_43 = arith.constant dense<0.000000e+00> : vector<2x8x8xf32>
    %95 = tpu.matmul %93, %94, %cst_43 {dimension_numbers = #tpu.dot_dimension_numbers<[2], [2], [1], [1], [0, 0, 0, 1, 1, 1], [0], [0]>} : vector<2x8x8xf32>, vector<2x8x8xf32>, vector<2x8x8xf32> -> vector<2x8x8xf32>
    "tpu.trace_stop"() : () -> ()
    %cst_44 = arith.constant 0.353553385 : f32
    %96 = vector.broadcast %cst_44 : f32 to vector<2x8x8xf32>
    %97 = arith.mulf %95, %96 : vector<2x8x8xf32>
    %cst_45 = arith.constant dense<0xFF800000> : vector<2x8xf32>
    %98 = vector.multi_reduction <maximumf>, %97, %cst_45 [2] : vector<2x8x8xf32> to vector<2x8xf32>
    %99 = vector.shape_cast %98 : vector<2x8xf32> to vector<2x8x1xf32>
    %100 = vector.broadcast %99 : vector<2x8x1xf32> to vector<2x8x8xf32>
    %101 = arith.subf %97, %100 : vector<2x8x8xf32>
    %102 = math.exp %101 : vector<2x8x8xf32>
    %cst_46 = arith.constant dense<0.000000e+00> : vector<2x8xf32>
    %103 = vector.multi_reduction <add>, %102, %cst_46 [2] : vector<2x8x8xf32> to vector<2x8xf32>
    %104 = vector.shape_cast %103 : vector<2x8xf32> to vector<2x8x1xf32>
    %105 = vector.extract_strided_slice %30 {offsets = [0, 0, 24], sizes = [2, 8, 8], strides = [1, 1, 1]} : vector<2x8x32xf32> to vector<2x8x8xf32>
    "tpu.trace_start"() <{level = 10 : i32, message = "bqk,bkd->bqd"}> : () -> ()
    %cst_47 = arith.constant dense<0.000000e+00> : vector<2x8x8xf32>
    %106 = tpu.matmul %102, %105, %cst_47 {dimension_numbers = #tpu.dot_dimension_numbers<[2], [1], [1], [2], [0, 0, 0, 1, 1, 2], [0], [0]>} : vector<2x8x8xf32>, vector<2x8x8xf32>, vector<2x8x8xf32> -> vector<2x8x8xf32>
    "tpu.trace_stop"() : () -> ()
    %107 = tpu.reciprocal %104 {approx = true} : vector<2x8x1xf32> -> vector<2x8x1xf32>
    %108 = vector.broadcast %107 : vector<2x8x1xf32> to vector<2x8x8xf32>
    %109 = arith.mulf %106, %108 : vector<2x8x8xf32>
    %110 = vector.shape_cast %109 : vector<2x8x8xf32> to vector<16x8xf32>
    %111 = vector.extract_strided_slice %15 {offsets = [24, 0], sizes = [8, 32], strides = [1, 1]} : vector<32x32xf32> to vector<8x32xf32>
    %cst_48 = arith.constant dense<0.000000e+00> : vector<16x32xf32>
    %112 = tpu.matmul %110, %111, %cst_48 {dimension_numbers = #tpu.dot_dimension_numbers<[1], [0], [0], [1], [0, 0, 1, 1], [], []>} : vector<16x8xf32>, vector<8x32xf32>, vector<16x32xf32> -> vector<16x32xf32>
    %113 = arith.addf %92, %112 : vector<16x32xf32>
    %114 = vector.broadcast %17 : vector<1x32xf32> to vector<16x32xf32>
    %115 = arith.addf %113, %114 : vector<16x32xf32>
    %116 = arith.addf %5, %115 : vector<16x32xf32>
    %c0_49 = arith.constant 0 : index
    %c0_50 = arith.constant 0 : index
    %c0_51 = arith.constant 0 : index
    %117 = vector.load %arg9[%c0_49, %c0_50, %c0_51] : memref<1x1x32xf32, #tpu.memory_space<vmem>>, vector<1x1x32xf32>
    %118 = vector.shape_cast %117 : vector<1x1x32xf32> to vector<1x32xf32>
    %c0_52 = arith.constant 0 : index
    %c0_53 = arith.constant 0 : index
    %c0_54 = arith.constant 0 : index
    %119 = vector.load %arg10[%c0_52, %c0_53, %c0_54] : memref<1x1x32xf32, #tpu.memory_space<vmem>>, vector<1x1x32xf32>
    %120 = vector.shape_cast %119 : vector<1x1x32xf32> to vector<1x32xf32>
    %cst_55 = arith.constant dense<0.000000e+00> : vector<16xf32>
    %121 = vector.multi_reduction <add>, %116, %cst_55 [1] : vector<16x32xf32> to vector<16xf32>
    %122 = vector.shape_cast %121 : vector<16xf32> to vector<16x1xf32>
    %cst_56 = arith.constant 3.200000e+01 : f32
    %123 = vector.broadcast %cst_56 : f32 to vector<16x1xf32>
    %124 = arith.divf %122, %123 : vector<16x1xf32>
    %125 = vector.broadcast %124 : vector<16x1xf32> to vector<16x32xf32>
    %126 = arith.subf %116, %125 : vector<16x32xf32>
    %127 = arith.mulf %126, %126 : vector<16x32xf32>
    %cst_57 = arith.constant dense<0.000000e+00> : vector<16xf32>
    %128 = vector.multi_reduction <add>, %127, %cst_57 [1] : vector<16x32xf32> to vector<16xf32>
    %129 = vector.shape_cast %128 : vector<16xf32> to vector<16x1xf32>
    %cst_58 = arith.constant 3.200000e+01 : f32
    %130 = vector.broadcast %cst_58 : f32 to vector<16x1xf32>
    %131 = arith.divf %129, %130 : vector<16x1xf32>
    %132 = vector.broadcast %124 : vector<16x1xf32> to vector<16x32xf32>
    %133 = arith.subf %116, %132 : vector<16x32xf32>
    %cst_59 = arith.constant 9.99999974E-6 : f32
    %134 = vector.broadcast %cst_59 : f32 to vector<16x1xf32>
    %135 = arith.addf %131, %134 : vector<16x1xf32>
    %136 = math.rsqrt %135 : vector<16x1xf32>
    %137 = vector.broadcast %136 : vector<16x1xf32> to vector<16x32xf32>
    %138 = arith.mulf %133, %137 : vector<16x32xf32>
    %139 = vector.broadcast %118 : vector<1x32xf32> to vector<16x32xf32>
    %140 = arith.mulf %138, %139 : vector<16x32xf32>
    %141 = vector.broadcast %120 : vector<1x32xf32> to vector<16x32xf32>
    %142 = arith.addf %140, %141 : vector<16x32xf32>
    %143 = vector.shape_cast %142 : vector<16x32xf32> to vector<2x8x32xf32>
    %c0_60 = arith.constant 0 : index
    %c0_61 = arith.constant 0 : index
    %c0_62 = arith.constant 0 : index
    %144 = vector.load %arg11[%c0_60, %c0_61, %c0_62] : memref<1x32x32xf32, #tpu.memory_space<vmem>>, vector<1x32x32xf32>
    %145 = vector.shape_cast %144 : vector<1x32x32xf32> to vector<32x32xf32>
    %c0_63 = arith.constant 0 : index
    %c0_64 = arith.constant 0 : index
    %c0_65 = arith.constant 0 : index
    %146 = vector.load %arg12[%c0_63, %c0_64, %c0_65] : memref<1x1x32xf32, #tpu.memory_space<vmem>>, vector<1x1x32xf32>
    %147 = vector.shape_cast %146 : vector<1x1x32xf32> to vector<1x32xf32>
    %c0_66 = arith.constant 0 : index
    %c0_67 = arith.constant 0 : index
    %c0_68 = arith.constant 0 : index
    %148 = vector.load %arg13[%c0_66, %c0_67, %c0_68] : memref<1x32x64xf32, #tpu.memory_space<vmem>>, vector<1x32x64xf32>
    %149 = vector.shape_cast %148 : vector<1x32x64xf32> to vector<32x64xf32>
    %c0_69 = arith.constant 0 : index
    %c0_70 = arith.constant 0 : index
    %c0_71 = arith.constant 0 : index
    %150 = vector.load %arg14[%c0_69, %c0_70, %c0_71] : memref<1x1x64xf32, #tpu.memory_space<vmem>>, vector<1x1x64xf32>
    %151 = vector.shape_cast %150 : vector<1x1x64xf32> to vector<1x64xf32>
    %c0_72 = arith.constant 0 : index
    %c0_73 = arith.constant 0 : index
    %c0_74 = arith.constant 0 : index
    %152 = vector.load %arg15[%c0_72, %c0_73, %c0_74] : memref<1x32x32xf32, #tpu.memory_space<vmem>>, vector<1x32x32xf32>
    %153 = vector.shape_cast %152 : vector<1x32x32xf32> to vector<32x32xf32>
    %c0_75 = arith.constant 0 : index
    %c0_76 = arith.constant 0 : index
    %c0_77 = arith.constant 0 : index
    %154 = vector.load %arg16[%c0_75, %c0_76, %c0_77] : memref<1x1x32xf32, #tpu.memory_space<vmem>>, vector<1x1x32xf32>
    %155 = vector.shape_cast %154 : vector<1x1x32xf32> to vector<1x32xf32>
    %156 = vector.shape_cast %143 : vector<2x8x32xf32> to vector<16x32xf32>
    %cst_78 = arith.constant dense<0.000000e+00> : vector<16x32xf32>
    %157 = tpu.matmul %156, %145, %cst_78 {dimension_numbers = #tpu.dot_dimension_numbers<[1], [0], [0], [1], [0, 0, 1, 1], [], []>} : vector<16x32xf32>, vector<32x32xf32>, vector<16x32xf32> -> vector<16x32xf32>
    %158 = vector.broadcast %147 : vector<1x32xf32> to vector<16x32xf32>
    %159 = arith.addf %157, %158 : vector<16x32xf32>
    %160 = vector.shape_cast %4 : vector<2x8x32xf32> to vector<16x32xf32>
    %cst_79 = arith.constant dense<0.000000e+00> : vector<16x64xf32>
    %161 = tpu.matmul %160, %149, %cst_79 {dimension_numbers = #tpu.dot_dimension_numbers<[1], [0], [0], [1], [0, 0, 1, 1], [], []>} : vector<16x32xf32>, vector<32x64xf32>, vector<16x64xf32> -> vector<16x64xf32>
    %162 = vector.broadcast %151 : vector<1x64xf32> to vector<16x64xf32>
    %163 = arith.addf %161, %162 : vector<16x64xf32>
    %164 = vector.shape_cast %159 : vector<16x32xf32> to vector<2x8x32xf32>
    %165 = vector.extract_strided_slice %163 {offsets = [0, 0], sizes = [16, 32], strides = [1, 1]} : vector<16x64xf32> to vector<16x32xf32>
    %166 = vector.shape_cast %165 : vector<16x32xf32> to vector<2x8x32xf32>
    %167 = vector.extract_strided_slice %163 {offsets = [0, 32], sizes = [16, 32], strides = [1, 1]} : vector<16x64xf32> to vector<16x32xf32>
    %168 = vector.shape_cast %167 : vector<16x32xf32> to vector<2x8x32xf32>
    %169 = vector.extract_strided_slice %164 {offsets = [0, 0, 0], sizes = [2, 8, 8], strides = [1, 1, 1]} : vector<2x8x32xf32> to vector<2x8x8xf32>
    %170 = vector.extract_strided_slice %166 {offsets = [0, 0, 0], sizes = [2, 8, 8], strides = [1, 1, 1]} : vector<2x8x32xf32> to vector<2x8x8xf32>
    "tpu.trace_start"() <{level = 10 : i32, message = "bqd,bkd->bqk"}> : () -> ()
    %cst_80 = arith.constant dense<0.000000e+00> : vector<2x8x8xf32>
    %171 = tpu.matmul %169, %170, %cst_80 {dimension_numbers = #tpu.dot_dimension_numbers<[2], [2], [1], [1], [0, 0, 0, 1, 1, 1], [0], [0]>} : vector<2x8x8xf32>, vector<2x8x8xf32>, vector<2x8x8xf32> -> vector<2x8x8xf32>
    "tpu.trace_stop"() : () -> ()
    %cst_81 = arith.constant 0.353553385 : f32
    %172 = vector.broadcast %cst_81 : f32 to vector<2x8x8xf32>
    %173 = arith.mulf %171, %172 : vector<2x8x8xf32>
    %cst_82 = arith.constant dense<0xFF800000> : vector<2x8xf32>
    %174 = vector.multi_reduction <maximumf>, %173, %cst_82 [2] : vector<2x8x8xf32> to vector<2x8xf32>
    %175 = vector.shape_cast %174 : vector<2x8xf32> to vector<2x8x1xf32>
    %176 = vector.broadcast %175 : vector<2x8x1xf32> to vector<2x8x8xf32>
    %177 = arith.subf %173, %176 : vector<2x8x8xf32>
    %178 = math.exp %177 : vector<2x8x8xf32>
    %cst_83 = arith.constant dense<0.000000e+00> : vector<2x8xf32>
    %179 = vector.multi_reduction <add>, %178, %cst_83 [2] : vector<2x8x8xf32> to vector<2x8xf32>
    %180 = vector.shape_cast %179 : vector<2x8xf32> to vector<2x8x1xf32>
    %181 = vector.extract_strided_slice %168 {offsets = [0, 0, 0], sizes = [2, 8, 8], strides = [1, 1, 1]} : vector<2x8x32xf32> to vector<2x8x8xf32>
    "tpu.trace_start"() <{level = 10 : i32, message = "bqk,bkd->bqd"}> : () -> ()
    %cst_84 = arith.constant dense<0.000000e+00> : vector<2x8x8xf32>
    %182 = tpu.matmul %178, %181, %cst_84 {dimension_numbers = #tpu.dot_dimension_numbers<[2], [1], [1], [2], [0, 0, 0, 1, 1, 2], [0], [0]>} : vector<2x8x8xf32>, vector<2x8x8xf32>, vector<2x8x8xf32> -> vector<2x8x8xf32>
    "tpu.trace_stop"() : () -> ()
    %183 = tpu.reciprocal %180 {approx = true} : vector<2x8x1xf32> -> vector<2x8x1xf32>
    %184 = vector.broadcast %183 : vector<2x8x1xf32> to vector<2x8x8xf32>
    %185 = arith.mulf %182, %184 : vector<2x8x8xf32>
    %186 = vector.shape_cast %185 : vector<2x8x8xf32> to vector<16x8xf32>
    %187 = vector.extract_strided_slice %153 {offsets = [0, 0], sizes = [8, 32], strides = [1, 1]} : vector<32x32xf32> to vector<8x32xf32>
    %cst_85 = arith.constant dense<0.000000e+00> : vector<16x32xf32>
    %188 = tpu.matmul %186, %187, %cst_85 {dimension_numbers = #tpu.dot_dimension_numbers<[1], [0], [0], [1], [0, 0, 1, 1], [], []>} : vector<16x8xf32>, vector<8x32xf32>, vector<16x32xf32> -> vector<16x32xf32>
    %189 = vector.extract_strided_slice %164 {offsets = [0, 0, 8], sizes = [2, 8, 8], strides = [1, 1, 1]} : vector<2x8x32xf32> to vector<2x8x8xf32>
    %190 = vector.extract_strided_slice %166 {offsets = [0, 0, 8], sizes = [2, 8, 8], strides = [1, 1, 1]} : vector<2x8x32xf32> to vector<2x8x8xf32>
    "tpu.trace_start"() <{level = 10 : i32, message = "bqd,bkd->bqk"}> : () -> ()
    %cst_86 = arith.constant dense<0.000000e+00> : vector<2x8x8xf32>
    %191 = tpu.matmul %189, %190, %cst_86 {dimension_numbers = #tpu.dot_dimension_numbers<[2], [2], [1], [1], [0, 0, 0, 1, 1, 1], [0], [0]>} : vector<2x8x8xf32>, vector<2x8x8xf32>, vector<2x8x8xf32> -> vector<2x8x8xf32>
    "tpu.trace_stop"() : () -> ()
    %cst_87 = arith.constant 0.353553385 : f32
    %192 = vector.broadcast %cst_87 : f32 to vector<2x8x8xf32>
    %193 = arith.mulf %191, %192 : vector<2x8x8xf32>
    %cst_88 = arith.constant dense<0xFF800000> : vector<2x8xf32>
    %194 = vector.multi_reduction <maximumf>, %193, %cst_88 [2] : vector<2x8x8xf32> to vector<2x8xf32>
    %195 = vector.shape_cast %194 : vector<2x8xf32> to vector<2x8x1xf32>
    %196 = vector.broadcast %195 : vector<2x8x1xf32> to vector<2x8x8xf32>
    %197 = arith.subf %193, %196 : vector<2x8x8xf32>
    %198 = math.exp %197 : vector<2x8x8xf32>
    %cst_89 = arith.constant dense<0.000000e+00> : vector<2x8xf32>
    %199 = vector.multi_reduction <add>, %198, %cst_89 [2] : vector<2x8x8xf32> to vector<2x8xf32>
    %200 = vector.shape_cast %199 : vector<2x8xf32> to vector<2x8x1xf32>
    %201 = vector.extract_strided_slice %168 {offsets = [0, 0, 8], sizes = [2, 8, 8], strides = [1, 1, 1]} : vector<2x8x32xf32> to vector<2x8x8xf32>
    "tpu.trace_start"() <{level = 10 : i32, message = "bqk,bkd->bqd"}> : () -> ()
    %cst_90 = arith.constant dense<0.000000e+00> : vector<2x8x8xf32>
    %202 = tpu.matmul %198, %201, %cst_90 {dimension_numbers = #tpu.dot_dimension_numbers<[2], [1], [1], [2], [0, 0, 0, 1, 1, 2], [0], [0]>} : vector<2x8x8xf32>, vector<2x8x8xf32>, vector<2x8x8xf32> -> vector<2x8x8xf32>
    "tpu.trace_stop"() : () -> ()
    %203 = tpu.reciprocal %200 {approx = true} : vector<2x8x1xf32> -> vector<2x8x1xf32>
    %204 = vector.broadcast %203 : vector<2x8x1xf32> to vector<2x8x8xf32>
    %205 = arith.mulf %202, %204 : vector<2x8x8xf32>
    %206 = vector.shape_cast %205 : vector<2x8x8xf32> to vector<16x8xf32>
    %207 = vector.extract_strided_slice %153 {offsets = [8, 0], sizes = [8, 32], strides = [1, 1]} : vector<32x32xf32> to vector<8x32xf32>
    %cst_91 = arith.constant dense<0.000000e+00> : vector<16x32xf32>
    %208 = tpu.matmul %206, %207, %cst_91 {dimension_numbers = #tpu.dot_dimension_numbers<[1], [0], [0], [1], [0, 0, 1, 1], [], []>} : vector<16x8xf32>, vector<8x32xf32>, vector<16x32xf32> -> vector<16x32xf32>
    %209 = arith.addf %188, %208 : vector<16x32xf32>
    %210 = vector.extract_strided_slice %164 {offsets = [0, 0, 16], sizes = [2, 8, 8], strides = [1, 1, 1]} : vector<2x8x32xf32> to vector<2x8x8xf32>
    %211 = vector.extract_strided_slice %166 {offsets = [0, 0, 16], sizes = [2, 8, 8], strides = [1, 1, 1]} : vector<2x8x32xf32> to vector<2x8x8xf32>
    "tpu.trace_start"() <{level = 10 : i32, message = "bqd,bkd->bqk"}> : () -> ()
    %cst_92 = arith.constant dense<0.000000e+00> : vector<2x8x8xf32>
    %212 = tpu.matmul %210, %211, %cst_92 {dimension_numbers = #tpu.dot_dimension_numbers<[2], [2], [1], [1], [0, 0, 0, 1, 1, 1], [0], [0]>} : vector<2x8x8xf32>, vector<2x8x8xf32>, vector<2x8x8xf32> -> vector<2x8x8xf32>
    "tpu.trace_stop"() : () -> ()
    %cst_93 = arith.constant 0.353553385 : f32
    %213 = vector.broadcast %cst_93 : f32 to vector<2x8x8xf32>
    %214 = arith.mulf %212, %213 : vector<2x8x8xf32>
    %cst_94 = arith.constant dense<0xFF800000> : vector<2x8xf32>
    %215 = vector.multi_reduction <maximumf>, %214, %cst_94 [2] : vector<2x8x8xf32> to vector<2x8xf32>
    %216 = vector.shape_cast %215 : vector<2x8xf32> to vector<2x8x1xf32>
    %217 = vector.broadcast %216 : vector<2x8x1xf32> to vector<2x8x8xf32>
    %218 = arith.subf %214, %217 : vector<2x8x8xf32>
    %219 = math.exp %218 : vector<2x8x8xf32>
    %cst_95 = arith.constant dense<0.000000e+00> : vector<2x8xf32>
    %220 = vector.multi_reduction <add>, %219, %cst_95 [2] : vector<2x8x8xf32> to vector<2x8xf32>
    %221 = vector.shape_cast %220 : vector<2x8xf32> to vector<2x8x1xf32>
    %222 = vector.extract_strided_slice %168 {offsets = [0, 0, 16], sizes = [2, 8, 8], strides = [1, 1, 1]} : vector<2x8x32xf32> to vector<2x8x8xf32>
    "tpu.trace_start"() <{level = 10 : i32, message = "bqk,bkd->bqd"}> : () -> ()
    %cst_96 = arith.constant dense<0.000000e+00> : vector<2x8x8xf32>
    %223 = tpu.matmul %219, %222, %cst_96 {dimension_numbers = #tpu.dot_dimension_numbers<[2], [1], [1], [2], [0, 0, 0, 1, 1, 2], [0], [0]>} : vector<2x8x8xf32>, vector<2x8x8xf32>, vector<2x8x8xf32> -> vector<2x8x8xf32>
    "tpu.trace_stop"() : () -> ()
    %224 = tpu.reciprocal %221 {approx = true} : vector<2x8x1xf32> -> vector<2x8x1xf32>
    %225 = vector.broadcast %224 : vector<2x8x1xf32> to vector<2x8x8xf32>
    %226 = arith.mulf %223, %225 : vector<2x8x8xf32>
    %227 = vector.shape_cast %226 : vector<2x8x8xf32> to vector<16x8xf32>
    %228 = vector.extract_strided_slice %153 {offsets = [16, 0], sizes = [8, 32], strides = [1, 1]} : vector<32x32xf32> to vector<8x32xf32>
    %cst_97 = arith.constant dense<0.000000e+00> : vector<16x32xf32>
    %229 = tpu.matmul %227, %228, %cst_97 {dimension_numbers = #tpu.dot_dimension_numbers<[1], [0], [0], [1], [0, 0, 1, 1], [], []>} : vector<16x8xf32>, vector<8x32xf32>, vector<16x32xf32> -> vector<16x32xf32>
    %230 = arith.addf %209, %229 : vector<16x32xf32>
    %231 = vector.extract_strided_slice %164 {offsets = [0, 0, 24], sizes = [2, 8, 8], strides = [1, 1, 1]} : vector<2x8x32xf32> to vector<2x8x8xf32>
    %232 = vector.extract_strided_slice %166 {offsets = [0, 0, 24], sizes = [2, 8, 8], strides = [1, 1, 1]} : vector<2x8x32xf32> to vector<2x8x8xf32>
    "tpu.trace_start"() <{level = 10 : i32, message = "bqd,bkd->bqk"}> : () -> ()
    %cst_98 = arith.constant dense<0.000000e+00> : vector<2x8x8xf32>
    %233 = tpu.matmul %231, %232, %cst_98 {dimension_numbers = #tpu.dot_dimension_numbers<[2], [2], [1], [1], [0, 0, 0, 1, 1, 1], [0], [0]>} : vector<2x8x8xf32>, vector<2x8x8xf32>, vector<2x8x8xf32> -> vector<2x8x8xf32>
    "tpu.trace_stop"() : () -> ()
    %cst_99 = arith.constant 0.353553385 : f32
    %234 = vector.broadcast %cst_99 : f32 to vector<2x8x8xf32>
    %235 = arith.mulf %233, %234 : vector<2x8x8xf32>
    %cst_100 = arith.constant dense<0xFF800000> : vector<2x8xf32>
    %236 = vector.multi_reduction <maximumf>, %235, %cst_100 [2] : vector<2x8x8xf32> to vector<2x8xf32>
    %237 = vector.shape_cast %236 : vector<2x8xf32> to vector<2x8x1xf32>
    %238 = vector.broadcast %237 : vector<2x8x1xf32> to vector<2x8x8xf32>
    %239 = arith.subf %235, %238 : vector<2x8x8xf32>
    %240 = math.exp %239 : vector<2x8x8xf32>
    %cst_101 = arith.constant dense<0.000000e+00> : vector<2x8xf32>
    %241 = vector.multi_reduction <add>, %240, %cst_101 [2] : vector<2x8x8xf32> to vector<2x8xf32>
    %242 = vector.shape_cast %241 : vector<2x8xf32> to vector<2x8x1xf32>
    %243 = vector.extract_strided_slice %168 {offsets = [0, 0, 24], sizes = [2, 8, 8], strides = [1, 1, 1]} : vector<2x8x32xf32> to vector<2x8x8xf32>
    "tpu.trace_start"() <{level = 10 : i32, message = "bqk,bkd->bqd"}> : () -> ()
    %cst_102 = arith.constant dense<0.000000e+00> : vector<2x8x8xf32>
    %244 = tpu.matmul %240, %243, %cst_102 {dimension_numbers = #tpu.dot_dimension_numbers<[2], [1], [1], [2], [0, 0, 0, 1, 1, 2], [0], [0]>} : vector<2x8x8xf32>, vector<2x8x8xf32>, vector<2x8x8xf32> -> vector<2x8x8xf32>
    "tpu.trace_stop"() : () -> ()
    %245 = tpu.reciprocal %242 {approx = true} : vector<2x8x1xf32> -> vector<2x8x1xf32>
    %246 = vector.broadcast %245 : vector<2x8x1xf32> to vector<2x8x8xf32>
    %247 = arith.mulf %244, %246 : vector<2x8x8xf32>
    %248 = vector.shape_cast %247 : vector<2x8x8xf32> to vector<16x8xf32>
    %249 = vector.extract_strided_slice %153 {offsets = [24, 0], sizes = [8, 32], strides = [1, 1]} : vector<32x32xf32> to vector<8x32xf32>
    %cst_103 = arith.constant dense<0.000000e+00> : vector<16x32xf32>
    %250 = tpu.matmul %248, %249, %cst_103 {dimension_numbers = #tpu.dot_dimension_numbers<[1], [0], [0], [1], [0, 0, 1, 1], [], []>} : vector<16x8xf32>, vector<8x32xf32>, vector<16x32xf32> -> vector<16x32xf32>
    %251 = arith.addf %230, %250 : vector<16x32xf32>
    %252 = vector.broadcast %155 : vector<1x32xf32> to vector<16x32xf32>
    %253 = arith.addf %251, %252 : vector<16x32xf32>
    %254 = arith.addf %142, %253 : vector<16x32xf32>
    %c0_104 = arith.constant 0 : index
    %c0_105 = arith.constant 0 : index
    %c0_106 = arith.constant 0 : index
    %255 = vector.load %arg17[%c0_104, %c0_105, %c0_106] : memref<1x1x32xf32, #tpu.memory_space<vmem>>, vector<1x1x32xf32>
    %256 = vector.shape_cast %255 : vector<1x1x32xf32> to vector<1x32xf32>
    %c0_107 = arith.constant 0 : index
    %c0_108 = arith.constant 0 : index
    %c0_109 = arith.constant 0 : index
    %257 = vector.load %arg18[%c0_107, %c0_108, %c0_109] : memref<1x1x32xf32, #tpu.memory_space<vmem>>, vector<1x1x32xf32>
    %258 = vector.shape_cast %257 : vector<1x1x32xf32> to vector<1x32xf32>
    %cst_110 = arith.constant dense<0.000000e+00> : vector<16xf32>
    %259 = vector.multi_reduction <add>, %254, %cst_110 [1] : vector<16x32xf32> to vector<16xf32>
    %260 = vector.shape_cast %259 : vector<16xf32> to vector<16x1xf32>
    %cst_111 = arith.constant 3.200000e+01 : f32
    %261 = vector.broadcast %cst_111 : f32 to vector<16x1xf32>
    %262 = arith.divf %260, %261 : vector<16x1xf32>
    %263 = vector.broadcast %262 : vector<16x1xf32> to vector<16x32xf32>
    %264 = arith.subf %254, %263 : vector<16x32xf32>
    %265 = arith.mulf %264, %264 : vector<16x32xf32>
    %cst_112 = arith.constant dense<0.000000e+00> : vector<16xf32>
    %266 = vector.multi_reduction <add>, %265, %cst_112 [1] : vector<16x32xf32> to vector<16xf32>
    %267 = vector.shape_cast %266 : vector<16xf32> to vector<16x1xf32>
    %cst_113 = arith.constant 3.200000e+01 : f32
    %268 = vector.broadcast %cst_113 : f32 to vector<16x1xf32>
    %269 = arith.divf %267, %268 : vector<16x1xf32>
    %270 = vector.broadcast %262 : vector<16x1xf32> to vector<16x32xf32>
    %271 = arith.subf %254, %270 : vector<16x32xf32>
    %cst_114 = arith.constant 9.99999974E-6 : f32
    %272 = vector.broadcast %cst_114 : f32 to vector<16x1xf32>
    %273 = arith.addf %269, %272 : vector<16x1xf32>
    %274 = math.rsqrt %273 : vector<16x1xf32>
    %275 = vector.broadcast %274 : vector<16x1xf32> to vector<16x32xf32>
    %276 = arith.mulf %271, %275 : vector<16x32xf32>
    %277 = vector.broadcast %256 : vector<1x32xf32> to vector<16x32xf32>
    %278 = arith.mulf %276, %277 : vector<16x32xf32>
    %279 = vector.broadcast %258 : vector<1x32xf32> to vector<16x32xf32>
    %280 = arith.addf %278, %279 : vector<16x32xf32>
    %c0_115 = arith.constant 0 : index
    %c0_116 = arith.constant 0 : index
    %c0_117 = arith.constant 0 : index
    %281 = vector.load %arg19[%c0_115, %c0_116, %c0_117] : memref<1x32x128xf32, #tpu.memory_space<vmem>>, vector<1x32x128xf32>
    %282 = vector.shape_cast %281 : vector<1x32x128xf32> to vector<32x128xf32>
    %c0_118 = arith.constant 0 : index
    %c0_119 = arith.constant 0 : index
    %c0_120 = arith.constant 0 : index
    %283 = vector.load %arg20[%c0_118, %c0_119, %c0_120] : memref<1x1x128xf32, #tpu.memory_space<vmem>>, vector<1x1x128xf32>
    %284 = vector.shape_cast %283 : vector<1x1x128xf32> to vector<1x128xf32>
    %c0_121 = arith.constant 0 : index
    %c0_122 = arith.constant 0 : index
    %c0_123 = arith.constant 0 : index
    %285 = vector.load %arg21[%c0_121, %c0_122, %c0_123] : memref<1x128x32xf32, #tpu.memory_space<vmem>>, vector<1x128x32xf32>
    %286 = vector.shape_cast %285 : vector<1x128x32xf32> to vector<128x32xf32>
    %c0_124 = arith.constant 0 : index
    %c0_125 = arith.constant 0 : index
    %c0_126 = arith.constant 0 : index
    %287 = vector.load %arg22[%c0_124, %c0_125, %c0_126] : memref<1x1x32xf32, #tpu.memory_space<vmem>>, vector<1x1x32xf32>
    %288 = vector.shape_cast %287 : vector<1x1x32xf32> to vector<1x32xf32>
    %cst_127 = arith.constant dense<0.000000e+00> : vector<16x128xf32>
    %289 = tpu.matmul %280, %282, %cst_127 {dimension_numbers = #tpu.dot_dimension_numbers<[1], [0], [0], [1], [0, 0, 1, 1], [], []>} : vector<16x32xf32>, vector<32x128xf32>, vector<16x128xf32> -> vector<16x128xf32>
    %290 = vector.broadcast %284 : vector<1x128xf32> to vector<16x128xf32>
    %291 = arith.addf %289, %290 : vector<16x128xf32>
    %cst_128 = arith.constant 0.000000e+00 : f32
    %292 = vector.broadcast %cst_128 : f32 to vector<16x128xf32>
    %293 = arith.maximumf %291, %292 : vector<16x128xf32>
    %cst_129 = arith.constant dense<0.000000e+00> : vector<16x32xf32>
    %294 = tpu.matmul %293, %286, %cst_129 {dimension_numbers = #tpu.dot_dimension_numbers<[1], [0], [0], [1], [0, 0, 1, 1], [], []>} : vector<16x128xf32>, vector<128x32xf32>, vector<16x32xf32> -> vector<16x32xf32>
    %295 = vector.broadcast %288 : vector<1x32xf32> to vector<16x32xf32>
    %296 = arith.addf %294, %295 : vector<16x32xf32>
    %297 = arith.addf %280, %296 : vector<16x32xf32>
    %c0_130 = arith.constant 0 : index
    %c0_131 = arith.constant 0 : index
    %c0_132 = arith.constant 0 : index
    %298 = vector.load %arg23[%c0_130, %c0_131, %c0_132] : memref<1x1x32xf32, #tpu.memory_space<vmem>>, vector<1x1x32xf32>
    %299 = vector.shape_cast %298 : vector<1x1x32xf32> to vector<1x32xf32>
    %c0_133 = arith.constant 0 : index
    %c0_134 = arith.constant 0 : index
    %c0_135 = arith.constant 0 : index
    %300 = vector.load %arg24[%c0_133, %c0_134, %c0_135] : memref<1x1x32xf32, #tpu.memory_space<vmem>>, vector<1x1x32xf32>
    %301 = vector.shape_cast %300 : vector<1x1x32xf32> to vector<1x32xf32>
    %cst_136 = arith.constant dense<0.000000e+00> : vector<16xf32>
    %302 = vector.multi_reduction <add>, %297, %cst_136 [1] : vector<16x32xf32> to vector<16xf32>
    %303 = vector.shape_cast %302 : vector<16xf32> to vector<16x1xf32>
    %cst_137 = arith.constant 3.200000e+01 : f32
    %304 = vector.broadcast %cst_137 : f32 to vector<16x1xf32>
    %305 = arith.divf %303, %304 : vector<16x1xf32>
    %306 = vector.broadcast %305 : vector<16x1xf32> to vector<16x32xf32>
    %307 = arith.subf %297, %306 : vector<16x32xf32>
    %308 = arith.mulf %307, %307 : vector<16x32xf32>
    %cst_138 = arith.constant dense<0.000000e+00> : vector<16xf32>
    %309 = vector.multi_reduction <add>, %308, %cst_138 [1] : vector<16x32xf32> to vector<16xf32>
    %310 = vector.shape_cast %309 : vector<16xf32> to vector<16x1xf32>
    %cst_139 = arith.constant 3.200000e+01 : f32
    %311 = vector.broadcast %cst_139 : f32 to vector<16x1xf32>
    %312 = arith.divf %310, %311 : vector<16x1xf32>
    %313 = vector.broadcast %305 : vector<16x1xf32> to vector<16x32xf32>
    %314 = arith.subf %297, %313 : vector<16x32xf32>
    %cst_140 = arith.constant 9.99999974E-6 : f32
    %315 = vector.broadcast %cst_140 : f32 to vector<16x1xf32>
    %316 = arith.addf %312, %315 : vector<16x1xf32>
    %317 = math.rsqrt %316 : vector<16x1xf32>
    %318 = vector.broadcast %317 : vector<16x1xf32> to vector<16x32xf32>
    %319 = arith.mulf %314, %318 : vector<16x32xf32>
    %320 = vector.broadcast %299 : vector<1x32xf32> to vector<16x32xf32>
    %321 = arith.mulf %319, %320 : vector<16x32xf32>
    %322 = vector.broadcast %301 : vector<1x32xf32> to vector<16x32xf32>
    %323 = arith.addf %321, %322 : vector<16x32xf32>
    %324 = vector.shape_cast %323 : vector<16x32xf32> to vector<2x8x32xf32>
    %c0_141 = arith.constant 0 : index
    %c0_142 = arith.constant 0 : index
    %c0_143 = arith.constant 0 : index
    %325 = vector.load %arg26[%c0_141, %c0_142, %c0_143] : memref<2x8x32xf32, #tpu.memory_space<vmem>>, vector<2x8x32xf32>
    tpu.vector_store %arg26[%c0_141, %c0_142, %c0_143], %324 {strides = array<i32>} : memref<2x8x32xf32, #tpu.memory_space<vmem>>, vector<2x8x32xf32>,
    %c1_i32 = arith.constant 1 : i32
    %326 = arith.cmpi eq, %arg0, %c1_i32 : i32
    %327 = arith.extui %326 : i1 to i32
    %c0_i32_144 = arith.constant 0 : i32
    %328 = arith.cmpi ne, %327, %c0_i32_144 : i32
    scf.if %328 {
      %c0_145 = arith.constant 0 : index
      %c0_146 = arith.constant 0 : index
      %c0_147 = arith.constant 0 : index
      %329 = vector.load %arg26[%c0_145, %c0_146, %c0_147] : memref<2x8x32xf32, #tpu.memory_space<vmem>>, vector<2x8x32xf32>
      %c0_148 = arith.constant 0 : index
      %c0_149 = arith.constant 0 : index
      %c0_150 = arith.constant 0 : index
      %330 = vector.load %arg25[%c0_148, %c0_149, %c0_150] : memref<2x8x32xf32, #tpu.memory_space<vmem>>, vector<2x8x32xf32>
      tpu.vector_store %arg25[%c0_148, %c0_149, %c0_150], %329 {strides = array<i32>} : memref<2x8x32xf32, #tpu.memory_space<vmem>>, vector<2x8x32xf32>,
    } else {
    }
    return
  }
  func.func @transform_0(%arg0: i32) -> (i32, i32, i32) {
    %c0_i32 = arith.constant 0 : i32
    %c0_i32_0 = arith.constant 0 : i32
    %c0_i32_1 = arith.constant 0 : i32
    %c0_i32_2 = arith.constant 0 : i32
    return %c0_i32, %c0_i32_0, %c0_i32_1 : i32, i32, i32
  }
  func.func @transform_1(%arg0: i32) -> (i32, i32, i32) {
    %c0_i32 = arith.constant 0 : i32
    %c0_i32_0 = arith.constant 0 : i32
    %c0_i32_1 = arith.constant 0 : i32
    %c0_i32_2 = arith.constant 0 : i32
    return %c0_i32, %c0_i32_0, %c0_i32_1 : i32, i32, i32
  }
  func.func @transform_2(%arg0: i32) -> (i32, i32, i32) {
    %c0_i32 = arith.constant 0 : i32
    %c0_i32_0 = arith.constant 0 : i32
    %c0_i32_1 = arith.constant 0 : i32
    return %arg0, %c0_i32, %c0_i32_0 : i32, i32, i32
  }
  func.func @transform_3(%arg0: i32) -> (i32, i32, i32) {
    %c0_i32 = arith.constant 0 : i32
    %c0_i32_0 = arith.constant 0 : i32
    %c0_i32_1 = arith.constant 0 : i32
    return %arg0, %c0_i32, %c0_i32_0 : i32, i32, i32
  }
  func.func @transform_4(%arg0: i32) -> (i32, i32, i32) {
    %c0_i32 = arith.constant 0 : i32
    %c0_i32_0 = arith.constant 0 : i32
    %c0_i32_1 = arith.constant 0 : i32
    return %arg0, %c0_i32, %c0_i32_0 : i32, i32, i32
  }
  func.func @transform_5(%arg0: i32) -> (i32, i32, i32) {
    %c0_i32 = arith.constant 0 : i32
    %c0_i32_0 = arith.constant 0 : i32
    %c0_i32_1 = arith.constant 0 : i32
    return %arg0, %c0_i32, %c0_i32_0 : i32, i32, i32
  }
  func.func @transform_6(%arg0: i32) -> (i32, i32, i32) {
    %c0_i32 = arith.constant 0 : i32
    %c0_i32_0 = arith.constant 0 : i32
    %c0_i32_1 = arith.constant 0 : i32
    return %arg0, %c0_i32, %c0_i32_0 : i32, i32, i32
  }
  func.func @transform_7(%arg0: i32) -> (i32, i32, i32) {
    %c0_i32 = arith.constant 0 : i32
    %c0_i32_0 = arith.constant 0 : i32
    %c0_i32_1 = arith.constant 0 : i32
    return %arg0, %c0_i32, %c0_i32_0 : i32, i32, i32
  }
  func.func @transform_8(%arg0: i32) -> (i32, i32, i32) {
    %c0_i32 = arith.constant 0 : i32
    %c0_i32_0 = arith.constant 0 : i32
    %c0_i32_1 = arith.constant 0 : i32
    return %arg0, %c0_i32, %c0_i32_0 : i32, i32, i32
  }
  func.func @transform_9(%arg0: i32) -> (i32, i32, i32) {
    %c0_i32 = arith.constant 0 : i32
    %c0_i32_0 = arith.constant 0 : i32
    %c0_i32_1 = arith.constant 0 : i32
    return %arg0, %c0_i32, %c0_i32_0 : i32, i32, i32
  }
  func.func @transform_10(%arg0: i32) -> (i32, i32, i32) {
    %c0_i32 = arith.constant 0 : i32
    %c0_i32_0 = arith.constant 0 : i32
    %c0_i32_1 = arith.constant 0 : i32
    return %arg0, %c0_i32, %c0_i32_0 : i32, i32, i32
  }
  func.func @transform_11(%arg0: i32) -> (i32, i32, i32) {
    %c0_i32 = arith.constant 0 : i32
    %c0_i32_0 = arith.constant 0 : i32
    %c0_i32_1 = arith.constant 0 : i32
    return %arg0, %c0_i32, %c0_i32_0 : i32, i32, i32
  }
  func.func @transform_12(%arg0: i32) -> (i32, i32, i32) {
    %c0_i32 = arith.constant 0 : i32
    %c0_i32_0 = arith.constant 0 : i32
    %c0_i32_1 = arith.constant 0 : i32
    return %arg0, %c0_i32, %c0_i32_0 : i32, i32, i32
  }
  func.func @transform_13(%arg0: i32) -> (i32, i32, i32) {
    %c0_i32 = arith.constant 0 : i32
    %c0_i32_0 = arith.constant 0 : i32
    %c0_i32_1 = arith.constant 0 : i32
    return %arg0, %c0_i32, %c0_i32_0 : i32, i32, i32
  }
  func.func @transform_14(%arg0: i32) -> (i32, i32, i32) {
    %c0_i32 = arith.constant 0 : i32
    %c0_i32_0 = arith.constant 0 : i32
    %c0_i32_1 = arith.constant 0 : i32
    return %arg0, %c0_i32, %c0_i32_0 : i32, i32, i32
  }
  func.func @transform_15(%arg0: i32) -> (i32, i32, i32) {
    %c0_i32 = arith.constant 0 : i32
    %c0_i32_0 = arith.constant 0 : i32
    %c0_i32_1 = arith.constant 0 : i32
    return %arg0, %c0_i32, %c0_i32_0 : i32, i32, i32
  }
  func.func @transform_16(%arg0: i32) -> (i32, i32, i32) {
    %c0_i32 = arith.constant 0 : i32
    %c0_i32_0 = arith.constant 0 : i32
    %c0_i32_1 = arith.constant 0 : i32
    return %arg0, %c0_i32, %c0_i32_0 : i32, i32, i32
  }
  func.func @transform_17(%arg0: i32) -> (i32, i32, i32) {
    %c0_i32 = arith.constant 0 : i32
    %c0_i32_0 = arith.constant 0 : i32
    %c0_i32_1 = arith.constant 0 : i32
    return %arg0, %c0_i32, %c0_i32_0 : i32, i32, i32
  }
  func.func @transform_18(%arg0: i32) -> (i32, i32, i32) {
    %c0_i32 = arith.constant 0 : i32
    %c0_i32_0 = arith.constant 0 : i32
    %c0_i32_1 = arith.constant 0 : i32
    return %arg0, %c0_i32, %c0_i32_0 : i32, i32, i32
  }
  func.func @transform_19(%arg0: i32) -> (i32, i32, i32) {
    %c0_i32 = arith.constant 0 : i32
    %c0_i32_0 = arith.constant 0 : i32
    %c0_i32_1 = arith.constant 0 : i32
    return %arg0, %c0_i32, %c0_i32_0 : i32, i32, i32
  }
  func.func @transform_20(%arg0: i32) -> (i32, i32, i32) {
    %c0_i32 = arith.constant 0 : i32
    %c0_i32_0 = arith.constant 0 : i32
    %c0_i32_1 = arith.constant 0 : i32
    return %arg0, %c0_i32, %c0_i32_0 : i32, i32, i32
  }
  func.func @transform_21(%arg0: i32) -> (i32, i32, i32) {
    %c0_i32 = arith.constant 0 : i32
    %c0_i32_0 = arith.constant 0 : i32
    %c0_i32_1 = arith.constant 0 : i32
    return %arg0, %c0_i32, %c0_i32_0 : i32, i32, i32
  }
  func.func @transform_22(%arg0: i32) -> (i32, i32, i32) {
    %c0_i32 = arith.constant 0 : i32
    %c0_i32_0 = arith.constant 0 : i32
    %c0_i32_1 = arith.constant 0 : i32
    return %arg0, %c0_i32, %c0_i32_0 : i32, i32, i32
  }
  func.func @transform_23(%arg0: i32) -> (i32, i32, i32) {
    %c0_i32 = arith.constant 0 : i32
    %c0_i32_0 = arith.constant 0 : i32
    %c0_i32_1 = arith.constant 0 : i32
    return %arg0, %c0_i32, %c0_i32_0 : i32, i32, i32
  }
  func.func @transform_24(%arg0: i32) -> (i32, i32, i32) {
    %c0_i32 = arith.constant 0 : i32
    %c0_i32_0 = arith.constant 0 : i32
    %c0_i32_1 = arith.constant 0 : i32
    %c0_i32_2 = arith.constant 0 : i32
    return %c0_i32, %c0_i32_0, %c0_i32_1 : i32, i32, i32
  }
}

module attributes {stable_mosaic.version = 11 : i64} {
  func.func @_encoder_stack_kernel(%arg0: i32, %arg1: memref<2x8x32xf32, #tpu.memory_space<vmem>>, %arg2: memref<1x32x32xf32, #tpu.memory_space<vmem>>, %arg3: memref<1x1x32xf32, #tpu.memory_space<vmem>>, %arg4: memref<1x32x64xf32, #tpu.memory_space<vmem>>, %arg5: memref<1x1x64xf32, #tpu.memory_space<vmem>>, %arg6: memref<1x32x32xf32, #tpu.memory_space<vmem>>, %arg7: memref<1x1x32xf32, #tpu.memory_space<vmem>>, %arg8: memref<1x1x32xf32, #tpu.memory_space<vmem>>, %arg9: memref<1x1x32xf32, #tpu.memory_space<vmem>>, %arg10: memref<1x32x128xf32, #tpu.memory_space<vmem>>, %arg11: memref<1x1x128xf32, #tpu.memory_space<vmem>>, %arg12: memref<1x128x32xf32, #tpu.memory_space<vmem>>, %arg13: memref<1x1x32xf32, #tpu.memory_space<vmem>>, %arg14: memref<1x1x32xf32, #tpu.memory_space<vmem>>, %arg15: memref<1x1x32xf32, #tpu.memory_space<vmem>>, %arg16: memref<2x8x32xf32, #tpu.memory_space<vmem>>, %arg17: memref<2x8x32xf32, #tpu.memory_space<vmem>>) attributes {dimension_semantics = [#tpu.dimension_semantics<arbitrary>], iteration_bounds = array<i64: 2>, scalar_prefetch = 0 : i64, scratch_operands = 1 : i64, tpu.core_type = #tpu.core_type<tc>, window_params = [{pipeline_mode = #tpu.pipeline_mode<synchronous>, transform_indices = @transform_0, window_bounds = array<i64: 2, 8, 32>}, {transform_indices = @transform_1, window_bounds = array<i64: 1, 32, 32>}, {transform_indices = @transform_2, window_bounds = array<i64: 1, 1, 32>}, {transform_indices = @transform_3, window_bounds = array<i64: 1, 32, 64>}, {transform_indices = @transform_4, window_bounds = array<i64: 1, 1, 64>}, {transform_indices = @transform_5, window_bounds = array<i64: 1, 32, 32>}, {transform_indices = @transform_6, window_bounds = array<i64: 1, 1, 32>}, {transform_indices = @transform_7, window_bounds = array<i64: 1, 1, 32>}, {transform_indices = @transform_8, window_bounds = array<i64: 1, 1, 32>}, {transform_indices = @transform_9, window_bounds = array<i64: 1, 32, 128>}, {transform_indices = @transform_10, window_bounds = array<i64: 1, 1, 128>}, {transform_indices = @transform_11, window_bounds = array<i64: 1, 128, 32>}, {transform_indices = @transform_12, window_bounds = array<i64: 1, 1, 32>}, {transform_indices = @transform_13, window_bounds = array<i64: 1, 1, 32>}, {transform_indices = @transform_14, window_bounds = array<i64: 1, 1, 32>}, {pipeline_mode = #tpu.pipeline_mode<synchronous>, transform_indices = @transform_15, window_bounds = array<i64: 2, 8, 32>}]} {
    %c0_i32 = arith.constant 0 : i32
    %0 = arith.cmpi eq, %arg0, %c0_i32 : i32
    %1 = arith.extui %0 : i1 to i32
    %c0_i32_0 = arith.constant 0 : i32
    %2 = arith.cmpi ne, %1, %c0_i32_0 : i32
    scf.if %2 {
      %c0_87 = arith.constant 0 : index
      %c0_88 = arith.constant 0 : index
      %c0_89 = arith.constant 0 : index
      %190 = vector.load %arg1[%c0_87, %c0_88, %c0_89] : memref<2x8x32xf32, #tpu.memory_space<vmem>>, vector<2x8x32xf32>
      %c0_90 = arith.constant 0 : index
      %c0_91 = arith.constant 0 : index
      %c0_92 = arith.constant 0 : index
      %191 = vector.load %arg17[%c0_90, %c0_91, %c0_92] : memref<2x8x32xf32, #tpu.memory_space<vmem>>, vector<2x8x32xf32>
      tpu.vector_store %arg17[%c0_90, %c0_91, %c0_92], %190 {strides = array<i32>} : memref<2x8x32xf32, #tpu.memory_space<vmem>>, vector<2x8x32xf32>,
    } else {
    }
    %c0 = arith.constant 0 : index
    %c0_1 = arith.constant 0 : index
    %c0_2 = arith.constant 0 : index
    %3 = vector.load %arg17[%c0, %c0_1, %c0_2] : memref<2x8x32xf32, #tpu.memory_space<vmem>>, vector<2x8x32xf32>
    %4 = vector.shape_cast %3 : vector<2x8x32xf32> to vector<16x32xf32>
    %c0_3 = arith.constant 0 : index
    %c0_4 = arith.constant 0 : index
    %c0_5 = arith.constant 0 : index
    %5 = vector.load %arg2[%c0_3, %c0_4, %c0_5] : memref<1x32x32xf32, #tpu.memory_space<vmem>>, vector<1x32x32xf32>
    %6 = vector.shape_cast %5 : vector<1x32x32xf32> to vector<32x32xf32>
    %c0_6 = arith.constant 0 : index
    %c0_7 = arith.constant 0 : index
    %c0_8 = arith.constant 0 : index
    %7 = vector.load %arg3[%c0_6, %c0_7, %c0_8] : memref<1x1x32xf32, #tpu.memory_space<vmem>>, vector<1x1x32xf32>
    %8 = vector.shape_cast %7 : vector<1x1x32xf32> to vector<1x32xf32>
    %c0_9 = arith.constant 0 : index
    %c0_10 = arith.constant 0 : index
    %c0_11 = arith.constant 0 : index
    %9 = vector.load %arg4[%c0_9, %c0_10, %c0_11] : memref<1x32x64xf32, #tpu.memory_space<vmem>>, vector<1x32x64xf32>
    %10 = vector.shape_cast %9 : vector<1x32x64xf32> to vector<32x64xf32>
    %c0_12 = arith.constant 0 : index
    %c0_13 = arith.constant 0 : index
    %c0_14 = arith.constant 0 : index
    %11 = vector.load %arg5[%c0_12, %c0_13, %c0_14] : memref<1x1x64xf32, #tpu.memory_space<vmem>>, vector<1x1x64xf32>
    %12 = vector.shape_cast %11 : vector<1x1x64xf32> to vector<1x64xf32>
    %c0_15 = arith.constant 0 : index
    %c0_16 = arith.constant 0 : index
    %c0_17 = arith.constant 0 : index
    %13 = vector.load %arg6[%c0_15, %c0_16, %c0_17] : memref<1x32x32xf32, #tpu.memory_space<vmem>>, vector<1x32x32xf32>
    %14 = vector.shape_cast %13 : vector<1x32x32xf32> to vector<32x32xf32>
    %c0_18 = arith.constant 0 : index
    %c0_19 = arith.constant 0 : index
    %c0_20 = arith.constant 0 : index
    %15 = vector.load %arg7[%c0_18, %c0_19, %c0_20] : memref<1x1x32xf32, #tpu.memory_space<vmem>>, vector<1x1x32xf32>
    %16 = vector.shape_cast %15 : vector<1x1x32xf32> to vector<1x32xf32>
    %17 = vector.shape_cast %3 : vector<2x8x32xf32> to vector<16x32xf32>
    %cst = arith.constant dense<0.000000e+00> : vector<16x32xf32>
    %18 = tpu.matmul %17, %6, %cst {dimension_numbers = #tpu.dot_dimension_numbers<[1], [0], [0], [1], [0, 0, 1, 1], [], []>} : vector<16x32xf32>, vector<32x32xf32>, vector<16x32xf32> -> vector<16x32xf32>
    %19 = vector.broadcast %8 : vector<1x32xf32> to vector<16x32xf32>
    %20 = arith.addf %18, %19 : vector<16x32xf32>
    %21 = vector.shape_cast %3 : vector<2x8x32xf32> to vector<16x32xf32>
    %cst_21 = arith.constant dense<0.000000e+00> : vector<16x64xf32>
    %22 = tpu.matmul %21, %10, %cst_21 {dimension_numbers = #tpu.dot_dimension_numbers<[1], [0], [0], [1], [0, 0, 1, 1], [], []>} : vector<16x32xf32>, vector<32x64xf32>, vector<16x64xf32> -> vector<16x64xf32>
    %23 = vector.broadcast %12 : vector<1x64xf32> to vector<16x64xf32>
    %24 = arith.addf %22, %23 : vector<16x64xf32>
    %25 = vector.shape_cast %20 : vector<16x32xf32> to vector<2x8x32xf32>
    %26 = vector.extract_strided_slice %24 {offsets = [0, 0], sizes = [16, 32], strides = [1, 1]} : vector<16x64xf32> to vector<16x32xf32>
    %27 = vector.shape_cast %26 : vector<16x32xf32> to vector<2x8x32xf32>
    %28 = vector.extract_strided_slice %24 {offsets = [0, 32], sizes = [16, 32], strides = [1, 1]} : vector<16x64xf32> to vector<16x32xf32>
    %29 = vector.shape_cast %28 : vector<16x32xf32> to vector<2x8x32xf32>
    %30 = vector.extract_strided_slice %25 {offsets = [0, 0, 0], sizes = [2, 8, 8], strides = [1, 1, 1]} : vector<2x8x32xf32> to vector<2x8x8xf32>
    %31 = vector.extract_strided_slice %27 {offsets = [0, 0, 0], sizes = [2, 8, 8], strides = [1, 1, 1]} : vector<2x8x32xf32> to vector<2x8x8xf32>
    "tpu.trace_start"() <{level = 10 : i32, message = "bqd,bkd->bqk"}> : () -> ()
    %cst_22 = arith.constant dense<0.000000e+00> : vector<2x8x8xf32>
    %32 = tpu.matmul %30, %31, %cst_22 {dimension_numbers = #tpu.dot_dimension_numbers<[2], [2], [1], [1], [0, 0, 0, 1, 1, 1], [0], [0]>} : vector<2x8x8xf32>, vector<2x8x8xf32>, vector<2x8x8xf32> -> vector<2x8x8xf32>
    "tpu.trace_stop"() : () -> ()
    %cst_23 = arith.constant 0.353553385 : f32
    %33 = vector.broadcast %cst_23 : f32 to vector<2x8x8xf32>
    %34 = arith.mulf %32, %33 : vector<2x8x8xf32>
    %cst_24 = arith.constant dense<0xFF800000> : vector<2x8xf32>
    %35 = vector.multi_reduction <maximumf>, %34, %cst_24 [2] : vector<2x8x8xf32> to vector<2x8xf32>
    %36 = vector.shape_cast %35 : vector<2x8xf32> to vector<2x8x1xf32>
    %37 = vector.broadcast %36 : vector<2x8x1xf32> to vector<2x8x8xf32>
    %38 = arith.subf %34, %37 : vector<2x8x8xf32>
    %39 = math.exp %38 : vector<2x8x8xf32>
    %cst_25 = arith.constant dense<0.000000e+00> : vector<2x8xf32>
    %40 = vector.multi_reduction <add>, %39, %cst_25 [2] : vector<2x8x8xf32> to vector<2x8xf32>
    %41 = vector.shape_cast %40 : vector<2x8xf32> to vector<2x8x1xf32>
    %42 = vector.extract_strided_slice %29 {offsets = [0, 0, 0], sizes = [2, 8, 8], strides = [1, 1, 1]} : vector<2x8x32xf32> to vector<2x8x8xf32>
    "tpu.trace_start"() <{level = 10 : i32, message = "bqk,bkd->bqd"}> : () -> ()
    %cst_26 = arith.constant dense<0.000000e+00> : vector<2x8x8xf32>
    %43 = tpu.matmul %39, %42, %cst_26 {dimension_numbers = #tpu.dot_dimension_numbers<[2], [1], [1], [2], [0, 0, 0, 1, 1, 2], [0], [0]>} : vector<2x8x8xf32>, vector<2x8x8xf32>, vector<2x8x8xf32> -> vector<2x8x8xf32>
    "tpu.trace_stop"() : () -> ()
    %44 = tpu.reciprocal %41 {approx = true} : vector<2x8x1xf32> -> vector<2x8x1xf32>
    %45 = vector.broadcast %44 : vector<2x8x1xf32> to vector<2x8x8xf32>
    %46 = arith.mulf %43, %45 : vector<2x8x8xf32>
    %47 = vector.shape_cast %46 : vector<2x8x8xf32> to vector<16x8xf32>
    %48 = vector.extract_strided_slice %14 {offsets = [0, 0], sizes = [8, 32], strides = [1, 1]} : vector<32x32xf32> to vector<8x32xf32>
    %cst_27 = arith.constant dense<0.000000e+00> : vector<16x32xf32>
    %49 = tpu.matmul %47, %48, %cst_27 {dimension_numbers = #tpu.dot_dimension_numbers<[1], [0], [0], [1], [0, 0, 1, 1], [], []>} : vector<16x8xf32>, vector<8x32xf32>, vector<16x32xf32> -> vector<16x32xf32>
    %50 = vector.extract_strided_slice %25 {offsets = [0, 0, 8], sizes = [2, 8, 8], strides = [1, 1, 1]} : vector<2x8x32xf32> to vector<2x8x8xf32>
    %51 = vector.extract_strided_slice %27 {offsets = [0, 0, 8], sizes = [2, 8, 8], strides = [1, 1, 1]} : vector<2x8x32xf32> to vector<2x8x8xf32>
    "tpu.trace_start"() <{level = 10 : i32, message = "bqd,bkd->bqk"}> : () -> ()
    %cst_28 = arith.constant dense<0.000000e+00> : vector<2x8x8xf32>
    %52 = tpu.matmul %50, %51, %cst_28 {dimension_numbers = #tpu.dot_dimension_numbers<[2], [2], [1], [1], [0, 0, 0, 1, 1, 1], [0], [0]>} : vector<2x8x8xf32>, vector<2x8x8xf32>, vector<2x8x8xf32> -> vector<2x8x8xf32>
    "tpu.trace_stop"() : () -> ()
    %cst_29 = arith.constant 0.353553385 : f32
    %53 = vector.broadcast %cst_29 : f32 to vector<2x8x8xf32>
    %54 = arith.mulf %52, %53 : vector<2x8x8xf32>
    %cst_30 = arith.constant dense<0xFF800000> : vector<2x8xf32>
    %55 = vector.multi_reduction <maximumf>, %54, %cst_30 [2] : vector<2x8x8xf32> to vector<2x8xf32>
    %56 = vector.shape_cast %55 : vector<2x8xf32> to vector<2x8x1xf32>
    %57 = vector.broadcast %56 : vector<2x8x1xf32> to vector<2x8x8xf32>
    %58 = arith.subf %54, %57 : vector<2x8x8xf32>
    %59 = math.exp %58 : vector<2x8x8xf32>
    %cst_31 = arith.constant dense<0.000000e+00> : vector<2x8xf32>
    %60 = vector.multi_reduction <add>, %59, %cst_31 [2] : vector<2x8x8xf32> to vector<2x8xf32>
    %61 = vector.shape_cast %60 : vector<2x8xf32> to vector<2x8x1xf32>
    %62 = vector.extract_strided_slice %29 {offsets = [0, 0, 8], sizes = [2, 8, 8], strides = [1, 1, 1]} : vector<2x8x32xf32> to vector<2x8x8xf32>
    "tpu.trace_start"() <{level = 10 : i32, message = "bqk,bkd->bqd"}> : () -> ()
    %cst_32 = arith.constant dense<0.000000e+00> : vector<2x8x8xf32>
    %63 = tpu.matmul %59, %62, %cst_32 {dimension_numbers = #tpu.dot_dimension_numbers<[2], [1], [1], [2], [0, 0, 0, 1, 1, 2], [0], [0]>} : vector<2x8x8xf32>, vector<2x8x8xf32>, vector<2x8x8xf32> -> vector<2x8x8xf32>
    "tpu.trace_stop"() : () -> ()
    %64 = tpu.reciprocal %61 {approx = true} : vector<2x8x1xf32> -> vector<2x8x1xf32>
    %65 = vector.broadcast %64 : vector<2x8x1xf32> to vector<2x8x8xf32>
    %66 = arith.mulf %63, %65 : vector<2x8x8xf32>
    %67 = vector.shape_cast %66 : vector<2x8x8xf32> to vector<16x8xf32>
    %68 = vector.extract_strided_slice %14 {offsets = [8, 0], sizes = [8, 32], strides = [1, 1]} : vector<32x32xf32> to vector<8x32xf32>
    %cst_33 = arith.constant dense<0.000000e+00> : vector<16x32xf32>
    %69 = tpu.matmul %67, %68, %cst_33 {dimension_numbers = #tpu.dot_dimension_numbers<[1], [0], [0], [1], [0, 0, 1, 1], [], []>} : vector<16x8xf32>, vector<8x32xf32>, vector<16x32xf32> -> vector<16x32xf32>
    %70 = arith.addf %49, %69 : vector<16x32xf32>
    %71 = vector.extract_strided_slice %25 {offsets = [0, 0, 16], sizes = [2, 8, 8], strides = [1, 1, 1]} : vector<2x8x32xf32> to vector<2x8x8xf32>
    %72 = vector.extract_strided_slice %27 {offsets = [0, 0, 16], sizes = [2, 8, 8], strides = [1, 1, 1]} : vector<2x8x32xf32> to vector<2x8x8xf32>
    "tpu.trace_start"() <{level = 10 : i32, message = "bqd,bkd->bqk"}> : () -> ()
    %cst_34 = arith.constant dense<0.000000e+00> : vector<2x8x8xf32>
    %73 = tpu.matmul %71, %72, %cst_34 {dimension_numbers = #tpu.dot_dimension_numbers<[2], [2], [1], [1], [0, 0, 0, 1, 1, 1], [0], [0]>} : vector<2x8x8xf32>, vector<2x8x8xf32>, vector<2x8x8xf32> -> vector<2x8x8xf32>
    "tpu.trace_stop"() : () -> ()
    %cst_35 = arith.constant 0.353553385 : f32
    %74 = vector.broadcast %cst_35 : f32 to vector<2x8x8xf32>
    %75 = arith.mulf %73, %74 : vector<2x8x8xf32>
    %cst_36 = arith.constant dense<0xFF800000> : vector<2x8xf32>
    %76 = vector.multi_reduction <maximumf>, %75, %cst_36 [2] : vector<2x8x8xf32> to vector<2x8xf32>
    %77 = vector.shape_cast %76 : vector<2x8xf32> to vector<2x8x1xf32>
    %78 = vector.broadcast %77 : vector<2x8x1xf32> to vector<2x8x8xf32>
    %79 = arith.subf %75, %78 : vector<2x8x8xf32>
    %80 = math.exp %79 : vector<2x8x8xf32>
    %cst_37 = arith.constant dense<0.000000e+00> : vector<2x8xf32>
    %81 = vector.multi_reduction <add>, %80, %cst_37 [2] : vector<2x8x8xf32> to vector<2x8xf32>
    %82 = vector.shape_cast %81 : vector<2x8xf32> to vector<2x8x1xf32>
    %83 = vector.extract_strided_slice %29 {offsets = [0, 0, 16], sizes = [2, 8, 8], strides = [1, 1, 1]} : vector<2x8x32xf32> to vector<2x8x8xf32>
    "tpu.trace_start"() <{level = 10 : i32, message = "bqk,bkd->bqd"}> : () -> ()
    %cst_38 = arith.constant dense<0.000000e+00> : vector<2x8x8xf32>
    %84 = tpu.matmul %80, %83, %cst_38 {dimension_numbers = #tpu.dot_dimension_numbers<[2], [1], [1], [2], [0, 0, 0, 1, 1, 2], [0], [0]>} : vector<2x8x8xf32>, vector<2x8x8xf32>, vector<2x8x8xf32> -> vector<2x8x8xf32>
    "tpu.trace_stop"() : () -> ()
    %85 = tpu.reciprocal %82 {approx = true} : vector<2x8x1xf32> -> vector<2x8x1xf32>
    %86 = vector.broadcast %85 : vector<2x8x1xf32> to vector<2x8x8xf32>
    %87 = arith.mulf %84, %86 : vector<2x8x8xf32>
    %88 = vector.shape_cast %87 : vector<2x8x8xf32> to vector<16x8xf32>
    %89 = vector.extract_strided_slice %14 {offsets = [16, 0], sizes = [8, 32], strides = [1, 1]} : vector<32x32xf32> to vector<8x32xf32>
    %cst_39 = arith.constant dense<0.000000e+00> : vector<16x32xf32>
    %90 = tpu.matmul %88, %89, %cst_39 {dimension_numbers = #tpu.dot_dimension_numbers<[1], [0], [0], [1], [0, 0, 1, 1], [], []>} : vector<16x8xf32>, vector<8x32xf32>, vector<16x32xf32> -> vector<16x32xf32>
    %91 = arith.addf %70, %90 : vector<16x32xf32>
    %92 = vector.extract_strided_slice %25 {offsets = [0, 0, 24], sizes = [2, 8, 8], strides = [1, 1, 1]} : vector<2x8x32xf32> to vector<2x8x8xf32>
    %93 = vector.extract_strided_slice %27 {offsets = [0, 0, 24], sizes = [2, 8, 8], strides = [1, 1, 1]} : vector<2x8x32xf32> to vector<2x8x8xf32>
    "tpu.trace_start"() <{level = 10 : i32, message = "bqd,bkd->bqk"}> : () -> ()
    %cst_40 = arith.constant dense<0.000000e+00> : vector<2x8x8xf32>
    %94 = tpu.matmul %92, %93, %cst_40 {dimension_numbers = #tpu.dot_dimension_numbers<[2], [2], [1], [1], [0, 0, 0, 1, 1, 1], [0], [0]>} : vector<2x8x8xf32>, vector<2x8x8xf32>, vector<2x8x8xf32> -> vector<2x8x8xf32>
    "tpu.trace_stop"() : () -> ()
    %cst_41 = arith.constant 0.353553385 : f32
    %95 = vector.broadcast %cst_41 : f32 to vector<2x8x8xf32>
    %96 = arith.mulf %94, %95 : vector<2x8x8xf32>
    %cst_42 = arith.constant dense<0xFF800000> : vector<2x8xf32>
    %97 = vector.multi_reduction <maximumf>, %96, %cst_42 [2] : vector<2x8x8xf32> to vector<2x8xf32>
    %98 = vector.shape_cast %97 : vector<2x8xf32> to vector<2x8x1xf32>
    %99 = vector.broadcast %98 : vector<2x8x1xf32> to vector<2x8x8xf32>
    %100 = arith.subf %96, %99 : vector<2x8x8xf32>
    %101 = math.exp %100 : vector<2x8x8xf32>
    %cst_43 = arith.constant dense<0.000000e+00> : vector<2x8xf32>
    %102 = vector.multi_reduction <add>, %101, %cst_43 [2] : vector<2x8x8xf32> to vector<2x8xf32>
    %103 = vector.shape_cast %102 : vector<2x8xf32> to vector<2x8x1xf32>
    %104 = vector.extract_strided_slice %29 {offsets = [0, 0, 24], sizes = [2, 8, 8], strides = [1, 1, 1]} : vector<2x8x32xf32> to vector<2x8x8xf32>
    "tpu.trace_start"() <{level = 10 : i32, message = "bqk,bkd->bqd"}> : () -> ()
    %cst_44 = arith.constant dense<0.000000e+00> : vector<2x8x8xf32>
    %105 = tpu.matmul %101, %104, %cst_44 {dimension_numbers = #tpu.dot_dimension_numbers<[2], [1], [1], [2], [0, 0, 0, 1, 1, 2], [0], [0]>} : vector<2x8x8xf32>, vector<2x8x8xf32>, vector<2x8x8xf32> -> vector<2x8x8xf32>
    "tpu.trace_stop"() : () -> ()
    %106 = tpu.reciprocal %103 {approx = true} : vector<2x8x1xf32> -> vector<2x8x1xf32>
    %107 = vector.broadcast %106 : vector<2x8x1xf32> to vector<2x8x8xf32>
    %108 = arith.mulf %105, %107 : vector<2x8x8xf32>
    %109 = vector.shape_cast %108 : vector<2x8x8xf32> to vector<16x8xf32>
    %110 = vector.extract_strided_slice %14 {offsets = [24, 0], sizes = [8, 32], strides = [1, 1]} : vector<32x32xf32> to vector<8x32xf32>
    %cst_45 = arith.constant dense<0.000000e+00> : vector<16x32xf32>
    %111 = tpu.matmul %109, %110, %cst_45 {dimension_numbers = #tpu.dot_dimension_numbers<[1], [0], [0], [1], [0, 0, 1, 1], [], []>} : vector<16x8xf32>, vector<8x32xf32>, vector<16x32xf32> -> vector<16x32xf32>
    %112 = arith.addf %91, %111 : vector<16x32xf32>
    %113 = vector.broadcast %16 : vector<1x32xf32> to vector<16x32xf32>
    %114 = arith.addf %112, %113 : vector<16x32xf32>
    %115 = arith.addf %4, %114 : vector<16x32xf32>
    %c0_46 = arith.constant 0 : index
    %c0_47 = arith.constant 0 : index
    %c0_48 = arith.constant 0 : index
    %116 = vector.load %arg8[%c0_46, %c0_47, %c0_48] : memref<1x1x32xf32, #tpu.memory_space<vmem>>, vector<1x1x32xf32>
    %117 = vector.shape_cast %116 : vector<1x1x32xf32> to vector<1x32xf32>
    %c0_49 = arith.constant 0 : index
    %c0_50 = arith.constant 0 : index
    %c0_51 = arith.constant 0 : index
    %118 = vector.load %arg9[%c0_49, %c0_50, %c0_51] : memref<1x1x32xf32, #tpu.memory_space<vmem>>, vector<1x1x32xf32>
    %119 = vector.shape_cast %118 : vector<1x1x32xf32> to vector<1x32xf32>
    %cst_52 = arith.constant dense<0.000000e+00> : vector<16xf32>
    %120 = vector.multi_reduction <add>, %115, %cst_52 [1] : vector<16x32xf32> to vector<16xf32>
    %121 = vector.shape_cast %120 : vector<16xf32> to vector<16x1xf32>
    %cst_53 = arith.constant 3.200000e+01 : f32
    %122 = vector.broadcast %cst_53 : f32 to vector<16x1xf32>
    %123 = arith.divf %121, %122 : vector<16x1xf32>
    %124 = vector.broadcast %123 : vector<16x1xf32> to vector<16x32xf32>
    %125 = arith.subf %115, %124 : vector<16x32xf32>
    %126 = arith.mulf %125, %125 : vector<16x32xf32>
    %cst_54 = arith.constant dense<0.000000e+00> : vector<16xf32>
    %127 = vector.multi_reduction <add>, %126, %cst_54 [1] : vector<16x32xf32> to vector<16xf32>
    %128 = vector.shape_cast %127 : vector<16xf32> to vector<16x1xf32>
    %cst_55 = arith.constant 3.200000e+01 : f32
    %129 = vector.broadcast %cst_55 : f32 to vector<16x1xf32>
    %130 = arith.divf %128, %129 : vector<16x1xf32>
    %131 = vector.broadcast %123 : vector<16x1xf32> to vector<16x32xf32>
    %132 = arith.subf %115, %131 : vector<16x32xf32>
    %cst_56 = arith.constant 9.99999974E-6 : f32
    %133 = vector.broadcast %cst_56 : f32 to vector<16x1xf32>
    %134 = arith.addf %130, %133 : vector<16x1xf32>
    %135 = math.rsqrt %134 : vector<16x1xf32>
    %136 = vector.broadcast %135 : vector<16x1xf32> to vector<16x32xf32>
    %137 = arith.mulf %132, %136 : vector<16x32xf32>
    %138 = vector.broadcast %117 : vector<1x32xf32> to vector<16x32xf32>
    %139 = arith.mulf %137, %138 : vector<16x32xf32>
    %140 = vector.broadcast %119 : vector<1x32xf32> to vector<16x32xf32>
    %141 = arith.addf %139, %140 : vector<16x32xf32>
    %c0_57 = arith.constant 0 : index
    %c0_58 = arith.constant 0 : index
    %c0_59 = arith.constant 0 : index
    %142 = vector.load %arg10[%c0_57, %c0_58, %c0_59] : memref<1x32x128xf32, #tpu.memory_space<vmem>>, vector<1x32x128xf32>
    %143 = vector.shape_cast %142 : vector<1x32x128xf32> to vector<32x128xf32>
    %c0_60 = arith.constant 0 : index
    %c0_61 = arith.constant 0 : index
    %c0_62 = arith.constant 0 : index
    %144 = vector.load %arg11[%c0_60, %c0_61, %c0_62] : memref<1x1x128xf32, #tpu.memory_space<vmem>>, vector<1x1x128xf32>
    %145 = vector.shape_cast %144 : vector<1x1x128xf32> to vector<1x128xf32>
    %c0_63 = arith.constant 0 : index
    %c0_64 = arith.constant 0 : index
    %c0_65 = arith.constant 0 : index
    %146 = vector.load %arg12[%c0_63, %c0_64, %c0_65] : memref<1x128x32xf32, #tpu.memory_space<vmem>>, vector<1x128x32xf32>
    %147 = vector.shape_cast %146 : vector<1x128x32xf32> to vector<128x32xf32>
    %c0_66 = arith.constant 0 : index
    %c0_67 = arith.constant 0 : index
    %c0_68 = arith.constant 0 : index
    %148 = vector.load %arg13[%c0_66, %c0_67, %c0_68] : memref<1x1x32xf32, #tpu.memory_space<vmem>>, vector<1x1x32xf32>
    %149 = vector.shape_cast %148 : vector<1x1x32xf32> to vector<1x32xf32>
    %cst_69 = arith.constant dense<0.000000e+00> : vector<16x128xf32>
    %150 = tpu.matmul %141, %143, %cst_69 {dimension_numbers = #tpu.dot_dimension_numbers<[1], [0], [0], [1], [0, 0, 1, 1], [], []>} : vector<16x32xf32>, vector<32x128xf32>, vector<16x128xf32> -> vector<16x128xf32>
    %151 = vector.broadcast %145 : vector<1x128xf32> to vector<16x128xf32>
    %152 = arith.addf %150, %151 : vector<16x128xf32>
    %cst_70 = arith.constant 0.000000e+00 : f32
    %153 = vector.broadcast %cst_70 : f32 to vector<16x128xf32>
    %154 = arith.maximumf %152, %153 : vector<16x128xf32>
    %cst_71 = arith.constant dense<0.000000e+00> : vector<16x32xf32>
    %155 = tpu.matmul %154, %147, %cst_71 {dimension_numbers = #tpu.dot_dimension_numbers<[1], [0], [0], [1], [0, 0, 1, 1], [], []>} : vector<16x128xf32>, vector<128x32xf32>, vector<16x32xf32> -> vector<16x32xf32>
    %156 = vector.broadcast %149 : vector<1x32xf32> to vector<16x32xf32>
    %157 = arith.addf %155, %156 : vector<16x32xf32>
    %158 = arith.addf %141, %157 : vector<16x32xf32>
    %c0_72 = arith.constant 0 : index
    %c0_73 = arith.constant 0 : index
    %c0_74 = arith.constant 0 : index
    %159 = vector.load %arg14[%c0_72, %c0_73, %c0_74] : memref<1x1x32xf32, #tpu.memory_space<vmem>>, vector<1x1x32xf32>
    %160 = vector.shape_cast %159 : vector<1x1x32xf32> to vector<1x32xf32>
    %c0_75 = arith.constant 0 : index
    %c0_76 = arith.constant 0 : index
    %c0_77 = arith.constant 0 : index
    %161 = vector.load %arg15[%c0_75, %c0_76, %c0_77] : memref<1x1x32xf32, #tpu.memory_space<vmem>>, vector<1x1x32xf32>
    %162 = vector.shape_cast %161 : vector<1x1x32xf32> to vector<1x32xf32>
    %cst_78 = arith.constant dense<0.000000e+00> : vector<16xf32>
    %163 = vector.multi_reduction <add>, %158, %cst_78 [1] : vector<16x32xf32> to vector<16xf32>
    %164 = vector.shape_cast %163 : vector<16xf32> to vector<16x1xf32>
    %cst_79 = arith.constant 3.200000e+01 : f32
    %165 = vector.broadcast %cst_79 : f32 to vector<16x1xf32>
    %166 = arith.divf %164, %165 : vector<16x1xf32>
    %167 = vector.broadcast %166 : vector<16x1xf32> to vector<16x32xf32>
    %168 = arith.subf %158, %167 : vector<16x32xf32>
    %169 = arith.mulf %168, %168 : vector<16x32xf32>
    %cst_80 = arith.constant dense<0.000000e+00> : vector<16xf32>
    %170 = vector.multi_reduction <add>, %169, %cst_80 [1] : vector<16x32xf32> to vector<16xf32>
    %171 = vector.shape_cast %170 : vector<16xf32> to vector<16x1xf32>
    %cst_81 = arith.constant 3.200000e+01 : f32
    %172 = vector.broadcast %cst_81 : f32 to vector<16x1xf32>
    %173 = arith.divf %171, %172 : vector<16x1xf32>
    %174 = vector.broadcast %166 : vector<16x1xf32> to vector<16x32xf32>
    %175 = arith.subf %158, %174 : vector<16x32xf32>
    %cst_82 = arith.constant 9.99999974E-6 : f32
    %176 = vector.broadcast %cst_82 : f32 to vector<16x1xf32>
    %177 = arith.addf %173, %176 : vector<16x1xf32>
    %178 = math.rsqrt %177 : vector<16x1xf32>
    %179 = vector.broadcast %178 : vector<16x1xf32> to vector<16x32xf32>
    %180 = arith.mulf %175, %179 : vector<16x32xf32>
    %181 = vector.broadcast %160 : vector<1x32xf32> to vector<16x32xf32>
    %182 = arith.mulf %180, %181 : vector<16x32xf32>
    %183 = vector.broadcast %162 : vector<1x32xf32> to vector<16x32xf32>
    %184 = arith.addf %182, %183 : vector<16x32xf32>
    %185 = vector.shape_cast %184 : vector<16x32xf32> to vector<2x8x32xf32>
    %c0_83 = arith.constant 0 : index
    %c0_84 = arith.constant 0 : index
    %c0_85 = arith.constant 0 : index
    %186 = vector.load %arg17[%c0_83, %c0_84, %c0_85] : memref<2x8x32xf32, #tpu.memory_space<vmem>>, vector<2x8x32xf32>
    tpu.vector_store %arg17[%c0_83, %c0_84, %c0_85], %185 {strides = array<i32>} : memref<2x8x32xf32, #tpu.memory_space<vmem>>, vector<2x8x32xf32>,
    %c1_i32 = arith.constant 1 : i32
    %187 = arith.cmpi eq, %arg0, %c1_i32 : i32
    %188 = arith.extui %187 : i1 to i32
    %c0_i32_86 = arith.constant 0 : i32
    %189 = arith.cmpi ne, %188, %c0_i32_86 : i32
    scf.if %189 {
      %c0_87 = arith.constant 0 : index
      %c0_88 = arith.constant 0 : index
      %c0_89 = arith.constant 0 : index
      %190 = vector.load %arg17[%c0_87, %c0_88, %c0_89] : memref<2x8x32xf32, #tpu.memory_space<vmem>>, vector<2x8x32xf32>
      %c0_90 = arith.constant 0 : index
      %c0_91 = arith.constant 0 : index
      %c0_92 = arith.constant 0 : index
      %191 = vector.load %arg16[%c0_90, %c0_91, %c0_92] : memref<2x8x32xf32, #tpu.memory_space<vmem>>, vector<2x8x32xf32>
      tpu.vector_store %arg16[%c0_90, %c0_91, %c0_92], %190 {strides = array<i32>} : memref<2x8x32xf32, #tpu.memory_space<vmem>>, vector<2x8x32xf32>,
    } else {
    }
    return
  }
  func.func @transform_0(%arg0: i32) -> (i32, i32, i32) {
    %c0_i32 = arith.constant 0 : i32
    %c0_i32_0 = arith.constant 0 : i32
    %c0_i32_1 = arith.constant 0 : i32
    %c0_i32_2 = arith.constant 0 : i32
    return %c0_i32, %c0_i32_0, %c0_i32_1 : i32, i32, i32
  }
  func.func @transform_1(%arg0: i32) -> (i32, i32, i32) {
    %c0_i32 = arith.constant 0 : i32
    %c0_i32_0 = arith.constant 0 : i32
    %c0_i32_1 = arith.constant 0 : i32
    return %arg0, %c0_i32, %c0_i32_0 : i32, i32, i32
  }
  func.func @transform_2(%arg0: i32) -> (i32, i32, i32) {
    %c0_i32 = arith.constant 0 : i32
    %c0_i32_0 = arith.constant 0 : i32
    %c0_i32_1 = arith.constant 0 : i32
    return %arg0, %c0_i32, %c0_i32_0 : i32, i32, i32
  }
  func.func @transform_3(%arg0: i32) -> (i32, i32, i32) {
    %c0_i32 = arith.constant 0 : i32
    %c0_i32_0 = arith.constant 0 : i32
    %c0_i32_1 = arith.constant 0 : i32
    return %arg0, %c0_i32, %c0_i32_0 : i32, i32, i32
  }
  func.func @transform_4(%arg0: i32) -> (i32, i32, i32) {
    %c0_i32 = arith.constant 0 : i32
    %c0_i32_0 = arith.constant 0 : i32
    %c0_i32_1 = arith.constant 0 : i32
    return %arg0, %c0_i32, %c0_i32_0 : i32, i32, i32
  }
  func.func @transform_5(%arg0: i32) -> (i32, i32, i32) {
    %c0_i32 = arith.constant 0 : i32
    %c0_i32_0 = arith.constant 0 : i32
    %c0_i32_1 = arith.constant 0 : i32
    return %arg0, %c0_i32, %c0_i32_0 : i32, i32, i32
  }
  func.func @transform_6(%arg0: i32) -> (i32, i32, i32) {
    %c0_i32 = arith.constant 0 : i32
    %c0_i32_0 = arith.constant 0 : i32
    %c0_i32_1 = arith.constant 0 : i32
    return %arg0, %c0_i32, %c0_i32_0 : i32, i32, i32
  }
  func.func @transform_7(%arg0: i32) -> (i32, i32, i32) {
    %c0_i32 = arith.constant 0 : i32
    %c0_i32_0 = arith.constant 0 : i32
    %c0_i32_1 = arith.constant 0 : i32
    return %arg0, %c0_i32, %c0_i32_0 : i32, i32, i32
  }
  func.func @transform_8(%arg0: i32) -> (i32, i32, i32) {
    %c0_i32 = arith.constant 0 : i32
    %c0_i32_0 = arith.constant 0 : i32
    %c0_i32_1 = arith.constant 0 : i32
    return %arg0, %c0_i32, %c0_i32_0 : i32, i32, i32
  }
  func.func @transform_9(%arg0: i32) -> (i32, i32, i32) {
    %c0_i32 = arith.constant 0 : i32
    %c0_i32_0 = arith.constant 0 : i32
    %c0_i32_1 = arith.constant 0 : i32
    return %arg0, %c0_i32, %c0_i32_0 : i32, i32, i32
  }
  func.func @transform_10(%arg0: i32) -> (i32, i32, i32) {
    %c0_i32 = arith.constant 0 : i32
    %c0_i32_0 = arith.constant 0 : i32
    %c0_i32_1 = arith.constant 0 : i32
    return %arg0, %c0_i32, %c0_i32_0 : i32, i32, i32
  }
  func.func @transform_11(%arg0: i32) -> (i32, i32, i32) {
    %c0_i32 = arith.constant 0 : i32
    %c0_i32_0 = arith.constant 0 : i32
    %c0_i32_1 = arith.constant 0 : i32
    return %arg0, %c0_i32, %c0_i32_0 : i32, i32, i32
  }
  func.func @transform_12(%arg0: i32) -> (i32, i32, i32) {
    %c0_i32 = arith.constant 0 : i32
    %c0_i32_0 = arith.constant 0 : i32
    %c0_i32_1 = arith.constant 0 : i32
    return %arg0, %c0_i32, %c0_i32_0 : i32, i32, i32
  }
  func.func @transform_13(%arg0: i32) -> (i32, i32, i32) {
    %c0_i32 = arith.constant 0 : i32
    %c0_i32_0 = arith.constant 0 : i32
    %c0_i32_1 = arith.constant 0 : i32
    return %arg0, %c0_i32, %c0_i32_0 : i32, i32, i32
  }
  func.func @transform_14(%arg0: i32) -> (i32, i32, i32) {
    %c0_i32 = arith.constant 0 : i32
    %c0_i32_0 = arith.constant 0 : i32
    %c0_i32_1 = arith.constant 0 : i32
    return %arg0, %c0_i32, %c0_i32_0 : i32, i32, i32
  }
  func.func @transform_15(%arg0: i32) -> (i32, i32, i32) {
    %c0_i32 = arith.constant 0 : i32
    %c0_i32_0 = arith.constant 0 : i32
    %c0_i32_1 = arith.constant 0 : i32
    %c0_i32_2 = arith.constant 0 : i32
    return %c0_i32, %c0_i32_0, %c0_i32_1 : i32, i32, i32
  }
}

</mosaic_0001>

<llo_original>
// kernel: transformer_forward.5
$region0: #{transformer_forward.5}
  #allocation0 [shape = 'u32[]', space=smem, size = 0x4, offset = 0x4, fixed_abs, tag = 'smem constant byte address 0x4 - core index']
  #allocation1 [shape = 'u32[144,128]{1,0:T(1,128)}', space=vmem, size = 0x12000, scoped, tag = 'internal scratch']
  %s0 = inlined_call_operand.vmem [shape: f32[16,32], index: 0, kind: input, shape index: {}]
  %s1 = inlined_call_operand.vmem [shape: f32[32,64], index: 1, kind: input, shape index: {}]
  %s2 = inlined_call_operand.vmem [shape: f32[1,64], index: 2, kind: input, shape index: {}]
  %s3 = inlined_call_operand.hbm [shape: f32[16,64], index: 3, kind: output, shape index: {}]
  %s4 = sld [smem:[#allocation0]]
  $region22: #{transformer_forward.5} parent=0
    _
  %s6 = ssub.s32 1, %s4
  %s7 = scalar_select 0, %s6, %s4
  $region1: #{transformer_forward.5} parent=0
    #allocation2 [shape = 'u8[8192]{0}', space=vmem, size = 0x2000, scoped, tag = 'output window, operand 0, single buffered']
    #allocation3 [shape = 's32[1]{0}', space=sflag, size = 0x4, scoped, tag = 'scoped memory for transformer_forward.5']
    %8 = vsyncpa [#allocation3], 0
    // Predicated region
    $region2: #{transformer_forward.5} parent=1 // pred_check
      _
    $region3: #{transformer_forward.5} parent=1 // pred_check_branch
      %10 = sbr.rel (0) target = $region5
    $region4: #{transformer_forward.5} parent=1 // pred_region
      _
    $region5: #{transformer_forward.5} parent=1 // pred_fallthru
      _
    // Predicated region
    $region6: #{transformer_forward.5} parent=1 // pred_check
      _
    $region7: #{transformer_forward.5} parent=1 // pred_check_branch
      %12 = sbr.rel (0) target = $region9
    $region8: #{transformer_forward.5} parent=1 // pred_region
      _
    $region9: #{transformer_forward.5} parent=1 // pred_fallthru
      _
    // Predicated region
    $region10: #{transformer_forward.5} parent=1 // pred_check
      _
    $region11: #{transformer_forward.5} parent=1 // pred_check_branch
      %14 = sbr.rel (0) target = $region13
    $region12: #{transformer_forward.5} parent=1 // pred_region
      _
    $region13: #{transformer_forward.5} parent=1 // pred_fallthru
      _
    %v15 = vld [vmem:[%s0] sm:$0xff]
    %v16 = vld [vmem:[%s0 + $0x8] sm:$0xff]
    %v17 = vld [vmem:[%s1] sm:$0xff]
    %v18 = vld [vmem:[%s1 + $0x8] sm:$0xff]
    %v19 = vld [vmem:[%s1 + $0x10] sm:$0xff]
    %v20 = vld [vmem:[%s1 + $0x18] sm:$0xff]
    %v21 = vld [vmem:[%s2] sm:$0x1]
    %v23 = vlaneseq
    %v24 = vshrl.u32 %v23, 7
    %v25 = vsub.s32 0, %v24
    %v26 = vrot.slane %v21, %v25
    %vm28 = vcmask 261120
    %v30 = vsel %vm28, %v15, 0
    %v33 = vsel %vm28, %v16, 0
    %35 = vmatprep.subr.mxu0 0.0
    %36 = vmatpush1.msra.mxu0 0.0
    %37 = vmatprep.subr.mxu0 0.0
    %38 = vmatpush1.msra.mxu0 0.0
    %39 = vmatprep.subr.mxu0 0.0
    %40 = vmatpush1.msra.mxu0 0.0
    %41 = vmatprep.subr.mxu0 0.0
    %42 = vmatpush1.msra.mxu0 0.0
    %43 = vmatprep.subr.mxu0 0.0
    %44 = vmatpush1.msra.mxu0 0.0
    %45 = vmatprep.subr.mxu0 0.0
    %46 = vmatpush1.msra.mxu0 0.0
    %47 = vmatprep.subr.mxu0 0.0
    %48 = vmatpush1.msra.mxu0 0.0
    %49 = vmatprep.subr.mxu0 0.0
    %50 = vmatpush1.msra.mxu0 0.0
    %51 = vmatprep.subr.mxu0 0.0
    %52 = vmatpush1.msra.mxu0 0.0
    %53 = vmatprep.subr.mxu0 0.0
    %54 = vmatpush1.msra.mxu0 0.0
    %55 = vmatprep.subr.mxu0 0.0
    %56 = vmatpush1.msra.mxu0 0.0
    %57 = vmatprep.subr.mxu0 0.0
    %58 = vmatpush1.msra.mxu0 0.0
    %59 = vmatprep.subr.mxu0 0.0
    %60 = vmatpush1.msra.mxu0 %v20
    %61 = vmatprep.subr.mxu0 0.0
    %62 = vmatpush1.msra.mxu0 %v19
    %63 = vmatprep.subr.mxu0 0.0
    %64 = vmatpush1.msra.mxu0 %v18
    %65 = vmatprep.subr.mxu0 0.0
    %66 = vmatpush1.msra.mxu0 %v17
    %67 = vmatprep.subr.mxu0 0.0
    %68 = vmatpush2.msra.mxu0 0.0
    %69 = vmatprep.subr.mxu0 0.0
    %70 = vmatpush2.msra.mxu0 0.0
    %71 = vmatprep.subr.mxu0 0.0
    %72 = vmatpush2.msra.mxu0 0.0
    %73 = vmatprep.subr.mxu0 0.0
    %74 = vmatpush2.msra.mxu0 0.0
    %75 = vmatprep.subr.mxu0 0.0
    %76 = vmatpush2.msra.mxu0 0.0
    %77 = vmatprep.subr.mxu0 0.0
    %78 = vmatpush2.msra.mxu0 0.0
    %79 = vmatprep.subr.mxu0 0.0
    %80 = vmatpush2.msra.mxu0 0.0
    %81 = vmatprep.subr.mxu0 0.0
    %82 = vmatpush2.msra.mxu0 0.0
    %83 = vmatprep.subr.mxu0 0.0
    %84 = vmatpush2.msra.mxu0 0.0
    %85 = vmatprep.subr.mxu0 0.0
    %86 = vmatpush2.msra.mxu0 0.0
    %87 = vmatprep.subr.mxu0 0.0
    %88 = vmatpush2.msra.mxu0 0.0
    %89 = vmatprep.subr.mxu0 0.0
    %90 = vmatpush2.msra.mxu0 0.0
    %91 = vmatprep.subr.mxu0 0.0
    %92 = vmatpush2.msra.mxu0 0.0
    %93 = vmatprep.subr.mxu0 0.0
    %94 = vmatpush2.msra.mxu0 0.0
    %95 = vmatprep.subr.mxu0 0.0
    %96 = vmatpush2.msra.mxu0 0.0
    %97 = vmatprep.subr.mxu0 0.0
    %98 = vmatpush2.msra.mxu0 0.0
    %99 = vmatprep.mubr.f32.mxu0 0.0
    %100 = vmatmul.mubr.f32.gmra.mxu0 %v30
    %v101 = vpop.f32.mrf.mxu0
    %v102 = vadd.f32 %v26, %v101
    %v103 = vpop.f32.mrf.mxu0
    %104 = vmatprep.mubr.f32.mxu0 0.0
    %105 = vmatmul.mubr.f32.gmra.mxu0 %v33
    %v106 = vpop.f32.mrf.mxu0
    %v107 = vadd.f32 %v26, %v106
    %v108 = vpop.f32.mrf.mxu0
    %109 = vdwg.mxu0
    %vm110 = vcmask 523264
    %v111 = vsel %vm110, %v102, -inf
    %112 = vmax.xlane.f32.xlu0 %v111
    %v113 = vpop.xlane.xlu0 %112
    %v114 = vsel %vm110, %v107, -inf
    %115 = vmax.xlane.f32.xlu0 %v114
    %v116 = vpop.xlane.xlu0 %115
    %v117 = vsub.f32 %v102, %v113
    %v118 = vsub.f32 %v107, %v116
    %v119 = vmul.f32 %v117, 1.442695
    %v120 = vpow.pop %v119
    %v121 = vmul.f32 %v118, 1.442695
    %v122 = vpow.pop %v121
    %v123 = vsel %vm110, %v120, 0.0
    %124 = vadd.xlane.f32.xlu0 %v123
    %v125 = vpop.xlane.xlu0 %124
    %v126 = vsel %vm110, %v122, 0.0
    %127 = vadd.xlane.f32.xlu0 %v126
    %v128 = vpop.xlane.xlu0 %127
    %v129 = vlog2.pop %v125
    %v130 = vmul.f32 %v129, 0.6931472
    %v131 = vlog2.pop %v128
    %v132 = vmul.f32 %v131, 0.6931472
    %v133 = vsub.f32 %v117, %v130
    %v134 = vsub.f32 %v118, %v132
    %135 = vst.msk [vmem:[#allocation2] sm:$0xff] %vm110, %v133
    %136 = vst.msk [vmem:[#allocation2 + $0x8] sm:$0xff] %vm110, %v134
    // Predicated region
    $region14: #{transformer_forward.5} parent=1 // pred_check
      _
    $region15: #{transformer_forward.5} parent=1 // pred_check_branch
      %138 = sbr.rel (0) target = $region17
    $region16: #{transformer_forward.5} parent=1 // pred_region
      %s140 = ssub.s32 256, 256
      %141 = vsyncadd [#allocation3], %s140
      %s142 = sshll.u32 [#allocation2], 4
      %s143 = int_to_ptr.vmem [resolvable:$true] %s142
      %148 = dma.vmem_to_hbm [thread:$0]  %s143, 256, %s3, [#allocation3], 128, 128, 8
    $region17: #{transformer_forward.5} parent=1 // pred_fallthru
      _
    // Predicated region
    $region18: #{transformer_forward.5} parent=1 // pred_check
      _
    $region19: #{transformer_forward.5} parent=1 // pred_check_branch
      %150 = sbr.rel (0) target = $region21
    $region20: #{transformer_forward.5} parent=1 // pred_region
      %151 = dma.done [#allocation3], 256
    $region21: #{transformer_forward.5} parent=1 // pred_fallthru
      _
    %152 = vsyncpa [#allocation3], 1

// kernel: transformer_forward.3
$region0: #{transformer_forward.3}
  #allocation0 [shape = 'u32[]', space=smem, size = 0x4, offset = 0x4, fixed_abs, tag = 'smem constant byte address 0x4 - core index']
  #allocation1 [shape = 'u32[144,128]{1,0:T(1,128)}', space=vmem, size = 0x12000, scoped, tag = 'internal scratch']
  #allocation2 [shape = 'f32[2,8,32]{2,1,0:T(8,128)}', space=vmem, size = 0x2000, scoped, tag = 'scratch operand']
  %s0 = inlined_call_operand.vmem [shape: f32[2,8,32], index: 0, kind: input, shape index: {}]
  %s1 = inlined_call_operand.vmem [shape: f32[2,32,32], index: 1, kind: input, shape index: {}]
  %s2 = inlined_call_operand.vmem [shape: f32[2,1,32], index: 2, kind: input, shape index: {}]
  %s3 = inlined_call_operand.vmem [shape: f32[2,32,64], index: 3, kind: input, shape index: {}]
  %s4 = inlined_call_operand.vmem [shape: f32[2,1,64], index: 4, kind: input, shape index: {}]
  %s5 = inlined_call_operand.vmem [shape: f32[2,32,32], index: 5, kind: input, shape index: {}]
  %s6 = inlined_call_operand.vmem [shape: f32[2,1,32], index: 6, kind: input, shape index: {}]
  %s7 = inlined_call_operand.vmem [shape: f32[2,1,32], index: 7, kind: input, shape index: {}]
  %s8 = inlined_call_operand.vmem [shape: f32[2,1,32], index: 8, kind: input, shape index: {}]
  %s9 = inlined_call_operand.vmem [shape: f32[2,32,128], index: 9, kind: input, shape index: {}]
  %s10 = inlined_call_operand.vmem [shape: f32[2,1,128], index: 10, kind: input, shape index: {}]
  %s11 = inlined_call_operand.vmem [shape: f32[2,128,32], index: 11, kind: input, shape index: {}]
  %s12 = inlined_call_operand.vmem [shape: f32[2,1,32], index: 12, kind: input, shape index: {}]
  %s13 = inlined_call_operand.vmem [shape: f32[2,1,32], index: 13, kind: input, shape index: {}]
  %s14 = inlined_call_operand.vmem [shape: f32[2,1,32], index: 14, kind: input, shape index: {}]
  %s15 = inlined_call_operand.vmem [shape: f32[2,8,32], index: 15, kind: output, shape index: {}]
  %s16 = sld [smem:[#allocation0]]
  $region101: #{transformer_forward.3} parent=0
    _
  %s18 = ssub.s32 1, %s16
  %s19 = scalar_select 0, %s18, %s16
  loop: start=0, step=1, limit=4
  $region2: #{transformer_forward.3} parent=0 // loop_pre_header
    _
  $region3: #{transformer_forward.3} parent=0 // loop_header
    %s21 = sphi 0, %s25
    %p22 = scmp.ge.s32.totalorder %s21, 4
    %s29 = sphi 0, %s29
    %s31 = sphi 0, %s29
    %s32 = sphi 0, %s31
    %s46 = sphi 0, %s32
    %s52 = sphi 0, %s54
    %s55 = sphi 0, %s52
    %s56 = sphi 0, %s55
    %s72 = sphi 0, %s56
    %s78 = sphi 0, %s80
    %s81 = sphi 0, %s78
    %s82 = sphi 0, %s81
    %s98 = sphi 0, %s82
    %s104 = sphi 0, %s106
    %s107 = sphi 0, %s104
    %s108 = sphi 0, %s107
    %s124 = sphi 0, %s108
    %s130 = sphi 0, %s132
    %s133 = sphi 0, %s130
    %s134 = sphi 0, %s133
    %s150 = sphi 0, %s134
    %s156 = sphi 0, %s158
    %s159 = sphi 0, %s156
    %s160 = sphi 0, %s159
    %s176 = sphi 0, %s160
    %s182 = sphi 0, %s184
    %s185 = sphi 0, %s182
    %s186 = sphi 0, %s185
    %s202 = sphi 0, %s186
    %s208 = sphi 0, %s210
    %s211 = sphi 0, %s208
    %s212 = sphi 0, %s211
    %s228 = sphi 0, %s212
    %s234 = sphi 0, %s236
    %s237 = sphi 0, %s234
    %s238 = sphi 0, %s237
    %s254 = sphi 0, %s238
    %s260 = sphi 0, %s262
    %s263 = sphi 0, %s260
    %s264 = sphi 0, %s263
    %s280 = sphi 0, %s264
    %s286 = sphi 0, %s288
    %s289 = sphi 0, %s286
    %s290 = sphi 0, %s289
    %s306 = sphi 0, %s290
    %s312 = sphi 0, %s314
    %s315 = sphi 0, %s312
    %s316 = sphi 0, %s315
    %s332 = sphi 0, %s316
    %s338 = sphi 0, %s340
    %s341 = sphi 0, %s338
    %s342 = sphi 0, %s341
    %s358 = sphi 0, %s342
    %s364 = sphi 0, %s366
    %s367 = sphi 0, %s364
    %s368 = sphi 0, %s367
    %s384 = sphi 0, %s368
    %s390 = sphi 0, %s392
    %s393 = sphi 0, %s390
    %s394 = sphi 0, %s393
    %s410 = sphi 0, %s394
    %s414 = sphi 0, %s414
    %s416 = sphi 0, %s414
    %s417 = sphi 0, %s416
    %s431 = sphi 0, %s417
  $region4: #{transformer_forward.3} parent=0 // loop_header_branch
    %24 = sbr.rel (%p22) target = $region8
  $region5: #{transformer_forward.3} parent=0 // loop_body
    %s26 = ssub.s32 %s21, 1
    %s27 = ssub.s32 %s21, 2
    %s28 = sadd.s32 %s21, 1
    %s30 = sadd.s32 %s29, 1
    %p33 = scmp.eq.s32.totalorder %s21, 1
    %p34 = scmp.ne.s32.totalorder %s29, %s31
    %p35 = scmp.eq.s32.totalorder %s21, 0
    %p36 = por %p34, %p35
    %p37 = scmp.ne.s32.totalorder %s29, %s31
    %p38 = scmp.eq.s32.totalorder %s26, 1
    %p39 = por %p37, %p38
    %p40 = scmp.ne.s32.totalorder %s31, %s32
    %p41 = scmp.eq.s32.totalorder %s26, 0
    %p42 = por %p40, %p41
    %p43 = scmp.ne.s32.totalorder %s31, %s32
    %p44 = scmp.eq.s32.totalorder %s27, 1
    %p45 = por %p43, %p44
    %p47 = scmp.ne.s32.totalorder %s32, %s46
    %p48 = scmp.eq.s32.totalorder %s27, 0
    %p49 = por %p47, %p48
    %s50 = ssub.s32 %s21, %s28
    %p51 = scmp.eq.s32.totalorder %s50, 0
    %s53 = sadd.s32 %s52, 1
    %s54 = scalar_select %p51, %s52, %s53
    %p57 = pneg %p51
    %p58 = scmp.eq.s32.totalorder %s21, 1
    %p59 = por %p57, %p58
    %p60 = scmp.ne.s32.totalorder %s52, %s55
    %p61 = scmp.eq.s32.totalorder %s21, 0
    %p62 = por %p60, %p61
    %p63 = scmp.ne.s32.totalorder %s52, %s55
    %p64 = scmp.eq.s32.totalorder %s26, 1
    %p65 = por %p63, %p64
    %p66 = scmp.ne.s32.totalorder %s55, %s56
    %p67 = scmp.eq.s32.totalorder %s26, 0
    %p68 = por %p66, %p67
    %p69 = scmp.ne.s32.totalorder %s55, %s56
    %p70 = scmp.eq.s32.totalorder %s27, 1
    %p71 = por %p69, %p70
    %p73 = scmp.ne.s32.totalorder %s56, %s72
    %p74 = scmp.eq.s32.totalorder %s27, 0
    %p75 = por %p73, %p74
    %s76 = ssub.s32 %s21, %s28
    %p77 = scmp.eq.s32.totalorder %s76, 0
    %s79 = sadd.s32 %s78, 1
    %s80 = scalar_select %p77, %s78, %s79
    %p83 = pneg %p77
    %p84 = scmp.eq.s32.totalorder %s21, 1
    %p85 = por %p83, %p84
    %p86 = scmp.ne.s32.totalorder %s78, %s81
    %p87 = scmp.eq.s32.totalorder %s21, 0
    %p88 = por %p86, %p87
    %p89 = scmp.ne.s32.totalorder %s78, %s81
    %p90 = scmp.eq.s32.totalorder %s26, 1
    %p91 = por %p89, %p90
    %p92 = scmp.ne.s32.totalorder %s81, %s82
    %p93 = scmp.eq.s32.totalorder %s26, 0
    %p94 = por %p92, %p93
    %p95 = scmp.ne.s32.totalorder %s81, %s82
    %p96 = scmp.eq.s32.totalorder %s27, 1
    %p97 = por %p95, %p96
    %p99 = scmp.ne.s32.totalorder %s82, %s98
    %p100 = scmp.eq.s32.totalorder %s27, 0
    %p101 = por %p99, %p100
    %s102 = ssub.s32 %s21, %s28
    %p103 = scmp.eq.s32.totalorder %s102, 0
    %s105 = sadd.s32 %s104, 1
    %s106 = scalar_select %p103, %s104, %s105
    %p109 = pneg %p103
    %p110 = scmp.eq.s32.totalorder %s21, 1
    %p111 = por %p109, %p110
    %p112 = scmp.ne.s32.totalorder %s104, %s107
    %p113 = scmp.eq.s32.totalorder %s21, 0
    %p114 = por %p112, %p113
    %p115 = scmp.ne.s32.totalorder %s104, %s107
    %p116 = scmp.eq.s32.totalorder %s26, 1
    %p117 = por %p115, %p116
    %p118 = scmp.ne.s32.totalorder %s107, %s108
    %p119 = scmp.eq.s32.totalorder %s26, 0
    %p120 = por %p118, %p119
    %p121 = scmp.ne.s32.totalorder %s107, %s108
    %p122 = scmp.eq.s32.totalorder %s27, 1
    %p123 = por %p121, %p122
    %p125 = scmp.ne.s32.totalorder %s108, %s124
    %p126 = scmp.eq.s32.totalorder %s27, 0
    %p127 = por %p125, %p126
    %s128 = ssub.s32 %s21, %s28
    %p129 = scmp.eq.s32.totalorder %s128, 0
    %s131 = sadd.s32 %s130, 1
    %s132 = scalar_select %p129, %s130, %s131
    %p135 = pneg %p129
    %p136 = scmp.eq.s32.totalorder %s21, 1
    %p137 = por %p135, %p136
    %p138 = scmp.ne.s32.totalorder %s130, %s133
    %p139 = scmp.eq.s32.totalorder %s21, 0
    %p140 = por %p138, %p139
    %p141 = scmp.ne.s32.totalorder %s130, %s133
    %p142 = scmp.eq.s32.totalorder %s26, 1
    %p143 = por %p141, %p142
    %p144 = scmp.ne.s32.totalorder %s133, %s134
    %p145 = scmp.eq.s32.totalorder %s26, 0
    %p146 = por %p144, %p145
    %p147 = scmp.ne.s32.totalorder %s133, %s134
    %p148 = scmp.eq.s32.totalorder %s27, 1
    %p149 = por %p147, %p148
    %p151 = scmp.ne.s32.totalorder %s134, %s150
    %p152 = scmp.eq.s32.totalorder %s27, 0
    %p153 = por %p151, %p152
    %s154 = ssub.s32 %s21, %s28
    %p155 = scmp.eq.s32.totalorder %s154, 0
    %s157 = sadd.s32 %s156, 1
    %s158 = scalar_select %p155, %s156, %s157
    %p161 = pneg %p155
    %p162 = scmp.eq.s32.totalorder %s21, 1
    %p163 = por %p161, %p162
    %p164 = scmp.ne.s32.totalorder %s156, %s159
    %p165 = scmp.eq.s32.totalorder %s21, 0
    %p166 = por %p164, %p165
    %p167 = scmp.ne.s32.totalorder %s156, %s159
    %p168 = scmp.eq.s32.totalorder %s26, 1
    %p169 = por %p167, %p168
    %p170 = scmp.ne.s32.totalorder %s159, %s160
    %p171 = scmp.eq.s32.totalorder %s26, 0
    %p172 = por %p170, %p171
    %p173 = scmp.ne.s32.totalorder %s159, %s160
    %p174 = scmp.eq.s32.totalorder %s27, 1
    %p175 = por %p173, %p174
    %p177 = scmp.ne.s32.totalorder %s160, %s176
    %p178 = scmp.eq.s32.totalorder %s27, 0
    %p179 = por %p177, %p178
    %s180 = ssub.s32 %s21, %s28
    %p181 = scmp.eq.s32.totalorder %s180, 0
    %s183 = sadd.s32 %s182, 1
    %s184 = scalar_select %p181, %s182, %s183
    %p187 = pneg %p181
    %p188 = scmp.eq.s32.totalorder %s21, 1
    %p189 = por %p187, %p188
    %p190 = scmp.ne.s32.totalorder %s182, %s185
    %p191 = scmp.eq.s32.totalorder %s21, 0
    %p192 = por %p190, %p191
    %p193 = scmp.ne.s32.totalorder %s182, %s185
    %p194 = scmp.eq.s32.totalorder %s26, 1
    %p195 = por %p193, %p194
    %p196 = scmp.ne.s32.totalorder %s185, %s186
    %p197 = scmp.eq.s32.totalorder %s26, 0
    %p198 = por %p196, %p197
    %p199 = scmp.ne.s32.totalorder %s185, %s186
    %p200 = scmp.eq.s32.totalorder %s27, 1
    %p201 = por %p199, %p200
    %p203 = scmp.ne.s32.totalorder %s186, %s202
    %p204 = scmp.eq.s32.totalorder %s27, 0
    %p205 = por %p203, %p204
    %s206 = ssub.s32 %s21, %s28
    %p207 = scmp.eq.s32.totalorder %s206, 0
    %s209 = sadd.s32 %s208, 1
    %s210 = scalar_select %p207, %s208, %s209
    %p213 = pneg %p207
    %p214 = scmp.eq.s32.totalorder %s21, 1
    %p215 = por %p213, %p214
    %p216 = scmp.ne.s32.totalorder %s208, %s211
    %p217 = scmp.eq.s32.totalorder %s21, 0
    %p218 = por %p216, %p217
    %p219 = scmp.ne.s32.totalorder %s208, %s211
    %p220 = scmp.eq.s32.totalorder %s26, 1
    %p221 = por %p219, %p220
    %p222 = scmp.ne.s32.totalorder %s211, %s212
    %p223 = scmp.eq.s32.totalorder %s26, 0
    %p224 = por %p222, %p223
    %p225 = scmp.ne.s32.totalorder %s211, %s212
    %p226 = scmp.eq.s32.totalorder %s27, 1
    %p227 = por %p225, %p226
    %p229 = scmp.ne.s32.totalorder %s212, %s228
    %p230 = scmp.eq.s32.totalorder %s27, 0
    %p231 = por %p229, %p230
    %s232 = ssub.s32 %s21, %s28
    %p233 = scmp.eq.s32.totalorder %s232, 0
    %s235 = sadd.s32 %s234, 1
    %s236 = scalar_select %p233, %s234, %s235
    %p239 = pneg %p233
    %p240 = scmp.eq.s32.totalorder %s21, 1
    %p241 = por %p239, %p240
    %p242 = scmp.ne.s32.totalorder %s234, %s237
    %p243 = scmp.eq.s32.totalorder %s21, 0
    %p244 = por %p242, %p243
    %p245 = scmp.ne.s32.totalorder %s234, %s237
    %p246 = scmp.eq.s32.totalorder %s26, 1
    %p247 = por %p245, %p246
    %p248 = scmp.ne.s32.totalorder %s237, %s238
    %p249 = scmp.eq.s32.totalorder %s26, 0
    %p250 = por %p248, %p249
    %p251 = scmp.ne.s32.totalorder %s237, %s238
    %p252 = scmp.eq.s32.totalorder %s27, 1
    %p253 = por %p251, %p252
    %p255 = scmp.ne.s32.totalorder %s238, %s254
    %p256 = scmp.eq.s32.totalorder %s27, 0
    %p257 = por %p255, %p256
    %s258 = ssub.s32 %s21, %s28
    %p259 = scmp.eq.s32.totalorder %s258, 0
    %s261 = sadd.s32 %s260, 1
    %s262 = scalar_select %p259, %s260, %s261
    %p265 = pneg %p259
    %p266 = scmp.eq.s32.totalorder %s21, 1
    %p267 = por %p265, %p266
    %p268 = scmp.ne.s32.totalorder %s260, %s263
    %p269 = scmp.eq.s32.totalorder %s21, 0
    %p270 = por %p268, %p269
    %p271 = scmp.ne.s32.totalorder %s260, %s263
    %p272 = scmp.eq.s32.totalorder %s26, 1
    %p273 = por %p271, %p272
    %p274 = scmp.ne.s32.totalorder %s263, %s264
    %p275 = scmp.eq.s32.totalorder %s26, 0
    %p276 = por %p274, %p275
    %p277 = scmp.ne.s32.totalorder %s263, %s264
    %p278 = scmp.eq.s32.totalorder %s27, 1
    %p279 = por %p277, %p278
    %p281 = scmp.ne.s32.totalorder %s264, %s280
    %p282 = scmp.eq.s32.totalorder %s27, 0
    %p283 = por %p281, %p282
    %s284 = ssub.s32 %s21, %s28
    %p285 = scmp.eq.s32.totalorder %s284, 0
    %s287 = sadd.s32 %s286, 1
    %s288 = scalar_select %p285, %s286, %s287
    %p291 = pneg %p285
    %p292 = scmp.eq.s32.totalorder %s21, 1
    %p293 = por %p291, %p292
    %p294 = scmp.ne.s32.totalorder %s286, %s289
    %p295 = scmp.eq.s32.totalorder %s21, 0
    %p296 = por %p294, %p295
    %p297 = scmp.ne.s32.totalorder %s286, %s289
    %p298 = scmp.eq.s32.totalorder %s26, 1
    %p299 = por %p297, %p298
    %p300 = scmp.ne.s32.totalorder %s289, %s290
    %p301 = scmp.eq.s32.totalorder %s26, 0
    %p302 = por %p300, %p301
    %p303 = scmp.ne.s32.totalorder %s289, %s290
    %p304 = scmp.eq.s32.totalorder %s27, 1
    %p305 = por %p303, %p304
    %p307 = scmp.ne.s32.totalorder %s290, %s306
    %p308 = scmp.eq.s32.totalorder %s27, 0
    %p309 = por %p307, %p308
    %s310 = ssub.s32 %s21, %s28
    %p311 = scmp.eq.s32.totalorder %s310, 0
    %s313 = sadd.s32 %s312, 1
    %s314 = scalar_select %p311, %s312, %s313
    %p317 = pneg %p311
    %p318 = scmp.eq.s32.totalorder %s21, 1
    %p319 = por %p317, %p318
    %p320 = scmp.ne.s32.totalorder %s312, %s315
    %p321 = scmp.eq.s32.totalorder %s21, 0
    %p322 = por %p320, %p321
    %p323 = scmp.ne.s32.totalorder %s312, %s315
    %p324 = scmp.eq.s32.totalorder %s26, 1
    %p325 = por %p323, %p324
    %p326 = scmp.ne.s32.totalorder %s315, %s316
    %p327 = scmp.eq.s32.totalorder %s26, 0
    %p328 = por %p326, %p327
    %p329 = scmp.ne.s32.totalorder %s315, %s316
    %p330 = scmp.eq.s32.totalorder %s27, 1
    %p331 = por %p329, %p330
    %p333 = scmp.ne.s32.totalorder %s316, %s332
    %p334 = scmp.eq.s32.totalorder %s27, 0
    %p335 = por %p333, %p334
    %s336 = ssub.s32 %s21, %s28
    %p337 = scmp.eq.s32.totalorder %s336, 0
    %s339 = sadd.s32 %s338, 1
    %s340 = scalar_select %p337, %s338, %s339
    %p343 = pneg %p337
    %p344 = scmp.eq.s32.totalorder %s21, 1
    %p345 = por %p343, %p344
    %p346 = scmp.ne.s32.totalorder %s338, %s341
    %p347 = scmp.eq.s32.totalorder %s21, 0
    %p348 = por %p346, %p347
    %p349 = scmp.ne.s32.totalorder %s338, %s341
    %p350 = scmp.eq.s32.totalorder %s26, 1
    %p351 = por %p349, %p350
    %p352 = scmp.ne.s32.totalorder %s341, %s342
    %p353 = scmp.eq.s32.totalorder %s26, 0
    %p354 = por %p352, %p353
    %p355 = scmp.ne.s32.totalorder %s341, %s342
    %p356 = scmp.eq.s32.totalorder %s27, 1
    %p357 = por %p355, %p356
    %p359 = scmp.ne.s32.totalorder %s342, %s358
    %p360 = scmp.eq.s32.totalorder %s27, 0
    %p361 = por %p359, %p360
    %s362 = ssub.s32 %s21, %s28
    %p363 = scmp.eq.s32.totalorder %s362, 0
    %s365 = sadd.s32 %s364, 1
    %s366 = scalar_select %p363, %s364, %s365
    %p369 = pneg %p363
    %p370 = scmp.eq.s32.totalorder %s21, 1
    %p371 = por %p369, %p370
    %p372 = scmp.ne.s32.totalorder %s364, %s367
    %p373 = scmp.eq.s32.totalorder %s21, 0
    %p374 = por %p372, %p373
    %p375 = scmp.ne.s32.totalorder %s364, %s367
    %p376 = scmp.eq.s32.totalorder %s26, 1
    %p377 = por %p375, %p376
    %p378 = scmp.ne.s32.totalorder %s367, %s368
    %p379 = scmp.eq.s32.totalorder %s26, 0
    %p380 = por %p378, %p379
    %p381 = scmp.ne.s32.totalorder %s367, %s368
    %p382 = scmp.eq.s32.totalorder %s27, 1
    %p383 = por %p381, %p382
    %p385 = scmp.ne.s32.totalorder %s368, %s384
    %p386 = scmp.eq.s32.totalorder %s27, 0
    %p387 = por %p385, %p386
    %s388 = ssub.s32 %s21, %s28
    %p389 = scmp.eq.s32.totalorder %s388, 0
    %s391 = sadd.s32 %s390, 1
    %s392 = scalar_select %p389, %s390, %s391
    %p395 = pneg %p389
    %p396 = scmp.eq.s32.totalorder %s21, 1
    %p397 = por %p395, %p396
    %p398 = scmp.ne.s32.totalorder %s390, %s393
    %p399 = scmp.eq.s32.totalorder %s21, 0
    %p400 = por %p398, %p399
    %p401 = scmp.ne.s32.totalorder %s390, %s393
    %p402 = scmp.eq.s32.totalorder %s26, 1
    %p403 = por %p401, %p402
    %p404 = scmp.ne.s32.totalorder %s393, %s394
    %p405 = scmp.eq.s32.totalorder %s26, 0
    %p406 = por %p404, %p405
    %p407 = scmp.ne.s32.totalorder %s393, %s394
    %p408 = scmp.eq.s32.totalorder %s27, 1
    %p409 = por %p407, %p408
    %p411 = scmp.ne.s32.totalorder %s394, %s410
    %p412 = scmp.eq.s32.totalorder %s27, 0
    %p413 = por %p411, %p412
    %s415 = sadd.s32 %s414, 1
    %p418 = scmp.eq.s32.totalorder %s21, 1
    %p419 = scmp.ne.s32.totalorder %s414, %s416
    %p420 = scmp.eq.s32.totalorder %s21, 0
    %p421 = por %p419, %p420
    %p422 = scmp.ne.s32.totalorder %s414, %s416
    %p423 = scmp.eq.s32.totalorder %s26, 1
    %p424 = por %p422, %p423
    %p425 = scmp.ne.s32.totalorder %s416, %s417
    %p426 = scmp.eq.s32.totalorder %s26, 0
    %p427 = por %p425, %p426
    %p428 = scmp.ne.s32.totalorder %s416, %s417
    %p429 = scmp.eq.s32.totalorder %s27, 1
    %p430 = por %p428, %p429
    %p432 = scmp.ne.s32.totalorder %s417, %s431
    %p433 = scmp.eq.s32.totalorder %s27, 0
    %p434 = por %p432, %p433
    %p435 = scmp.le.s32.totalorder 1, %s21
    %p436 = scmp.lt.s32.totalorder %s21, 3
    %p437 = pnand %p435, %p436
    %p438 = pneg %p437
    // Predicated region
    $region9: #{transformer_forward.3} parent=5 // pred_check
      _
    $region10: #{transformer_forward.3} parent=5 // pred_check_branch
      %440 = sbr.rel (%p437) target = $region12
    $region11: #{transformer_forward.3} parent=5 // pred_region
      %s441 = ssub.s32 %s21, 1
      // Predicated region
      $region13: #{transformer_forward.3} parent=11 // pred_check
        %p442 = pneg %p42
      $region14: #{transformer_forward.3} parent=11 // pred_check_branch
        %444 = sbr.rel (%p442) target = $region16
      $region15: #{transformer_forward.3} parent=11 // pred_region
        _
      $region16: #{transformer_forward.3} parent=11 // pred_fallthru
        _
    $region12: #{transformer_forward.3} parent=5 // pred_fallthru
      _
    %p445 = scmp.lt.s32.totalorder %s21, 2
    // Predicated region
    $region17: #{transformer_forward.3} parent=5 // pred_check
      %p446 = pneg %p445
    $region18: #{transformer_forward.3} parent=5 // pred_check_branch
      %448 = sbr.rel (%p446) target = $region20
    $region19: #{transformer_forward.3} parent=5 // pred_region
      // Predicated region
      $region21: #{transformer_forward.3} parent=19 // pred_check
        %p449 = pneg %p62
      $region22: #{transformer_forward.3} parent=19 // pred_check_branch
        %451 = sbr.rel (%p449) target = $region24
      $region23: #{transformer_forward.3} parent=19 // pred_region
        %p452 = scmp.lt.s32.totalorder %s21, 1
        %s453 = scalar_select %p452, %s21, 1
        %s454 = smul.addr %s453, 4
        %s455 = smul.addr %s454, 8
        %s456 = scalar_lea.vmem %s1, %s455
      $region24: #{transformer_forward.3} parent=19 // pred_fallthru
        _
      // Predicated region
      $region25: #{transformer_forward.3} parent=19 // pred_check
        %p457 = pneg %p88
      $region26: #{transformer_forward.3} parent=19 // pred_check_branch
        %459 = sbr.rel (%p457) target = $region28
      $region27: #{transformer_forward.3} parent=19 // pred_region
        %p460 = scmp.lt.s32.totalorder %s21, 1
        %s461 = scalar_select %p460, %s21, 1
        %s462 = scalar_lea.vmem %s2, %s461
      $region28: #{transformer_forward.3} parent=19 // pred_fallthru
        _
      // Predicated region
      $region29: #{transformer_forward.3} parent=19 // pred_check
        %p463 = pneg %p114
      $region30: #{transformer_forward.3} parent=19 // pred_check_branch
        %465 = sbr.rel (%p463) target = $region32
      $region31: #{transformer_forward.3} parent=19 // pred_region
        %p466 = scmp.lt.s32.totalorder %s21, 1
        %s467 = scalar_select %p466, %s21, 1
        %s468 = smul.addr %s467, 4
        %s469 = smul.addr %s468, 8
        %s470 = scalar_lea.vmem %s3, %s469
      $region32: #{transformer_forward.3} parent=19 // pred_fallthru
        _
      // Predicated region
      $region33: #{transformer_forward.3} parent=19 // pred_check
        %p471 = pneg %p140
      $region34: #{transformer_forward.3} parent=19 // pred_check_branch
        %473 = sbr.rel (%p471) target = $region36
      $region35: #{transformer_forward.3} parent=19 // pred_region
        %p474 = scmp.lt.s32.totalorder %s21, 1
        %s475 = scalar_select %p474, %s21, 1
        %s476 = scalar_lea.vmem %s4, %s475
      $region36: #{transformer_forward.3} parent=19 // pred_fallthru
        _
      // Predicated region
      $region37: #{transformer_forward.3} parent=19 // pred_check
        %p477 = pneg %p166
      $region38: #{transformer_forward.3} parent=19 // pred_check_branch
        %479 = sbr.rel (%p477) target = $region40
      $region39: #{transformer_forward.3} parent=19 // pred_region
        %p480 = scmp.lt.s32.totalorder %s21, 1
        %s481 = scalar_select %p480, %s21, 1
        %s482 = smul.addr %s481, 4
        %s483 = smul.addr %s482, 8
        %s484 = scalar_lea.vmem %s5, %s483
      $region40: #{transformer_forward.3} parent=19 // pred_fallthru
        _
      // Predicated region
      $region41: #{transformer_forward.3} parent=19 // pred_check
        %p485 = pneg %p192
      $region42: #{transformer_forward.3} parent=19 // pred_check_branch
        %487 = sbr.rel (%p485) target = $region44
      $region43: #{transformer_forward.3} parent=19 // pred_region
        %p488 = scmp.lt.s32.totalorder %s21, 1
        %s489 = scalar_select %p488, %s21, 1
        %s490 = scalar_lea.vmem %s6, %s489
      $region44: #{transformer_forward.3} parent=19 // pred_fallthru
        _
      // Predicated region
      $region45: #{transformer_forward.3} parent=19 // pred_check
        %p491 = pneg %p218
      $region46: #{transformer_forward.3} parent=19 // pred_check_branch
        %493 = sbr.rel (%p491) target = $region48
      $region47: #{transformer_forward.3} parent=19 // pred_region
        %p494 = scmp.lt.s32.totalorder %s21, 1
        %s495 = scalar_select %p494, %s21, 1
        %s496 = scalar_lea.vmem %s7, %s495
      $region48: #{transformer_forward.3} parent=19 // pred_fallthru
        _
      // Predicated region
      $region49: #{transformer_forward.3} parent=19 // pred_check
        %p497 = pneg %p244
      $region50: #{transformer_forward.3} parent=19 // pred_check_branch
        %499 = sbr.rel (%p497) target = $region52
      $region51: #{transformer_forward.3} parent=19 // pred_region
        %p500 = scmp.lt.s32.totalorder %s21, 1
        %s501 = scalar_select %p500, %s21, 1
        %s502 = scalar_lea.vmem %s8, %s501
      $region52: #{transformer_forward.3} parent=19 // pred_fallthru
        _
      // Predicated region
      $region53: #{transformer_forward.3} parent=19 // pred_check
        %p503 = pneg %p270
      $region54: #{transformer_forward.3} parent=19 // pred_check_branch
        %505 = sbr.rel (%p503) target = $region56
      $region55: #{transformer_forward.3} parent=19 // pred_region
        %p506 = scmp.lt.s32.totalorder %s21, 1
        %s507 = scalar_select %p506, %s21, 1
        %s508 = smul.addr %s507, 4
        %s509 = smul.addr %s508, 8
        %s510 = scalar_lea.vmem %s9, %s509
      $region56: #{transformer_forward.3} parent=19 // pred_fallthru
        _
      // Predicated region
      $region57: #{transformer_forward.3} parent=19 // pred_check
        %p511 = pneg %p296
      $region58: #{transformer_forward.3} parent=19 // pred_check_branch
        %513 = sbr.rel (%p511) target = $region60
      $region59: #{transformer_forward.3} parent=19 // pred_region
        %p514 = scmp.lt.s32.totalorder %s21, 1
        %s515 = scalar_select %p514, %s21, 1
        %s516 = scalar_lea.vmem %s10, %s515
      $region60: #{transformer_forward.3} parent=19 // pred_fallthru
        _
      // Predicated region
      $region61: #{transformer_forward.3} parent=19 // pred_check
        %p517 = pneg %p322
      $region62: #{transformer_forward.3} parent=19 // pred_check_branch
        %519 = sbr.rel (%p517) target = $region64
      $region63: #{transformer_forward.3} parent=19 // pred_region
        %p520 = scmp.lt.s32.totalorder %s21, 1
        %s521 = scalar_select %p520, %s21, 1
        %s522 = smul.addr %s521, 16
        %s523 = smul.addr %s522, 8
        %s524 = scalar_lea.vmem %s11, %s523
      $region64: #{transformer_forward.3} parent=19 // pred_fallthru
        _
      // Predicated region
      $region65: #{transformer_forward.3} parent=19 // pred_check
        %p525 = pneg %p348
      $region66: #{transformer_forward.3} parent=19 // pred_check_branch
        %527 = sbr.rel (%p525) target = $region68
      $region67: #{transformer_forward.3} parent=19 // pred_region
        %p528 = scmp.lt.s32.totalorder %s21, 1
        %s529 = scalar_select %p528, %s21, 1
        %s530 = scalar_lea.vmem %s12, %s529
      $region68: #{transformer_forward.3} parent=19 // pred_fallthru
        _
      // Predicated region
      $region69: #{transformer_forward.3} parent=19 // pred_check
        %p531 = pneg %p374
      $region70: #{transformer_forward.3} parent=19 // pred_check_branch
        %533 = sbr.rel (%p531) target = $region72
      $region71: #{transformer_forward.3} parent=19 // pred_region
        %p534 = scmp.lt.s32.totalorder %s21, 1
        %s535 = scalar_select %p534, %s21, 1
        %s536 = scalar_lea.vmem %s13, %s535
      $region72: #{transformer_forward.3} parent=19 // pred_fallthru
        _
      // Predicated region
      $region73: #{transformer_forward.3} parent=19 // pred_check
        %p537 = pneg %p400
      $region74: #{transformer_forward.3} parent=19 // pred_check_branch
        %539 = sbr.rel (%p537) target = $region76
      $region75: #{transformer_forward.3} parent=19 // pred_region
        %p540 = scmp.lt.s32.totalorder %s21, 1
        %s541 = scalar_select %p540, %s21, 1
        %s542 = scalar_lea.vmem %s14, %s541
      $region76: #{transformer_forward.3} parent=19 // pred_fallthru
        _
    $region20: #{transformer_forward.3} parent=5 // pred_fallthru
      _
    %p543 = scmp.le.s32.totalorder 1, %s21
    %p544 = scmp.lt.s32.totalorder %s21, 3
    %p545 = pnand %p543, %p544
    %p546 = pneg %p545
    // Predicated region
    $region77: #{transformer_forward.3} parent=5 // pred_check
      _
    $region78: #{transformer_forward.3} parent=5 // pred_check_branch
      %548 = sbr.rel (%p545) target = $region80
    $region79: #{transformer_forward.3} parent=5 // pred_region
      %s549 = ssub.s32 %s21, 1
      %p550 = pneg %p42
      %p551 = pneg %p39
      %p552 = scmp.lt.s32.totalorder %s26, 1
      %s553 = scalar_select %p552, %s26, 1
      %s554 = smul.addr %s553, 4
      %s555 = smul.addr %s554, 8
      %s556 = scalar_lea.vmem %s1, %s555
      %p557 = pneg %p68
      %p558 = pneg %p65
      %p559 = scmp.lt.s32.totalorder %s26, 1
      %s560 = scalar_select %p559, %s26, 1
      %s561 = scalar_lea.vmem %s2, %s560
      %p562 = pneg %p94
      %p563 = pneg %p91
      %p564 = scmp.lt.s32.totalorder %s26, 1
      %s565 = scalar_select %p564, %s26, 1
      %s566 = smul.addr %s565, 4
      %s567 = smul.addr %s566, 8
      %s568 = scalar_lea.vmem %s3, %s567
      %p569 = pneg %p120
      %p570 = pneg %p117
      %p571 = scmp.lt.s32.totalorder %s26, 1
      %s572 = scalar_select %p571, %s26, 1
      %s573 = scalar_lea.vmem %s4, %s572
      %p574 = pneg %p146
      %p575 = pneg %p143
      %p576 = scmp.lt.s32.totalorder %s26, 1
      %s577 = scalar_select %p576, %s26, 1
      %s578 = smul.addr %s577, 4
      %s579 = smul.addr %s578, 8
      %s580 = scalar_lea.vmem %s5, %s579
      %p581 = pneg %p172
      %p582 = pneg %p169
      %p583 = scmp.lt.s32.totalorder %s26, 1
      %s584 = scalar_select %p583, %s26, 1
      %s585 = scalar_lea.vmem %s6, %s584
      %p586 = pneg %p198
      %p587 = pneg %p195
      %p588 = scmp.lt.s32.totalorder %s26, 1
      %s589 = scalar_select %p588, %s26, 1
      %s590 = scalar_lea.vmem %s7, %s589
      %p591 = pneg %p224
      %p592 = pneg %p221
      %p593 = scmp.lt.s32.totalorder %s26, 1
      %s594 = scalar_select %p593, %s26, 1
      %s595 = scalar_lea.vmem %s8, %s594
      %p596 = pneg %p250
      %p597 = pneg %p247
      %p598 = scmp.lt.s32.totalorder %s26, 1
      %s599 = scalar_select %p598, %s26, 1
      %s600 = smul.addr %s599, 4
      %s601 = smul.addr %s600, 8
      %s602 = scalar_lea.vmem %s9, %s601
      %p603 = pneg %p276
      %p604 = pneg %p273
      %p605 = scmp.lt.s32.totalorder %s26, 1
      %s606 = scalar_select %p605, %s26, 1
      %s607 = scalar_lea.vmem %s10, %s606
      %p608 = pneg %p302
      %p609 = pneg %p299
      %p610 = scmp.lt.s32.totalorder %s26, 1
      %s611 = scalar_select %p610, %s26, 1
      %s612 = smul.addr %s611, 16
      %s613 = smul.addr %s612, 8
      %s614 = scalar_lea.vmem %s11, %s613
      %p615 = pneg %p328
      %p616 = pneg %p325
      %p617 = scmp.lt.s32.totalorder %s26, 1
      %s618 = scalar_select %p617, %s26, 1
      %s619 = scalar_lea.vmem %s12, %s618
      %p620 = pneg %p354
      %p621 = pneg %p351
      %p622 = scmp.lt.s32.totalorder %s26, 1
      %s623 = scalar_select %p622, %s26, 1
      %s624 = scalar_lea.vmem %s13, %s623
      %p625 = pneg %p380
      %p626 = pneg %p377
      %p627 = scmp.lt.s32.totalorder %s26, 1
      %s628 = scalar_select %p627, %s26, 1
      %s629 = scalar_lea.vmem %s14, %s628
      %p630 = pneg %p406
      %p631 = pneg %p403
      %p632 = pneg %p427
      %p633 = pneg %p424
      %p634 = scmp.lt.s32.totalorder %s26, 1
      %s635 = scalar_select %p634, %s26, 1
      %s636 = smul.addr %s635, 4
      %s637 = smul.addr %s636, 8
      %s638 = scalar_lea.vmem %s1, %s637
      %p639 = scmp.lt.s32.totalorder %s26, 1
      %s640 = scalar_select %p639, %s26, 1
      %s641 = scalar_lea.vmem %s2, %s640
      %p642 = scmp.lt.s32.totalorder %s26, 1
      %s643 = scalar_select %p642, %s26, 1
      %s644 = smul.addr %s643, 4
      %s645 = smul.addr %s644, 8
      %s646 = scalar_lea.vmem %s3, %s645
      %p647 = scmp.lt.s32.totalorder %s26, 1
      %s648 = scalar_select %p647, %s26, 1
      %s649 = scalar_lea.vmem %s4, %s648
      %p650 = scmp.lt.s32.totalorder %s26, 1
      %s651 = scalar_select %p650, %s26, 1
      %s652 = smul.addr %s651, 4
      %s653 = smul.addr %s652, 8
      %s654 = scalar_lea.vmem %s5, %s653
      %p655 = scmp.lt.s32.totalorder %s26, 1
      %s656 = scalar_select %p655, %s26, 1
      %s657 = scalar_lea.vmem %s6, %s656
      %p658 = scmp.lt.s32.totalorder %s26, 1
      %s659 = scalar_select %p658, %s26, 1
      %s660 = scalar_lea.vmem %s7, %s659
      %p661 = scmp.lt.s32.totalorder %s26, 1
      %s662 = scalar_select %p661, %s26, 1
      %s663 = scalar_lea.vmem %s8, %s662
      %p664 = scmp.lt.s32.totalorder %s26, 1
      %s665 = scalar_select %p664, %s26, 1
      %s666 = smul.addr %s665, 4
      %s667 = smul.addr %s666, 8
      %s668 = scalar_lea.vmem %s9, %s667
      %p669 = scmp.lt.s32.totalorder %s26, 1
      %s670 = scalar_select %p669, %s26, 1
      %s671 = scalar_lea.vmem %s10, %s670
      %p672 = scmp.lt.s32.totalorder %s26, 1
      %s673 = scalar_select %p672, %s26, 1
      %s674 = smul.addr %s673, 16
      %s675 = smul.addr %s674, 8
      %s676 = scalar_lea.vmem %s11, %s675
      %p677 = scmp.lt.s32.totalorder %s26, 1
      %s678 = scalar_select %p677, %s26, 1
      %s679 = scalar_lea.vmem %s12, %s678
      %p680 = scmp.lt.s32.totalorder %s26, 1
      %s681 = scalar_select %p680, %s26, 1
      %s682 = scalar_lea.vmem %s13, %s681
      %p683 = scmp.lt.s32.totalorder %s26, 1
      %s684 = scalar_select %p683, %s26, 1
      %s685 = scalar_lea.vmem %s14, %s684
      %p686 = scmp.eq.s32.totalorder %s26, 0
      // Predicated region
      $region81: #{transformer_forward.3} parent=79 // pred_check
        %p687 = pneg %p686
      $region82: #{transformer_forward.3} parent=79 // pred_check_branch
        %689 = sbr.rel (%p687) target = $region84
      $region83: #{transformer_forward.3} parent=79 // pred_region
        %v690 = vld [vmem:[%s0] sm:$0xff]
        %v691 = vld [vmem:[%s0 + $0x8] sm:$0xff]
        %vm692 = vcmask 261120
        %693 = vst.msk [vmem:[#allocation2] sm:$0xff] %vm692, %v690
        %694 = vst.msk [vmem:[#allocation2 + $0x8] sm:$0xff] %vm692, %v691
      $region84: #{transformer_forward.3} parent=79 // pred_fallthru
        _
      %v695 = vld [vmem:[#allocation2] sm:$0xff]
      %v696 = vld [vmem:[#allocation2 + $0x8] sm:$0xff]
      %v697 = vld [vmem:[%s638] sm:$0xff]
      %v698 = vld [vmem:[%s638 + $0x8] sm:$0xff]
      %v699 = vld [vmem:[%s638 + $0x10] sm:$0xff]
      %v700 = vld [vmem:[%s638 + $0x18] sm:$0xff]
      %v701 = vld [vmem:[%s641] sm:$0x1]
      %v702 = vld [vmem:[%s646] sm:$0xff]
      %v703 = vld [vmem:[%s646 + $0x8] sm:$0xff]
      %v704 = vld [vmem:[%s646 + $0x10] sm:$0xff]
      %v705 = vld [vmem:[%s646 + $0x18] sm:$0xff]
      %v706 = vld [vmem:[%s649] sm:$0x1]
      %v707 = vld [vmem:[%s654] sm:$0xff]
      %v708 = vld [vmem:[%s654 + $0x8] sm:$0xff]
      %v709 = vld [vmem:[%s654 + $0x10] sm:$0xff]
      %v710 = vld [vmem:[%s654 + $0x18] sm:$0xff]
      %v711 = vld [vmem:[%s657] sm:$0x1]
      %v713 = vlaneseq
      %v714 = vshrl.u32 %v713, 7
      %v715 = vsub.s32 0, %v714
      %v716 = vrot.slane %v701, %v715
      %vm718 = vcmask 261120
      %v720 = vsel %vm718, %v695, 0
      %v723 = vsel %vm718, %v696, 0
      %725 = vmatprep.subr.mxu0 0.0
      %726 = vmatpush1.msra.mxu0 0.0
      %727 = vmatprep.subr.mxu0 0.0
      %728 = vmatpush1.msra.mxu0 0.0
      %729 = vmatprep.subr.mxu0 0.0
      %730 = vmatpush1.msra.mxu0 0.0
      %731 = vmatprep.subr.mxu0 0.0
      %732 = vmatpush1.msra.mxu0 0.0
      %733 = vmatprep.subr.mxu0 0.0
      %734 = vmatpush1.msra.mxu0 0.0
      %735 = vmatprep.subr.mxu0 0.0
      %736 = vmatpush1.msra.mxu0 0.0
      %737 = vmatprep.subr.mxu0 0.0
      %738 = vmatpush1.msra.mxu0 0.0
      %739 = vmatprep.subr.mxu0 0.0
      %740 = vmatpush1.msra.mxu0 0.0
      %741 = vmatprep.subr.mxu0 0.0
      %742 = vmatpush1.msra.mxu0 0.0
      %743 = vmatprep.subr.mxu0 0.0
      %744 = vmatpush1.msra.mxu0 0.0
      %745 = vmatprep.subr.mxu0 0.0
      %746 = vmatpush1.msra.mxu0 0.0
      %747 = vmatprep.subr.mxu0 0.0
      %748 = vmatpush1.msra.mxu0 0.0
      %749 = vmatprep.subr.mxu0 0.0
      %750 = vmatpush1.msra.mxu0 %v700
      %751 = vmatprep.subr.mxu0 0.0
      %752 = vmatpush1.msra.mxu0 %v699
      %753 = vmatprep.subr.mxu0 0.0
      %754 = vmatpush1.msra.mxu0 %v698
      %755 = vmatprep.subr.mxu0 0.0
      %756 = vmatpush1.msra.mxu0 %v697
      %757 = vmatprep.subr.mxu0 0.0
      %758 = vmatpush2.msra.mxu0 0.0
      %759 = vmatprep.subr.mxu0 0.0
      %760 = vmatpush2.msra.mxu0 0.0
      %761 = vmatprep.subr.mxu0 0.0
      %762 = vmatpush2.msra.mxu0 0.0
      %763 = vmatprep.subr.mxu0 0.0
      %764 = vmatpush2.msra.mxu0 0.0
      %765 = vmatprep.subr.mxu0 0.0
      %766 = vmatpush2.msra.mxu0 0.0
      %767 = vmatprep.subr.mxu0 0.0
      %768 = vmatpush2.msra.mxu0 0.0
      %769 = vmatprep.subr.mxu0 0.0
      %770 = vmatpush2.msra.mxu0 0.0
      %771 = vmatprep.subr.mxu0 0.0
      %772 = vmatpush2.msra.mxu0 0.0
      %773 = vmatprep.subr.mxu0 0.0
      %774 = vmatpush2.msra.mxu0 0.0
      %775 = vmatprep.subr.mxu0 0.0
      %776 = vmatpush2.msra.mxu0 0.0
      %777 = vmatprep.subr.mxu0 0.0
      %778 = vmatpush2.msra.mxu0 0.0
      %779 = vmatprep.subr.mxu0 0.0
      %780 = vmatpush2.msra.mxu0 0.0
      %781 = vmatprep.subr.mxu0 0.0
      %782 = vmatpush2.msra.mxu0 0.0
      %783 = vmatprep.subr.mxu0 0.0
      %784 = vmatpush2.msra.mxu0 0.0
      %785 = vmatprep.subr.mxu0 0.0
      %786 = vmatpush2.msra.mxu0 0.0
      %787 = vmatprep.subr.mxu0 0.0
      %788 = vmatpush2.msra.mxu0 0.0
      %789 = vmatprep.mubr.f32.mxu0 0.0
      %790 = vmatmul.mubr.f32.gmra.mxu0 %v720
      %v791 = vpop.f32.mrf.mxu0
      %v792 = vadd.f32 %v716, %v791
      %v793 = vpop.f32.mrf.mxu0
      %794 = vmatprep.mubr.f32.mxu0 0.0
      %795 = vmatmul.mubr.f32.gmra.mxu0 %v723
      %v796 = vpop.f32.mrf.mxu0
      %v797 = vadd.f32 %v716, %v796
      %v798 = vpop.f32.mrf.mxu0
      %799 = vdwg.mxu0
      %v801 = vlaneseq
      %v802 = vshrl.u32 %v801, 7
      %v803 = vsub.s32 0, %v802
      %v804 = vrot.slane %v706, %v803
      %806 = vmatprep.subr.mxu0 0.0
      %807 = vmatpush1.msra.mxu0 0.0
      %808 = vmatprep.subr.mxu0 0.0
      %809 = vmatpush1.msra.mxu0 0.0
      %810 = vmatprep.subr.mxu0 0.0
      %811 = vmatpush1.msra.mxu0 0.0
      %812 = vmatprep.subr.mxu0 0.0
      %813 = vmatpush1.msra.mxu0 0.0
      %814 = vmatprep.subr.mxu0 0.0
      %815 = vmatpush1.msra.mxu0 0.0
      %816 = vmatprep.subr.mxu0 0.0
      %817 = vmatpush1.msra.mxu0 0.0
      %818 = vmatprep.subr.mxu0 0.0
      %819 = vmatpush1.msra.mxu0 0.0
      %820 = vmatprep.subr.mxu0 0.0
      %821 = vmatpush1.msra.mxu0 0.0
      %822 = vmatprep.subr.mxu0 0.0
      %823 = vmatpush1.msra.mxu0 0.0
      %824 = vmatprep.subr.mxu0 0.0
      %825 = vmatpush1.msra.mxu0 0.0
      %826 = vmatprep.subr.mxu0 0.0
      %827 = vmatpush1.msra.mxu0 0.0
      %828 = vmatprep.subr.mxu0 0.0
      %829 = vmatpush1.msra.mxu0 0.0
      %830 = vmatprep.subr.mxu0 0.0
      %831 = vmatpush1.msra.mxu0 %v705
      %832 = vmatprep.subr.mxu0 0.0
      %833 = vmatpush1.msra.mxu0 %v704
      %834 = vmatprep.subr.mxu0 0.0
      %835 = vmatpush1.msra.mxu0 %v703
      %836 = vmatprep.subr.mxu0 0.0
      %837 = vmatpush1.msra.mxu0 %v702
      %838 = vmatprep.subr.mxu0 0.0
      %839 = vmatpush2.msra.mxu0 0.0
      %840 = vmatprep.subr.mxu0 0.0
      %841 = vmatpush2.msra.mxu0 0.0
      %842 = vmatprep.subr.mxu0 0.0
      %843 = vmatpush2.msra.mxu0 0.0
      %844 = vmatprep.subr.mxu0 0.0
      %845 = vmatpush2.msra.mxu0 0.0
      %846 = vmatprep.subr.mxu0 0.0
      %847 = vmatpush2.msra.mxu0 0.0
      %848 = vmatprep.subr.mxu0 0.0
      %849 = vmatpush2.msra.mxu0 0.0
      %850 = vmatprep.subr.mxu0 0.0
      %851 = vmatpush2.msra.mxu0 0.0
      %852 = vmatprep.subr.mxu0 0.0
      %853 = vmatpush2.msra.mxu0 0.0
      %854 = vmatprep.subr.mxu0 0.0
      %855 = vmatpush2.msra.mxu0 0.0
      %856 = vmatprep.subr.mxu0 0.0
      %857 = vmatpush2.msra.mxu0 0.0
      %858 = vmatprep.subr.mxu0 0.0
      %859 = vmatpush2.msra.mxu0 0.0
      %860 = vmatprep.subr.mxu0 0.0
      %861 = vmatpush2.msra.mxu0 0.0
      %862 = vmatprep.subr.mxu0 0.0
      %863 = vmatpush2.msra.mxu0 0.0
      %864 = vmatprep.subr.mxu0 0.0
      %865 = vmatpush2.msra.mxu0 0.0
      %866 = vmatprep.subr.mxu0 0.0
      %867 = vmatpush2.msra.mxu0 0.0
      %868 = vmatprep.subr.mxu0 0.0
      %869 = vmatpush2.msra.mxu0 0.0
      %870 = vmatprep.mubr.f32.mxu0 0.0
      %871 = vmatmul.mubr.f32.gmra.mxu0 %v720
      %v872 = vpop.f32.mrf.mxu0
      %v873 = vadd.f32 %v804, %v872
      %v874 = vpop.f32.mrf.mxu0
      %875 = vmatprep.mubr.f32.mxu0 0.0
      %876 = vmatmul.mubr.f32.gmra.mxu0 %v723
      %v877 = vpop.f32.mrf.mxu0
      %v878 = vadd.f32 %v804, %v877
      %v879 = vpop.f32.mrf.mxu0
      %880 = vdwg.mxu0
      %vm881 = vcmask 64512
      %v883 = vsel %vm881, %v792, 0
      %v886 = vsel %vm881, %v873, 0
      %888 = vmatprep.subr.mxu0 0.0
      %889 = vmatpush1.xpose.msra.mxu0 0.0
      %890 = vmatprep.subr.mxu0 0.0
      %891 = vmatpush1.xpose.msra.mxu0 0.0
      %892 = vmatprep.subr.mxu0 0.0
      %893 = vmatpush1.xpose.msra.mxu0 0.0
      %894 = vmatprep.subr.mxu0 0.0
      %895 = vmatpush1.xpose.msra.mxu0 0.0
      %896 = vmatprep.subr.mxu0 0.0
      %897 = vmatpush1.xpose.msra.mxu0 0.0
      %898 = vmatprep.subr.mxu0 0.0
      %899 = vmatpush1.xpose.msra.mxu0 0.0
      %900 = vmatprep.subr.mxu0 0.0
      %901 = vmatpush1.xpose.msra.mxu0 0.0
      %902 = vmatprep.subr.mxu0 0.0
      %903 = vmatpush1.xpose.msra.mxu0 0.0
      %904 = vmatprep.subr.mxu0 0.0
      %905 = vmatpush1.xpose.msra.mxu0 0.0
      %906 = vmatprep.subr.mxu0 0.0
      %907 = vmatpush1.xpose.msra.mxu0 0.0
      %908 = vmatprep.subr.mxu0 0.0
      %909 = vmatpush1.xpose.msra.mxu0 0.0
      %910 = vmatprep.subr.mxu0 0.0
      %911 = vmatpush1.xpose.msra.mxu0 0.0
      %912 = vmatprep.subr.mxu0 0.0
      %913 = vmatpush1.xpose.msra.mxu0 0.0
      %914 = vmatprep.subr.mxu0 0.0
      %915 = vmatpush1.xpose.msra.mxu0 0.0
      %916 = vmatprep.subr.mxu0 0.0
      %917 = vmatpush1.xpose.msra.mxu0 0.0
      %918 = vmatprep.subr.mxu0 0.0
      %919 = vmatpush1.xpose.msra.mxu0 %v886
      %920 = vmatprep.subr.mxu0 0.0
      %921 = vmatpush2.xpose.msra.mxu0 0.0
      %922 = vmatprep.subr.mxu0 0.0
      %923 = vmatpush2.xpose.msra.mxu0 0.0
      %924 = vmatprep.subr.mxu0 0.0
      %925 = vmatpush2.xpose.msra.mxu0 0.0
      %926 = vmatprep.subr.mxu0 0.0
      %927 = vmatpush2.xpose.msra.mxu0 0.0
      %928 = vmatprep.subr.mxu0 0.0
      %929 = vmatpush2.xpose.msra.mxu0 0.0
      %930 = vmatprep.subr.mxu0 0.0
      %931 = vmatpush2.xpose.msra.mxu0 0.0
      %932 = vmatprep.subr.mxu0 0.0
      %933 = vmatpush2.xpose.msra.mxu0 0.0
      %934 = vmatprep.subr.mxu0 0.0
      %935 = vmatpush2.xpose.msra.mxu0 0.0
      %936 = vmatprep.subr.mxu0 0.0
      %937 = vmatpush2.xpose.msra.mxu0 0.0
      %938 = vmatprep.subr.mxu0 0.0
      %939 = vmatpush2.xpose.msra.mxu0 0.0
      %940 = vmatprep.subr.mxu0 0.0
      %941 = vmatpush2.xpose.msra.mxu0 0.0
      %942 = vmatprep.subr.mxu0 0.0
      %943 = vmatpush2.xpose.msra.mxu0 0.0
      %944 = vmatprep.subr.mxu0 0.0
      %945 = vmatpush2.xpose.msra.mxu0 0.0
      %946 = vmatprep.subr.mxu0 0.0
      %947 = vmatpush2.xpose.msra.mxu0 0.0
      %948 = vmatprep.subr.mxu0 0.0
      %949 = vmatpush2.xpose.msra.mxu0 0.0
      %950 = vmatprep.subr.mxu0 0.0
      %951 = vmatpush2.xpose.msra.mxu0 0.0
      %952 = vmatprep.mubr.f32.mxu0 0.0
      %953 = vmatmul.mubr.f32.gmra.mxu0 %v883
      %v954 = vpop.f32.mrf.mxu0
      %v955 = vadd.f32 0.0, %v954
      %v956 = vpop.f32.mrf.mxu0
      %957 = vdwg.mxu0
      %v959 = vsel %vm881, %v797, 0
      %v962 = vsel %vm881, %v878, 0
      %964 = vmatprep.subr.mxu0 0.0
      %965 = vmatpush1.xpose.msra.mxu0 0.0
      %966 = vmatprep.subr.mxu0 0.0
      %967 = vmatpush1.xpose.msra.mxu0 0.0
      %968 = vmatprep.subr.mxu0 0.0
      %969 = vmatpush1.xpose.msra.mxu0 0.0
      %970 = vmatprep.subr.mxu0 0.0
      %971 = vmatpush1.xpose.msra.mxu0 0.0
      %972 = vmatprep.subr.mxu0 0.0
      %973 = vmatpush1.xpose.msra.mxu0 0.0
      %974 = vmatprep.subr.mxu0 0.0
      %975 = vmatpush1.xpose.msra.mxu0 0.0
      %976 = vmatprep.subr.mxu0 0.0
      %977 = vmatpush1.xpose.msra.mxu0 0.0
      %978 = vmatprep.subr.mxu0 0.0
      %979 = vmatpush1.xpose.msra.mxu0 0.0
      %980 = vmatprep.subr.mxu0 0.0
      %981 = vmatpush1.xpose.msra.mxu0 0.0
      %982 = vmatprep.subr.mxu0 0.0
      %983 = vmatpush1.xpose.msra.mxu0 0.0
      %984 = vmatprep.subr.mxu0 0.0
      %985 = vmatpush1.xpose.msra.mxu0 0.0
      %986 = vmatprep.subr.mxu0 0.0
      %987 = vmatpush1.xpose.msra.mxu0 0.0
      %988 = vmatprep.subr.mxu0 0.0
      %989 = vmatpush1.xpose.msra.mxu0 0.0
      %990 = vmatprep.subr.mxu0 0.0
      %991 = vmatpush1.xpose.msra.mxu0 0.0
      %992 = vmatprep.subr.mxu0 0.0
      %993 = vmatpush1.xpose.msra.mxu0 0.0
      %994 = vmatprep.subr.mxu0 0.0
      %995 = vmatpush1.xpose.msra.mxu0 %v962
      %996 = vmatprep.subr.mxu0 0.0
      %997 = vmatpush2.xpose.msra.mxu0 0.0
      %998 = vmatprep.subr.mxu0 0.0
      %999 = vmatpush2.xpose.msra.mxu0 0.0
      %1000 = vmatprep.subr.mxu0 0.0
      %1001 = vmatpush2.xpose.msra.mxu0 0.0
      %1002 = vmatprep.subr.mxu0 0.0
      %1003 = vmatpush2.xpose.msra.mxu0 0.0
      %1004 = vmatprep.subr.mxu0 0.0
      %1005 = vmatpush2.xpose.msra.mxu0 0.0
      %1006 = vmatprep.subr.mxu0 0.0
      %1007 = vmatpush2.xpose.msra.mxu0 0.0
      %1008 = vmatprep.subr.mxu0 0.0
      %1009 = vmatpush2.xpose.msra.mxu0 0.0
      %1010 = vmatprep.subr.mxu0 0.0
      %1011 = vmatpush2.xpose.msra.mxu0 0.0
      %1012 = vmatprep.subr.mxu0 0.0
      %1013 = vmatpush2.xpose.msra.mxu0 0.0
      %1014 = vmatprep.subr.mxu0 0.0
      %1015 = vmatpush2.xpose.msra.mxu0 0.0
      %1016 = vmatprep.subr.mxu0 0.0
      %1017 = vmatpush2.xpose.msra.mxu0 0.0
      %1018 = vmatprep.subr.mxu0 0.0
      %1019 = vmatpush2.xpose.msra.mxu0 0.0
      %1020 = vmatprep.subr.mxu0 0.0
      %1021 = vmatpush2.xpose.msra.mxu0 0.0
      %1022 = vmatprep.subr.mxu0 0.0
      %1023 = vmatpush2.xpose.msra.mxu0 0.0
      %1024 = vmatprep.subr.mxu0 0.0
      %1025 = vmatpush2.xpose.msra.mxu0 0.0
      %1026 = vmatprep.subr.mxu0 0.0
      %1027 = vmatpush2.xpose.msra.mxu0 0.0
      %1028 = vmatprep.mubr.f32.mxu0 0.0
      %1029 = vmatmul.mubr.f32.gmra.mxu0 %v959
      %v1030 = vpop.f32.mrf.mxu0
      %v1031 = vadd.f32 0.0, %v1030
      %v1032 = vpop.f32.mrf.mxu0
      %1033 = vdwg.mxu0
      %v1034 = vmul.f32 %v955, 0.35355338
      %v1035 = vmul.f32 %v1031, 0.35355338
      %v1036 = vsel %vm881, %v1034, -inf
      %1037 = vmax.xlane.f32.xlu0 %v1036
      %v1038 = vpop.xlane.xlu0 %1037
      %v1039 = vsel %vm881, %v1035, -inf
      %1040 = vmax.xlane.f32.xlu0 %v1039
      %v1041 = vpop.xlane.xlu0 %1040
      %v1042 = vsub.f32 %v1034, %v1038
      %v1043 = vsub.f32 %v1035, %v1041
      %v1044 = vmul.f32 %v1042, 1.442695
      %v1045 = vpow.pop %v1044
      %v1046 = vmul.f32 %v1043, 1.442695
      %v1047 = vpow.pop %v1046
      %v1048 = vsel %vm881, %v1045, 0.0
      %1049 = vadd.xlane.f32.xlu0 %v1048
      %v1050 = vpop.xlane.xlu0 %1049
      %v1051 = vsel %vm881, %v1047, 0.0
      %1052 = vadd.xlane.f32.xlu0 %v1051
      %v1053 = vpop.xlane.xlu0 %1052
      %1054 = vrot.lane.b32.xlu0 %v873, 96
      %v1055 = vpop.permute.xlu0 %1054
      %v1058 = vsel %vm881, %v1045, 0
      %1060 = vmatprep.subr.mxu0 0.0
      %1061 = vmatpush1.msra.mxu0 0.0
      %1062 = vmatprep.subr.mxu0 0.0
      %1063 = vmatpush1.msra.mxu0 0.0
      %1064 = vmatprep.subr.mxu0 0.0
      %1065 = vmatpush1.msra.mxu0 0.0
      %1066 = vmatprep.subr.mxu0 0.0
      %1067 = vmatpush1.msra.mxu0 0.0
      %1068 = vmatprep.subr.mxu0 0.0
      %1069 = vmatpush1.msra.mxu0 0.0
      %1070 = vmatprep.subr.mxu0 0.0
      %1071 = vmatpush1.msra.mxu0 0.0
      %1072 = vmatprep.subr.mxu0 0.0
      %1073 = vmatpush1.msra.mxu0 0.0
      %1074 = vmatprep.subr.mxu0 0.0
      %1075 = vmatpush1.msra.mxu0 0.0
      %1076 = vmatprep.subr.mxu0 0.0
      %1077 = vmatpush1.msra.mxu0 0.0
      %1078 = vmatprep.subr.mxu0 0.0
      %1079 = vmatpush1.msra.mxu0 0.0
      %1080 = vmatprep.subr.mxu0 0.0
      %1081 = vmatpush1.msra.mxu0 0.0
      %1082 = vmatprep.subr.mxu0 0.0
      %1083 = vmatpush1.msra.mxu0 0.0
      %1084 = vmatprep.subr.mxu0 0.0
      %1085 = vmatpush1.msra.mxu0 0.0
      %1086 = vmatprep.subr.mxu0 0.0
      %1087 = vmatpush1.msra.mxu0 0.0
      %1088 = vmatprep.subr.mxu0 0.0
      %1089 = vmatpush1.msra.mxu0 0.0
      %1090 = vmatprep.subr.mxu0 0.0
      %1091 = vmatpush1.msra.mxu0 %v1055
      %1092 = vmatprep.subr.mxu0 0.0
      %1093 = vmatpush2.msra.mxu0 0.0
      %1094 = vmatprep.subr.mxu0 0.0
      %1095 = vmatpush2.msra.mxu0 0.0
      %1096 = vmatprep.subr.mxu0 0.0
      %1097 = vmatpush2.msra.mxu0 0.0
      %1098 = vmatprep.subr.mxu0 0.0
      %1099 = vmatpush2.msra.mxu0 0.0
      %1100 = vmatprep.subr.mxu0 0.0
      %1101 = vmatpush2.msra.mxu0 0.0
      %1102 = vmatprep.subr.mxu0 0.0
      %1103 = vmatpush2.msra.mxu0 0.0
      %1104 = vmatprep.subr.mxu0 0.0
      %1105 = vmatpush2.msra.mxu0 0.0
      %1106 = vmatprep.subr.mxu0 0.0
      %1107 = vmatpush2.msra.mxu0 0.0
      %1108 = vmatprep.subr.mxu0 0.0
      %1109 = vmatpush2.msra.mxu0 0.0
      %1110 = vmatprep.subr.mxu0 0.0
      %1111 = vmatpush2.msra.mxu0 0.0
      %1112 = vmatprep.subr.mxu0 0.0
      %1113 = vmatpush2.msra.mxu0 0.0
      %1114 = vmatprep.subr.mxu0 0.0
      %1115 = vmatpush2.msra.mxu0 0.0
      %1116 = vmatprep.subr.mxu0 0.0
      %1117 = vmatpush2.msra.mxu0 0.0
      %1118 = vmatprep.subr.mxu0 0.0
      %1119 = vmatpush2.msra.mxu0 0.0
      %1120 = vmatprep.subr.mxu0 0.0
      %1121 = vmatpush2.msra.mxu0 0.0
      %1122 = vmatprep.subr.mxu0 0.0
      %1123 = vmatpush2.msra.mxu0 0.0
      %1124 = vmatprep.mubr.f32.mxu0 0.0
      %1125 = vmatmul.mubr.f32.gmra.mxu0 %v1058
      %v1126 = vpop.f32.mrf.mxu0
      %v1127 = vadd.f32 0.0, %v1126
      %v1128 = vpop.f32.mrf.mxu0
      %1129 = vdwg.mxu0
      %1130 = vrot.lane.b32.xlu0 %v878, 96
      %v1131 = vpop.permute.xlu0 %1130
      %v1134 = vsel %vm881, %v1047, 0
      %1136 = vmatprep.subr.mxu0 0.0
      %1137 = vmatpush1.msra.mxu0 0.0
      %1138 = vmatprep.subr.mxu0 0.0
      %1139 = vmatpush1.msra.mxu0 0.0
      %1140 = vmatprep.subr.mxu0 0.0
      %1141 = vmatpush1.msra.mxu0 0.0
      %1142 = vmatprep.subr.mxu0 0.0
      %1143 = vmatpush1.msra.mxu0 0.0
      %1144 = vmatprep.subr.mxu0 0.0
      %1145 = vmatpush1.msra.mxu0 0.0
      %1146 = vmatprep.subr.mxu0 0.0
      %1147 = vmatpush1.msra.mxu0 0.0
      %1148 = vmatprep.subr.mxu0 0.0
      %1149 = vmatpush1.msra.mxu0 0.0
      %1150 = vmatprep.subr.mxu0 0.0
      %1151 = vmatpush1.msra.mxu0 0.0
      %1152 = vmatprep.subr.mxu0 0.0
      %1153 = vmatpush1.msra.mxu0 0.0
      %1154 = vmatprep.subr.mxu0 0.0
      %1155 = vmatpush1.msra.mxu0 0.0
      %1156 = vmatprep.subr.mxu0 0.0
      %1157 = vmatpush1.msra.mxu0 0.0
      %1158 = vmatprep.subr.mxu0 0.0
      %1159 = vmatpush1.msra.mxu0 0.0
      %1160 = vmatprep.subr.mxu0 0.0
      %1161 = vmatpush1.msra.mxu0 0.0
      %1162 = vmatprep.subr.mxu0 0.0
      %1163 = vmatpush1.msra.mxu0 0.0
      %1164 = vmatprep.subr.mxu0 0.0
      %1165 = vmatpush1.msra.mxu0 0.0
      %1166 = vmatprep.subr.mxu0 0.0
      %1167 = vmatpush1.msra.mxu0 %v1131
      %1168 = vmatprep.subr.mxu0 0.0
      %1169 = vmatpush2.msra.mxu0 0.0
      %1170 = vmatprep.subr.mxu0 0.0
      %1171 = vmatpush2.msra.mxu0 0.0
      %1172 = vmatprep.subr.mxu0 0.0
      %1173 = vmatpush2.msra.mxu0 0.0
      %1174 = vmatprep.subr.mxu0 0.0
      %1175 = vmatpush2.msra.mxu0 0.0
      %1176 = vmatprep.subr.mxu0 0.0
      %1177 = vmatpush2.msra.mxu0 0.0
      %1178 = vmatprep.subr.mxu0 0.0
      %1179 = vmatpush2.msra.mxu0 0.0
      %1180 = vmatprep.subr.mxu0 0.0
      %1181 = vmatpush2.msra.mxu0 0.0
      %1182 = vmatprep.subr.mxu0 0.0
      %1183 = vmatpush2.msra.mxu0 0.0
      %1184 = vmatprep.subr.mxu0 0.0
      %1185 = vmatpush2.msra.mxu0 0.0
      %1186 = vmatprep.subr.mxu0 0.0
      %1187 = vmatpush2.msra.mxu0 0.0
      %1188 = vmatprep.subr.mxu0 0.0
      %1189 = vmatpush2.msra.mxu0 0.0
      %1190 = vmatprep.subr.mxu0 0.0
      %1191 = vmatpush2.msra.mxu0 0.0
      %1192 = vmatprep.subr.mxu0 0.0
      %1193 = vmatpush2.msra.mxu0 0.0
      %1194 = vmatprep.subr.mxu0 0.0
      %1195 = vmatpush2.msra.mxu0 0.0
      %1196 = vmatprep.subr.mxu0 0.0
      %1197 = vmatpush2.msra.mxu0 0.0
      %1198 = vmatprep.subr.mxu0 0.0
      %1199 = vmatpush2.msra.mxu0 0.0
      %1200 = vmatprep.mubr.f32.mxu0 0.0
      %1201 = vmatmul.mubr.f32.gmra.mxu0 %v1134
      %v1202 = vpop.f32.mrf.mxu0
      %v1203 = vadd.f32 0.0, %v1202
      %v1204 = vpop.f32.mrf.mxu0
      %1205 = vdwg.mxu0
      %v1206 = vrcp.pop %v1050
      %v1207 = vrcp.pop %v1053
      %v1208 = vmul.f32 %v1127, %v1206
      %v1209 = vmul.f32 %v1203, %v1207
      %1210 = vrot.lane.b32.xlu0 %v792, 120
      %v1211 = vpop.permute.xlu0 %1210
      %1212 = vrot.lane.b32.xlu0 %v873, 120
      %v1213 = vpop.permute.xlu0 %1212
      %v1214 = vsel %vm881, %v1211, 0
      %v1216 = vsel %vm881, %v1213, 0
      %1218 = vmatprep.subr.mxu0 0.0
      %1219 = vmatpush1.xpose.msra.mxu0 0.0
      %1220 = vmatprep.subr.mxu0 0.0
      %1221 = vmatpush1.xpose.msra.mxu0 0.0
      %1222 = vmatprep.subr.mxu0 0.0
      %1223 = vmatpush1.xpose.msra.mxu0 0.0
      %1224 = vmatprep.subr.mxu0 0.0
      %1225 = vmatpush1.xpose.msra.mxu0 0.0
      %1226 = vmatprep.subr.mxu0 0.0
      %1227 = vmatpush1.xpose.msra.mxu0 0.0
      %1228 = vmatprep.subr.mxu0 0.0
      %1229 = vmatpush1.xpose.msra.mxu0 0.0
      %1230 = vmatprep.subr.mxu0 0.0
      %1231 = vmatpush1.xpose.msra.mxu0 0.0
      %1232 = vmatprep.subr.mxu0 0.0
      %1233 = vmatpush1.xpose.msra.mxu0 0.0
      %1234 = vmatprep.subr.mxu0 0.0
      %1235 = vmatpush1.xpose.msra.mxu0 0.0
      %1236 = vmatprep.subr.mxu0 0.0
      %1237 = vmatpush1.xpose.msra.mxu0 0.0
      %1238 = vmatprep.subr.mxu0 0.0
      %1239 = vmatpush1.xpose.msra.mxu0 0.0
      %1240 = vmatprep.subr.mxu0 0.0
      %1241 = vmatpush1.xpose.msra.mxu0 0.0
      %1242 = vmatprep.subr.mxu0 0.0
      %1243 = vmatpush1.xpose.msra.mxu0 0.0
      %1244 = vmatprep.subr.mxu0 0.0
      %1245 = vmatpush1.xpose.msra.mxu0 0.0
      %1246 = vmatprep.subr.mxu0 0.0
      %1247 = vmatpush1.xpose.msra.mxu0 0.0
      %1248 = vmatprep.subr.mxu0 0.0
      %1249 = vmatpush1.xpose.msra.mxu0 %v1216
      %1250 = vmatprep.subr.mxu0 0.0
      %1251 = vmatpush2.xpose.msra.mxu0 0.0
      %1252 = vmatprep.subr.mxu0 0.0
      %1253 = vmatpush2.xpose.msra.mxu0 0.0
      %1254 = vmatprep.subr.mxu0 0.0
      %1255 = vmatpush2.xpose.msra.mxu0 0.0
      %1256 = vmatprep.subr.mxu0 0.0
      %1257 = vmatpush2.xpose.msra.mxu0 0.0
      %1258 = vmatprep.subr.mxu0 0.0
      %1259 = vmatpush2.xpose.msra.mxu0 0.0
      %1260 = vmatprep.subr.mxu0 0.0
      %1261 = vmatpush2.xpose.msra.mxu0 0.0
      %1262 = vmatprep.subr.mxu0 0.0
      %1263 = vmatpush2.xpose.msra.mxu0 0.0
      %1264 = vmatprep.subr.mxu0 0.0
      %1265 = vmatpush2.xpose.msra.mxu0 0.0
      %1266 = vmatprep.subr.mxu0 0.0
      %1267 = vmatpush2.xpose.msra.mxu0 0.0
      %1268 = vmatprep.subr.mxu0 0.0
      %1269 = vmatpush2.xpose.msra.mxu0 0.0
      %1270 = vmatprep.subr.mxu0 0.0
      %1271 = vmatpush2.xpose.msra.mxu0 0.0
      %1272 = vmatprep.subr.mxu0 0.0
      %1273 = vmatpush2.xpose.msra.mxu0 0.0
      %1274 = vmatprep.subr.mxu0 0.0
      %1275 = vmatpush2.xpose.msra.mxu0 0.0
      %1276 = vmatprep.subr.mxu0 0.0
      %1277 = vmatpush2.xpose.msra.mxu0 0.0
      %1278 = vmatprep.subr.mxu0 0.0
      %1279 = vmatpush2.xpose.msra.mxu0 0.0
      %1280 = vmatprep.subr.mxu0 0.0
      %1281 = vmatpush2.xpose.msra.mxu0 0.0
      %1282 = vmatprep.mubr.f32.mxu0 0.0
      %1283 = vmatmul.mubr.f32.gmra.mxu0 %v1214
      %v1284 = vpop.f32.mrf.mxu0
      %v1285 = vadd.f32 0.0, %v1284
      %v1286 = vpop.f32.mrf.mxu0
      %1287 = vdwg.mxu0
      %1288 = vrot.lane.b32.xlu0 %v797, 120
      %v1289 = vpop.permute.xlu0 %1288
      %1290 = vrot.lane.b32.xlu0 %v878, 120
      %v1291 = vpop.permute.xlu0 %1290
      %v1292 = vsel %vm881, %v1289, 0
      %v1294 = vsel %vm881, %v1291, 0
      %1296 = vmatprep.subr.mxu0 0.0
      %1297 = vmatpush1.xpose.msra.mxu0 0.0
      %1298 = vmatprep.subr.mxu0 0.0
      %1299 = vmatpush1.xpose.msra.mxu0 0.0
      %1300 = vmatprep.subr.mxu0 0.0
      %1301 = vmatpush1.xpose.msra.mxu0 0.0
      %1302 = vmatprep.subr.mxu0 0.0
      %1303 = vmatpush1.xpose.msra.mxu0 0.0
      %1304 = vmatprep.subr.mxu0 0.0
      %1305 = vmatpush1.xpose.msra.mxu0 0.0
      %1306 = vmatprep.subr.mxu0 0.0
      %1307 = vmatpush1.xpose.msra.mxu0 0.0
      %1308 = vmatprep.subr.mxu0 0.0
      %1309 = vmatpush1.xpose.msra.mxu0 0.0
      %1310 = vmatprep.subr.mxu0 0.0
      %1311 = vmatpush1.xpose.msra.mxu0 0.0
      %1312 = vmatprep.subr.mxu0 0.0
      %1313 = vmatpush1.xpose.msra.mxu0 0.0
      %1314 = vmatprep.subr.mxu0 0.0
      %1315 = vmatpush1.xpose.msra.mxu0 0.0
      %1316 = vmatprep.subr.mxu0 0.0
      %1317 = vmatpush1.xpose.msra.mxu0 0.0
      %1318 = vmatprep.subr.mxu0 0.0
      %1319 = vmatpush1.xpose.msra.mxu0 0.0
      %1320 = vmatprep.subr.mxu0 0.0
      %1321 = vmatpush1.xpose.msra.mxu0 0.0
      %1322 = vmatprep.subr.mxu0 0.0
      %1323 = vmatpush1.xpose.msra.mxu0 0.0
      %1324 = vmatprep.subr.mxu0 0.0
      %1325 = vmatpush1.xpose.msra.mxu0 0.0
      %1326 = vmatprep.subr.mxu0 0.0
      %1327 = vmatpush1.xpose.msra.mxu0 %v1294
      %1328 = vmatprep.subr.mxu0 0.0
      %1329 = vmatpush2.xpose.msra.mxu0 0.0
      %1330 = vmatprep.subr.mxu0 0.0
      %1331 = vmatpush2.xpose.msra.mxu0 0.0
      %1332 = vmatprep.subr.mxu0 0.0
      %1333 = vmatpush2.xpose.msra.mxu0 0.0
      %1334 = vmatprep.subr.mxu0 0.0
      %1335 = vmatpush2.xpose.msra.mxu0 0.0
      %1336 = vmatprep.subr.mxu0 0.0
      %1337 = vmatpush2.xpose.msra.mxu0 0.0
      %1338 = vmatprep.subr.mxu0 0.0
      %1339 = vmatpush2.xpose.msra.mxu0 0.0
      %1340 = vmatprep.subr.mxu0 0.0
      %1341 = vmatpush2.xpose.msra.mxu0 0.0
      %1342 = vmatprep.subr.mxu0 0.0
      %1343 = vmatpush2.xpose.msra.mxu0 0.0
      %1344 = vmatprep.subr.mxu0 0.0
      %1345 = vmatpush2.xpose.msra.mxu0 0.0
      %1346 = vmatprep.subr.mxu0 0.0
      %1347 = vmatpush2.xpose.msra.mxu0 0.0
      %1348 = vmatprep.subr.mxu0 0.0
      %1349 = vmatpush2.xpose.msra.mxu0 0.0
      %1350 = vmatprep.subr.mxu0 0.0
      %1351 = vmatpush2.xpose.msra.mxu0 0.0
      %1352 = vmatprep.subr.mxu0 0.0
      %1353 = vmatpush2.xpose.msra.mxu0 0.0
      %1354 = vmatprep.subr.mxu0 0.0
      %1355 = vmatpush2.xpose.msra.mxu0 0.0
      %1356 = vmatprep.subr.mxu0 0.0
      %1357 = vmatpush2.xpose.msra.mxu0 0.0
      %1358 = vmatprep.subr.mxu0 0.0
      %1359 = vmatpush2.xpose.msra.mxu0 0.0
      %1360 = vmatprep.mubr.f32.mxu0 0.0
      %1361 = vmatmul.mubr.f32.gmra.mxu0 %v1292
      %v1362 = vpop.f32.mrf.mxu0
      %v1363 = vadd.f32 0.0, %v1362
      %v1364 = vpop.f32.mrf.mxu0
      %1365 = vdwg.mxu0
      %v1366 = vmul.f32 %v1285, 0.35355338
      %v1367 = vmul.f32 %v1363, 0.35355338
      %v1368 = vsel %vm881, %v1366, -inf
      %1369 = vmax.xlane.f32.xlu0 %v1368
      %v1370 = vpop.xlane.xlu0 %1369
      %v1371 = vsel %vm881, %v1367, -inf
      %1372 = vmax.xlane.f32.xlu0 %v1371
      %v1373 = vpop.xlane.xlu0 %1372
      %v1374 = vsub.f32 %v1366, %v1370
      %v1375 = vsub.f32 %v1367, %v1373
      %v1376 = vmul.f32 %v1374, 1.442695
      %v1377 = vpow.pop %v1376
      %v1378 = vmul.f32 %v1375, 1.442695
      %v1379 = vpow.pop %v1378
      %v1380 = vsel %vm881, %v1377, 0.0
      %1381 = vadd.xlane.f32.xlu0 %v1380
      %v1382 = vpop.xlane.xlu0 %1381
      %v1383 = vsel %vm881, %v1379, 0.0
      %1384 = vadd.xlane.f32.xlu0 %v1383
      %v1385 = vpop.xlane.xlu0 %1384
      %1386 = vrot.lane.b32.xlu0 %v873, 88
      %v1387 = vpop.permute.xlu0 %1386
      %v1390 = vsel %vm881, %v1377, 0
      %1392 = vmatprep.subr.mxu0 0.0
      %1393 = vmatpush1.msra.mxu0 0.0
      %1394 = vmatprep.subr.mxu0 0.0
      %1395 = vmatpush1.msra.mxu0 0.0
      %1396 = vmatprep.subr.mxu0 0.0
      %1397 = vmatpush1.msra.mxu0 0.0
      %1398 = vmatprep.subr.mxu0 0.0
      %1399 = vmatpush1.msra.mxu0 0.0
      %1400 = vmatprep.subr.mxu0 0.0
      %1401 = vmatpush1.msra.mxu0 0.0
      %1402 = vmatprep.subr.mxu0 0.0
      %1403 = vmatpush1.msra.mxu0 0.0
      %1404 = vmatprep.subr.mxu0 0.0
      %1405 = vmatpush1.msra.mxu0 0.0
      %1406 = vmatprep.subr.mxu0 0.0
      %1407 = vmatpush1.msra.mxu0 0.0
      %1408 = vmatprep.subr.mxu0 0.0
      %1409 = vmatpush1.msra.mxu0 0.0
      %1410 = vmatprep.subr.mxu0 0.0
      %1411 = vmatpush1.msra.mxu0 0.0
      %1412 = vmatprep.subr.mxu0 0.0
      %1413 = vmatpush1.msra.mxu0 0.0
      %1414 = vmatprep.subr.mxu0 0.0
      %1415 = vmatpush1.msra.mxu0 0.0
      %1416 = vmatprep.subr.mxu0 0.0
      %1417 = vmatpush1.msra.mxu0 0.0
      %1418 = vmatprep.subr.mxu0 0.0
      %1419 = vmatpush1.msra.mxu0 0.0
      %1420 = vmatprep.subr.mxu0 0.0
      %1421 = vmatpush1.msra.mxu0 0.0
      %1422 = vmatprep.subr.mxu0 0.0
      %1423 = vmatpush1.msra.mxu0 %v1387
      %1424 = vmatprep.subr.mxu0 0.0
      %1425 = vmatpush2.msra.mxu0 0.0
      %1426 = vmatprep.subr.mxu0 0.0
      %1427 = vmatpush2.msra.mxu0 0.0
      %1428 = vmatprep.subr.mxu0 0.0
      %1429 = vmatpush2.msra.mxu0 0.0
      %1430 = vmatprep.subr.mxu0 0.0
      %1431 = vmatpush2.msra.mxu0 0.0
      %1432 = vmatprep.subr.mxu0 0.0
      %1433 = vmatpush2.msra.mxu0 0.0
      %1434 = vmatprep.subr.mxu0 0.0
      %1435 = vmatpush2.msra.mxu0 0.0
      %1436 = vmatprep.subr.mxu0 0.0
      %1437 = vmatpush2.msra.mxu0 0.0
      %1438 = vmatprep.subr.mxu0 0.0
      %1439 = vmatpush2.msra.mxu0 0.0
      %1440 = vmatprep.subr.mxu0 0.0
      %1441 = vmatpush2.msra.mxu0 0.0
      %1442 = vmatprep.subr.mxu0 0.0
      %1443 = vmatpush2.msra.mxu0 0.0
      %1444 = vmatprep.subr.mxu0 0.0
      %1445 = vmatpush2.msra.mxu0 0.0
      %1446 = vmatprep.subr.mxu0 0.0
      %1447 = vmatpush2.msra.mxu0 0.0
      %1448 = vmatprep.subr.mxu0 0.0
      %1449 = vmatpush2.msra.mxu0 0.0
      %1450 = vmatprep.subr.mxu0 0.0
      %1451 = vmatpush2.msra.mxu0 0.0
      %1452 = vmatprep.subr.mxu0 0.0
      %1453 = vmatpush2.msra.mxu0 0.0
      %1454 = vmatprep.subr.mxu0 0.0
      %1455 = vmatpush2.msra.mxu0 0.0
      %1456 = vmatprep.mubr.f32.mxu0 0.0
      %1457 = vmatmul.mubr.f32.gmra.mxu0 %v1390
      %v1458 = vpop.f32.mrf.mxu0
      %v1459 = vadd.f32 0.0, %v1458
      %v1460 = vpop.f32.mrf.mxu0
      %1461 = vdwg.mxu0
      %1462 = vrot.lane.b32.xlu0 %v878, 88
      %v1463 = vpop.permute.xlu0 %1462
      %v1466 = vsel %vm881, %v1379, 0
      %1468 = vmatprep.subr.mxu0 0.0
      %1469 = vmatpush1.msra.mxu0 0.0
      %1470 = vmatprep.subr.mxu0 0.0
      %1471 = vmatpush1.msra.mxu0 0.0
      %1472 = vmatprep.subr.mxu0 0.0
      %1473 = vmatpush1.msra.mxu0 0.0
      %1474 = vmatprep.subr.mxu0 0.0
      %1475 = vmatpush1.msra.mxu0 0.0
      %1476 = vmatprep.subr.mxu0 0.0
      %1477 = vmatpush1.msra.mxu0 0.0
      %1478 = vmatprep.subr.mxu0 0.0
      %1479 = vmatpush1.msra.mxu0 0.0
      %1480 = vmatprep.subr.mxu0 0.0
      %1481 = vmatpush1.msra.mxu0 0.0
      %1482 = vmatprep.subr.mxu0 0.0
      %1483 = vmatpush1.msra.mxu0 0.0
      %1484 = vmatprep.subr.mxu0 0.0
      %1485 = vmatpush1.msra.mxu0 0.0
      %1486 = vmatprep.subr.mxu0 0.0
      %1487 = vmatpush1.msra.mxu0 0.0
      %1488 = vmatprep.subr.mxu0 0.0
      %1489 = vmatpush1.msra.mxu0 0.0
      %1490 = vmatprep.subr.mxu0 0.0
      %1491 = vmatpush1.msra.mxu0 0.0
      %1492 = vmatprep.subr.mxu0 0.0
      %1493 = vmatpush1.msra.mxu0 0.0
      %1494 = vmatprep.subr.mxu0 0.0
      %1495 = vmatpush1.msra.mxu0 0.0
      %1496 = vmatprep.subr.mxu0 0.0
      %1497 = vmatpush1.msra.mxu0 0.0
      %1498 = vmatprep.subr.mxu0 0.0
      %1499 = vmatpush1.msra.mxu0 %v1463
      %1500 = vmatprep.subr.mxu0 0.0
      %1501 = vmatpush2.msra.mxu0 0.0
      %1502 = vmatprep.subr.mxu0 0.0
      %1503 = vmatpush2.msra.mxu0 0.0
      %1504 = vmatprep.subr.mxu0 0.0
      %1505 = vmatpush2.msra.mxu0 0.0
      %1506 = vmatprep.subr.mxu0 0.0
      %1507 = vmatpush2.msra.mxu0 0.0
      %1508 = vmatprep.subr.mxu0 0.0
      %1509 = vmatpush2.msra.mxu0 0.0
      %1510 = vmatprep.subr.mxu0 0.0
      %1511 = vmatpush2.msra.mxu0 0.0
      %1512 = vmatprep.subr.mxu0 0.0
      %1513 = vmatpush2.msra.mxu0 0.0
      %1514 = vmatprep.subr.mxu0 0.0
      %1515 = vmatpush2.msra.mxu0 0.0
      %1516 = vmatprep.subr.mxu0 0.0
      %1517 = vmatpush2.msra.mxu0 0.0
      %1518 = vmatprep.subr.mxu0 0.0
      %1519 = vmatpush2.msra.mxu0 0.0
      %1520 = vmatprep.subr.mxu0 0.0
      %1521 = vmatpush2.msra.mxu0 0.0
      %1522 = vmatprep.subr.mxu0 0.0
      %1523 = vmatpush2.msra.mxu0 0.0
      %1524 = vmatprep.subr.mxu0 0.0
      %1525 = vmatpush2.msra.mxu0 0.0
      %1526 = vmatprep.subr.mxu0 0.0
      %1527 = vmatpush2.msra.mxu0 0.0
      %1528 = vmatprep.subr.mxu0 0.0
      %1529 = vmatpush2.msra.mxu0 0.0
      %1530 = vmatprep.subr.mxu0 0.0
      %1531 = vmatpush2.msra.mxu0 0.0
      %1532 = vmatprep.mubr.f32.mxu0 0.0
      %1533 = vmatmul.mubr.f32.gmra.mxu0 %v1466
      %v1534 = vpop.f32.mrf.mxu0
      %v1535 = vadd.f32 0.0, %v1534
      %v1536 = vpop.f32.mrf.mxu0
      %1537 = vdwg.mxu0
      %v1538 = vrcp.pop %v1382
      %v1539 = vrcp.pop %v1385
      %v1540 = vmul.f32 %v1459, %v1538
      %v1541 = vmul.f32 %v1535, %v1539
      %v1543 = vsel %vm881, %v1540, 0
      %v1546 = vsel %vm881, %v1541, 0
      %1548 = vmatprep.subr.mxu0 0.0
      %1549 = vmatpush1.msra.mxu0 0.0
      %1550 = vmatprep.subr.mxu0 0.0
      %1551 = vmatpush1.msra.mxu0 0.0
      %1552 = vmatprep.subr.mxu0 0.0
      %1553 = vmatpush1.msra.mxu0 0.0
      %1554 = vmatprep.subr.mxu0 0.0
      %1555 = vmatpush1.msra.mxu0 0.0
      %1556 = vmatprep.subr.mxu0 0.0
      %1557 = vmatpush1.msra.mxu0 0.0
      %1558 = vmatprep.subr.mxu0 0.0
      %1559 = vmatpush1.msra.mxu0 0.0
      %1560 = vmatprep.subr.mxu0 0.0
      %1561 = vmatpush1.msra.mxu0 0.0
      %1562 = vmatprep.subr.mxu0 0.0
      %1563 = vmatpush1.msra.mxu0 0.0
      %1564 = vmatprep.subr.mxu0 0.0
      %1565 = vmatpush1.msra.mxu0 0.0
      %1566 = vmatprep.subr.mxu0 0.0
      %1567 = vmatpush1.msra.mxu0 0.0
      %1568 = vmatprep.subr.mxu0 0.0
      %1569 = vmatpush1.msra.mxu0 0.0
      %1570 = vmatprep.subr.mxu0 0.0
      %1571 = vmatpush1.msra.mxu0 0.0
      %1572 = vmatprep.subr.mxu0 0.0
      %1573 = vmatpush1.msra.mxu0 0.0
      %1574 = vmatprep.subr.mxu0 0.0
      %1575 = vmatpush1.msra.mxu0 0.0
      %1576 = vmatprep.subr.mxu0 0.0
      %1577 = vmatpush1.msra.mxu0 0.0
      %1578 = vmatprep.subr.mxu0 0.0
      %1579 = vmatpush1.msra.mxu0 %v708
      %1580 = vmatprep.subr.mxu0 0.0
      %1581 = vmatpush2.msra.mxu0 0.0
      %1582 = vmatprep.subr.mxu0 0.0
      %1583 = vmatpush2.msra.mxu0 0.0
      %1584 = vmatprep.subr.mxu0 0.0
      %1585 = vmatpush2.msra.mxu0 0.0
      %1586 = vmatprep.subr.mxu0 0.0
      %1587 = vmatpush2.msra.mxu0 0.0
      %1588 = vmatprep.subr.mxu0 0.0
      %1589 = vmatpush2.msra.mxu0 0.0
      %1590 = vmatprep.subr.mxu0 0.0
      %1591 = vmatpush2.msra.mxu0 0.0
      %1592 = vmatprep.subr.mxu0 0.0
      %1593 = vmatpush2.msra.mxu0 0.0
      %1594 = vmatprep.subr.mxu0 0.0
      %1595 = vmatpush2.msra.mxu0 0.0
      %1596 = vmatprep.subr.mxu0 0.0
      %1597 = vmatpush2.msra.mxu0 0.0
      %1598 = vmatprep.subr.mxu0 0.0
      %1599 = vmatpush2.msra.mxu0 0.0
      %1600 = vmatprep.subr.mxu0 0.0
      %1601 = vmatpush2.msra.mxu0 0.0
      %1602 = vmatprep.subr.mxu0 0.0
      %1603 = vmatpush2.msra.mxu0 0.0
      %1604 = vmatprep.subr.mxu0 0.0
      %1605 = vmatpush2.msra.mxu0 0.0
      %1606 = vmatprep.subr.mxu0 0.0
      %1607 = vmatpush2.msra.mxu0 0.0
      %1608 = vmatprep.subr.mxu0 0.0
      %1609 = vmatpush2.msra.mxu0 0.0
      %1610 = vmatprep.subr.mxu0 0.0
      %1611 = vmatpush2.msra.mxu0 0.0
      %1612 = vmatprep.mubr.f32.mxu0 0.0
      %1613 = vmatmul.mubr.f32.gmra.mxu0 %v1543
      %v1614 = vpop.f32.mrf.mxu0
      %v1615 = vadd.f32 0.0, %v1614
      %v1616 = vpop.f32.mrf.mxu0
      %1617 = vmatprep.mubr.f32.mxu0 0.0
      %1618 = vmatmul.mubr.f32.gmra.mxu0 %v1546
      %v1619 = vpop.f32.mrf.mxu0
      %v1620 = vadd.f32 0.0, %v1619
      %v1621 = vpop.f32.mrf.mxu0
      %1622 = vdwg.mxu0
      %v1624 = vsel %vm881, %v1208, 0
      %v1627 = vsel %vm881, %v1209, 0
      %1629 = vmatprep.subr.mxu0 0.0
      %1630 = vmatpush1.msra.mxu0 0.0
      %1631 = vmatprep.subr.mxu0 0.0
      %1632 = vmatpush1.msra.mxu0 0.0
      %1633 = vmatprep.subr.mxu0 0.0
      %1634 = vmatpush1.msra.mxu0 0.0
      %1635 = vmatprep.subr.mxu0 0.0
      %1636 = vmatpush1.msra.mxu0 0.0
      %1637 = vmatprep.subr.mxu0 0.0
      %1638 = vmatpush1.msra.mxu0 0.0
      %1639 = vmatprep.subr.mxu0 0.0
      %1640 = vmatpush1.msra.mxu0 0.0
      %1641 = vmatprep.subr.mxu0 0.0
      %1642 = vmatpush1.msra.mxu0 0.0
      %1643 = vmatprep.subr.mxu0 0.0
      %1644 = vmatpush1.msra.mxu0 0.0
      %1645 = vmatprep.subr.mxu0 0.0
      %1646 = vmatpush1.msra.mxu0 0.0
      %1647 = vmatprep.subr.mxu0 0.0
      %1648 = vmatpush1.msra.mxu0 0.0
      %1649 = vmatprep.subr.mxu0 0.0
      %1650 = vmatpush1.msra.mxu0 0.0
      %1651 = vmatprep.subr.mxu0 0.0
      %1652 = vmatpush1.msra.mxu0 0.0
      %1653 = vmatprep.subr.mxu0 0.0
      %1654 = vmatpush1.msra.mxu0 0.0
      %1655 = vmatprep.subr.mxu0 0.0
      %1656 = vmatpush1.msra.mxu0 0.0
      %1657 = vmatprep.subr.mxu0 0.0
      %1658 = vmatpush1.msra.mxu0 0.0
      %1659 = vmatprep.subr.mxu0 0.0
      %1660 = vmatpush1.msra.mxu0 %v707
      %1661 = vmatprep.subr.mxu0 0.0
      %1662 = vmatpush2.msra.mxu0 0.0
      %1663 = vmatprep.subr.mxu0 0.0
      %1664 = vmatpush2.msra.mxu0 0.0
      %1665 = vmatprep.subr.mxu0 0.0
      %1666 = vmatpush2.msra.mxu0 0.0
      %1667 = vmatprep.subr.mxu0 0.0
      %1668 = vmatpush2.msra.mxu0 0.0
      %1669 = vmatprep.subr.mxu0 0.0
      %1670 = vmatpush2.msra.mxu0 0.0
      %1671 = vmatprep.subr.mxu0 0.0
      %1672 = vmatpush2.msra.mxu0 0.0
      %1673 = vmatprep.subr.mxu0 0.0
      %1674 = vmatpush2.msra.mxu0 0.0
      %1675 = vmatprep.subr.mxu0 0.0
      %1676 = vmatpush2.msra.mxu0 0.0
      %1677 = vmatprep.subr.mxu0 0.0
      %1678 = vmatpush2.msra.mxu0 0.0
      %1679 = vmatprep.subr.mxu0 0.0
      %1680 = vmatpush2.msra.mxu0 0.0
      %1681 = vmatprep.subr.mxu0 0.0
      %1682 = vmatpush2.msra.mxu0 0.0
      %1683 = vmatprep.subr.mxu0 0.0
      %1684 = vmatpush2.msra.mxu0 0.0
      %1685 = vmatprep.subr.mxu0 0.0
      %1686 = vmatpush2.msra.mxu0 0.0
      %1687 = vmatprep.subr.mxu0 0.0
      %1688 = vmatpush2.msra.mxu0 0.0
      %1689 = vmatprep.subr.mxu0 0.0
      %1690 = vmatpush2.msra.mxu0 0.0
      %1691 = vmatprep.subr.mxu0 0.0
      %1692 = vmatpush2.msra.mxu0 0.0
      %1693 = vmatprep.mubr.f32.mxu0 0.0
      %1694 = vmatmul.mubr.f32.gmra.mxu0 %v1624
      %v1695 = vpop.f32.mrf.mxu0
      %v1696 = vadd.f32 %v1615, %v1695
      %v1697 = vpop.f32.mrf.mxu0
      %1698 = vmatprep.mubr.f32.mxu0 0.0
      %1699 = vmatmul.mubr.f32.gmra.mxu0 %v1627
      %v1700 = vpop.f32.mrf.mxu0
      %v1701 = vadd.f32 %v1620, %v1700
      %v1702 = vpop.f32.mrf.mxu0
      %1703 = vdwg.mxu0
      %1704 = vrot.lane.b32.xlu0 %v792, 112
      %v1705 = vpop.permute.xlu0 %1704
      %1706 = vrot.lane.b32.xlu0 %v873, 112
      %v1707 = vpop.permute.xlu0 %1706
      %v1708 = vsel %vm881, %v1705, 0
      %v1710 = vsel %vm881, %v1707, 0
      %1712 = vmatprep.subr.mxu0 0.0
      %1713 = vmatpush1.xpose.msra.mxu0 0.0
      %1714 = vmatprep.subr.mxu0 0.0
      %1715 = vmatpush1.xpose.msra.mxu0 0.0
      %1716 = vmatprep.subr.mxu0 0.0
      %1717 = vmatpush1.xpose.msra.mxu0 0.0
      %1718 = vmatprep.subr.mxu0 0.0
      %1719 = vmatpush1.xpose.msra.mxu0 0.0
      %1720 = vmatprep.subr.mxu0 0.0
      %1721 = vmatpush1.xpose.msra.mxu0 0.0
      %1722 = vmatprep.subr.mxu0 0.0
      %1723 = vmatpush1.xpose.msra.mxu0 0.0
      %1724 = vmatprep.subr.mxu0 0.0
      %1725 = vmatpush1.xpose.msra.mxu0 0.0
      %1726 = vmatprep.subr.mxu0 0.0
      %1727 = vmatpush1.xpose.msra.mxu0 0.0
      %1728 = vmatprep.subr.mxu0 0.0
      %1729 = vmatpush1.xpose.msra.mxu0 0.0
      %1730 = vmatprep.subr.mxu0 0.0
      %1731 = vmatpush1.xpose.msra.mxu0 0.0
      %1732 = vmatprep.subr.mxu0 0.0
      %1733 = vmatpush1.xpose.msra.mxu0 0.0
      %1734 = vmatprep.subr.mxu0 0.0
      %1735 = vmatpush1.xpose.msra.mxu0 0.0
      %1736 = vmatprep.subr.mxu0 0.0
      %1737 = vmatpush1.xpose.msra.mxu0 0.0
      %1738 = vmatprep.subr.mxu0 0.0
      %1739 = vmatpush1.xpose.msra.mxu0 0.0
      %1740 = vmatprep.subr.mxu0 0.0
      %1741 = vmatpush1.xpose.msra.mxu0 0.0
      %1742 = vmatprep.subr.mxu0 0.0
      %1743 = vmatpush1.xpose.msra.mxu0 %v1710
      %1744 = vmatprep.subr.mxu0 0.0
      %1745 = vmatpush2.xpose.msra.mxu0 0.0
      %1746 = vmatprep.subr.mxu0 0.0
      %1747 = vmatpush2.xpose.msra.mxu0 0.0
      %1748 = vmatprep.subr.mxu0 0.0
      %1749 = vmatpush2.xpose.msra.mxu0 0.0
      %1750 = vmatprep.subr.mxu0 0.0
      %1751 = vmatpush2.xpose.msra.mxu0 0.0
      %1752 = vmatprep.subr.mxu0 0.0
      %1753 = vmatpush2.xpose.msra.mxu0 0.0
      %1754 = vmatprep.subr.mxu0 0.0
      %1755 = vmatpush2.xpose.msra.mxu0 0.0
      %1756 = vmatprep.subr.mxu0 0.0
      %1757 = vmatpush2.xpose.msra.mxu0 0.0
      %1758 = vmatprep.subr.mxu0 0.0
      %1759 = vmatpush2.xpose.msra.mxu0 0.0
      %1760 = vmatprep.subr.mxu0 0.0
      %1761 = vmatpush2.xpose.msra.mxu0 0.0
      %1762 = vmatprep.subr.mxu0 0.0
      %1763 = vmatpush2.xpose.msra.mxu0 0.0
      %1764 = vmatprep.subr.mxu0 0.0
      %1765 = vmatpush2.xpose.msra.mxu0 0.0
      %1766 = vmatprep.subr.mxu0 0.0
      %1767 = vmatpush2.xpose.msra.mxu0 0.0
      %1768 = vmatprep.subr.mxu0 0.0
      %1769 = vmatpush2.xpose.msra.mxu0 0.0
      %1770 = vmatprep.subr.mxu0 0.0
      %1771 = vmatpush2.xpose.msra.mxu0 0.0
      %1772 = vmatprep.subr.mxu0 0.0
      %1773 = vmatpush2.xpose.msra.mxu0 0.0
      %1774 = vmatprep.subr.mxu0 0.0
      %1775 = vmatpush2.xpose.msra.mxu0 0.0
      %1776 = vmatprep.mubr.f32.mxu0 0.0
      %1777 = vmatmul.mubr.f32.gmra.mxu0 %v1708
      %v1778 = vpop.f32.mrf.mxu0
      %v1779 = vadd.f32 0.0, %v1778
      %v1780 = vpop.f32.mrf.mxu0
      %1781 = vdwg.mxu0
      %1782 = vrot.lane.b32.xlu0 %v797, 112
      %v1783 = vpop.permute.xlu0 %1782
      %1784 = vrot.lane.b32.xlu0 %v878, 112
      %v1785 = vpop.permute.xlu0 %1784
      %v1786 = vsel %vm881, %v1783, 0
      %v1788 = vsel %vm881, %v1785, 0
      %1790 = vmatprep.subr.mxu0 0.0
      %1791 = vmatpush1.xpose.msra.mxu0 0.0
      %1792 = vmatprep.subr.mxu0 0.0
      %1793 = vmatpush1.xpose.msra.mxu0 0.0
      %1794 = vmatprep.subr.mxu0 0.0
      %1795 = vmatpush1.xpose.msra.mxu0 0.0
      %1796 = vmatprep.subr.mxu0 0.0
      %1797 = vmatpush1.xpose.msra.mxu0 0.0
      %1798 = vmatprep.subr.mxu0 0.0
      %1799 = vmatpush1.xpose.msra.mxu0 0.0
      %1800 = vmatprep.subr.mxu0 0.0
      %1801 = vmatpush1.xpose.msra.mxu0 0.0
      %1802 = vmatprep.subr.mxu0 0.0
      %1803 = vmatpush1.xpose.msra.mxu0 0.0
      %1804 = vmatprep.subr.mxu0 0.0
      %1805 = vmatpush1.xpose.msra.mxu0 0.0
      %1806 = vmatprep.subr.mxu0 0.0
      %1807 = vmatpush1.xpose.msra.mxu0 0.0
      %1808 = vmatprep.subr.mxu0 0.0
      %1809 = vmatpush1.xpose.msra.mxu0 0.0
      %1810 = vmatprep.subr.mxu0 0.0
      %1811 = vmatpush1.xpose.msra.mxu0 0.0
      %1812 = vmatprep.subr.mxu0 0.0
      %1813 = vmatpush1.xpose.msra.mxu0 0.0
      %1814 = vmatprep.subr.mxu0 0.0
      %1815 = vmatpush1.xpose.msra.mxu0 0.0
      %1816 = vmatprep.subr.mxu0 0.0
      %1817 = vmatpush1.xpose.msra.mxu0 0.0
      %1818 = vmatprep.subr.mxu0 0.0
      %1819 = vmatpush1.xpose.msra.mxu0 0.0
      %1820 = vmatprep.subr.mxu0 0.0
      %1821 = vmatpush1.xpose.msra.mxu0 %v1788
      %1822 = vmatprep.subr.mxu0 0.0
      %1823 = vmatpush2.xpose.msra.mxu0 0.0
      %1824 = vmatprep.subr.mxu0 0.0
      %1825 = vmatpush2.xpose.msra.mxu0 0.0
      %1826 = vmatprep.subr.mxu0 0.0
      %1827 = vmatpush2.xpose.msra.mxu0 0.0
      %1828 = vmatprep.subr.mxu0 0.0
      %1829 = vmatpush2.xpose.msra.mxu0 0.0
      %1830 = vmatprep.subr.mxu0 0.0
      %1831 = vmatpush2.xpose.msra.mxu0 0.0
      %1832 = vmatprep.subr.mxu0 0.0
      %1833 = vmatpush2.xpose.msra.mxu0 0.0
      %1834 = vmatprep.subr.mxu0 0.0
      %1835 = vmatpush2.xpose.msra.mxu0 0.0
      %1836 = vmatprep.subr.mxu0 0.0
      %1837 = vmatpush2.xpose.msra.mxu0 0.0
      %1838 = vmatprep.subr.mxu0 0.0
      %1839 = vmatpush2.xpose.msra.mxu0 0.0
      %1840 = vmatprep.subr.mxu0 0.0
      %1841 = vmatpush2.xpose.msra.mxu0 0.0
      %1842 = vmatprep.subr.mxu0 0.0
      %1843 = vmatpush2.xpose.msra.mxu0 0.0
      %1844 = vmatprep.subr.mxu0 0.0
      %1845 = vmatpush2.xpose.msra.mxu0 0.0
      %1846 = vmatprep.subr.mxu0 0.0
      %1847 = vmatpush2.xpose.msra.mxu0 0.0
      %1848 = vmatprep.subr.mxu0 0.0
      %1849 = vmatpush2.xpose.msra.mxu0 0.0
      %1850 = vmatprep.subr.mxu0 0.0
      %1851 = vmatpush2.xpose.msra.mxu0 0.0
      %1852 = vmatprep.subr.mxu0 0.0
      %1853 = vmatpush2.xpose.msra.mxu0 0.0
      %1854 = vmatprep.mubr.f32.mxu0 0.0
      %1855 = vmatmul.mubr.f32.gmra.mxu0 %v1786
      %v1856 = vpop.f32.mrf.mxu0
      %v1857 = vadd.f32 0.0, %v1856
      %v1858 = vpop.f32.mrf.mxu0
      %1859 = vdwg.mxu0
      %v1860 = vmul.f32 %v1779, 0.35355338
      %v1861 = vmul.f32 %v1857, 0.35355338
      %v1862 = vsel %vm881, %v1860, -inf
      %1863 = vmax.xlane.f32.xlu0 %v1862
      %v1864 = vpop.xlane.xlu0 %1863
      %v1865 = vsel %vm881, %v1861, -inf
      %1866 = vmax.xlane.f32.xlu0 %v1865
      %v1867 = vpop.xlane.xlu0 %1866
      %v1868 = vsub.f32 %v1860, %v1864
      %v1869 = vsub.f32 %v1861, %v1867
      %v1870 = vmul.f32 %v1868, 1.442695
      %v1871 = vpow.pop %v1870
      %v1872 = vmul.f32 %v1869, 1.442695
      %v1873 = vpow.pop %v1872
      %v1874 = vsel %vm881, %v1871, 0.0
      %1875 = vadd.xlane.f32.xlu0 %v1874
      %v1876 = vpop.xlane.xlu0 %1875
      %v1877 = vsel %vm881, %v1873, 0.0
      %1878 = vadd.xlane.f32.xlu0 %v1877
      %v1879 = vpop.xlane.xlu0 %1878
      %1880 = vrot.lane.b32.xlu0 %v873, 80
      %v1881 = vpop.permute.xlu0 %1880
      %v1884 = vsel %vm881, %v1871, 0
      %1886 = vmatprep.subr.mxu0 0.0
      %1887 = vmatpush1.msra.mxu0 0.0
      %1888 = vmatprep.subr.mxu0 0.0
      %1889 = vmatpush1.msra.mxu0 0.0
      %1890 = vmatprep.subr.mxu0 0.0
      %1891 = vmatpush1.msra.mxu0 0.0
      %1892 = vmatprep.subr.mxu0 0.0
      %1893 = vmatpush1.msra.mxu0 0.0
      %1894 = vmatprep.subr.mxu0 0.0
      %1895 = vmatpush1.msra.mxu0 0.0
      %1896 = vmatprep.subr.mxu0 0.0
      %1897 = vmatpush1.msra.mxu0 0.0
      %1898 = vmatprep.subr.mxu0 0.0
      %1899 = vmatpush1.msra.mxu0 0.0
      %1900 = vmatprep.subr.mxu0 0.0
      %1901 = vmatpush1.msra.mxu0 0.0
      %1902 = vmatprep.subr.mxu0 0.0
      %1903 = vmatpush1.msra.mxu0 0.0
      %1904 = vmatprep.subr.mxu0 0.0
      %1905 = vmatpush1.msra.mxu0 0.0
      %1906 = vmatprep.subr.mxu0 0.0
      %1907 = vmatpush1.msra.mxu0 0.0
      %1908 = vmatprep.subr.mxu0 0.0
      %1909 = vmatpush1.msra.mxu0 0.0
      %1910 = vmatprep.subr.mxu0 0.0
      %1911 = vmatpush1.msra.mxu0 0.0
      %1912 = vmatprep.subr.mxu0 0.0
      %1913 = vmatpush1.msra.mxu0 0.0
      %1914 = vmatprep.subr.mxu0 0.0
      %1915 = vmatpush1.msra.mxu0 0.0
      %1916 = vmatprep.subr.mxu0 0.0
      %1917 = vmatpush1.msra.mxu0 %v1881
      %1918 = vmatprep.subr.mxu0 0.0
      %1919 = vmatpush2.msra.mxu0 0.0
      %1920 = vmatprep.subr.mxu0 0.0
      %1921 = vmatpush2.msra.mxu0 0.0
      %1922 = vmatprep.subr.mxu0 0.0
      %1923 = vmatpush2.msra.mxu0 0.0
      %1924 = vmatprep.subr.mxu0 0.0
      %1925 = vmatpush2.msra.mxu0 0.0
      %1926 = vmatprep.subr.mxu0 0.0
      %1927 = vmatpush2.msra.mxu0 0.0
      %1928 = vmatprep.subr.mxu0 0.0
      %1929 = vmatpush2.msra.mxu0 0.0
      %1930 = vmatprep.subr.mxu0 0.0
      %1931 = vmatpush2.msra.mxu0 0.0
      %1932 = vmatprep.subr.mxu0 0.0
      %1933 = vmatpush2.msra.mxu0 0.0
      %1934 = vmatprep.subr.mxu0 0.0
      %1935 = vmatpush2.msra.mxu0 0.0
      %1936 = vmatprep.subr.mxu0 0.0
      %1937 = vmatpush2.msra.mxu0 0.0
      %1938 = vmatprep.subr.mxu0 0.0
      %1939 = vmatpush2.msra.mxu0 0.0
      %1940 = vmatprep.subr.mxu0 0.0
      %1941 = vmatpush2.msra.mxu0 0.0
      %1942 = vmatprep.subr.mxu0 0.0
      %1943 = vmatpush2.msra.mxu0 0.0
      %1944 = vmatprep.subr.mxu0 0.0
      %1945 = vmatpush2.msra.mxu0 0.0
      %1946 = vmatprep.subr.mxu0 0.0
      %1947 = vmatpush2.msra.mxu0 0.0
      %1948 = vmatprep.subr.mxu0 0.0
      %1949 = vmatpush2.msra.mxu0 0.0
      %1950 = vmatprep.mubr.f32.mxu0 0.0
      %1951 = vmatmul.mubr.f32.gmra.mxu0 %v1884
      %v1952 = vpop.f32.mrf.mxu0
      %v1953 = vadd.f32 0.0, %v1952
      %v1954 = vpop.f32.mrf.mxu0
      %1955 = vdwg.mxu0
      %1956 = vrot.lane.b32.xlu0 %v878, 80
      %v1957 = vpop.permute.xlu0 %1956
      %v1960 = vsel %vm881, %v1873, 0
      %1962 = vmatprep.subr.mxu0 0.0
      %1963 = vmatpush1.msra.mxu0 0.0
      %1964 = vmatprep.subr.mxu0 0.0
      %1965 = vmatpush1.msra.mxu0 0.0
      %1966 = vmatprep.subr.mxu0 0.0
      %1967 = vmatpush1.msra.mxu0 0.0
      %1968 = vmatprep.subr.mxu0 0.0
      %1969 = vmatpush1.msra.mxu0 0.0
      %1970 = vmatprep.subr.mxu0 0.0
      %1971 = vmatpush1.msra.mxu0 0.0
      %1972 = vmatprep.subr.mxu0 0.0
      %1973 = vmatpush1.msra.mxu0 0.0
      %1974 = vmatprep.subr.mxu0 0.0
      %1975 = vmatpush1.msra.mxu0 0.0
      %1976 = vmatprep.subr.mxu0 0.0
      %1977 = vmatpush1.msra.mxu0 0.0
      %1978 = vmatprep.subr.mxu0 0.0
      %1979 = vmatpush1.msra.mxu0 0.0
      %1980 = vmatprep.subr.mxu0 0.0
      %1981 = vmatpush1.msra.mxu0 0.0
      %1982 = vmatprep.subr.mxu0 0.0
      %1983 = vmatpush1.msra.mxu0 0.0
      %1984 = vmatprep.subr.mxu0 0.0
      %1985 = vmatpush1.msra.mxu0 0.0
      %1986 = vmatprep.subr.mxu0 0.0
      %1987 = vmatpush1.msra.mxu0 0.0
      %1988 = vmatprep.subr.mxu0 0.0
      %1989 = vmatpush1.msra.mxu0 0.0
      %1990 = vmatprep.subr.mxu0 0.0
      %1991 = vmatpush1.msra.mxu0 0.0
      %1992 = vmatprep.subr.mxu0 0.0
      %1993 = vmatpush1.msra.mxu0 %v1957
      %1994 = vmatprep.subr.mxu0 0.0
      %1995 = vmatpush2.msra.mxu0 0.0
      %1996 = vmatprep.subr.mxu0 0.0
      %1997 = vmatpush2.msra.mxu0 0.0
      %1998 = vmatprep.subr.mxu0 0.0
      %1999 = vmatpush2.msra.mxu0 0.0
      %2000 = vmatprep.subr.mxu0 0.0
      %2001 = vmatpush2.msra.mxu0 0.0
      %2002 = vmatprep.subr.mxu0 0.0
      %2003 = vmatpush2.msra.mxu0 0.0
      %2004 = vmatprep.subr.mxu0 0.0
      %2005 = vmatpush2.msra.mxu0 0.0
      %2006 = vmatprep.subr.mxu0 0.0
      %2007 = vmatpush2.msra.mxu0 0.0
      %2008 = vmatprep.subr.mxu0 0.0
      %2009 = vmatpush2.msra.mxu0 0.0
      %2010 = vmatprep.subr.mxu0 0.0
      %2011 = vmatpush2.msra.mxu0 0.0
      %2012 = vmatprep.subr.mxu0 0.0
      %2013 = vmatpush2.msra.mxu0 0.0
      %2014 = vmatprep.subr.mxu0 0.0
      %2015 = vmatpush2.msra.mxu0 0.0
      %2016 = vmatprep.subr.mxu0 0.0
      %2017 = vmatpush2.msra.mxu0 0.0
      %2018 = vmatprep.subr.mxu0 0.0
      %2019 = vmatpush2.msra.mxu0 0.0
      %2020 = vmatprep.subr.mxu0 0.0
      %2021 = vmatpush2.msra.mxu0 0.0
      %2022 = vmatprep.subr.mxu0 0.0
      %2023 = vmatpush2.msra.mxu0 0.0
      %2024 = vmatprep.subr.mxu0 0.0
      %2025 = vmatpush2.msra.mxu0 0.0
      %2026 = vmatprep.mubr.f32.mxu0 0.0
      %2027 = vmatmul.mubr.f32.gmra.mxu0 %v1960
      %v2028 = vpop.f32.mrf.mxu0
      %v2029 = vadd.f32 0.0, %v2028
      %v2030 = vpop.f32.mrf.mxu0
      %2031 = vdwg.mxu0
      %v2032 = vrcp.pop %v1876
      %v2033 = vrcp.pop %v1879
      %v2034 = vmul.f32 %v1953, %v2032
      %v2035 = vmul.f32 %v2029, %v2033
      %v2037 = vsel %vm881, %v2034, 0
      %v2040 = vsel %vm881, %v2035, 0
      %2042 = vmatprep.subr.mxu0 0.0
      %2043 = vmatpush1.msra.mxu0 0.0
      %2044 = vmatprep.subr.mxu0 0.0
      %2045 = vmatpush1.msra.mxu0 0.0
      %2046 = vmatprep.subr.mxu0 0.0
      %2047 = vmatpush1.msra.mxu0 0.0
      %2048 = vmatprep.subr.mxu0 0.0
      %2049 = vmatpush1.msra.mxu0 0.0
      %2050 = vmatprep.subr.mxu0 0.0
      %2051 = vmatpush1.msra.mxu0 0.0
      %2052 = vmatprep.subr.mxu0 0.0
      %2053 = vmatpush1.msra.mxu0 0.0
      %2054 = vmatprep.subr.mxu0 0.0
      %2055 = vmatpush1.msra.mxu0 0.0
      %2056 = vmatprep.subr.mxu0 0.0
      %2057 = vmatpush1.msra.mxu0 0.0
      %2058 = vmatprep.subr.mxu0 0.0
      %2059 = vmatpush1.msra.mxu0 0.0
      %2060 = vmatprep.subr.mxu0 0.0
      %2061 = vmatpush1.msra.mxu0 0.0
      %2062 = vmatprep.subr.mxu0 0.0
      %2063 = vmatpush1.msra.mxu0 0.0
      %2064 = vmatprep.subr.mxu0 0.0
      %2065 = vmatpush1.msra.mxu0 0.0
      %2066 = vmatprep.subr.mxu0 0.0
      %2067 = vmatpush1.msra.mxu0 0.0
      %2068 = vmatprep.subr.mxu0 0.0
      %2069 = vmatpush1.msra.mxu0 0.0
      %2070 = vmatprep.subr.mxu0 0.0
      %2071 = vmatpush1.msra.mxu0 0.0
      %2072 = vmatprep.subr.mxu0 0.0
      %2073 = vmatpush1.msra.mxu0 %v709
      %2074 = vmatprep.subr.mxu0 0.0
      %2075 = vmatpush2.msra.mxu0 0.0
      %2076 = vmatprep.subr.mxu0 0.0
      %2077 = vmatpush2.msra.mxu0 0.0
      %2078 = vmatprep.subr.mxu0 0.0
      %2079 = vmatpush2.msra.mxu0 0.0
      %2080 = vmatprep.subr.mxu0 0.0
      %2081 = vmatpush2.msra.mxu0 0.0
      %2082 = vmatprep.subr.mxu0 0.0
      %2083 = vmatpush2.msra.mxu0 0.0
      %2084 = vmatprep.subr.mxu0 0.0
      %2085 = vmatpush2.msra.mxu0 0.0
      %2086 = vmatprep.subr.mxu0 0.0
      %2087 = vmatpush2.msra.mxu0 0.0
      %2088 = vmatprep.subr.mxu0 0.0
      %2089 = vmatpush2.msra.mxu0 0.0
      %2090 = vmatprep.subr.mxu0 0.0
      %2091 = vmatpush2.msra.mxu0 0.0
      %2092 = vmatprep.subr.mxu0 0.0
      %2093 = vmatpush2.msra.mxu0 0.0
      %2094 = vmatprep.subr.mxu0 0.0
      %2095 = vmatpush2.msra.mxu0 0.0
      %2096 = vmatprep.subr.mxu0 0.0
      %2097 = vmatpush2.msra.mxu0 0.0
      %2098 = vmatprep.subr.mxu0 0.0
      %2099 = vmatpush2.msra.mxu0 0.0
      %2100 = vmatprep.subr.mxu0 0.0
      %2101 = vmatpush2.msra.mxu0 0.0
      %2102 = vmatprep.subr.mxu0 0.0
      %2103 = vmatpush2.msra.mxu0 0.0
      %2104 = vmatprep.subr.mxu0 0.0
      %2105 = vmatpush2.msra.mxu0 0.0
      %2106 = vmatprep.mubr.f32.mxu0 0.0
      %2107 = vmatmul.mubr.f32.gmra.mxu0 %v2037
      %v2108 = vpop.f32.mrf.mxu0
      %v2109 = vadd.f32 0.0, %v2108
      %v2110 = vpop.f32.mrf.mxu0
      %2111 = vmatprep.mubr.f32.mxu0 0.0
      %2112 = vmatmul.mubr.f32.gmra.mxu0 %v2040
      %v2113 = vpop.f32.mrf.mxu0
      %v2114 = vadd.f32 0.0, %v2113
      %v2115 = vpop.f32.mrf.mxu0
      %2116 = vdwg.mxu0
      %v2117 = vadd.f32 %v1696, %v2109
      %v2118 = vadd.f32 %v1701, %v2114
      %2119 = vrot.lane.b32.xlu0 %v792, 104
      %v2120 = vpop.permute.xlu0 %2119
      %2121 = vrot.lane.b32.xlu0 %v873, 104
      %v2122 = vpop.permute.xlu0 %2121
      %v2123 = vsel %vm881, %v2120, 0
      %v2125 = vsel %vm881, %v2122, 0
      %2127 = vmatprep.subr.mxu0 0.0
      %2128 = vmatpush1.xpose.msra.mxu0 0.0
      %2129 = vmatprep.subr.mxu0 0.0
      %2130 = vmatpush1.xpose.msra.mxu0 0.0
      %2131 = vmatprep.subr.mxu0 0.0
      %2132 = vmatpush1.xpose.msra.mxu0 0.0
      %2133 = vmatprep.subr.mxu0 0.0
      %2134 = vmatpush1.xpose.msra.mxu0 0.0
      %2135 = vmatprep.subr.mxu0 0.0
      %2136 = vmatpush1.xpose.msra.mxu0 0.0
      %2137 = vmatprep.subr.mxu0 0.0
      %2138 = vmatpush1.xpose.msra.mxu0 0.0
      %2139 = vmatprep.subr.mxu0 0.0
      %2140 = vmatpush1.xpose.msra.mxu0 0.0
      %2141 = vmatprep.subr.mxu0 0.0
      %2142 = vmatpush1.xpose.msra.mxu0 0.0
      %2143 = vmatprep.subr.mxu0 0.0
      %2144 = vmatpush1.xpose.msra.mxu0 0.0
      %2145 = vmatprep.subr.mxu0 0.0
      %2146 = vmatpush1.xpose.msra.mxu0 0.0
      %2147 = vmatprep.subr.mxu0 0.0
      %2148 = vmatpush1.xpose.msra.mxu0 0.0
      %2149 = vmatprep.subr.mxu0 0.0
      %2150 = vmatpush1.xpose.msra.mxu0 0.0
      %2151 = vmatprep.subr.mxu0 0.0
      %2152 = vmatpush1.xpose.msra.mxu0 0.0
      %2153 = vmatprep.subr.mxu0 0.0
      %2154 = vmatpush1.xpose.msra.mxu0 0.0
      %2155 = vmatprep.subr.mxu0 0.0
      %2156 = vmatpush1.xpose.msra.mxu0 0.0
      %2157 = vmatprep.subr.mxu0 0.0
      %2158 = vmatpush1.xpose.msra.mxu0 %v2125
      %2159 = vmatprep.subr.mxu0 0.0
      %2160 = vmatpush2.xpose.msra.mxu0 0.0
      %2161 = vmatprep.subr.mxu0 0.0
      %2162 = vmatpush2.xpose.msra.mxu0 0.0
      %2163 = vmatprep.subr.mxu0 0.0
      %2164 = vmatpush2.xpose.msra.mxu0 0.0
      %2165 = vmatprep.subr.mxu0 0.0
      %2166 = vmatpush2.xpose.msra.mxu0 0.0
      %2167 = vmatprep.subr.mxu0 0.0
      %2168 = vmatpush2.xpose.msra.mxu0 0.0
      %2169 = vmatprep.subr.mxu0 0.0
      %2170 = vmatpush2.xpose.msra.mxu0 0.0
      %2171 = vmatprep.subr.mxu0 0.0
      %2172 = vmatpush2.xpose.msra.mxu0 0.0
      %2173 = vmatprep.subr.mxu0 0.0
      %2174 = vmatpush2.xpose.msra.mxu0 0.0
      %2175 = vmatprep.subr.mxu0 0.0
      %2176 = vmatpush2.xpose.msra.mxu0 0.0
      %2177 = vmatprep.subr.mxu0 0.0
      %2178 = vmatpush2.xpose.msra.mxu0 0.0
      %2179 = vmatprep.subr.mxu0 0.0
      %2180 = vmatpush2.xpose.msra.mxu0 0.0
      %2181 = vmatprep.subr.mxu0 0.0
      %2182 = vmatpush2.xpose.msra.mxu0 0.0
      %2183 = vmatprep.subr.mxu0 0.0
      %2184 = vmatpush2.xpose.msra.mxu0 0.0
      %2185 = vmatprep.subr.mxu0 0.0
      %2186 = vmatpush2.xpose.msra.mxu0 0.0
      %2187 = vmatprep.subr.mxu0 0.0
      %2188 = vmatpush2.xpose.msra.mxu0 0.0
      %2189 = vmatprep.subr.mxu0 0.0
      %2190 = vmatpush2.xpose.msra.mxu0 0.0
      %2191 = vmatprep.mubr.f32.mxu0 0.0
      %2192 = vmatmul.mubr.f32.gmra.mxu0 %v2123
      %v2193 = vpop.f32.mrf.mxu0
      %v2194 = vadd.f32 0.0, %v2193
      %v2195 = vpop.f32.mrf.mxu0
      %2196 = vdwg.mxu0
      %2197 = vrot.lane.b32.xlu0 %v797, 104
      %v2198 = vpop.permute.xlu0 %2197
      %2199 = vrot.lane.b32.xlu0 %v878, 104
      %v2200 = vpop.permute.xlu0 %2199
      %v2201 = vsel %vm881, %v2198, 0
      %v2203 = vsel %vm881, %v2200, 0
      %2205 = vmatprep.subr.mxu0 0.0
      %2206 = vmatpush1.xpose.msra.mxu0 0.0
      %2207 = vmatprep.subr.mxu0 0.0
      %2208 = vmatpush1.xpose.msra.mxu0 0.0
      %2209 = vmatprep.subr.mxu0 0.0
      %2210 = vmatpush1.xpose.msra.mxu0 0.0
      %2211 = vmatprep.subr.mxu0 0.0
      %2212 = vmatpush1.xpose.msra.mxu0 0.0
      %2213 = vmatprep.subr.mxu0 0.0
      %2214 = vmatpush1.xpose.msra.mxu0 0.0
      %2215 = vmatprep.subr.mxu0 0.0
      %2216 = vmatpush1.xpose.msra.mxu0 0.0
      %2217 = vmatprep.subr.mxu0 0.0
      %2218 = vmatpush1.xpose.msra.mxu0 0.0
      %2219 = vmatprep.subr.mxu0 0.0
      %2220 = vmatpush1.xpose.msra.mxu0 0.0
      %2221 = vmatprep.subr.mxu0 0.0
      %2222 = vmatpush1.xpose.msra.mxu0 0.0
      %2223 = vmatprep.subr.mxu0 0.0
      %2224 = vmatpush1.xpose.msra.mxu0 0.0
      %2225 = vmatprep.subr.mxu0 0.0
      %2226 = vmatpush1.xpose.msra.mxu0 0.0
      %2227 = vmatprep.subr.mxu0 0.0
      %2228 = vmatpush1.xpose.msra.mxu0 0.0
      %2229 = vmatprep.subr.mxu0 0.0
      %2230 = vmatpush1.xpose.msra.mxu0 0.0
      %2231 = vmatprep.subr.mxu0 0.0
      %2232 = vmatpush1.xpose.msra.mxu0 0.0
      %2233 = vmatprep.subr.mxu0 0.0
      %2234 = vmatpush1.xpose.msra.mxu0 0.0
      %2235 = vmatprep.subr.mxu0 0.0
      %2236 = vmatpush1.xpose.msra.mxu0 %v2203
      %2237 = vmatprep.subr.mxu0 0.0
      %2238 = vmatpush2.xpose.msra.mxu0 0.0
      %2239 = vmatprep.subr.mxu0 0.0
      %2240 = vmatpush2.xpose.msra.mxu0 0.0
      %2241 = vmatprep.subr.mxu0 0.0
      %2242 = vmatpush2.xpose.msra.mxu0 0.0
      %2243 = vmatprep.subr.mxu0 0.0
      %2244 = vmatpush2.xpose.msra.mxu0 0.0
      %2245 = vmatprep.subr.mxu0 0.0
      %2246 = vmatpush2.xpose.msra.mxu0 0.0
      %2247 = vmatprep.subr.mxu0 0.0
      %2248 = vmatpush2.xpose.msra.mxu0 0.0
      %2249 = vmatprep.subr.mxu0 0.0
      %2250 = vmatpush2.xpose.msra.mxu0 0.0
      %2251 = vmatprep.subr.mxu0 0.0
      %2252 = vmatpush2.xpose.msra.mxu0 0.0
      %2253 = vmatprep.subr.mxu0 0.0
      %2254 = vmatpush2.xpose.msra.mxu0 0.0
      %2255 = vmatprep.subr.mxu0 0.0
      %2256 = vmatpush2.xpose.msra.mxu0 0.0
      %2257 = vmatprep.subr.mxu0 0.0
      %2258 = vmatpush2.xpose.msra.mxu0 0.0
      %2259 = vmatprep.subr.mxu0 0.0
      %2260 = vmatpush2.xpose.msra.mxu0 0.0
      %2261 = vmatprep.subr.mxu0 0.0
      %2262 = vmatpush2.xpose.msra.mxu0 0.0
      %2263 = vmatprep.subr.mxu0 0.0
      %2264 = vmatpush2.xpose.msra.mxu0 0.0
      %2265 = vmatprep.subr.mxu0 0.0
      %2266 = vmatpush2.xpose.msra.mxu0 0.0
      %2267 = vmatprep.subr.mxu0 0.0
      %2268 = vmatpush2.xpose.msra.mxu0 0.0
      %2269 = vmatprep.mubr.f32.mxu0 0.0
      %2270 = vmatmul.mubr.f32.gmra.mxu0 %v2201
      %v2271 = vpop.f32.mrf.mxu0
      %v2272 = vadd.f32 0.0, %v2271
      %v2273 = vpop.f32.mrf.mxu0
      %2274 = vdwg.mxu0
      %v2275 = vmul.f32 %v2194, 0.35355338
      %v2276 = vmul.f32 %v2272, 0.35355338
      %v2277 = vsel %vm881, %v2275, -inf
      %2278 = vmax.xlane.f32.xlu0 %v2277
      %v2279 = vpop.xlane.xlu0 %2278
      %v2280 = vsel %vm881, %v2276, -inf
      %2281 = vmax.xlane.f32.xlu0 %v2280
      %v2282 = vpop.xlane.xlu0 %2281
      %v2283 = vsub.f32 %v2275, %v2279
      %v2284 = vsub.f32 %v2276, %v2282
      %v2285 = vmul.f32 %v2283, 1.442695
      %v2286 = vpow.pop %v2285
      %v2287 = vmul.f32 %v2284, 1.442695
      %v2288 = vpow.pop %v2287
      %v2289 = vsel %vm881, %v2286, 0.0
      %2290 = vadd.xlane.f32.xlu0 %v2289
      %v2291 = vpop.xlane.xlu0 %2290
      %v2292 = vsel %vm881, %v2288, 0.0
      %2293 = vadd.xlane.f32.xlu0 %v2292
      %v2294 = vpop.xlane.xlu0 %2293
      %2295 = vrot.lane.b32.xlu0 %v873, 72
      %v2296 = vpop.permute.xlu0 %2295
      %v2299 = vsel %vm881, %v2286, 0
      %2301 = vmatprep.subr.mxu0 0.0
      %2302 = vmatpush1.msra.mxu0 0.0
      %2303 = vmatprep.subr.mxu0 0.0
      %2304 = vmatpush1.msra.mxu0 0.0
      %2305 = vmatprep.subr.mxu0 0.0
      %2306 = vmatpush1.msra.mxu0 0.0
      %2307 = vmatprep.subr.mxu0 0.0
      %2308 = vmatpush1.msra.mxu0 0.0
      %2309 = vmatprep.subr.mxu0 0.0
      %2310 = vmatpush1.msra.mxu0 0.0
      %2311 = vmatprep.subr.mxu0 0.0
      %2312 = vmatpush1.msra.mxu0 0.0
      %2313 = vmatprep.subr.mxu0 0.0
      %2314 = vmatpush1.msra.mxu0 0.0
      %2315 = vmatprep.subr.mxu0 0.0
      %2316 = vmatpush1.msra.mxu0 0.0
      %2317 = vmatprep.subr.mxu0 0.0
      %2318 = vmatpush1.msra.mxu0 0.0
      %2319 = vmatprep.subr.mxu0 0.0
      %2320 = vmatpush1.msra.mxu0 0.0
      %2321 = vmatprep.subr.mxu0 0.0
      %2322 = vmatpush1.msra.mxu0 0.0
      %2323 = vmatprep.subr.mxu0 0.0
      %2324 = vmatpush1.msra.mxu0 0.0
      %2325 = vmatprep.subr.mxu0 0.0
      %2326 = vmatpush1.msra.mxu0 0.0
      %2327 = vmatprep.subr.mxu0 0.0
      %2328 = vmatpush1.msra.mxu0 0.0
      %2329 = vmatprep.subr.mxu0 0.0
      %2330 = vmatpush1.msra.mxu0 0.0
      %2331 = vmatprep.subr.mxu0 0.0
      %2332 = vmatpush1.msra.mxu0 %v2296
      %2333 = vmatprep.subr.mxu0 0.0
      %2334 = vmatpush2.msra.mxu0 0.0
      %2335 = vmatprep.subr.mxu0 0.0
      %2336 = vmatpush2.msra.mxu0 0.0
      %2337 = vmatprep.subr.mxu0 0.0
      %2338 = vmatpush2.msra.mxu0 0.0
      %2339 = vmatprep.subr.mxu0 0.0
      %2340 = vmatpush2.msra.mxu0 0.0
      %2341 = vmatprep.subr.mxu0 0.0
      %2342 = vmatpush2.msra.mxu0 0.0
      %2343 = vmatprep.subr.mxu0 0.0
      %2344 = vmatpush2.msra.mxu0 0.0
      %2345 = vmatprep.subr.mxu0 0.0
      %2346 = vmatpush2.msra.mxu0 0.0
      %2347 = vmatprep.subr.mxu0 0.0
      %2348 = vmatpush2.msra.mxu0 0.0
      %2349 = vmatprep.subr.mxu0 0.0
      %2350 = vmatpush2.msra.mxu0 0.0
      %2351 = vmatprep.subr.mxu0 0.0
      %2352 = vmatpush2.msra.mxu0 0.0
      %2353 = vmatprep.subr.mxu0 0.0
      %2354 = vmatpush2.msra.mxu0 0.0
      %2355 = vmatprep.subr.mxu0 0.0
      %2356 = vmatpush2.msra.mxu0 0.0
      %2357 = vmatprep.subr.mxu0 0.0
      %2358 = vmatpush2.msra.mxu0 0.0
      %2359 = vmatprep.subr.mxu0 0.0
      %2360 = vmatpush2.msra.mxu0 0.0
      %2361 = vmatprep.subr.mxu0 0.0
      %2362 = vmatpush2.msra.mxu0 0.0
      %2363 = vmatprep.subr.mxu0 0.0
      %2364 = vmatpush2.msra.mxu0 0.0
      %2365 = vmatprep.mubr.f32.mxu0 0.0
      %2366 = vmatmul.mubr.f32.gmra.mxu0 %v2299
      %v2367 = vpop.f32.mrf.mxu0
      %v2368 = vadd.f32 0.0, %v2367
      %v2369 = vpop.f32.mrf.mxu0
      %2370 = vdwg.mxu0
      %2371 = vrot.lane.b32.xlu0 %v878, 72
      %v2372 = vpop.permute.xlu0 %2371
      %v2375 = vsel %vm881, %v2288, 0
      %2377 = vmatprep.subr.mxu0 0.0
      %2378 = vmatpush1.msra.mxu0 0.0
      %2379 = vmatprep.subr.mxu0 0.0
      %2380 = vmatpush1.msra.mxu0 0.0
      %2381 = vmatprep.subr.mxu0 0.0
      %2382 = vmatpush1.msra.mxu0 0.0
      %2383 = vmatprep.subr.mxu0 0.0
      %2384 = vmatpush1.msra.mxu0 0.0
      %2385 = vmatprep.subr.mxu0 0.0
      %2386 = vmatpush1.msra.mxu0 0.0
      %2387 = vmatprep.subr.mxu0 0.0
      %2388 = vmatpush1.msra.mxu0 0.0
      %2389 = vmatprep.subr.mxu0 0.0
      %2390 = vmatpush1.msra.mxu0 0.0
      %2391 = vmatprep.subr.mxu0 0.0
      %2392 = vmatpush1.msra.mxu0 0.0
      %2393 = vmatprep.subr.mxu0 0.0
      %2394 = vmatpush1.msra.mxu0 0.0
      %2395 = vmatprep.subr.mxu0 0.0
      %2396 = vmatpush1.msra.mxu0 0.0
      %2397 = vmatprep.subr.mxu0 0.0
      %2398 = vmatpush1.msra.mxu0 0.0
      %2399 = vmatprep.subr.mxu0 0.0
      %2400 = vmatpush1.msra.mxu0 0.0
      %2401 = vmatprep.subr.mxu0 0.0
      %2402 = vmatpush1.msra.mxu0 0.0
      %2403 = vmatprep.subr.mxu0 0.0
      %2404 = vmatpush1.msra.mxu0 0.0
      %2405 = vmatprep.subr.mxu0 0.0
      %2406 = vmatpush1.msra.mxu0 0.0
      %2407 = vmatprep.subr.mxu0 0.0
      %2408 = vmatpush1.msra.mxu0 %v2372
      %2409 = vmatprep.subr.mxu0 0.0
      %2410 = vmatpush2.msra.mxu0 0.0
      %2411 = vmatprep.subr.mxu0 0.0
      %2412 = vmatpush2.msra.mxu0 0.0
      %2413 = vmatprep.subr.mxu0 0.0
      %2414 = vmatpush2.msra.mxu0 0.0
      %2415 = vmatprep.subr.mxu0 0.0
      %2416 = vmatpush2.msra.mxu0 0.0
      %2417 = vmatprep.subr.mxu0 0.0
      %2418 = vmatpush2.msra.mxu0 0.0
      %2419 = vmatprep.subr.mxu0 0.0
      %2420 = vmatpush2.msra.mxu0 0.0
      %2421 = vmatprep.subr.mxu0 0.0
      %2422 = vmatpush2.msra.mxu0 0.0
      %2423 = vmatprep.subr.mxu0 0.0
      %2424 = vmatpush2.msra.mxu0 0.0
      %2425 = vmatprep.subr.mxu0 0.0
      %2426 = vmatpush2.msra.mxu0 0.0
      %2427 = vmatprep.subr.mxu0 0.0
      %2428 = vmatpush2.msra.mxu0 0.0
      %2429 = vmatprep.subr.mxu0 0.0
      %2430 = vmatpush2.msra.mxu0 0.0
      %2431 = vmatprep.subr.mxu0 0.0
      %2432 = vmatpush2.msra.mxu0 0.0
      %2433 = vmatprep.subr.mxu0 0.0
      %2434 = vmatpush2.msra.mxu0 0.0
      %2435 = vmatprep.subr.mxu0 0.0
      %2436 = vmatpush2.msra.mxu0 0.0
      %2437 = vmatprep.subr.mxu0 0.0
      %2438 = vmatpush2.msra.mxu0 0.0
      %2439 = vmatprep.subr.mxu0 0.0
      %2440 = vmatpush2.msra.mxu0 0.0
      %2441 = vmatprep.mubr.f32.mxu0 0.0
      %2442 = vmatmul.mubr.f32.gmra.mxu0 %v2375
      %v2443 = vpop.f32.mrf.mxu0
      %v2444 = vadd.f32 0.0, %v2443
      %v2445 = vpop.f32.mrf.mxu0
      %2446 = vdwg.mxu0
      %v2447 = vrcp.pop %v2291
      %v2448 = vrcp.pop %v2294
      %v2449 = vmul.f32 %v2368, %v2447
      %v2450 = vmul.f32 %v2444, %v2448
      %v2452 = vsel %vm881, %v2449, 0
      %v2455 = vsel %vm881, %v2450, 0
      %2457 = vmatprep.subr.mxu0 0.0
      %2458 = vmatpush1.msra.mxu0 0.0
      %2459 = vmatprep.subr.mxu0 0.0
      %2460 = vmatpush1.msra.mxu0 0.0
      %2461 = vmatprep.subr.mxu0 0.0
      %2462 = vmatpush1.msra.mxu0 0.0
      %2463 = vmatprep.subr.mxu0 0.0
      %2464 = vmatpush1.msra.mxu0 0.0
      %2465 = vmatprep.subr.mxu0 0.0
      %2466 = vmatpush1.msra.mxu0 0.0
      %2467 = vmatprep.subr.mxu0 0.0
      %2468 = vmatpush1.msra.mxu0 0.0
      %2469 = vmatprep.subr.mxu0 0.0
      %2470 = vmatpush1.msra.mxu0 0.0
      %2471 = vmatprep.subr.mxu0 0.0
      %2472 = vmatpush1.msra.mxu0 0.0
      %2473 = vmatprep.subr.mxu0 0.0
      %2474 = vmatpush1.msra.mxu0 0.0
      %2475 = vmatprep.subr.mxu0 0.0
      %2476 = vmatpush1.msra.mxu0 0.0
      %2477 = vmatprep.subr.mxu0 0.0
      %2478 = vmatpush1.msra.mxu0 0.0
      %2479 = vmatprep.subr.mxu0 0.0
      %2480 = vmatpush1.msra.mxu0 0.0
      %2481 = vmatprep.subr.mxu0 0.0
      %2482 = vmatpush1.msra.mxu0 0.0
      %2483 = vmatprep.subr.mxu0 0.0
      %2484 = vmatpush1.msra.mxu0 0.0
      %2485 = vmatprep.subr.mxu0 0.0
      %2486 = vmatpush1.msra.mxu0 0.0
      %2487 = vmatprep.subr.mxu0 0.0
      %2488 = vmatpush1.msra.mxu0 %v710
      %2489 = vmatprep.subr.mxu0 0.0
      %2490 = vmatpush2.msra.mxu0 0.0
      %2491 = vmatprep.subr.mxu0 0.0
      %2492 = vmatpush2.msra.mxu0 0.0
      %2493 = vmatprep.subr.mxu0 0.0
      %2494 = vmatpush2.msra.mxu0 0.0
      %2495 = vmatprep.subr.mxu0 0.0
      %2496 = vmatpush2.msra.mxu0 0.0
      %2497 = vmatprep.subr.mxu0 0.0
      %2498 = vmatpush2.msra.mxu0 0.0
      %2499 = vmatprep.subr.mxu0 0.0
      %2500 = vmatpush2.msra.mxu0 0.0
      %2501 = vmatprep.subr.mxu0 0.0
      %2502 = vmatpush2.msra.mxu0 0.0
      %2503 = vmatprep.subr.mxu0 0.0
      %2504 = vmatpush2.msra.mxu0 0.0
      %2505 = vmatprep.subr.mxu0 0.0
      %2506 = vmatpush2.msra.mxu0 0.0
      %2507 = vmatprep.subr.mxu0 0.0
      %2508 = vmatpush2.msra.mxu0 0.0
      %2509 = vmatprep.subr.mxu0 0.0
      %2510 = vmatpush2.msra.mxu0 0.0
      %2511 = vmatprep.subr.mxu0 0.0
      %2512 = vmatpush2.msra.mxu0 0.0
      %2513 = vmatprep.subr.mxu0 0.0
      %2514 = vmatpush2.msra.mxu0 0.0
      %2515 = vmatprep.subr.mxu0 0.0
      %2516 = vmatpush2.msra.mxu0 0.0
      %2517 = vmatprep.subr.mxu0 0.0
      %2518 = vmatpush2.msra.mxu0 0.0
      %2519 = vmatprep.subr.mxu0 0.0
      %2520 = vmatpush2.msra.mxu0 0.0
      %2521 = vmatprep.mubr.f32.mxu0 0.0
      %2522 = vmatmul.mubr.f32.gmra.mxu0 %v2452
      %v2523 = vpop.f32.mrf.mxu0
      %v2524 = vadd.f32 0.0, %v2523
      %v2525 = vpop.f32.mrf.mxu0
      %2526 = vmatprep.mubr.f32.mxu0 0.0
      %2527 = vmatmul.mubr.f32.gmra.mxu0 %v2455
      %v2528 = vpop.f32.mrf.mxu0
      %v2529 = vadd.f32 0.0, %v2528
      %v2530 = vpop.f32.mrf.mxu0
      %2531 = vdwg.mxu0
      %v2532 = vadd.f32 %v2117, %v2524
      %v2533 = vadd.f32 %v2118, %v2529
      %v2535 = vlaneseq
      %v2536 = vshrl.u32 %v2535, 7
      %v2537 = vsub.s32 0, %v2536
      %v2538 = vrot.slane %v711, %v2537
      %v2540 = vadd.f32 %v2532, %v2538
      %v2541 = vadd.f32 %v2533, %v2538
      %v2542 = vadd.f32 %v695, %v2540
      %v2543 = vadd.f32 %v696, %v2541
      %v2544 = vld [vmem:[%s660] sm:$0x1]
      %v2545 = vld [vmem:[%s663] sm:$0x1]
      %v2546 = vsel %vm718, %v2542, 0.0
      %2547 = vadd.xlane.f32.xlu0 %v2546
      %v2548 = vpop.xlane.xlu0 %2547
      %v2549 = vsel %vm718, %v2543, 0.0
      %2550 = vadd.xlane.f32.xlu0 %v2549
      %v2551 = vpop.xlane.xlu0 %2550
      %v2552 = vrcp.pop 32.0
      %v2553 = vmul.f32 %v2548, %v2552
      %v2554 = vmul.f32 %v2551, %v2552
      %v2555 = vsub.f32 %v2542, %v2553
      %v2556 = vsub.f32 %v2543, %v2554
      %v2557 = vmul.f32 %v2555, %v2555
      %v2558 = vmul.f32 %v2556, %v2556
      %v2559 = vsel %vm718, %v2557, 0.0
      %2560 = vadd.xlane.f32.xlu0 %v2559
      %v2561 = vpop.xlane.xlu0 %2560
      %v2562 = vsel %vm718, %v2558, 0.0
      %2563 = vadd.xlane.f32.xlu0 %v2562
      %v2564 = vpop.xlane.xlu0 %2563
      %v2565 = vmul.f32 %v2561, %v2552
      %v2566 = vmul.f32 %v2564, %v2552
      %v2567 = vadd.f32 %v2565, 1e-05
      %v2568 = vadd.f32 %v2566, 1e-05
      %v2569 = vrsqrt.pop %v2567
      %v2570 = vrsqrt.pop %v2568
      %v2571 = vmul.f32 %v2555, %v2569
      %v2572 = vmul.f32 %v2556, %v2570
      %v2574 = vlaneseq
      %v2575 = vshrl.u32 %v2574, 7
      %v2576 = vsub.s32 0, %v2575
      %v2577 = vrot.slane %v2544, %v2576
      %v2579 = vmul.f32 %v2571, %v2577
      %v2580 = vmul.f32 %v2572, %v2577
      %v2582 = vlaneseq
      %v2583 = vshrl.u32 %v2582, 7
      %v2584 = vsub.s32 0, %v2583
      %v2585 = vrot.slane %v2545, %v2584
      %v2587 = vadd.f32 %v2579, %v2585
      %v2588 = vadd.f32 %v2580, %v2585
      %v2589 = vld [vmem:[%s668] sm:$0xff]
      %v2590 = vld [vmem:[%s668 + $0x8] sm:$0xff]
      %v2591 = vld [vmem:[%s668 + $0x10] sm:$0xff]
      %v2592 = vld [vmem:[%s668 + $0x18] sm:$0xff]
      %v2593 = vld [vmem:[%s671] sm:$0x1]
      %v2594 = vld [vmem:[%s676] sm:$0xff]
      %v2595 = vld [vmem:[%s676 + $0x8] sm:$0xff]
      %v2596 = vld [vmem:[%s676 + $0x10] sm:$0xff]
      %v2597 = vld [vmem:[%s676 + $0x18] sm:$0xff]
      %v2598 = vld [vmem:[%s676 + $0x20] sm:$0xff]
      %v2599 = vld [vmem:[%s676 + $0x28] sm:$0xff]
      %v2600 = vld [vmem:[%s676 + $0x30] sm:$0xff]
      %v2601 = vld [vmem:[%s676 + $0x38] sm:$0xff]
      %v2602 = vld [vmem:[%s676 + $0x40] sm:$0xff]
      %v2603 = vld [vmem:[%s676 + $0x48] sm:$0xff]
      %v2604 = vld [vmem:[%s676 + $0x50] sm:$0xff]
      %v2605 = vld [vmem:[%s676 + $0x58] sm:$0xff]
      %v2606 = vld [vmem:[%s676 + $0x60] sm:$0xff]
      %v2607 = vld [vmem:[%s676 + $0x68] sm:$0xff]
      %v2608 = vld [vmem:[%s676 + $0x70] sm:$0xff]
      %v2609 = vld [vmem:[%s676 + $0x78] sm:$0xff]
      %v2610 = vld [vmem:[%s679] sm:$0x1]
      %v2612 = vlaneseq
      %v2613 = vshrl.u32 %v2612, 7
      %v2614 = vsub.s32 0, %v2613
      %v2615 = vrot.slane %v2593, %v2614
      %v2618 = vsel %vm718, %v2587, 0
      %v2621 = vsel %vm718, %v2588, 0
      %2623 = vmatprep.subr.mxu0 0.0
      %2624 = vmatpush1.msra.mxu0 0.0
      %2625 = vmatprep.subr.mxu0 0.0
      %2626 = vmatpush1.msra.mxu0 0.0
      %2627 = vmatprep.subr.mxu0 0.0
      %2628 = vmatpush1.msra.mxu0 0.0
      %2629 = vmatprep.subr.mxu0 0.0
      %2630 = vmatpush1.msra.mxu0 0.0
      %2631 = vmatprep.subr.mxu0 0.0
      %2632 = vmatpush1.msra.mxu0 0.0
      %2633 = vmatprep.subr.mxu0 0.0
      %2634 = vmatpush1.msra.mxu0 0.0
      %2635 = vmatprep.subr.mxu0 0.0
      %2636 = vmatpush1.msra.mxu0 0.0
      %2637 = vmatprep.subr.mxu0 0.0
      %2638 = vmatpush1.msra.mxu0 0.0
      %2639 = vmatprep.subr.mxu0 0.0
      %2640 = vmatpush1.msra.mxu0 0.0
      %2641 = vmatprep.subr.mxu0 0.0
      %2642 = vmatpush1.msra.mxu0 0.0
      %2643 = vmatprep.subr.mxu0 0.0
      %2644 = vmatpush1.msra.mxu0 0.0
      %2645 = vmatprep.subr.mxu0 0.0
      %2646 = vmatpush1.msra.mxu0 0.0
      %2647 = vmatprep.subr.mxu0 0.0
      %2648 = vmatpush1.msra.mxu0 %v2592
      %2649 = vmatprep.subr.mxu0 0.0
      %2650 = vmatpush1.msra.mxu0 %v2591
      %2651 = vmatprep.subr.mxu0 0.0
      %2652 = vmatpush1.msra.mxu0 %v2590
      %2653 = vmatprep.subr.mxu0 0.0
      %2654 = vmatpush1.msra.mxu0 %v2589
      %2655 = vmatprep.subr.mxu0 0.0
      %2656 = vmatpush2.msra.mxu0 0.0
      %2657 = vmatprep.subr.mxu0 0.0
      %2658 = vmatpush2.msra.mxu0 0.0
      %2659 = vmatprep.subr.mxu0 0.0
      %2660 = vmatpush2.msra.mxu0 0.0
      %2661 = vmatprep.subr.mxu0 0.0
      %2662 = vmatpush2.msra.mxu0 0.0
      %2663 = vmatprep.subr.mxu0 0.0
      %2664 = vmatpush2.msra.mxu0 0.0
      %2665 = vmatprep.subr.mxu0 0.0
      %2666 = vmatpush2.msra.mxu0 0.0
      %2667 = vmatprep.subr.mxu0 0.0
      %2668 = vmatpush2.msra.mxu0 0.0
      %2669 = vmatprep.subr.mxu0 0.0
      %2670 = vmatpush2.msra.mxu0 0.0
      %2671 = vmatprep.subr.mxu0 0.0
      %2672 = vmatpush2.msra.mxu0 0.0
      %2673 = vmatprep.subr.mxu0 0.0
      %2674 = vmatpush2.msra.mxu0 0.0
      %2675 = vmatprep.subr.mxu0 0.0
      %2676 = vmatpush2.msra.mxu0 0.0
      %2677 = vmatprep.subr.mxu0 0.0
      %2678 = vmatpush2.msra.mxu0 0.0
      %2679 = vmatprep.subr.mxu0 0.0
      %2680 = vmatpush2.msra.mxu0 0.0
      %2681 = vmatprep.subr.mxu0 0.0
      %2682 = vmatpush2.msra.mxu0 0.0
      %2683 = vmatprep.subr.mxu0 0.0
      %2684 = vmatpush2.msra.mxu0 0.0
      %2685 = vmatprep.subr.mxu0 0.0
      %2686 = vmatpush2.msra.mxu0 0.0
      %2687 = vmatprep.mubr.f32.mxu0 0.0
      %2688 = vmatmul.mubr.f32.gmra.mxu0 %v2618
      %v2689 = vpop.f32.mrf.mxu0
      %v2690 = vadd.f32 %v2615, %v2689
      %v2691 = vpop.f32.mrf.mxu0
      %2692 = vmatprep.mubr.f32.mxu0 0.0
      %2693 = vmatmul.mubr.f32.gmra.mxu0 %v2621
      %v2694 = vpop.f32.mrf.mxu0
      %v2695 = vadd.f32 %v2615, %v2694
      %v2696 = vpop.f32.mrf.mxu0
      %2697 = vdwg.mxu0
      %v2698 = vmax.f32 %v2690, 0.0
      %v2699 = vmax.f32 %v2695, 0.0
      %v2701 = vlaneseq
      %v2702 = vshrl.u32 %v2701, 7
      %v2703 = vsub.s32 0, %v2702
      %v2704 = vrot.slane %v2610, %v2703
      %2706 = vmatprep.subr.mxu0 0.0
      %2707 = vmatpush1.msra.mxu0 %v2609
      %2708 = vmatprep.subr.mxu0 0.0
      %2709 = vmatpush1.msra.mxu0 %v2608
      %2710 = vmatprep.subr.mxu0 0.0
      %2711 = vmatpush1.msra.mxu0 %v2607
      %2712 = vmatprep.subr.mxu0 0.0
      %2713 = vmatpush1.msra.mxu0 %v2606
      %2714 = vmatprep.subr.mxu0 0.0
      %2715 = vmatpush1.msra.mxu0 %v2605
      %2716 = vmatprep.subr.mxu0 0.0
      %2717 = vmatpush1.msra.mxu0 %v2604
      %2718 = vmatprep.subr.mxu0 0.0
      %2719 = vmatpush1.msra.mxu0 %v2603
      %2720 = vmatprep.subr.mxu0 0.0
      %2721 = vmatpush1.msra.mxu0 %v2602
      %2722 = vmatprep.subr.mxu0 0.0
      %2723 = vmatpush1.msra.mxu0 %v2601
      %2724 = vmatprep.subr.mxu0 0.0
      %2725 = vmatpush1.msra.mxu0 %v2600
      %2726 = vmatprep.subr.mxu0 0.0
      %2727 = vmatpush1.msra.mxu0 %v2599
      %2728 = vmatprep.subr.mxu0 0.0
      %2729 = vmatpush1.msra.mxu0 %v2598
      %2730 = vmatprep.subr.mxu0 0.0
      %2731 = vmatpush1.msra.mxu0 %v2597
      %2732 = vmatprep.subr.mxu0 0.0
      %2733 = vmatpush1.msra.mxu0 %v2596
      %2734 = vmatprep.subr.mxu0 0.0
      %2735 = vmatpush1.msra.mxu0 %v2595
      %2736 = vmatprep.subr.mxu0 0.0
      %2737 = vmatpush1.msra.mxu0 %v2594
      %2738 = vmatprep.subr.mxu0 0.0
      %2739 = vmatpush2.msra.mxu0 0.0
      %2740 = vmatprep.subr.mxu0 0.0
      %2741 = vmatpush2.msra.mxu0 0.0
      %2742 = vmatprep.subr.mxu0 0.0
      %2743 = vmatpush2.msra.mxu0 0.0
      %2744 = vmatprep.subr.mxu0 0.0
      %2745 = vmatpush2.msra.mxu0 0.0
      %2746 = vmatprep.subr.mxu0 0.0
      %2747 = vmatpush2.msra.mxu0 0.0
      %2748 = vmatprep.subr.mxu0 0.0
      %2749 = vmatpush2.msra.mxu0 0.0
      %2750 = vmatprep.subr.mxu0 0.0
      %2751 = vmatpush2.msra.mxu0 0.0
      %2752 = vmatprep.subr.mxu0 0.0
      %2753 = vmatpush2.msra.mxu0 0.0
      %2754 = vmatprep.subr.mxu0 0.0
      %2755 = vmatpush2.msra.mxu0 0.0
      %2756 = vmatprep.subr.mxu0 0.0
      %2757 = vmatpush2.msra.mxu0 0.0
      %2758 = vmatprep.subr.mxu0 0.0
      %2759 = vmatpush2.msra.mxu0 0.0
      %2760 = vmatprep.subr.mxu0 0.0
      %2761 = vmatpush2.msra.mxu0 0.0
      %2762 = vmatprep.subr.mxu0 0.0
      %2763 = vmatpush2.msra.mxu0 0.0
      %2764 = vmatprep.subr.mxu0 0.0
      %2765 = vmatpush2.msra.mxu0 0.0
      %2766 = vmatprep.subr.mxu0 0.0
      %2767 = vmatpush2.msra.mxu0 0.0
      %2768 = vmatprep.subr.mxu0 0.0
      %2769 = vmatpush2.msra.mxu0 0.0
      %2770 = vmatprep.mubr.f32.mxu0 0.0
      %2771 = vmatmul.mubr.f32.gmra.mxu0 %v2698
      %v2772 = vpop.f32.mrf.mxu0
      %v2773 = vadd.f32 %v2704, %v2772
      %v2774 = vpop.f32.mrf.mxu0
      %2775 = vmatprep.mubr.f32.mxu0 0.0
      %2776 = vmatmul.mubr.f32.gmra.mxu0 %v2699
      %v2777 = vpop.f32.mrf.mxu0
      %v2778 = vadd.f32 %v2704, %v2777
      %v2779 = vpop.f32.mrf.mxu0
      %2780 = vdwg.mxu0
      %v2781 = vadd.f32 %v2587, %v2773
      %v2782 = vadd.f32 %v2588, %v2778
      %v2783 = vld [vmem:[%s682] sm:$0x1]
      %v2784 = vld [vmem:[%s685] sm:$0x1]
      %v2785 = vsel %vm718, %v2781, 0.0
      %2786 = vadd.xlane.f32.xlu0 %v2785
      %v2787 = vpop.xlane.xlu0 %2786
      %v2788 = vsel %vm718, %v2782, 0.0
      %2789 = vadd.xlane.f32.xlu0 %v2788
      %v2790 = vpop.xlane.xlu0 %2789
      %v2791 = vmul.f32 %v2787, %v2552
      %v2792 = vmul.f32 %v2790, %v2552
      %v2793 = vsub.f32 %v2781, %v2791
      %v2794 = vsub.f32 %v2782, %v2792
      %v2795 = vmul.f32 %v2793, %v2793
      %v2796 = vmul.f32 %v2794, %v2794
      %v2797 = vsel %vm718, %v2795, 0.0
      %2798 = vadd.xlane.f32.xlu0 %v2797
      %v2799 = vpop.xlane.xlu0 %2798
      %v2800 = vsel %vm718, %v2796, 0.0
      %2801 = vadd.xlane.f32.xlu0 %v2800
      %v2802 = vpop.xlane.xlu0 %2801
      %v2803 = vmul.f32 %v2799, %v2552
      %v2804 = vmul.f32 %v2802, %v2552
      %v2805 = vadd.f32 %v2803, 1e-05
      %v2806 = vadd.f32 %v2804, 1e-05
      %v2807 = vrsqrt.pop %v2805
      %v2808 = vrsqrt.pop %v2806
      %v2809 = vmul.f32 %v2793, %v2807
      %v2810 = vmul.f32 %v2794, %v2808
      %v2812 = vlaneseq
      %v2813 = vshrl.u32 %v2812, 7
      %v2814 = vsub.s32 0, %v2813
      %v2815 = vrot.slane %v2783, %v2814
      %v2817 = vmul.f32 %v2809, %v2815
      %v2818 = vmul.f32 %v2810, %v2815
      %v2820 = vlaneseq
      %v2821 = vshrl.u32 %v2820, 7
      %v2822 = vsub.s32 0, %v2821
      %v2823 = vrot.slane %v2784, %v2822
      %v2825 = vadd.f32 %v2817, %v2823
      %v2826 = vadd.f32 %v2818, %v2823
      %2827 = vst.msk [vmem:[#allocation2] sm:$0xff] %vm718, %v2825
      %2828 = vst.msk [vmem:[#allocation2 + $0x8] sm:$0xff] %vm718, %v2826
      %p2829 = scmp.eq.s32.totalorder %s26, 1
      // Predicated region
      $region85: #{transformer_forward.3} parent=79 // pred_check
        %p2830 = pneg %p2829
      $region86: #{transformer_forward.3} parent=79 // pred_check_branch
        %2832 = sbr.rel (%p2830) target = $region88
      $region87: #{transformer_forward.3} parent=79 // pred_region
        %v2833 = vld [vmem:[#allocation2] sm:$0xff]
        %v2834 = vld [vmem:[#allocation2 + $0x8] sm:$0xff]
        %2835 = vst.msk [vmem:[%s15] sm:$0xff] %vm718, %v2833
        %2836 = vst.msk [vmem:[%s15 + $0x8] sm:$0xff] %vm718, %v2834
      $region88: #{transformer_forward.3} parent=79 // pred_fallthru
        _
      // Predicated region
      $region89: #{transformer_forward.3} parent=79 // pred_check
        %p2837 = pneg %p424
      $region90: #{transformer_forward.3} parent=79 // pred_check_branch
        %2839 = sbr.rel (%p2837) target = $region92
      $region91: #{transformer_forward.3} parent=79 // pred_region
        _
      $region92: #{transformer_forward.3} parent=79 // pred_fallthru
        _
      // Predicated region
      $region93: #{transformer_forward.3} parent=79 // pred_check
        %p2840 = pneg %p424
      $region94: #{transformer_forward.3} parent=79 // pred_check_branch
        %2842 = sbr.rel (%p2840) target = $region96
      $region95: #{transformer_forward.3} parent=79 // pred_region
        _
      $region96: #{transformer_forward.3} parent=79 // pred_fallthru
        _
    $region80: #{transformer_forward.3} parent=5 // pred_fallthru
      _
    %p2843 = scmp.le.s32.totalorder 2, %s21
    // Predicated region
    $region97: #{transformer_forward.3} parent=5 // pred_check
      %p2844 = pneg %p2843
    $region98: #{transformer_forward.3} parent=5 // pred_check_branch
      %2846 = sbr.rel (%p2844) target = $region100
    $region99: #{transformer_forward.3} parent=5 // pred_region
      %s2847 = ssub.s32 %s21, 2
    $region100: #{transformer_forward.3} parent=5 // pred_fallthru
      _
  $region6: #{transformer_forward.3} parent=0 // loop_footer
    %s25 = sadd.s32 1, %s21
  $region7: #{transformer_forward.3} parent=0 // loop_footer_branch
    %20 = sbr.rel target = $region3
  $region8: #{transformer_forward.3} parent=0 // loop_exit
    _

// kernel: transformer_forward.4
$region0: #{transformer_forward.4}
  #allocation0 [shape = 'u32[]', space=smem, size = 0x4, offset = 0x4, fixed_abs, tag = 'smem constant byte address 0x4 - core index']
  #allocation1 [shape = 'u32[144,128]{1,0:T(1,128)}', space=vmem, size = 0x12000, scoped, tag = 'internal scratch']
  #allocation2 [shape = 'f32[2,8,32]{2,1,0:T(8,128)}', space=vmem, size = 0x2000, scoped, tag = 'scratch operand']
  %s0 = inlined_call_operand.vmem [shape: f32[2,8,32], index: 0, kind: input, shape index: {}]
  %s1 = inlined_call_operand.vmem [shape: f32[2,8,32], index: 1, kind: input, shape index: {}]
  %s2 = inlined_call_operand.vmem [shape: f32[2,32,32], index: 2, kind: input, shape index: {}]
  %s3 = inlined_call_operand.vmem [shape: f32[2,1,32], index: 3, kind: input, shape index: {}]
  %s4 = inlined_call_operand.vmem [shape: f32[2,32,64], index: 4, kind: input, shape index: {}]
  %s5 = inlined_call_operand.vmem [shape: f32[2,1,64], index: 5, kind: input, shape index: {}]
  %s6 = inlined_call_operand.vmem [shape: f32[2,32,32], index: 6, kind: input, shape index: {}]
  %s7 = inlined_call_operand.vmem [shape: f32[2,1,32], index: 7, kind: input, shape index: {}]
  %s8 = inlined_call_operand.vmem [shape: f32[2,1,32], index: 8, kind: input, shape index: {}]
  %s9 = inlined_call_operand.vmem [shape: f32[2,1,32], index: 9, kind: input, shape index: {}]
  %s10 = inlined_call_operand.vmem [shape: f32[2,32,32], index: 10, kind: input, shape index: {}]
  %s11 = inlined_call_operand.vmem [shape: f32[2,1,32], index: 11, kind: input, shape index: {}]
  %s12 = inlined_call_operand.vmem [shape: f32[2,32,64], index: 12, kind: input, shape index: {}]
  %s13 = inlined_call_operand.vmem [shape: f32[2,1,64], index: 13, kind: input, shape index: {}]
  %s14 = inlined_call_operand.vmem [shape: f32[2,32,32], index: 14, kind: input, shape index: {}]
  %s15 = inlined_call_operand.vmem [shape: f32[2,1,32], index: 15, kind: input, shape index: {}]
  %s16 = inlined_call_operand.vmem [shape: f32[2,1,32], index: 16, kind: input, shape index: {}]
  %s17 = inlined_call_operand.vmem [shape: f32[2,1,32], index: 17, kind: input, shape index: {}]
  %s18 = inlined_call_operand.vmem [shape: f32[2,32,128], index: 18, kind: input, shape index: {}]
  %s19 = inlined_call_operand.vmem [shape: f32[2,1,128], index: 19, kind: input, shape index: {}]
  %s20 = inlined_call_operand.vmem [shape: f32[2,128,32], index: 20, kind: input, shape index: {}]
  %s21 = inlined_call_operand.vmem [shape: f32[2,1,32], index: 21, kind: input, shape index: {}]
  %s22 = inlined_call_operand.vmem [shape: f32[2,1,32], index: 22, kind: input, shape index: {}]
  %s23 = inlined_call_operand.vmem [shape: f32[2,1,32], index: 23, kind: input, shape index: {}]
  %s24 = inlined_call_operand.vmem [shape: f32[2,8,32], index: 24, kind: output, shape index: {}]
  %s25 = sld [smem:[#allocation0]]
  $region137: #{transformer_forward.4} parent=0
    _
  %s27 = ssub.s32 1, %s25
  %s28 = scalar_select 0, %s27, %s25
  loop: start=0, step=1, limit=4
  $region2: #{transformer_forward.4} parent=0 // loop_pre_header
    _
  $region3: #{transformer_forward.4} parent=0 // loop_header
    %s30 = sphi 0, %s34
    %p31 = scmp.ge.s32.totalorder %s30, 4
    %s38 = sphi 0, %s38
    %s40 = sphi 0, %s38
    %s41 = sphi 0, %s40
    %s55 = sphi 0, %s41
    %s59 = sphi 0, %s59
    %s61 = sphi 0, %s59
    %s62 = sphi 0, %s61
    %s76 = sphi 0, %s62
    %s82 = sphi 0, %s84
    %s85 = sphi 0, %s82
    %s86 = sphi 0, %s85
    %s102 = sphi 0, %s86
    %s108 = sphi 0, %s110
    %s111 = sphi 0, %s108
    %s112 = sphi 0, %s111
    %s128 = sphi 0, %s112
    %s134 = sphi 0, %s136
    %s137 = sphi 0, %s134
    %s138 = sphi 0, %s137
    %s154 = sphi 0, %s138
    %s160 = sphi 0, %s162
    %s163 = sphi 0, %s160
    %s164 = sphi 0, %s163
    %s180 = sphi 0, %s164
    %s186 = sphi 0, %s188
    %s189 = sphi 0, %s186
    %s190 = sphi 0, %s189
    %s206 = sphi 0, %s190
    %s212 = sphi 0, %s214
    %s215 = sphi 0, %s212
    %s216 = sphi 0, %s215
    %s232 = sphi 0, %s216
    %s238 = sphi 0, %s240
    %s241 = sphi 0, %s238
    %s242 = sphi 0, %s241
    %s258 = sphi 0, %s242
    %s264 = sphi 0, %s266
    %s267 = sphi 0, %s264
    %s268 = sphi 0, %s267
    %s284 = sphi 0, %s268
    %s290 = sphi 0, %s292
    %s293 = sphi 0, %s290
    %s294 = sphi 0, %s293
    %s310 = sphi 0, %s294
    %s316 = sphi 0, %s318
    %s319 = sphi 0, %s316
    %s320 = sphi 0, %s319
    %s336 = sphi 0, %s320
    %s342 = sphi 0, %s344
    %s345 = sphi 0, %s342
    %s346 = sphi 0, %s345
    %s362 = sphi 0, %s346
    %s368 = sphi 0, %s370
    %s371 = sphi 0, %s368
    %s372 = sphi 0, %s371
    %s388 = sphi 0, %s372
    %s394 = sphi 0, %s396
    %s397 = sphi 0, %s394
    %s398 = sphi 0, %s397
    %s414 = sphi 0, %s398
    %s420 = sphi 0, %s422
    %s423 = sphi 0, %s420
    %s424 = sphi 0, %s423
    %s440 = sphi 0, %s424
    %s446 = sphi 0, %s448
    %s449 = sphi 0, %s446
    %s450 = sphi 0, %s449
    %s466 = sphi 0, %s450
    %s472 = sphi 0, %s474
    %s475 = sphi 0, %s472
    %s476 = sphi 0, %s475
    %s492 = sphi 0, %s476
    %s498 = sphi 0, %s500
    %s501 = sphi 0, %s498
    %s502 = sphi 0, %s501
    %s518 = sphi 0, %s502
    %s524 = sphi 0, %s526
    %s527 = sphi 0, %s524
    %s528 = sphi 0, %s527
    %s544 = sphi 0, %s528
    %s550 = sphi 0, %s552
    %s553 = sphi 0, %s550
    %s554 = sphi 0, %s553
    %s570 = sphi 0, %s554
    %s576 = sphi 0, %s578
    %s579 = sphi 0, %s576
    %s580 = sphi 0, %s579
    %s596 = sphi 0, %s580
    %s602 = sphi 0, %s604
    %s605 = sphi 0, %s602
    %s606 = sphi 0, %s605
    %s622 = sphi 0, %s606
    %s628 = sphi 0, %s630
    %s631 = sphi 0, %s628
    %s632 = sphi 0, %s631
    %s648 = sphi 0, %s632
    %s652 = sphi 0, %s652
    %s654 = sphi 0, %s652
    %s655 = sphi 0, %s654
    %s669 = sphi 0, %s655
  $region4: #{transformer_forward.4} parent=0 // loop_header_branch
    %33 = sbr.rel (%p31) target = $region8
  $region5: #{transformer_forward.4} parent=0 // loop_body
    %s35 = ssub.s32 %s30, 1
    %s36 = ssub.s32 %s30, 2
    %s37 = sadd.s32 %s30, 1
    %s39 = sadd.s32 %s38, 1
    %p42 = scmp.eq.s32.totalorder %s30, 1
    %p43 = scmp.ne.s32.totalorder %s38, %s40
    %p44 = scmp.eq.s32.totalorder %s30, 0
    %p45 = por %p43, %p44
    %p46 = scmp.ne.s32.totalorder %s38, %s40
    %p47 = scmp.eq.s32.totalorder %s35, 1
    %p48 = por %p46, %p47
    %p49 = scmp.ne.s32.totalorder %s40, %s41
    %p50 = scmp.eq.s32.totalorder %s35, 0
    %p51 = por %p49, %p50
    %p52 = scmp.ne.s32.totalorder %s40, %s41
    %p53 = scmp.eq.s32.totalorder %s36, 1
    %p54 = por %p52, %p53
    %p56 = scmp.ne.s32.totalorder %s41, %s55
    %p57 = scmp.eq.s32.totalorder %s36, 0
    %p58 = por %p56, %p57
    %s60 = sadd.s32 %s59, 1
    %p63 = scmp.eq.s32.totalorder %s30, 1
    %p64 = scmp.ne.s32.totalorder %s59, %s61
    %p65 = scmp.eq.s32.totalorder %s30, 0
    %p66 = por %p64, %p65
    %p67 = scmp.ne.s32.totalorder %s59, %s61
    %p68 = scmp.eq.s32.totalorder %s35, 1
    %p69 = por %p67, %p68
    %p70 = scmp.ne.s32.totalorder %s61, %s62
    %p71 = scmp.eq.s32.totalorder %s35, 0
    %p72 = por %p70, %p71
    %p73 = scmp.ne.s32.totalorder %s61, %s62
    %p74 = scmp.eq.s32.totalorder %s36, 1
    %p75 = por %p73, %p74
    %p77 = scmp.ne.s32.totalorder %s62, %s76
    %p78 = scmp.eq.s32.totalorder %s36, 0
    %p79 = por %p77, %p78
    %s80 = ssub.s32 %s30, %s37
    %p81 = scmp.eq.s32.totalorder %s80, 0
    %s83 = sadd.s32 %s82, 1
    %s84 = scalar_select %p81, %s82, %s83
    %p87 = pneg %p81
    %p88 = scmp.eq.s32.totalorder %s30, 1
    %p89 = por %p87, %p88
    %p90 = scmp.ne.s32.totalorder %s82, %s85
    %p91 = scmp.eq.s32.totalorder %s30, 0
    %p92 = por %p90, %p91
    %p93 = scmp.ne.s32.totalorder %s82, %s85
    %p94 = scmp.eq.s32.totalorder %s35, 1
    %p95 = por %p93, %p94
    %p96 = scmp.ne.s32.totalorder %s85, %s86
    %p97 = scmp.eq.s32.totalorder %s35, 0
    %p98 = por %p96, %p97
    %p99 = scmp.ne.s32.totalorder %s85, %s86
    %p100 = scmp.eq.s32.totalorder %s36, 1
    %p101 = por %p99, %p100
    %p103 = scmp.ne.s32.totalorder %s86, %s102
    %p104 = scmp.eq.s32.totalorder %s36, 0
    %p105 = por %p103, %p104
    %s106 = ssub.s32 %s30, %s37
    %p107 = scmp.eq.s32.totalorder %s106, 0
    %s109 = sadd.s32 %s108, 1
    %s110 = scalar_select %p107, %s108, %s109
    %p113 = pneg %p107
    %p114 = scmp.eq.s32.totalorder %s30, 1
    %p115 = por %p113, %p114
    %p116 = scmp.ne.s32.totalorder %s108, %s111
    %p117 = scmp.eq.s32.totalorder %s30, 0
    %p118 = por %p116, %p117
    %p119 = scmp.ne.s32.totalorder %s108, %s111
    %p120 = scmp.eq.s32.totalorder %s35, 1
    %p121 = por %p119, %p120
    %p122 = scmp.ne.s32.totalorder %s111, %s112
    %p123 = scmp.eq.s32.totalorder %s35, 0
    %p124 = por %p122, %p123
    %p125 = scmp.ne.s32.totalorder %s111, %s112
    %p126 = scmp.eq.s32.totalorder %s36, 1
    %p127 = por %p125, %p126
    %p129 = scmp.ne.s32.totalorder %s112, %s128
    %p130 = scmp.eq.s32.totalorder %s36, 0
    %p131 = por %p129, %p130
    %s132 = ssub.s32 %s30, %s37
    %p133 = scmp.eq.s32.totalorder %s132, 0
    %s135 = sadd.s32 %s134, 1
    %s136 = scalar_select %p133, %s134, %s135
    %p139 = pneg %p133
    %p140 = scmp.eq.s32.totalorder %s30, 1
    %p141 = por %p139, %p140
    %p142 = scmp.ne.s32.totalorder %s134, %s137
    %p143 = scmp.eq.s32.totalorder %s30, 0
    %p144 = por %p142, %p143
    %p145 = scmp.ne.s32.totalorder %s134, %s137
    %p146 = scmp.eq.s32.totalorder %s35, 1
    %p147 = por %p145, %p146
    %p148 = scmp.ne.s32.totalorder %s137, %s138
    %p149 = scmp.eq.s32.totalorder %s35, 0
    %p150 = por %p148, %p149
    %p151 = scmp.ne.s32.totalorder %s137, %s138
    %p152 = scmp.eq.s32.totalorder %s36, 1
    %p153 = por %p151, %p152
    %p155 = scmp.ne.s32.totalorder %s138, %s154
    %p156 = scmp.eq.s32.totalorder %s36, 0
    %p157 = por %p155, %p156
    %s158 = ssub.s32 %s30, %s37
    %p159 = scmp.eq.s32.totalorder %s158, 0
    %s161 = sadd.s32 %s160, 1
    %s162 = scalar_select %p159, %s160, %s161
    %p165 = pneg %p159
    %p166 = scmp.eq.s32.totalorder %s30, 1
    %p167 = por %p165, %p166
    %p168 = scmp.ne.s32.totalorder %s160, %s163
    %p169 = scmp.eq.s32.totalorder %s30, 0
    %p170 = por %p168, %p169
    %p171 = scmp.ne.s32.totalorder %s160, %s163
    %p172 = scmp.eq.s32.totalorder %s35, 1
    %p173 = por %p171, %p172
    %p174 = scmp.ne.s32.totalorder %s163, %s164
    %p175 = scmp.eq.s32.totalorder %s35, 0
    %p176 = por %p174, %p175
    %p177 = scmp.ne.s32.totalorder %s163, %s164
    %p178 = scmp.eq.s32.totalorder %s36, 1
    %p179 = por %p177, %p178
    %p181 = scmp.ne.s32.totalorder %s164, %s180
    %p182 = scmp.eq.s32.totalorder %s36, 0
    %p183 = por %p181, %p182
    %s184 = ssub.s32 %s30, %s37
    %p185 = scmp.eq.s32.totalorder %s184, 0
    %s187 = sadd.s32 %s186, 1
    %s188 = scalar_select %p185, %s186, %s187
    %p191 = pneg %p185
    %p192 = scmp.eq.s32.totalorder %s30, 1
    %p193 = por %p191, %p192
    %p194 = scmp.ne.s32.totalorder %s186, %s189
    %p195 = scmp.eq.s32.totalorder %s30, 0
    %p196 = por %p194, %p195
    %p197 = scmp.ne.s32.totalorder %s186, %s189
    %p198 = scmp.eq.s32.totalorder %s35, 1
    %p199 = por %p197, %p198
    %p200 = scmp.ne.s32.totalorder %s189, %s190
    %p201 = scmp.eq.s32.totalorder %s35, 0
    %p202 = por %p200, %p201
    %p203 = scmp.ne.s32.totalorder %s189, %s190
    %p204 = scmp.eq.s32.totalorder %s36, 1
    %p205 = por %p203, %p204
    %p207 = scmp.ne.s32.totalorder %s190, %s206
    %p208 = scmp.eq.s32.totalorder %s36, 0
    %p209 = por %p207, %p208
    %s210 = ssub.s32 %s30, %s37
    %p211 = scmp.eq.s32.totalorder %s210, 0
    %s213 = sadd.s32 %s212, 1
    %s214 = scalar_select %p211, %s212, %s213
    %p217 = pneg %p211
    %p218 = scmp.eq.s32.totalorder %s30, 1
    %p219 = por %p217, %p218
    %p220 = scmp.ne.s32.totalorder %s212, %s215
    %p221 = scmp.eq.s32.totalorder %s30, 0
    %p222 = por %p220, %p221
    %p223 = scmp.ne.s32.totalorder %s212, %s215
    %p224 = scmp.eq.s32.totalorder %s35, 1
    %p225 = por %p223, %p224
    %p226 = scmp.ne.s32.totalorder %s215, %s216
    %p227 = scmp.eq.s32.totalorder %s35, 0
    %p228 = por %p226, %p227
    %p229 = scmp.ne.s32.totalorder %s215, %s216
    %p230 = scmp.eq.s32.totalorder %s36, 1
    %p231 = por %p229, %p230
    %p233 = scmp.ne.s32.totalorder %s216, %s232
    %p234 = scmp.eq.s32.totalorder %s36, 0
    %p235 = por %p233, %p234
    %s236 = ssub.s32 %s30, %s37
    %p237 = scmp.eq.s32.totalorder %s236, 0
    %s239 = sadd.s32 %s238, 1
    %s240 = scalar_select %p237, %s238, %s239
    %p243 = pneg %p237
    %p244 = scmp.eq.s32.totalorder %s30, 1
    %p245 = por %p243, %p244
    %p246 = scmp.ne.s32.totalorder %s238, %s241
    %p247 = scmp.eq.s32.totalorder %s30, 0
    %p248 = por %p246, %p247
    %p249 = scmp.ne.s32.totalorder %s238, %s241
    %p250 = scmp.eq.s32.totalorder %s35, 1
    %p251 = por %p249, %p250
    %p252 = scmp.ne.s32.totalorder %s241, %s242
    %p253 = scmp.eq.s32.totalorder %s35, 0
    %p254 = por %p252, %p253
    %p255 = scmp.ne.s32.totalorder %s241, %s242
    %p256 = scmp.eq.s32.totalorder %s36, 1
    %p257 = por %p255, %p256
    %p259 = scmp.ne.s32.totalorder %s242, %s258
    %p260 = scmp.eq.s32.totalorder %s36, 0
    %p261 = por %p259, %p260
    %s262 = ssub.s32 %s30, %s37
    %p263 = scmp.eq.s32.totalorder %s262, 0
    %s265 = sadd.s32 %s264, 1
    %s266 = scalar_select %p263, %s264, %s265
    %p269 = pneg %p263
    %p270 = scmp.eq.s32.totalorder %s30, 1
    %p271 = por %p269, %p270
    %p272 = scmp.ne.s32.totalorder %s264, %s267
    %p273 = scmp.eq.s32.totalorder %s30, 0
    %p274 = por %p272, %p273
    %p275 = scmp.ne.s32.totalorder %s264, %s267
    %p276 = scmp.eq.s32.totalorder %s35, 1
    %p277 = por %p275, %p276
    %p278 = scmp.ne.s32.totalorder %s267, %s268
    %p279 = scmp.eq.s32.totalorder %s35, 0
    %p280 = por %p278, %p279
    %p281 = scmp.ne.s32.totalorder %s267, %s268
    %p282 = scmp.eq.s32.totalorder %s36, 1
    %p283 = por %p281, %p282
    %p285 = scmp.ne.s32.totalorder %s268, %s284
    %p286 = scmp.eq.s32.totalorder %s36, 0
    %p287 = por %p285, %p286
    %s288 = ssub.s32 %s30, %s37
    %p289 = scmp.eq.s32.totalorder %s288, 0
    %s291 = sadd.s32 %s290, 1
    %s292 = scalar_select %p289, %s290, %s291
    %p295 = pneg %p289
    %p296 = scmp.eq.s32.totalorder %s30, 1
    %p297 = por %p295, %p296
    %p298 = scmp.ne.s32.totalorder %s290, %s293
    %p299 = scmp.eq.s32.totalorder %s30, 0
    %p300 = por %p298, %p299
    %p301 = scmp.ne.s32.totalorder %s290, %s293
    %p302 = scmp.eq.s32.totalorder %s35, 1
    %p303 = por %p301, %p302
    %p304 = scmp.ne.s32.totalorder %s293, %s294
    %p305 = scmp.eq.s32.totalorder %s35, 0
    %p306 = por %p304, %p305
    %p307 = scmp.ne.s32.totalorder %s293, %s294
    %p308 = scmp.eq.s32.totalorder %s36, 1
    %p309 = por %p307, %p308
    %p311 = scmp.ne.s32.totalorder %s294, %s310
    %p312 = scmp.eq.s32.totalorder %s36, 0
    %p313 = por %p311, %p312
    %s314 = ssub.s32 %s30, %s37
    %p315 = scmp.eq.s32.totalorder %s314, 0
    %s317 = sadd.s32 %s316, 1
    %s318 = scalar_select %p315, %s316, %s317
    %p321 = pneg %p315
    %p322 = scmp.eq.s32.totalorder %s30, 1
    %p323 = por %p321, %p322
    %p324 = scmp.ne.s32.totalorder %s316, %s319
    %p325 = scmp.eq.s32.totalorder %s30, 0
    %p326 = por %p324, %p325
    %p327 = scmp.ne.s32.totalorder %s316, %s319
    %p328 = scmp.eq.s32.totalorder %s35, 1
    %p329 = por %p327, %p328
    %p330 = scmp.ne.s32.totalorder %s319, %s320
    %p331 = scmp.eq.s32.totalorder %s35, 0
    %p332 = por %p330, %p331
    %p333 = scmp.ne.s32.totalorder %s319, %s320
    %p334 = scmp.eq.s32.totalorder %s36, 1
    %p335 = por %p333, %p334
    %p337 = scmp.ne.s32.totalorder %s320, %s336
    %p338 = scmp.eq.s32.totalorder %s36, 0
    %p339 = por %p337, %p338
    %s340 = ssub.s32 %s30, %s37
    %p341 = scmp.eq.s32.totalorder %s340, 0
    %s343 = sadd.s32 %s342, 1
    %s344 = scalar_select %p341, %s342, %s343
    %p347 = pneg %p341
    %p348 = scmp.eq.s32.totalorder %s30, 1
    %p349 = por %p347, %p348
    %p350 = scmp.ne.s32.totalorder %s342, %s345
    %p351 = scmp.eq.s32.totalorder %s30, 0
    %p352 = por %p350, %p351
    %p353 = scmp.ne.s32.totalorder %s342, %s345
    %p354 = scmp.eq.s32.totalorder %s35, 1
    %p355 = por %p353, %p354
    %p356 = scmp.ne.s32.totalorder %s345, %s346
    %p357 = scmp.eq.s32.totalorder %s35, 0
    %p358 = por %p356, %p357
    %p359 = scmp.ne.s32.totalorder %s345, %s346
    %p360 = scmp.eq.s32.totalorder %s36, 1
    %p361 = por %p359, %p360
    %p363 = scmp.ne.s32.totalorder %s346, %s362
    %p364 = scmp.eq.s32.totalorder %s36, 0
    %p365 = por %p363, %p364
    %s366 = ssub.s32 %s30, %s37
    %p367 = scmp.eq.s32.totalorder %s366, 0
    %s369 = sadd.s32 %s368, 1
    %s370 = scalar_select %p367, %s368, %s369
    %p373 = pneg %p367
    %p374 = scmp.eq.s32.totalorder %s30, 1
    %p375 = por %p373, %p374
    %p376 = scmp.ne.s32.totalorder %s368, %s371
    %p377 = scmp.eq.s32.totalorder %s30, 0
    %p378 = por %p376, %p377
    %p379 = scmp.ne.s32.totalorder %s368, %s371
    %p380 = scmp.eq.s32.totalorder %s35, 1
    %p381 = por %p379, %p380
    %p382 = scmp.ne.s32.totalorder %s371, %s372
    %p383 = scmp.eq.s32.totalorder %s35, 0
    %p384 = por %p382, %p383
    %p385 = scmp.ne.s32.totalorder %s371, %s372
    %p386 = scmp.eq.s32.totalorder %s36, 1
    %p387 = por %p385, %p386
    %p389 = scmp.ne.s32.totalorder %s372, %s388
    %p390 = scmp.eq.s32.totalorder %s36, 0
    %p391 = por %p389, %p390
    %s392 = ssub.s32 %s30, %s37
    %p393 = scmp.eq.s32.totalorder %s392, 0
    %s395 = sadd.s32 %s394, 1
    %s396 = scalar_select %p393, %s394, %s395
    %p399 = pneg %p393
    %p400 = scmp.eq.s32.totalorder %s30, 1
    %p401 = por %p399, %p400
    %p402 = scmp.ne.s32.totalorder %s394, %s397
    %p403 = scmp.eq.s32.totalorder %s30, 0
    %p404 = por %p402, %p403
    %p405 = scmp.ne.s32.totalorder %s394, %s397
    %p406 = scmp.eq.s32.totalorder %s35, 1
    %p407 = por %p405, %p406
    %p408 = scmp.ne.s32.totalorder %s397, %s398
    %p409 = scmp.eq.s32.totalorder %s35, 0
    %p410 = por %p408, %p409
    %p411 = scmp.ne.s32.totalorder %s397, %s398
    %p412 = scmp.eq.s32.totalorder %s36, 1
    %p413 = por %p411, %p412
    %p415 = scmp.ne.s32.totalorder %s398, %s414
    %p416 = scmp.eq.s32.totalorder %s36, 0
    %p417 = por %p415, %p416
    %s418 = ssub.s32 %s30, %s37
    %p419 = scmp.eq.s32.totalorder %s418, 0
    %s421 = sadd.s32 %s420, 1
    %s422 = scalar_select %p419, %s420, %s421
    %p425 = pneg %p419
    %p426 = scmp.eq.s32.totalorder %s30, 1
    %p427 = por %p425, %p426
    %p428 = scmp.ne.s32.totalorder %s420, %s423
    %p429 = scmp.eq.s32.totalorder %s30, 0
    %p430 = por %p428, %p429
    %p431 = scmp.ne.s32.totalorder %s420, %s423
    %p432 = scmp.eq.s32.totalorder %s35, 1
    %p433 = por %p431, %p432
    %p434 = scmp.ne.s32.totalorder %s423, %s424
    %p435 = scmp.eq.s32.totalorder %s35, 0
    %p436 = por %p434, %p435
    %p437 = scmp.ne.s32.totalorder %s423, %s424
    %p438 = scmp.eq.s32.totalorder %s36, 1
    %p439 = por %p437, %p438
    %p441 = scmp.ne.s32.totalorder %s424, %s440
    %p442 = scmp.eq.s32.totalorder %s36, 0
    %p443 = por %p441, %p442
    %s444 = ssub.s32 %s30, %s37
    %p445 = scmp.eq.s32.totalorder %s444, 0
    %s447 = sadd.s32 %s446, 1
    %s448 = scalar_select %p445, %s446, %s447
    %p451 = pneg %p445
    %p452 = scmp.eq.s32.totalorder %s30, 1
    %p453 = por %p451, %p452
    %p454 = scmp.ne.s32.totalorder %s446, %s449
    %p455 = scmp.eq.s32.totalorder %s30, 0
    %p456 = por %p454, %p455
    %p457 = scmp.ne.s32.totalorder %s446, %s449
    %p458 = scmp.eq.s32.totalorder %s35, 1
    %p459 = por %p457, %p458
    %p460 = scmp.ne.s32.totalorder %s449, %s450
    %p461 = scmp.eq.s32.totalorder %s35, 0
    %p462 = por %p460, %p461
    %p463 = scmp.ne.s32.totalorder %s449, %s450
    %p464 = scmp.eq.s32.totalorder %s36, 1
    %p465 = por %p463, %p464
    %p467 = scmp.ne.s32.totalorder %s450, %s466
    %p468 = scmp.eq.s32.totalorder %s36, 0
    %p469 = por %p467, %p468
    %s470 = ssub.s32 %s30, %s37
    %p471 = scmp.eq.s32.totalorder %s470, 0
    %s473 = sadd.s32 %s472, 1
    %s474 = scalar_select %p471, %s472, %s473
    %p477 = pneg %p471
    %p478 = scmp.eq.s32.totalorder %s30, 1
    %p479 = por %p477, %p478
    %p480 = scmp.ne.s32.totalorder %s472, %s475
    %p481 = scmp.eq.s32.totalorder %s30, 0
    %p482 = por %p480, %p481
    %p483 = scmp.ne.s32.totalorder %s472, %s475
    %p484 = scmp.eq.s32.totalorder %s35, 1
    %p485 = por %p483, %p484
    %p486 = scmp.ne.s32.totalorder %s475, %s476
    %p487 = scmp.eq.s32.totalorder %s35, 0
    %p488 = por %p486, %p487
    %p489 = scmp.ne.s32.totalorder %s475, %s476
    %p490 = scmp.eq.s32.totalorder %s36, 1
    %p491 = por %p489, %p490
    %p493 = scmp.ne.s32.totalorder %s476, %s492
    %p494 = scmp.eq.s32.totalorder %s36, 0
    %p495 = por %p493, %p494
    %s496 = ssub.s32 %s30, %s37
    %p497 = scmp.eq.s32.totalorder %s496, 0
    %s499 = sadd.s32 %s498, 1
    %s500 = scalar_select %p497, %s498, %s499
    %p503 = pneg %p497
    %p504 = scmp.eq.s32.totalorder %s30, 1
    %p505 = por %p503, %p504
    %p506 = scmp.ne.s32.totalorder %s498, %s501
    %p507 = scmp.eq.s32.totalorder %s30, 0
    %p508 = por %p506, %p507
    %p509 = scmp.ne.s32.totalorder %s498, %s501
    %p510 = scmp.eq.s32.totalorder %s35, 1
    %p511 = por %p509, %p510
    %p512 = scmp.ne.s32.totalorder %s501, %s502
    %p513 = scmp.eq.s32.totalorder %s35, 0
    %p514 = por %p512, %p513
    %p515 = scmp.ne.s32.totalorder %s501, %s502
    %p516 = scmp.eq.s32.totalorder %s36, 1
    %p517 = por %p515, %p516
    %p519 = scmp.ne.s32.totalorder %s502, %s518
    %p520 = scmp.eq.s32.totalorder %s36, 0
    %p521 = por %p519, %p520
    %s522 = ssub.s32 %s30, %s37
    %p523 = scmp.eq.s32.totalorder %s522, 0
    %s525 = sadd.s32 %s524, 1
    %s526 = scalar_select %p523, %s524, %s525
    %p529 = pneg %p523
    %p530 = scmp.eq.s32.totalorder %s30, 1
    %p531 = por %p529, %p530
    %p532 = scmp.ne.s32.totalorder %s524, %s527
    %p533 = scmp.eq.s32.totalorder %s30, 0
    %p534 = por %p532, %p533
    %p535 = scmp.ne.s32.totalorder %s524, %s527
    %p536 = scmp.eq.s32.totalorder %s35, 1
    %p537 = por %p535, %p536
    %p538 = scmp.ne.s32.totalorder %s527, %s528
    %p539 = scmp.eq.s32.totalorder %s35, 0
    %p540 = por %p538, %p539
    %p541 = scmp.ne.s32.totalorder %s527, %s528
    %p542 = scmp.eq.s32.totalorder %s36, 1
    %p543 = por %p541, %p542
    %p545 = scmp.ne.s32.totalorder %s528, %s544
    %p546 = scmp.eq.s32.totalorder %s36, 0
    %p547 = por %p545, %p546
    %s548 = ssub.s32 %s30, %s37
    %p549 = scmp.eq.s32.totalorder %s548, 0
    %s551 = sadd.s32 %s550, 1
    %s552 = scalar_select %p549, %s550, %s551
    %p555 = pneg %p549
    %p556 = scmp.eq.s32.totalorder %s30, 1
    %p557 = por %p555, %p556
    %p558 = scmp.ne.s32.totalorder %s550, %s553
    %p559 = scmp.eq.s32.totalorder %s30, 0
    %p560 = por %p558, %p559
    %p561 = scmp.ne.s32.totalorder %s550, %s553
    %p562 = scmp.eq.s32.totalorder %s35, 1
    %p563 = por %p561, %p562
    %p564 = scmp.ne.s32.totalorder %s553, %s554
    %p565 = scmp.eq.s32.totalorder %s35, 0
    %p566 = por %p564, %p565
    %p567 = scmp.ne.s32.totalorder %s553, %s554
    %p568 = scmp.eq.s32.totalorder %s36, 1
    %p569 = por %p567, %p568
    %p571 = scmp.ne.s32.totalorder %s554, %s570
    %p572 = scmp.eq.s32.totalorder %s36, 0
    %p573 = por %p571, %p572
    %s574 = ssub.s32 %s30, %s37
    %p575 = scmp.eq.s32.totalorder %s574, 0
    %s577 = sadd.s32 %s576, 1
    %s578 = scalar_select %p575, %s576, %s577
    %p581 = pneg %p575
    %p582 = scmp.eq.s32.totalorder %s30, 1
    %p583 = por %p581, %p582
    %p584 = scmp.ne.s32.totalorder %s576, %s579
    %p585 = scmp.eq.s32.totalorder %s30, 0
    %p586 = por %p584, %p585
    %p587 = scmp.ne.s32.totalorder %s576, %s579
    %p588 = scmp.eq.s32.totalorder %s35, 1
    %p589 = por %p587, %p588
    %p590 = scmp.ne.s32.totalorder %s579, %s580
    %p591 = scmp.eq.s32.totalorder %s35, 0
    %p592 = por %p590, %p591
    %p593 = scmp.ne.s32.totalorder %s579, %s580
    %p594 = scmp.eq.s32.totalorder %s36, 1
    %p595 = por %p593, %p594
    %p597 = scmp.ne.s32.totalorder %s580, %s596
    %p598 = scmp.eq.s32.totalorder %s36, 0
    %p599 = por %p597, %p598
    %s600 = ssub.s32 %s30, %s37
    %p601 = scmp.eq.s32.totalorder %s600, 0
    %s603 = sadd.s32 %s602, 1
    %s604 = scalar_select %p601, %s602, %s603
    %p607 = pneg %p601
    %p608 = scmp.eq.s32.totalorder %s30, 1
    %p609 = por %p607, %p608
    %p610 = scmp.ne.s32.totalorder %s602, %s605
    %p611 = scmp.eq.s32.totalorder %s30, 0
    %p612 = por %p610, %p611
    %p613 = scmp.ne.s32.totalorder %s602, %s605
    %p614 = scmp.eq.s32.totalorder %s35, 1
    %p615 = por %p613, %p614
    %p616 = scmp.ne.s32.totalorder %s605, %s606
    %p617 = scmp.eq.s32.totalorder %s35, 0
    %p618 = por %p616, %p617
    %p619 = scmp.ne.s32.totalorder %s605, %s606
    %p620 = scmp.eq.s32.totalorder %s36, 1
    %p621 = por %p619, %p620
    %p623 = scmp.ne.s32.totalorder %s606, %s622
    %p624 = scmp.eq.s32.totalorder %s36, 0
    %p625 = por %p623, %p624
    %s626 = ssub.s32 %s30, %s37
    %p627 = scmp.eq.s32.totalorder %s626, 0
    %s629 = sadd.s32 %s628, 1
    %s630 = scalar_select %p627, %s628, %s629
    %p633 = pneg %p627
    %p634 = scmp.eq.s32.totalorder %s30, 1
    %p635 = por %p633, %p634
    %p636 = scmp.ne.s32.totalorder %s628, %s631
    %p637 = scmp.eq.s32.totalorder %s30, 0
    %p638 = por %p636, %p637
    %p639 = scmp.ne.s32.totalorder %s628, %s631
    %p640 = scmp.eq.s32.totalorder %s35, 1
    %p641 = por %p639, %p640
    %p642 = scmp.ne.s32.totalorder %s631, %s632
    %p643 = scmp.eq.s32.totalorder %s35, 0
    %p644 = por %p642, %p643
    %p645 = scmp.ne.s32.totalorder %s631, %s632
    %p646 = scmp.eq.s32.totalorder %s36, 1
    %p647 = por %p645, %p646
    %p649 = scmp.ne.s32.totalorder %s632, %s648
    %p650 = scmp.eq.s32.totalorder %s36, 0
    %p651 = por %p649, %p650
    %s653 = sadd.s32 %s652, 1
    %p656 = scmp.eq.s32.totalorder %s30, 1
    %p657 = scmp.ne.s32.totalorder %s652, %s654
    %p658 = scmp.eq.s32.totalorder %s30, 0
    %p659 = por %p657, %p658
    %p660 = scmp.ne.s32.totalorder %s652, %s654
    %p661 = scmp.eq.s32.totalorder %s35, 1
    %p662 = por %p660, %p661
    %p663 = scmp.ne.s32.totalorder %s654, %s655
    %p664 = scmp.eq.s32.totalorder %s35, 0
    %p665 = por %p663, %p664
    %p666 = scmp.ne.s32.totalorder %s654, %s655
    %p667 = scmp.eq.s32.totalorder %s36, 1
    %p668 = por %p666, %p667
    %p670 = scmp.ne.s32.totalorder %s655, %s669
    %p671 = scmp.eq.s32.totalorder %s36, 0
    %p672 = por %p670, %p671
    %p673 = scmp.le.s32.totalorder 1, %s30
    %p674 = scmp.lt.s32.totalorder %s30, 3
    %p675 = pnand %p673, %p674
    %p676 = pneg %p675
    // Predicated region
    $region9: #{transformer_forward.4} parent=5 // pred_check
      _
    $region10: #{transformer_forward.4} parent=5 // pred_check_branch
      %678 = sbr.rel (%p675) target = $region12
    $region11: #{transformer_forward.4} parent=5 // pred_region
      %s679 = ssub.s32 %s30, 1
      // Predicated region
      $region13: #{transformer_forward.4} parent=11 // pred_check
        %p680 = pneg %p51
      $region14: #{transformer_forward.4} parent=11 // pred_check_branch
        %682 = sbr.rel (%p680) target = $region16
      $region15: #{transformer_forward.4} parent=11 // pred_region
        _
      $region16: #{transformer_forward.4} parent=11 // pred_fallthru
        _
      // Predicated region
      $region17: #{transformer_forward.4} parent=11 // pred_check
        %p683 = pneg %p72
      $region18: #{transformer_forward.4} parent=11 // pred_check_branch
        %685 = sbr.rel (%p683) target = $region20
      $region19: #{transformer_forward.4} parent=11 // pred_region
        _
      $region20: #{transformer_forward.4} parent=11 // pred_fallthru
        _
    $region12: #{transformer_forward.4} parent=5 // pred_fallthru
      _
    %p686 = scmp.lt.s32.totalorder %s30, 2
    // Predicated region
    $region21: #{transformer_forward.4} parent=5 // pred_check
      %p687 = pneg %p686
    $region22: #{transformer_forward.4} parent=5 // pred_check_branch
      %689 = sbr.rel (%p687) target = $region24
    $region23: #{transformer_forward.4} parent=5 // pred_region
      // Predicated region
      $region25: #{transformer_forward.4} parent=23 // pred_check
        %p690 = pneg %p92
      $region26: #{transformer_forward.4} parent=23 // pred_check_branch
        %692 = sbr.rel (%p690) target = $region28
      $region27: #{transformer_forward.4} parent=23 // pred_region
        %p693 = scmp.lt.s32.totalorder %s30, 1
        %s694 = scalar_select %p693, %s30, 1
        %s695 = smul.addr %s694, 4
        %s696 = smul.addr %s695, 8
        %s697 = scalar_lea.vmem %s2, %s696
      $region28: #{transformer_forward.4} parent=23 // pred_fallthru
        _
      // Predicated region
      $region29: #{transformer_forward.4} parent=23 // pred_check
        %p698 = pneg %p118
      $region30: #{transformer_forward.4} parent=23 // pred_check_branch
        %700 = sbr.rel (%p698) target = $region32
      $region31: #{transformer_forward.4} parent=23 // pred_region
        %p701 = scmp.lt.s32.totalorder %s30, 1
        %s702 = scalar_select %p701, %s30, 1
        %s703 = scalar_lea.vmem %s3, %s702
      $region32: #{transformer_forward.4} parent=23 // pred_fallthru
        _
      // Predicated region
      $region33: #{transformer_forward.4} parent=23 // pred_check
        %p704 = pneg %p144
      $region34: #{transformer_forward.4} parent=23 // pred_check_branch
        %706 = sbr.rel (%p704) target = $region36
      $region35: #{transformer_forward.4} parent=23 // pred_region
        %p707 = scmp.lt.s32.totalorder %s30, 1
        %s708 = scalar_select %p707, %s30, 1
        %s709 = smul.addr %s708, 4
        %s710 = smul.addr %s709, 8
        %s711 = scalar_lea.vmem %s4, %s710
      $region36: #{transformer_forward.4} parent=23 // pred_fallthru
        _
      // Predicated region
      $region37: #{transformer_forward.4} parent=23 // pred_check
        %p712 = pneg %p170
      $region38: #{transformer_forward.4} parent=23 // pred_check_branch
        %714 = sbr.rel (%p712) target = $region40
      $region39: #{transformer_forward.4} parent=23 // pred_region
        %p715 = scmp.lt.s32.totalorder %s30, 1
        %s716 = scalar_select %p715, %s30, 1
        %s717 = scalar_lea.vmem %s5, %s716
      $region40: #{transformer_forward.4} parent=23 // pred_fallthru
        _
      // Predicated region
      $region41: #{transformer_forward.4} parent=23 // pred_check
        %p718 = pneg %p196
      $region42: #{transformer_forward.4} parent=23 // pred_check_branch
        %720 = sbr.rel (%p718) target = $region44
      $region43: #{transformer_forward.4} parent=23 // pred_region
        %p721 = scmp.lt.s32.totalorder %s30, 1
        %s722 = scalar_select %p721, %s30, 1
        %s723 = smul.addr %s722, 4
        %s724 = smul.addr %s723, 8
        %s725 = scalar_lea.vmem %s6, %s724
      $region44: #{transformer_forward.4} parent=23 // pred_fallthru
        _
      // Predicated region
      $region45: #{transformer_forward.4} parent=23 // pred_check
        %p726 = pneg %p222
      $region46: #{transformer_forward.4} parent=23 // pred_check_branch
        %728 = sbr.rel (%p726) target = $region48
      $region47: #{transformer_forward.4} parent=23 // pred_region
        %p729 = scmp.lt.s32.totalorder %s30, 1
        %s730 = scalar_select %p729, %s30, 1
        %s731 = scalar_lea.vmem %s7, %s730
      $region48: #{transformer_forward.4} parent=23 // pred_fallthru
        _
      // Predicated region
      $region49: #{transformer_forward.4} parent=23 // pred_check
        %p732 = pneg %p248
      $region50: #{transformer_forward.4} parent=23 // pred_check_branch
        %734 = sbr.rel (%p732) target = $region52
      $region51: #{transformer_forward.4} parent=23 // pred_region
        %p735 = scmp.lt.s32.totalorder %s30, 1
        %s736 = scalar_select %p735, %s30, 1
        %s737 = scalar_lea.vmem %s8, %s736
      $region52: #{transformer_forward.4} parent=23 // pred_fallthru
        _
      // Predicated region
      $region53: #{transformer_forward.4} parent=23 // pred_check
        %p738 = pneg %p274
      $region54: #{transformer_forward.4} parent=23 // pred_check_branch
        %740 = sbr.rel (%p738) target = $region56
      $region55: #{transformer_forward.4} parent=23 // pred_region
        %p741 = scmp.lt.s32.totalorder %s30, 1
        %s742 = scalar_select %p741, %s30, 1
        %s743 = scalar_lea.vmem %s9, %s742
      $region56: #{transformer_forward.4} parent=23 // pred_fallthru
        _
      // Predicated region
      $region57: #{transformer_forward.4} parent=23 // pred_check
        %p744 = pneg %p300
      $region58: #{transformer_forward.4} parent=23 // pred_check_branch
        %746 = sbr.rel (%p744) target = $region60
      $region59: #{transformer_forward.4} parent=23 // pred_region
        %p747 = scmp.lt.s32.totalorder %s30, 1
        %s748 = scalar_select %p747, %s30, 1
        %s749 = smul.addr %s748, 4
        %s750 = smul.addr %s749, 8
        %s751 = scalar_lea.vmem %s10, %s750
      $region60: #{transformer_forward.4} parent=23 // pred_fallthru
        _
      // Predicated region
      $region61: #{transformer_forward.4} parent=23 // pred_check
        %p752 = pneg %p326
      $region62: #{transformer_forward.4} parent=23 // pred_check_branch
        %754 = sbr.rel (%p752) target = $region64
      $region63: #{transformer_forward.4} parent=23 // pred_region
        %p755 = scmp.lt.s32.totalorder %s30, 1
        %s756 = scalar_select %p755, %s30, 1
        %s757 = scalar_lea.vmem %s11, %s756
      $region64: #{transformer_forward.4} parent=23 // pred_fallthru
        _
      // Predicated region
      $region65: #{transformer_forward.4} parent=23 // pred_check
        %p758 = pneg %p352
      $region66: #{transformer_forward.4} parent=23 // pred_check_branch
        %760 = sbr.rel (%p758) target = $region68
      $region67: #{transformer_forward.4} parent=23 // pred_region
        %p761 = scmp.lt.s32.totalorder %s30, 1
        %s762 = scalar_select %p761, %s30, 1
        %s763 = smul.addr %s762, 4
        %s764 = smul.addr %s763, 8
        %s765 = scalar_lea.vmem %s12, %s764
      $region68: #{transformer_forward.4} parent=23 // pred_fallthru
        _
      // Predicated region
      $region69: #{transformer_forward.4} parent=23 // pred_check
        %p766 = pneg %p378
      $region70: #{transformer_forward.4} parent=23 // pred_check_branch
        %768 = sbr.rel (%p766) target = $region72
      $region71: #{transformer_forward.4} parent=23 // pred_region
        %p769 = scmp.lt.s32.totalorder %s30, 1
        %s770 = scalar_select %p769, %s30, 1
        %s771 = scalar_lea.vmem %s13, %s770
      $region72: #{transformer_forward.4} parent=23 // pred_fallthru
        _
      // Predicated region
      $region73: #{transformer_forward.4} parent=23 // pred_check
        %p772 = pneg %p404
      $region74: #{transformer_forward.4} parent=23 // pred_check_branch
        %774 = sbr.rel (%p772) target = $region76
      $region75: #{transformer_forward.4} parent=23 // pred_region
        %p775 = scmp.lt.s32.totalorder %s30, 1
        %s776 = scalar_select %p775, %s30, 1
        %s777 = smul.addr %s776, 4
        %s778 = smul.addr %s777, 8
        %s779 = scalar_lea.vmem %s14, %s778
      $region76: #{transformer_forward.4} parent=23 // pred_fallthru
        _
      // Predicated region
      $region77: #{transformer_forward.4} parent=23 // pred_check
        %p780 = pneg %p430
      $region78: #{transformer_forward.4} parent=23 // pred_check_branch
        %782 = sbr.rel (%p780) target = $region80
      $region79: #{transformer_forward.4} parent=23 // pred_region
        %p783 = scmp.lt.s32.totalorder %s30, 1
        %s784 = scalar_select %p783, %s30, 1
        %s785 = scalar_lea.vmem %s15, %s784
      $region80: #{transformer_forward.4} parent=23 // pred_fallthru
        _
      // Predicated region
      $region81: #{transformer_forward.4} parent=23 // pred_check
        %p786 = pneg %p456
      $region82: #{transformer_forward.4} parent=23 // pred_check_branch
        %788 = sbr.rel (%p786) target = $region84
      $region83: #{transformer_forward.4} parent=23 // pred_region
        %p789 = scmp.lt.s32.totalorder %s30, 1
        %s790 = scalar_select %p789, %s30, 1
        %s791 = scalar_lea.vmem %s16, %s790
      $region84: #{transformer_forward.4} parent=23 // pred_fallthru
        _
      // Predicated region
      $region85: #{transformer_forward.4} parent=23 // pred_check
        %p792 = pneg %p482
      $region86: #{transformer_forward.4} parent=23 // pred_check_branch
        %794 = sbr.rel (%p792) target = $region88
      $region87: #{transformer_forward.4} parent=23 // pred_region
        %p795 = scmp.lt.s32.totalorder %s30, 1
        %s796 = scalar_select %p795, %s30, 1
        %s797 = scalar_lea.vmem %s17, %s796
      $region88: #{transformer_forward.4} parent=23 // pred_fallthru
        _
      // Predicated region
      $region89: #{transformer_forward.4} parent=23 // pred_check
        %p798 = pneg %p508
      $region90: #{transformer_forward.4} parent=23 // pred_check_branch
        %800 = sbr.rel (%p798) target = $region92
      $region91: #{transformer_forward.4} parent=23 // pred_region
        %p801 = scmp.lt.s32.totalorder %s30, 1
        %s802 = scalar_select %p801, %s30, 1
        %s803 = smul.addr %s802, 4
        %s804 = smul.addr %s803, 8
        %s805 = scalar_lea.vmem %s18, %s804
      $region92: #{transformer_forward.4} parent=23 // pred_fallthru
        _
      // Predicated region
      $region93: #{transformer_forward.4} parent=23 // pred_check
        %p806 = pneg %p534
      $region94: #{transformer_forward.4} parent=23 // pred_check_branch
        %808 = sbr.rel (%p806) target = $region96
      $region95: #{transformer_forward.4} parent=23 // pred_region
        %p809 = scmp.lt.s32.totalorder %s30, 1
        %s810 = scalar_select %p809, %s30, 1
        %s811 = scalar_lea.vmem %s19, %s810
      $region96: #{transformer_forward.4} parent=23 // pred_fallthru
        _
      // Predicated region
      $region97: #{transformer_forward.4} parent=23 // pred_check
        %p812 = pneg %p560
      $region98: #{transformer_forward.4} parent=23 // pred_check_branch
        %814 = sbr.rel (%p812) target = $region100
      $region99: #{transformer_forward.4} parent=23 // pred_region
        %p815 = scmp.lt.s32.totalorder %s30, 1
        %s816 = scalar_select %p815, %s30, 1
        %s817 = smul.addr %s816, 16
        %s818 = smul.addr %s817, 8
        %s819 = scalar_lea.vmem %s20, %s818
      $region100: #{transformer_forward.4} parent=23 // pred_fallthru
        _
      // Predicated region
      $region101: #{transformer_forward.4} parent=23 // pred_check
        %p820 = pneg %p586
      $region102: #{transformer_forward.4} parent=23 // pred_check_branch
        %822 = sbr.rel (%p820) target = $region104
      $region103: #{transformer_forward.4} parent=23 // pred_region
        %p823 = scmp.lt.s32.totalorder %s30, 1
        %s824 = scalar_select %p823, %s30, 1
        %s825 = scalar_lea.vmem %s21, %s824
      $region104: #{transformer_forward.4} parent=23 // pred_fallthru
        _
      // Predicated region
      $region105: #{transformer_forward.4} parent=23 // pred_check
        %p826 = pneg %p612
      $region106: #{transformer_forward.4} parent=23 // pred_check_branch
        %828 = sbr.rel (%p826) target = $region108
      $region107: #{transformer_forward.4} parent=23 // pred_region
        %p829 = scmp.lt.s32.totalorder %s30, 1
        %s830 = scalar_select %p829, %s30, 1
        %s831 = scalar_lea.vmem %s22, %s830
      $region108: #{transformer_forward.4} parent=23 // pred_fallthru
        _
      // Predicated region
      $region109: #{transformer_forward.4} parent=23 // pred_check
        %p832 = pneg %p638
      $region110: #{transformer_forward.4} parent=23 // pred_check_branch
        %834 = sbr.rel (%p832) target = $region112
      $region111: #{transformer_forward.4} parent=23 // pred_region
        %p835 = scmp.lt.s32.totalorder %s30, 1
        %s836 = scalar_select %p835, %s30, 1
        %s837 = scalar_lea.vmem %s23, %s836
      $region112: #{transformer_forward.4} parent=23 // pred_fallthru
        _
    $region24: #{transformer_forward.4} parent=5 // pred_fallthru
      _
    %p838 = scmp.le.s32.totalorder 1, %s30
    %p839 = scmp.lt.s32.totalorder %s30, 3
    %p840 = pnand %p838, %p839
    %p841 = pneg %p840
    // Predicated region
    $region113: #{transformer_forward.4} parent=5 // pred_check
      _
    $region114: #{transformer_forward.4} parent=5 // pred_check_branch
      %843 = sbr.rel (%p840) target = $region116
    $region115: #{transformer_forward.4} parent=5 // pred_region
      %s844 = ssub.s32 %s30, 1
      %p845 = pneg %p51
      %p846 = pneg %p48
      %p847 = pneg %p72
      %p848 = pneg %p69
      %p849 = scmp.lt.s32.totalorder %s35, 1
      %s850 = scalar_select %p849, %s35, 1
      %s851 = smul.addr %s850, 4
      %s852 = smul.addr %s851, 8
      %s853 = scalar_lea.vmem %s2, %s852
      %p854 = pneg %p98
      %p855 = pneg %p95
      %p856 = scmp.lt.s32.totalorder %s35, 1
      %s857 = scalar_select %p856, %s35, 1
      %s858 = scalar_lea.vmem %s3, %s857
      %p859 = pneg %p124
      %p860 = pneg %p121
      %p861 = scmp.lt.s32.totalorder %s35, 1
      %s862 = scalar_select %p861, %s35, 1
      %s863 = smul.addr %s862, 4
      %s864 = smul.addr %s863, 8
      %s865 = scalar_lea.vmem %s4, %s864
      %p866 = pneg %p150
      %p867 = pneg %p147
      %p868 = scmp.lt.s32.totalorder %s35, 1
      %s869 = scalar_select %p868, %s35, 1
      %s870 = scalar_lea.vmem %s5, %s869
      %p871 = pneg %p176
      %p872 = pneg %p173
      %p873 = scmp.lt.s32.totalorder %s35, 1
      %s874 = scalar_select %p873, %s35, 1
      %s875 = smul.addr %s874, 4
      %s876 = smul.addr %s875, 8
      %s877 = scalar_lea.vmem %s6, %s876
      %p878 = pneg %p202
      %p879 = pneg %p199
      %p880 = scmp.lt.s32.totalorder %s35, 1
      %s881 = scalar_select %p880, %s35, 1
      %s882 = scalar_lea.vmem %s7, %s881
      %p883 = pneg %p228
      %p884 = pneg %p225
      %p885 = scmp.lt.s32.totalorder %s35, 1
      %s886 = scalar_select %p885, %s35, 1
      %s887 = scalar_lea.vmem %s8, %s886
      %p888 = pneg %p254
      %p889 = pneg %p251
      %p890 = scmp.lt.s32.totalorder %s35, 1
      %s891 = scalar_select %p890, %s35, 1
      %s892 = scalar_lea.vmem %s9, %s891
      %p893 = pneg %p280
      %p894 = pneg %p277
      %p895 = scmp.lt.s32.totalorder %s35, 1
      %s896 = scalar_select %p895, %s35, 1
      %s897 = smul.addr %s896, 4
      %s898 = smul.addr %s897, 8
      %s899 = scalar_lea.vmem %s10, %s898
      %p900 = pneg %p306
      %p901 = pneg %p303
      %p902 = scmp.lt.s32.totalorder %s35, 1
      %s903 = scalar_select %p902, %s35, 1
      %s904 = scalar_lea.vmem %s11, %s903
      %p905 = pneg %p332
      %p906 = pneg %p329
      %p907 = scmp.lt.s32.totalorder %s35, 1
      %s908 = scalar_select %p907, %s35, 1
      %s909 = smul.addr %s908, 4
      %s910 = smul.addr %s909, 8
      %s911 = scalar_lea.vmem %s12, %s910
      %p912 = pneg %p358
      %p913 = pneg %p355
      %p914 = scmp.lt.s32.totalorder %s35, 1
      %s915 = scalar_select %p914, %s35, 1
      %s916 = scalar_lea.vmem %s13, %s915
      %p917 = pneg %p384
      %p918 = pneg %p381
      %p919 = scmp.lt.s32.totalorder %s35, 1
      %s920 = scalar_select %p919, %s35, 1
      %s921 = smul.addr %s920, 4
      %s922 = smul.addr %s921, 8
      %s923 = scalar_lea.vmem %s14, %s922
      %p924 = pneg %p410
      %p925 = pneg %p407
      %p926 = scmp.lt.s32.totalorder %s35, 1
      %s927 = scalar_select %p926, %s35, 1
      %s928 = scalar_lea.vmem %s15, %s927
      %p929 = pneg %p436
      %p930 = pneg %p433
      %p931 = scmp.lt.s32.totalorder %s35, 1
      %s932 = scalar_select %p931, %s35, 1
      %s933 = scalar_lea.vmem %s16, %s932
      %p934 = pneg %p462
      %p935 = pneg %p459
      %p936 = scmp.lt.s32.totalorder %s35, 1
      %s937 = scalar_select %p936, %s35, 1
      %s938 = scalar_lea.vmem %s17, %s937
      %p939 = pneg %p488
      %p940 = pneg %p485
      %p941 = scmp.lt.s32.totalorder %s35, 1
      %s942 = scalar_select %p941, %s35, 1
      %s943 = smul.addr %s942, 4
      %s944 = smul.addr %s943, 8
      %s945 = scalar_lea.vmem %s18, %s944
      %p946 = pneg %p514
      %p947 = pneg %p511
      %p948 = scmp.lt.s32.totalorder %s35, 1
      %s949 = scalar_select %p948, %s35, 1
      %s950 = scalar_lea.vmem %s19, %s949
      %p951 = pneg %p540
      %p952 = pneg %p537
      %p953 = scmp.lt.s32.totalorder %s35, 1
      %s954 = scalar_select %p953, %s35, 1
      %s955 = smul.addr %s954, 16
      %s956 = smul.addr %s955, 8
      %s957 = scalar_lea.vmem %s20, %s956
      %p958 = pneg %p566
      %p959 = pneg %p563
      %p960 = scmp.lt.s32.totalorder %s35, 1
      %s961 = scalar_select %p960, %s35, 1
      %s962 = scalar_lea.vmem %s21, %s961
      %p963 = pneg %p592
      %p964 = pneg %p589
      %p965 = scmp.lt.s32.totalorder %s35, 1
      %s966 = scalar_select %p965, %s35, 1
      %s967 = scalar_lea.vmem %s22, %s966
      %p968 = pneg %p618
      %p969 = pneg %p615
      %p970 = scmp.lt.s32.totalorder %s35, 1
      %s971 = scalar_select %p970, %s35, 1
      %s972 = scalar_lea.vmem %s23, %s971
      %p973 = pneg %p644
      %p974 = pneg %p641
      %p975 = pneg %p665
      %p976 = pneg %p662
      %p977 = scmp.lt.s32.totalorder %s35, 1
      %s978 = scalar_select %p977, %s35, 1
      %s979 = smul.addr %s978, 4
      %s980 = smul.addr %s979, 8
      %s981 = scalar_lea.vmem %s2, %s980
      %p982 = scmp.lt.s32.totalorder %s35, 1
      %s983 = scalar_select %p982, %s35, 1
      %s984 = scalar_lea.vmem %s3, %s983
      %p985 = scmp.lt.s32.totalorder %s35, 1
      %s986 = scalar_select %p985, %s35, 1
      %s987 = smul.addr %s986, 4
      %s988 = smul.addr %s987, 8
      %s989 = scalar_lea.vmem %s4, %s988
      %p990 = scmp.lt.s32.totalorder %s35, 1
      %s991 = scalar_select %p990, %s35, 1
      %s992 = scalar_lea.vmem %s5, %s991
      %p993 = scmp.lt.s32.totalorder %s35, 1
      %s994 = scalar_select %p993, %s35, 1
      %s995 = smul.addr %s994, 4
      %s996 = smul.addr %s995, 8
      %s997 = scalar_lea.vmem %s6, %s996
      %p998 = scmp.lt.s32.totalorder %s35, 1
      %s999 = scalar_select %p998, %s35, 1
      %s1000 = scalar_lea.vmem %s7, %s999
      %p1001 = scmp.lt.s32.totalorder %s35, 1
      %s1002 = scalar_select %p1001, %s35, 1
      %s1003 = scalar_lea.vmem %s8, %s1002
      %p1004 = scmp.lt.s32.totalorder %s35, 1
      %s1005 = scalar_select %p1004, %s35, 1
      %s1006 = scalar_lea.vmem %s9, %s1005
      %p1007 = scmp.lt.s32.totalorder %s35, 1
      %s1008 = scalar_select %p1007, %s35, 1
      %s1009 = smul.addr %s1008, 4
      %s1010 = smul.addr %s1009, 8
      %s1011 = scalar_lea.vmem %s10, %s1010
      %p1012 = scmp.lt.s32.totalorder %s35, 1
      %s1013 = scalar_select %p1012, %s35, 1
      %s1014 = scalar_lea.vmem %s11, %s1013
      %p1015 = scmp.lt.s32.totalorder %s35, 1
      %s1016 = scalar_select %p1015, %s35, 1
      %s1017 = smul.addr %s1016, 4
      %s1018 = smul.addr %s1017, 8
      %s1019 = scalar_lea.vmem %s12, %s1018
      %p1020 = scmp.lt.s32.totalorder %s35, 1
      %s1021 = scalar_select %p1020, %s35, 1
      %s1022 = scalar_lea.vmem %s13, %s1021
      %p1023 = scmp.lt.s32.totalorder %s35, 1
      %s1024 = scalar_select %p1023, %s35, 1
      %s1025 = smul.addr %s1024, 4
      %s1026 = smul.addr %s1025, 8
      %s1027 = scalar_lea.vmem %s14, %s1026
      %p1028 = scmp.lt.s32.totalorder %s35, 1
      %s1029 = scalar_select %p1028, %s35, 1
      %s1030 = scalar_lea.vmem %s15, %s1029
      %p1031 = scmp.lt.s32.totalorder %s35, 1
      %s1032 = scalar_select %p1031, %s35, 1
      %s1033 = scalar_lea.vmem %s16, %s1032
      %p1034 = scmp.lt.s32.totalorder %s35, 1
      %s1035 = scalar_select %p1034, %s35, 1
      %s1036 = scalar_lea.vmem %s17, %s1035
      %p1037 = scmp.lt.s32.totalorder %s35, 1
      %s1038 = scalar_select %p1037, %s35, 1
      %s1039 = smul.addr %s1038, 4
      %s1040 = smul.addr %s1039, 8
      %s1041 = scalar_lea.vmem %s18, %s1040
      %p1042 = scmp.lt.s32.totalorder %s35, 1
      %s1043 = scalar_select %p1042, %s35, 1
      %s1044 = scalar_lea.vmem %s19, %s1043
      %p1045 = scmp.lt.s32.totalorder %s35, 1
      %s1046 = scalar_select %p1045, %s35, 1
      %s1047 = smul.addr %s1046, 16
      %s1048 = smul.addr %s1047, 8
      %s1049 = scalar_lea.vmem %s20, %s1048
      %p1050 = scmp.lt.s32.totalorder %s35, 1
      %s1051 = scalar_select %p1050, %s35, 1
      %s1052 = scalar_lea.vmem %s21, %s1051
      %p1053 = scmp.lt.s32.totalorder %s35, 1
      %s1054 = scalar_select %p1053, %s35, 1
      %s1055 = scalar_lea.vmem %s22, %s1054
      %p1056 = scmp.lt.s32.totalorder %s35, 1
      %s1057 = scalar_select %p1056, %s35, 1
      %s1058 = scalar_lea.vmem %s23, %s1057
      %p1059 = scmp.eq.s32.totalorder %s35, 0
      // Predicated region
      $region117: #{transformer_forward.4} parent=115 // pred_check
        %p1060 = pneg %p1059
      $region118: #{transformer_forward.4} parent=115 // pred_check_branch
        %1062 = sbr.rel (%p1060) target = $region120
      $region119: #{transformer_forward.4} parent=115 // pred_region
        %v1063 = vld [vmem:[%s0] sm:$0xff]
        %v1064 = vld [vmem:[%s0 + $0x8] sm:$0xff]
        %vm1065 = vcmask 261120
        %1066 = vst.msk [vmem:[#allocation2] sm:$0xff] %vm1065, %v1063
        %1067 = vst.msk [vmem:[#allocation2 + $0x8] sm:$0xff] %vm1065, %v1064
      $region120: #{transformer_forward.4} parent=115 // pred_fallthru
        _
      %v1068 = vld [vmem:[#allocation2] sm:$0xff]
      %v1069 = vld [vmem:[#allocation2 + $0x8] sm:$0xff]
      %v1070 = vld [vmem:[%s1] sm:$0xff]
      %v1071 = vld [vmem:[%s1 + $0x8] sm:$0xff]
      %v1072 = vld [vmem:[%s981] sm:$0xff]
      %v1073 = vld [vmem:[%s981 + $0x8] sm:$0xff]
      %v1074 = vld [vmem:[%s981 + $0x10] sm:$0xff]
      %v1075 = vld [vmem:[%s981 + $0x18] sm:$0xff]
      %v1076 = vld [vmem:[%s984] sm:$0x1]
      %v1077 = vld [vmem:[%s989] sm:$0xff]
      %v1078 = vld [vmem:[%s989 + $0x8] sm:$0xff]
      %v1079 = vld [vmem:[%s989 + $0x10] sm:$0xff]
      %v1080 = vld [vmem:[%s989 + $0x18] sm:$0xff]
      %v1081 = vld [vmem:[%s992] sm:$0x1]
      %v1082 = vld [vmem:[%s997] sm:$0xff]
      %v1083 = vld [vmem:[%s997 + $0x8] sm:$0xff]
      %v1084 = vld [vmem:[%s997 + $0x10] sm:$0xff]
      %v1085 = vld [vmem:[%s997 + $0x18] sm:$0xff]
      %v1086 = vld [vmem:[%s1000] sm:$0x1]
      %v1088 = vlaneseq
      %v1089 = vshrl.u32 %v1088, 7
      %v1090 = vsub.s32 0, %v1089
      %v1091 = vrot.slane %v1076, %v1090
      %vm1093 = vcmask 261120
      %v1095 = vsel %vm1093, %v1068, 0
      %v1098 = vsel %vm1093, %v1069, 0
      %1100 = vmatprep.subr.mxu0 0.0
      %1101 = vmatpush1.msra.mxu0 0.0
      %1102 = vmatprep.subr.mxu0 0.0
      %1103 = vmatpush1.msra.mxu0 0.0
      %1104 = vmatprep.subr.mxu0 0.0
      %1105 = vmatpush1.msra.mxu0 0.0
      %1106 = vmatprep.subr.mxu0 0.0
      %1107 = vmatpush1.msra.mxu0 0.0
      %1108 = vmatprep.subr.mxu0 0.0
      %1109 = vmatpush1.msra.mxu0 0.0
      %1110 = vmatprep.subr.mxu0 0.0
      %1111 = vmatpush1.msra.mxu0 0.0
      %1112 = vmatprep.subr.mxu0 0.0
      %1113 = vmatpush1.msra.mxu0 0.0
      %1114 = vmatprep.subr.mxu0 0.0
      %1115 = vmatpush1.msra.mxu0 0.0
      %1116 = vmatprep.subr.mxu0 0.0
      %1117 = vmatpush1.msra.mxu0 0.0
      %1118 = vmatprep.subr.mxu0 0.0
      %1119 = vmatpush1.msra.mxu0 0.0
      %1120 = vmatprep.subr.mxu0 0.0
      %1121 = vmatpush1.msra.mxu0 0.0
      %1122 = vmatprep.subr.mxu0 0.0
      %1123 = vmatpush1.msra.mxu0 0.0
      %1124 = vmatprep.subr.mxu0 0.0
      %1125 = vmatpush1.msra.mxu0 %v1075
      %1126 = vmatprep.subr.mxu0 0.0
      %1127 = vmatpush1.msra.mxu0 %v1074
      %1128 = vmatprep.subr.mxu0 0.0
      %1129 = vmatpush1.msra.mxu0 %v1073
      %1130 = vmatprep.subr.mxu0 0.0
      %1131 = vmatpush1.msra.mxu0 %v1072
      %1132 = vmatprep.subr.mxu0 0.0
      %1133 = vmatpush2.msra.mxu0 0.0
      %1134 = vmatprep.subr.mxu0 0.0
      %1135 = vmatpush2.msra.mxu0 0.0
      %1136 = vmatprep.subr.mxu0 0.0
      %1137 = vmatpush2.msra.mxu0 0.0
      %1138 = vmatprep.subr.mxu0 0.0
      %1139 = vmatpush2.msra.mxu0 0.0
      %1140 = vmatprep.subr.mxu0 0.0
      %1141 = vmatpush2.msra.mxu0 0.0
      %1142 = vmatprep.subr.mxu0 0.0
      %1143 = vmatpush2.msra.mxu0 0.0
      %1144 = vmatprep.subr.mxu0 0.0
      %1145 = vmatpush2.msra.mxu0 0.0
      %1146 = vmatprep.subr.mxu0 0.0
      %1147 = vmatpush2.msra.mxu0 0.0
      %1148 = vmatprep.subr.mxu0 0.0
      %1149 = vmatpush2.msra.mxu0 0.0
      %1150 = vmatprep.subr.mxu0 0.0
      %1151 = vmatpush2.msra.mxu0 0.0
      %1152 = vmatprep.subr.mxu0 0.0
      %1153 = vmatpush2.msra.mxu0 0.0
      %1154 = vmatprep.subr.mxu0 0.0
      %1155 = vmatpush2.msra.mxu0 0.0
      %1156 = vmatprep.subr.mxu0 0.0
      %1157 = vmatpush2.msra.mxu0 0.0
      %1158 = vmatprep.subr.mxu0 0.0
      %1159 = vmatpush2.msra.mxu0 0.0
      %1160 = vmatprep.subr.mxu0 0.0
      %1161 = vmatpush2.msra.mxu0 0.0
      %1162 = vmatprep.subr.mxu0 0.0
      %1163 = vmatpush2.msra.mxu0 0.0
      %1164 = vmatprep.mubr.f32.mxu0 0.0
      %1165 = vmatmul.mubr.f32.gmra.mxu0 %v1095
      %v1166 = vpop.f32.mrf.mxu0
      %v1167 = vadd.f32 %v1091, %v1166
      %v1168 = vpop.f32.mrf.mxu0
      %1169 = vmatprep.mubr.f32.mxu0 0.0
      %1170 = vmatmul.mubr.f32.gmra.mxu0 %v1098
      %v1171 = vpop.f32.mrf.mxu0
      %v1172 = vadd.f32 %v1091, %v1171
      %v1173 = vpop.f32.mrf.mxu0
      %1174 = vdwg.mxu0
      %v1176 = vlaneseq
      %v1177 = vshrl.u32 %v1176, 7
      %v1178 = vsub.s32 0, %v1177
      %v1179 = vrot.slane %v1081, %v1178
      %1181 = vmatprep.subr.mxu0 0.0
      %1182 = vmatpush1.msra.mxu0 0.0
      %1183 = vmatprep.subr.mxu0 0.0
      %1184 = vmatpush1.msra.mxu0 0.0
      %1185 = vmatprep.subr.mxu0 0.0
      %1186 = vmatpush1.msra.mxu0 0.0
      %1187 = vmatprep.subr.mxu0 0.0
      %1188 = vmatpush1.msra.mxu0 0.0
      %1189 = vmatprep.subr.mxu0 0.0
      %1190 = vmatpush1.msra.mxu0 0.0
      %1191 = vmatprep.subr.mxu0 0.0
      %1192 = vmatpush1.msra.mxu0 0.0
      %1193 = vmatprep.subr.mxu0 0.0
      %1194 = vmatpush1.msra.mxu0 0.0
      %1195 = vmatprep.subr.mxu0 0.0
      %1196 = vmatpush1.msra.mxu0 0.0
      %1197 = vmatprep.subr.mxu0 0.0
      %1198 = vmatpush1.msra.mxu0 0.0
      %1199 = vmatprep.subr.mxu0 0.0
      %1200 = vmatpush1.msra.mxu0 0.0
      %1201 = vmatprep.subr.mxu0 0.0
      %1202 = vmatpush1.msra.mxu0 0.0
      %1203 = vmatprep.subr.mxu0 0.0
      %1204 = vmatpush1.msra.mxu0 0.0
      %1205 = vmatprep.subr.mxu0 0.0
      %1206 = vmatpush1.msra.mxu0 %v1080
      %1207 = vmatprep.subr.mxu0 0.0
      %1208 = vmatpush1.msra.mxu0 %v1079
      %1209 = vmatprep.subr.mxu0 0.0
      %1210 = vmatpush1.msra.mxu0 %v1078
      %1211 = vmatprep.subr.mxu0 0.0
      %1212 = vmatpush1.msra.mxu0 %v1077
      %1213 = vmatprep.subr.mxu0 0.0
      %1214 = vmatpush2.msra.mxu0 0.0
      %1215 = vmatprep.subr.mxu0 0.0
      %1216 = vmatpush2.msra.mxu0 0.0
      %1217 = vmatprep.subr.mxu0 0.0
      %1218 = vmatpush2.msra.mxu0 0.0
      %1219 = vmatprep.subr.mxu0 0.0
      %1220 = vmatpush2.msra.mxu0 0.0
      %1221 = vmatprep.subr.mxu0 0.0
      %1222 = vmatpush2.msra.mxu0 0.0
      %1223 = vmatprep.subr.mxu0 0.0
      %1224 = vmatpush2.msra.mxu0 0.0
      %1225 = vmatprep.subr.mxu0 0.0
      %1226 = vmatpush2.msra.mxu0 0.0
      %1227 = vmatprep.subr.mxu0 0.0
      %1228 = vmatpush2.msra.mxu0 0.0
      %1229 = vmatprep.subr.mxu0 0.0
      %1230 = vmatpush2.msra.mxu0 0.0
      %1231 = vmatprep.subr.mxu0 0.0
      %1232 = vmatpush2.msra.mxu0 0.0
      %1233 = vmatprep.subr.mxu0 0.0
      %1234 = vmatpush2.msra.mxu0 0.0
      %1235 = vmatprep.subr.mxu0 0.0
      %1236 = vmatpush2.msra.mxu0 0.0
      %1237 = vmatprep.subr.mxu0 0.0
      %1238 = vmatpush2.msra.mxu0 0.0
      %1239 = vmatprep.subr.mxu0 0.0
      %1240 = vmatpush2.msra.mxu0 0.0
      %1241 = vmatprep.subr.mxu0 0.0
      %1242 = vmatpush2.msra.mxu0 0.0
      %1243 = vmatprep.subr.mxu0 0.0
      %1244 = vmatpush2.msra.mxu0 0.0
      %1245 = vmatprep.mubr.f32.mxu0 0.0
      %1246 = vmatmul.mubr.f32.gmra.mxu0 %v1095
      %v1247 = vpop.f32.mrf.mxu0
      %v1248 = vadd.f32 %v1179, %v1247
      %v1249 = vpop.f32.mrf.mxu0
      %1250 = vmatprep.mubr.f32.mxu0 0.0
      %1251 = vmatmul.mubr.f32.gmra.mxu0 %v1098
      %v1252 = vpop.f32.mrf.mxu0
      %v1253 = vadd.f32 %v1179, %v1252
      %v1254 = vpop.f32.mrf.mxu0
      %1255 = vdwg.mxu0
      %vm1256 = vcmask 64512
      %v1258 = vsel %vm1256, %v1167, 0
      %v1261 = vsel %vm1256, %v1248, 0
      %1263 = vmatprep.subr.mxu0 0.0
      %1264 = vmatpush1.xpose.msra.mxu0 0.0
      %1265 = vmatprep.subr.mxu0 0.0
      %1266 = vmatpush1.xpose.msra.mxu0 0.0
      %1267 = vmatprep.subr.mxu0 0.0
      %1268 = vmatpush1.xpose.msra.mxu0 0.0
      %1269 = vmatprep.subr.mxu0 0.0
      %1270 = vmatpush1.xpose.msra.mxu0 0.0
      %1271 = vmatprep.subr.mxu0 0.0
      %1272 = vmatpush1.xpose.msra.mxu0 0.0
      %1273 = vmatprep.subr.mxu0 0.0
      %1274 = vmatpush1.xpose.msra.mxu0 0.0
      %1275 = vmatprep.subr.mxu0 0.0
      %1276 = vmatpush1.xpose.msra.mxu0 0.0
      %1277 = vmatprep.subr.mxu0 0.0
      %1278 = vmatpush1.xpose.msra.mxu0 0.0
      %1279 = vmatprep.subr.mxu0 0.0
      %1280 = vmatpush1.xpose.msra.mxu0 0.0
      %1281 = vmatprep.subr.mxu0 0.0
      %1282 = vmatpush1.xpose.msra.mxu0 0.0
      %1283 = vmatprep.subr.mxu0 0.0
      %1284 = vmatpush1.xpose.msra.mxu0 0.0
      %1285 = vmatprep.subr.mxu0 0.0
      %1286 = vmatpush1.xpose.msra.mxu0 0.0
      %1287 = vmatprep.subr.mxu0 0.0
      %1288 = vmatpush1.xpose.msra.mxu0 0.0
      %1289 = vmatprep.subr.mxu0 0.0
      %1290 = vmatpush1.xpose.msra.mxu0 0.0
      %1291 = vmatprep.subr.mxu0 0.0
      %1292 = vmatpush1.xpose.msra.mxu0 0.0
      %1293 = vmatprep.subr.mxu0 0.0
      %1294 = vmatpush1.xpose.msra.mxu0 %v1261
      %1295 = vmatprep.subr.mxu0 0.0
      %1296 = vmatpush2.xpose.msra.mxu0 0.0
      %1297 = vmatprep.subr.mxu0 0.0
      %1298 = vmatpush2.xpose.msra.mxu0 0.0
      %1299 = vmatprep.subr.mxu0 0.0
      %1300 = vmatpush2.xpose.msra.mxu0 0.0
      %1301 = vmatprep.subr.mxu0 0.0
      %1302 = vmatpush2.xpose.msra.mxu0 0.0
      %1303 = vmatprep.subr.mxu0 0.0
      %1304 = vmatpush2.xpose.msra.mxu0 0.0
      %1305 = vmatprep.subr.mxu0 0.0
      %1306 = vmatpush2.xpose.msra.mxu0 0.0
      %1307 = vmatprep.subr.mxu0 0.0
      %1308 = vmatpush2.xpose.msra.mxu0 0.0
      %1309 = vmatprep.subr.mxu0 0.0
      %1310 = vmatpush2.xpose.msra.mxu0 0.0
      %1311 = vmatprep.subr.mxu0 0.0
      %1312 = vmatpush2.xpose.msra.mxu0 0.0
      %1313 = vmatprep.subr.mxu0 0.0
      %1314 = vmatpush2.xpose.msra.mxu0 0.0
      %1315 = vmatprep.subr.mxu0 0.0
      %1316 = vmatpush2.xpose.msra.mxu0 0.0
      %1317 = vmatprep.subr.mxu0 0.0
      %1318 = vmatpush2.xpose.msra.mxu0 0.0
      %1319 = vmatprep.subr.mxu0 0.0
      %1320 = vmatpush2.xpose.msra.mxu0 0.0
      %1321 = vmatprep.subr.mxu0 0.0
      %1322 = vmatpush2.xpose.msra.mxu0 0.0
      %1323 = vmatprep.subr.mxu0 0.0
      %1324 = vmatpush2.xpose.msra.mxu0 0.0
      %1325 = vmatprep.subr.mxu0 0.0
      %1326 = vmatpush2.xpose.msra.mxu0 0.0
      %1327 = vmatprep.mubr.f32.mxu0 0.0
      %1328 = vmatmul.mubr.f32.gmra.mxu0 %v1258
      %v1329 = vpop.f32.mrf.mxu0
      %v1330 = vadd.f32 0.0, %v1329
      %v1331 = vpop.f32.mrf.mxu0
      %1332 = vdwg.mxu0
      %v1334 = vsel %vm1256, %v1172, 0
      %v1337 = vsel %vm1256, %v1253, 0
      %1339 = vmatprep.subr.mxu0 0.0
      %1340 = vmatpush1.xpose.msra.mxu0 0.0
      %1341 = vmatprep.subr.mxu0 0.0
      %1342 = vmatpush1.xpose.msra.mxu0 0.0
      %1343 = vmatprep.subr.mxu0 0.0
      %1344 = vmatpush1.xpose.msra.mxu0 0.0
      %1345 = vmatprep.subr.mxu0 0.0
      %1346 = vmatpush1.xpose.msra.mxu0 0.0
      %1347 = vmatprep.subr.mxu0 0.0
      %1348 = vmatpush1.xpose.msra.mxu0 0.0
      %1349 = vmatprep.subr.mxu0 0.0
      %1350 = vmatpush1.xpose.msra.mxu0 0.0
      %1351 = vmatprep.subr.mxu0 0.0
      %1352 = vmatpush1.xpose.msra.mxu0 0.0
      %1353 = vmatprep.subr.mxu0 0.0
      %1354 = vmatpush1.xpose.msra.mxu0 0.0
      %1355 = vmatprep.subr.mxu0 0.0
      %1356 = vmatpush1.xpose.msra.mxu0 0.0
      %1357 = vmatprep.subr.mxu0 0.0
      %1358 = vmatpush1.xpose.msra.mxu0 0.0
      %1359 = vmatprep.subr.mxu0 0.0
      %1360 = vmatpush1.xpose.msra.mxu0 0.0
      %1361 = vmatprep.subr.mxu0 0.0
      %1362 = vmatpush1.xpose.msra.mxu0 0.0
      %1363 = vmatprep.subr.mxu0 0.0
      %1364 = vmatpush1.xpose.msra.mxu0 0.0
      %1365 = vmatprep.subr.mxu0 0.0
      %1366 = vmatpush1.xpose.msra.mxu0 0.0
      %1367 = vmatprep.subr.mxu0 0.0
      %1368 = vmatpush1.xpose.msra.mxu0 0.0
      %1369 = vmatprep.subr.mxu0 0.0
      %1370 = vmatpush1.xpose.msra.mxu0 %v1337
      %1371 = vmatprep.subr.mxu0 0.0
      %1372 = vmatpush2.xpose.msra.mxu0 0.0
      %1373 = vmatprep.subr.mxu0 0.0
      %1374 = vmatpush2.xpose.msra.mxu0 0.0
      %1375 = vmatprep.subr.mxu0 0.0
      %1376 = vmatpush2.xpose.msra.mxu0 0.0
      %1377 = vmatprep.subr.mxu0 0.0
      %1378 = vmatpush2.xpose.msra.mxu0 0.0
      %1379 = vmatprep.subr.mxu0 0.0
      %1380 = vmatpush2.xpose.msra.mxu0 0.0
      %1381 = vmatprep.subr.mxu0 0.0
      %1382 = vmatpush2.xpose.msra.mxu0 0.0
      %1383 = vmatprep.subr.mxu0 0.0
      %1384 = vmatpush2.xpose.msra.mxu0 0.0
      %1385 = vmatprep.subr.mxu0 0.0
      %1386 = vmatpush2.xpose.msra.mxu0 0.0
      %1387 = vmatprep.subr.mxu0 0.0
      %1388 = vmatpush2.xpose.msra.mxu0 0.0
      %1389 = vmatprep.subr.mxu0 0.0
      %1390 = vmatpush2.xpose.msra.mxu0 0.0
      %1391 = vmatprep.subr.mxu0 0.0
      %1392 = vmatpush2.xpose.msra.mxu0 0.0
      %1393 = vmatprep.subr.mxu0 0.0
      %1394 = vmatpush2.xpose.msra.mxu0 0.0
      %1395 = vmatprep.subr.mxu0 0.0
      %1396 = vmatpush2.xpose.msra.mxu0 0.0
      %1397 = vmatprep.subr.mxu0 0.0
      %1398 = vmatpush2.xpose.msra.mxu0 0.0
      %1399 = vmatprep.subr.mxu0 0.0
      %1400 = vmatpush2.xpose.msra.mxu0 0.0
      %1401 = vmatprep.subr.mxu0 0.0
      %1402 = vmatpush2.xpose.msra.mxu0 0.0
      %1403 = vmatprep.mubr.f32.mxu0 0.0
      %1404 = vmatmul.mubr.f32.gmra.mxu0 %v1334
      %v1405 = vpop.f32.mrf.mxu0
      %v1406 = vadd.f32 0.0, %v1405
      %v1407 = vpop.f32.mrf.mxu0
      %1408 = vdwg.mxu0
      %v1409 = vmul.f32 %v1330, 0.35355338
      %v1410 = vmul.f32 %v1406, 0.35355338
      %v1411 = vsel %vm1256, %v1409, -inf
      %1412 = vmax.xlane.f32.xlu0 %v1411
      %v1413 = vpop.xlane.xlu0 %1412
      %v1414 = vsel %vm1256, %v1410, -inf
      %1415 = vmax.xlane.f32.xlu0 %v1414
      %v1416 = vpop.xlane.xlu0 %1415
      %v1417 = vsub.f32 %v1409, %v1413
      %v1418 = vsub.f32 %v1410, %v1416
      %v1419 = vmul.f32 %v1417, 1.442695
      %v1420 = vpow.pop %v1419
      %v1421 = vmul.f32 %v1418, 1.442695
      %v1422 = vpow.pop %v1421
      %v1423 = vsel %vm1256, %v1420, 0.0
      %1424 = vadd.xlane.f32.xlu0 %v1423
      %v1425 = vpop.xlane.xlu0 %1424
      %v1426 = vsel %vm1256, %v1422, 0.0
      %1427 = vadd.xlane.f32.xlu0 %v1426
      %v1428 = vpop.xlane.xlu0 %1427
      %1429 = vrot.lane.b32.xlu0 %v1248, 96
      %v1430 = vpop.permute.xlu0 %1429
      %v1433 = vsel %vm1256, %v1420, 0
      %1435 = vmatprep.subr.mxu0 0.0
      %1436 = vmatpush1.msra.mxu0 0.0
      %1437 = vmatprep.subr.mxu0 0.0
      %1438 = vmatpush1.msra.mxu0 0.0
      %1439 = vmatprep.subr.mxu0 0.0
      %1440 = vmatpush1.msra.mxu0 0.0
      %1441 = vmatprep.subr.mxu0 0.0
      %1442 = vmatpush1.msra.mxu0 0.0
      %1443 = vmatprep.subr.mxu0 0.0
      %1444 = vmatpush1.msra.mxu0 0.0
      %1445 = vmatprep.subr.mxu0 0.0
      %1446 = vmatpush1.msra.mxu0 0.0
      %1447 = vmatprep.subr.mxu0 0.0
      %1448 = vmatpush1.msra.mxu0 0.0
      %1449 = vmatprep.subr.mxu0 0.0
      %1450 = vmatpush1.msra.mxu0 0.0
      %1451 = vmatprep.subr.mxu0 0.0
      %1452 = vmatpush1.msra.mxu0 0.0
      %1453 = vmatprep.subr.mxu0 0.0
      %1454 = vmatpush1.msra.mxu0 0.0
      %1455 = vmatprep.subr.mxu0 0.0
      %1456 = vmatpush1.msra.mxu0 0.0
      %1457 = vmatprep.subr.mxu0 0.0
      %1458 = vmatpush1.msra.mxu0 0.0
      %1459 = vmatprep.subr.mxu0 0.0
      %1460 = vmatpush1.msra.mxu0 0.0
      %1461 = vmatprep.subr.mxu0 0.0
      %1462 = vmatpush1.msra.mxu0 0.0
      %1463 = vmatprep.subr.mxu0 0.0
      %1464 = vmatpush1.msra.mxu0 0.0
      %1465 = vmatprep.subr.mxu0 0.0
      %1466 = vmatpush1.msra.mxu0 %v1430
      %1467 = vmatprep.subr.mxu0 0.0
      %1468 = vmatpush2.msra.mxu0 0.0
      %1469 = vmatprep.subr.mxu0 0.0
      %1470 = vmatpush2.msra.mxu0 0.0
      %1471 = vmatprep.subr.mxu0 0.0
      %1472 = vmatpush2.msra.mxu0 0.0
      %1473 = vmatprep.subr.mxu0 0.0
      %1474 = vmatpush2.msra.mxu0 0.0
      %1475 = vmatprep.subr.mxu0 0.0
      %1476 = vmatpush2.msra.mxu0 0.0
      %1477 = vmatprep.subr.mxu0 0.0
      %1478 = vmatpush2.msra.mxu0 0.0
      %1479 = vmatprep.subr.mxu0 0.0
      %1480 = vmatpush2.msra.mxu0 0.0
      %1481 = vmatprep.subr.mxu0 0.0
      %1482 = vmatpush2.msra.mxu0 0.0
      %1483 = vmatprep.subr.mxu0 0.0
      %1484 = vmatpush2.msra.mxu0 0.0
      %1485 = vmatprep.subr.mxu0 0.0
      %1486 = vmatpush2.msra.mxu0 0.0
      %1487 = vmatprep.subr.mxu0 0.0
      %1488 = vmatpush2.msra.mxu0 0.0
      %1489 = vmatprep.subr.mxu0 0.0
      %1490 = vmatpush2.msra.mxu0 0.0
      %1491 = vmatprep.subr.mxu0 0.0
      %1492 = vmatpush2.msra.mxu0 0.0
      %1493 = vmatprep.subr.mxu0 0.0
      %1494 = vmatpush2.msra.mxu0 0.0
      %1495 = vmatprep.subr.mxu0 0.0
      %1496 = vmatpush2.msra.mxu0 0.0
      %1497 = vmatprep.subr.mxu0 0.0
      %1498 = vmatpush2.msra.mxu0 0.0
      %1499 = vmatprep.mubr.f32.mxu0 0.0
      %1500 = vmatmul.mubr.f32.gmra.mxu0 %v1433
      %v1501 = vpop.f32.mrf.mxu0
      %v1502 = vadd.f32 0.0, %v1501
      %v1503 = vpop.f32.mrf.mxu0
      %1504 = vdwg.mxu0
      %1505 = vrot.lane.b32.xlu0 %v1253, 96
      %v1506 = vpop.permute.xlu0 %1505
      %v1509 = vsel %vm1256, %v1422, 0
      %1511 = vmatprep.subr.mxu0 0.0
      %1512 = vmatpush1.msra.mxu0 0.0
      %1513 = vmatprep.subr.mxu0 0.0
      %1514 = vmatpush1.msra.mxu0 0.0
      %1515 = vmatprep.subr.mxu0 0.0
      %1516 = vmatpush1.msra.mxu0 0.0
      %1517 = vmatprep.subr.mxu0 0.0
      %1518 = vmatpush1.msra.mxu0 0.0
      %1519 = vmatprep.subr.mxu0 0.0
      %1520 = vmatpush1.msra.mxu0 0.0
      %1521 = vmatprep.subr.mxu0 0.0
      %1522 = vmatpush1.msra.mxu0 0.0
      %1523 = vmatprep.subr.mxu0 0.0
      %1524 = vmatpush1.msra.mxu0 0.0
      %1525 = vmatprep.subr.mxu0 0.0
      %1526 = vmatpush1.msra.mxu0 0.0
      %1527 = vmatprep.subr.mxu0 0.0
      %1528 = vmatpush1.msra.mxu0 0.0
      %1529 = vmatprep.subr.mxu0 0.0
      %1530 = vmatpush1.msra.mxu0 0.0
      %1531 = vmatprep.subr.mxu0 0.0
      %1532 = vmatpush1.msra.mxu0 0.0
      %1533 = vmatprep.subr.mxu0 0.0
      %1534 = vmatpush1.msra.mxu0 0.0
      %1535 = vmatprep.subr.mxu0 0.0
      %1536 = vmatpush1.msra.mxu0 0.0
      %1537 = vmatprep.subr.mxu0 0.0
      %1538 = vmatpush1.msra.mxu0 0.0
      %1539 = vmatprep.subr.mxu0 0.0
      %1540 = vmatpush1.msra.mxu0 0.0
      %1541 = vmatprep.subr.mxu0 0.0
      %1542 = vmatpush1.msra.mxu0 %v1506
      %1543 = vmatprep.subr.mxu0 0.0
      %1544 = vmatpush2.msra.mxu0 0.0
      %1545 = vmatprep.subr.mxu0 0.0
      %1546 = vmatpush2.msra.mxu0 0.0
      %1547 = vmatprep.subr.mxu0 0.0
      %1548 = vmatpush2.msra.mxu0 0.0
      %1549 = vmatprep.subr.mxu0 0.0
      %1550 = vmatpush2.msra.mxu0 0.0
      %1551 = vmatprep.subr.mxu0 0.0
      %1552 = vmatpush2.msra.mxu0 0.0
      %1553 = vmatprep.subr.mxu0 0.0
      %1554 = vmatpush2.msra.mxu0 0.0
      %1555 = vmatprep.subr.mxu0 0.0
      %1556 = vmatpush2.msra.mxu0 0.0
      %1557 = vmatprep.subr.mxu0 0.0
      %1558 = vmatpush2.msra.mxu0 0.0
      %1559 = vmatprep.subr.mxu0 0.0
      %1560 = vmatpush2.msra.mxu0 0.0
      %1561 = vmatprep.subr.mxu0 0.0
      %1562 = vmatpush2.msra.mxu0 0.0
      %1563 = vmatprep.subr.mxu0 0.0
      %1564 = vmatpush2.msra.mxu0 0.0
      %1565 = vmatprep.subr.mxu0 0.0
      %1566 = vmatpush2.msra.mxu0 0.0
      %1567 = vmatprep.subr.mxu0 0.0
      %1568 = vmatpush2.msra.mxu0 0.0
      %1569 = vmatprep.subr.mxu0 0.0
      %1570 = vmatpush2.msra.mxu0 0.0
      %1571 = vmatprep.subr.mxu0 0.0
      %1572 = vmatpush2.msra.mxu0 0.0
      %1573 = vmatprep.subr.mxu0 0.0
      %1574 = vmatpush2.msra.mxu0 0.0
      %1575 = vmatprep.mubr.f32.mxu0 0.0
      %1576 = vmatmul.mubr.f32.gmra.mxu0 %v1509
      %v1577 = vpop.f32.mrf.mxu0
      %v1578 = vadd.f32 0.0, %v1577
      %v1579 = vpop.f32.mrf.mxu0
      %1580 = vdwg.mxu0
      %v1581 = vrcp.pop %v1425
      %v1582 = vrcp.pop %v1428
      %v1583 = vmul.f32 %v1502, %v1581
      %v1584 = vmul.f32 %v1578, %v1582
      %1585 = vrot.lane.b32.xlu0 %v1167, 120
      %v1586 = vpop.permute.xlu0 %1585
      %1587 = vrot.lane.b32.xlu0 %v1248, 120
      %v1588 = vpop.permute.xlu0 %1587
      %v1589 = vsel %vm1256, %v1586, 0
      %v1591 = vsel %vm1256, %v1588, 0
      %1593 = vmatprep.subr.mxu0 0.0
      %1594 = vmatpush1.xpose.msra.mxu0 0.0
      %1595 = vmatprep.subr.mxu0 0.0
      %1596 = vmatpush1.xpose.msra.mxu0 0.0
      %1597 = vmatprep.subr.mxu0 0.0
      %1598 = vmatpush1.xpose.msra.mxu0 0.0
      %1599 = vmatprep.subr.mxu0 0.0
      %1600 = vmatpush1.xpose.msra.mxu0 0.0
      %1601 = vmatprep.subr.mxu0 0.0
      %1602 = vmatpush1.xpose.msra.mxu0 0.0
      %1603 = vmatprep.subr.mxu0 0.0
      %1604 = vmatpush1.xpose.msra.mxu0 0.0
      %1605 = vmatprep.subr.mxu0 0.0
      %1606 = vmatpush1.xpose.msra.mxu0 0.0
      %1607 = vmatprep.subr.mxu0 0.0
      %1608 = vmatpush1.xpose.msra.mxu0 0.0
      %1609 = vmatprep.subr.mxu0 0.0
      %1610 = vmatpush1.xpose.msra.mxu0 0.0
      %1611 = vmatprep.subr.mxu0 0.0
      %1612 = vmatpush1.xpose.msra.mxu0 0.0
      %1613 = vmatprep.subr.mxu0 0.0
      %1614 = vmatpush1.xpose.msra.mxu0 0.0
      %1615 = vmatprep.subr.mxu0 0.0
      %1616 = vmatpush1.xpose.msra.mxu0 0.0
      %1617 = vmatprep.subr.mxu0 0.0
      %1618 = vmatpush1.xpose.msra.mxu0 0.0
      %1619 = vmatprep.subr.mxu0 0.0
      %1620 = vmatpush1.xpose.msra.mxu0 0.0
      %1621 = vmatprep.subr.mxu0 0.0
      %1622 = vmatpush1.xpose.msra.mxu0 0.0
      %1623 = vmatprep.subr.mxu0 0.0
      %1624 = vmatpush1.xpose.msra.mxu0 %v1591
      %1625 = vmatprep.subr.mxu0 0.0
      %1626 = vmatpush2.xpose.msra.mxu0 0.0
      %1627 = vmatprep.subr.mxu0 0.0
      %1628 = vmatpush2.xpose.msra.mxu0 0.0
      %1629 = vmatprep.subr.mxu0 0.0
      %1630 = vmatpush2.xpose.msra.mxu0 0.0
      %1631 = vmatprep.subr.mxu0 0.0
      %1632 = vmatpush2.xpose.msra.mxu0 0.0
      %1633 = vmatprep.subr.mxu0 0.0
      %1634 = vmatpush2.xpose.msra.mxu0 0.0
      %1635 = vmatprep.subr.mxu0 0.0
      %1636 = vmatpush2.xpose.msra.mxu0 0.0
      %1637 = vmatprep.subr.mxu0 0.0
      %1638 = vmatpush2.xpose.msra.mxu0 0.0
      %1639 = vmatprep.subr.mxu0 0.0
      %1640 = vmatpush2.xpose.msra.mxu0 0.0
      %1641 = vmatprep.subr.mxu0 0.0
      %1642 = vmatpush2.xpose.msra.mxu0 0.0
      %1643 = vmatprep.subr.mxu0 0.0
      %1644 = vmatpush2.xpose.msra.mxu0 0.0
      %1645 = vmatprep.subr.mxu0 0.0
      %1646 = vmatpush2.xpose.msra.mxu0 0.0
      %1647 = vmatprep.subr.mxu0 0.0
      %1648 = vmatpush2.xpose.msra.mxu0 0.0
      %1649 = vmatprep.subr.mxu0 0.0
      %1650 = vmatpush2.xpose.msra.mxu0 0.0
      %1651 = vmatprep.subr.mxu0 0.0
      %1652 = vmatpush2.xpose.msra.mxu0 0.0
      %1653 = vmatprep.subr.mxu0 0.0
      %1654 = vmatpush2.xpose.msra.mxu0 0.0
      %1655 = vmatprep.subr.mxu0 0.0
      %1656 = vmatpush2.xpose.msra.mxu0 0.0
      %1657 = vmatprep.mubr.f32.mxu0 0.0
      %1658 = vmatmul.mubr.f32.gmra.mxu0 %v1589
      %v1659 = vpop.f32.mrf.mxu0
      %v1660 = vadd.f32 0.0, %v1659
      %v1661 = vpop.f32.mrf.mxu0
      %1662 = vdwg.mxu0
      %1663 = vrot.lane.b32.xlu0 %v1172, 120
      %v1664 = vpop.permute.xlu0 %1663
      %1665 = vrot.lane.b32.xlu0 %v1253, 120
      %v1666 = vpop.permute.xlu0 %1665
      %v1667 = vsel %vm1256, %v1664, 0
      %v1669 = vsel %vm1256, %v1666, 0
      %1671 = vmatprep.subr.mxu0 0.0
      %1672 = vmatpush1.xpose.msra.mxu0 0.0
      %1673 = vmatprep.subr.mxu0 0.0
      %1674 = vmatpush1.xpose.msra.mxu0 0.0
      %1675 = vmatprep.subr.mxu0 0.0
      %1676 = vmatpush1.xpose.msra.mxu0 0.0
      %1677 = vmatprep.subr.mxu0 0.0
      %1678 = vmatpush1.xpose.msra.mxu0 0.0
      %1679 = vmatprep.subr.mxu0 0.0
      %1680 = vmatpush1.xpose.msra.mxu0 0.0
      %1681 = vmatprep.subr.mxu0 0.0
      %1682 = vmatpush1.xpose.msra.mxu0 0.0
      %1683 = vmatprep.subr.mxu0 0.0
      %1684 = vmatpush1.xpose.msra.mxu0 0.0
      %1685 = vmatprep.subr.mxu0 0.0
      %1686 = vmatpush1.xpose.msra.mxu0 0.0
      %1687 = vmatprep.subr.mxu0 0.0
      %1688 = vmatpush1.xpose.msra.mxu0 0.0
      %1689 = vmatprep.subr.mxu0 0.0
      %1690 = vmatpush1.xpose.msra.mxu0 0.0
      %1691 = vmatprep.subr.mxu0 0.0
      %1692 = vmatpush1.xpose.msra.mxu0 0.0
      %1693 = vmatprep.subr.mxu0 0.0
      %1694 = vmatpush1.xpose.msra.mxu0 0.0
      %1695 = vmatprep.subr.mxu0 0.0
      %1696 = vmatpush1.xpose.msra.mxu0 0.0
      %1697 = vmatprep.subr.mxu0 0.0
      %1698 = vmatpush1.xpose.msra.mxu0 0.0
      %1699 = vmatprep.subr.mxu0 0.0
      %1700 = vmatpush1.xpose.msra.mxu0 0.0
      %1701 = vmatprep.subr.mxu0 0.0
      %1702 = vmatpush1.xpose.msra.mxu0 %v1669
      %1703 = vmatprep.subr.mxu0 0.0
      %1704 = vmatpush2.xpose.msra.mxu0 0.0
      %1705 = vmatprep.subr.mxu0 0.0
      %1706 = vmatpush2.xpose.msra.mxu0 0.0
      %1707 = vmatprep.subr.mxu0 0.0
      %1708 = vmatpush2.xpose.msra.mxu0 0.0
      %1709 = vmatprep.subr.mxu0 0.0
      %1710 = vmatpush2.xpose.msra.mxu0 0.0
      %1711 = vmatprep.subr.mxu0 0.0
      %1712 = vmatpush2.xpose.msra.mxu0 0.0
      %1713 = vmatprep.subr.mxu0 0.0
      %1714 = vmatpush2.xpose.msra.mxu0 0.0
      %1715 = vmatprep.subr.mxu0 0.0
      %1716 = vmatpush2.xpose.msra.mxu0 0.0
      %1717 = vmatprep.subr.mxu0 0.0
      %1718 = vmatpush2.xpose.msra.mxu0 0.0
      %1719 = vmatprep.subr.mxu0 0.0
      %1720 = vmatpush2.xpose.msra.mxu0 0.0
      %1721 = vmatprep.subr.mxu0 0.0
      %1722 = vmatpush2.xpose.msra.mxu0 0.0
      %1723 = vmatprep.subr.mxu0 0.0
      %1724 = vmatpush2.xpose.msra.mxu0 0.0
      %1725 = vmatprep.subr.mxu0 0.0
      %1726 = vmatpush2.xpose.msra.mxu0 0.0
      %1727 = vmatprep.subr.mxu0 0.0
      %1728 = vmatpush2.xpose.msra.mxu0 0.0
      %1729 = vmatprep.subr.mxu0 0.0
      %1730 = vmatpush2.xpose.msra.mxu0 0.0
      %1731 = vmatprep.subr.mxu0 0.0
      %1732 = vmatpush2.xpose.msra.mxu0 0.0
      %1733 = vmatprep.subr.mxu0 0.0
      %1734 = vmatpush2.xpose.msra.mxu0 0.0
      %1735 = vmatprep.mubr.f32.mxu0 0.0
      %1736 = vmatmul.mubr.f32.gmra.mxu0 %v1667
      %v1737 = vpop.f32.mrf.mxu0
      %v1738 = vadd.f32 0.0, %v1737
      %v1739 = vpop.f32.mrf.mxu0
      %1740 = vdwg.mxu0
      %v1741 = vmul.f32 %v1660, 0.35355338
      %v1742 = vmul.f32 %v1738, 0.35355338
      %v1743 = vsel %vm1256, %v1741, -inf
      %1744 = vmax.xlane.f32.xlu0 %v1743
      %v1745 = vpop.xlane.xlu0 %1744
      %v1746 = vsel %vm1256, %v1742, -inf
      %1747 = vmax.xlane.f32.xlu0 %v1746
      %v1748 = vpop.xlane.xlu0 %1747
      %v1749 = vsub.f32 %v1741, %v1745
      %v1750 = vsub.f32 %v1742, %v1748
      %v1751 = vmul.f32 %v1749, 1.442695
      %v1752 = vpow.pop %v1751
      %v1753 = vmul.f32 %v1750, 1.442695
      %v1754 = vpow.pop %v1753
      %v1755 = vsel %vm1256, %v1752, 0.0
      %1756 = vadd.xlane.f32.xlu0 %v1755
      %v1757 = vpop.xlane.xlu0 %1756
      %v1758 = vsel %vm1256, %v1754, 0.0
      %1759 = vadd.xlane.f32.xlu0 %v1758
      %v1760 = vpop.xlane.xlu0 %1759
      %1761 = vrot.lane.b32.xlu0 %v1248, 88
      %v1762 = vpop.permute.xlu0 %1761
      %v1765 = vsel %vm1256, %v1752, 0
      %1767 = vmatprep.subr.mxu0 0.0
      %1768 = vmatpush1.msra.mxu0 0.0
      %1769 = vmatprep.subr.mxu0 0.0
      %1770 = vmatpush1.msra.mxu0 0.0
      %1771 = vmatprep.subr.mxu0 0.0
      %1772 = vmatpush1.msra.mxu0 0.0
      %1773 = vmatprep.subr.mxu0 0.0
      %1774 = vmatpush1.msra.mxu0 0.0
      %1775 = vmatprep.subr.mxu0 0.0
      %1776 = vmatpush1.msra.mxu0 0.0
      %1777 = vmatprep.subr.mxu0 0.0
      %1778 = vmatpush1.msra.mxu0 0.0
      %1779 = vmatprep.subr.mxu0 0.0
      %1780 = vmatpush1.msra.mxu0 0.0
      %1781 = vmatprep.subr.mxu0 0.0
      %1782 = vmatpush1.msra.mxu0 0.0
      %1783 = vmatprep.subr.mxu0 0.0
      %1784 = vmatpush1.msra.mxu0 0.0
      %1785 = vmatprep.subr.mxu0 0.0
      %1786 = vmatpush1.msra.mxu0 0.0
      %1787 = vmatprep.subr.mxu0 0.0
      %1788 = vmatpush1.msra.mxu0 0.0
      %1789 = vmatprep.subr.mxu0 0.0
      %1790 = vmatpush1.msra.mxu0 0.0
      %1791 = vmatprep.subr.mxu0 0.0
      %1792 = vmatpush1.msra.mxu0 0.0
      %1793 = vmatprep.subr.mxu0 0.0
      %1794 = vmatpush1.msra.mxu0 0.0
      %1795 = vmatprep.subr.mxu0 0.0
      %1796 = vmatpush1.msra.mxu0 0.0
      %1797 = vmatprep.subr.mxu0 0.0
      %1798 = vmatpush1.msra.mxu0 %v1762
      %1799 = vmatprep.subr.mxu0 0.0
      %1800 = vmatpush2.msra.mxu0 0.0
      %1801 = vmatprep.subr.mxu0 0.0
      %1802 = vmatpush2.msra.mxu0 0.0
      %1803 = vmatprep.subr.mxu0 0.0
      %1804 = vmatpush2.msra.mxu0 0.0
      %1805 = vmatprep.subr.mxu0 0.0
      %1806 = vmatpush2.msra.mxu0 0.0
      %1807 = vmatprep.subr.mxu0 0.0
      %1808 = vmatpush2.msra.mxu0 0.0
      %1809 = vmatprep.subr.mxu0 0.0
      %1810 = vmatpush2.msra.mxu0 0.0
      %1811 = vmatprep.subr.mxu0 0.0
      %1812 = vmatpush2.msra.mxu0 0.0
      %1813 = vmatprep.subr.mxu0 0.0
      %1814 = vmatpush2.msra.mxu0 0.0
      %1815 = vmatprep.subr.mxu0 0.0
      %1816 = vmatpush2.msra.mxu0 0.0
      %1817 = vmatprep.subr.mxu0 0.0
      %1818 = vmatpush2.msra.mxu0 0.0
      %1819 = vmatprep.subr.mxu0 0.0
      %1820 = vmatpush2.msra.mxu0 0.0
      %1821 = vmatprep.subr.mxu0 0.0
      %1822 = vmatpush2.msra.mxu0 0.0
      %1823 = vmatprep.subr.mxu0 0.0
      %1824 = vmatpush2.msra.mxu0 0.0
      %1825 = vmatprep.subr.mxu0 0.0
      %1826 = vmatpush2.msra.mxu0 0.0
      %1827 = vmatprep.subr.mxu0 0.0
      %1828 = vmatpush2.msra.mxu0 0.0
      %1829 = vmatprep.subr.mxu0 0.0
      %1830 = vmatpush2.msra.mxu0 0.0
      %1831 = vmatprep.mubr.f32.mxu0 0.0
      %1832 = vmatmul.mubr.f32.gmra.mxu0 %v1765
      %v1833 = vpop.f32.mrf.mxu0
      %v1834 = vadd.f32 0.0, %v1833
      %v1835 = vpop.f32.mrf.mxu0
      %1836 = vdwg.mxu0
      %1837 = vrot.lane.b32.xlu0 %v1253, 88
      %v1838 = vpop.permute.xlu0 %1837
      %v1841 = vsel %vm1256, %v1754, 0
      %1843 = vmatprep.subr.mxu0 0.0
      %1844 = vmatpush1.msra.mxu0 0.0
      %1845 = vmatprep.subr.mxu0 0.0
      %1846 = vmatpush1.msra.mxu0 0.0
      %1847 = vmatprep.subr.mxu0 0.0
      %1848 = vmatpush1.msra.mxu0 0.0
      %1849 = vmatprep.subr.mxu0 0.0
      %1850 = vmatpush1.msra.mxu0 0.0
      %1851 = vmatprep.subr.mxu0 0.0
      %1852 = vmatpush1.msra.mxu0 0.0
      %1853 = vmatprep.subr.mxu0 0.0
      %1854 = vmatpush1.msra.mxu0 0.0
      %1855 = vmatprep.subr.mxu0 0.0
      %1856 = vmatpush1.msra.mxu0 0.0
      %1857 = vmatprep.subr.mxu0 0.0
      %1858 = vmatpush1.msra.mxu0 0.0
      %1859 = vmatprep.subr.mxu0 0.0
      %1860 = vmatpush1.msra.mxu0 0.0
      %1861 = vmatprep.subr.mxu0 0.0
      %1862 = vmatpush1.msra.mxu0 0.0
      %1863 = vmatprep.subr.mxu0 0.0
      %1864 = vmatpush1.msra.mxu0 0.0
      %1865 = vmatprep.subr.mxu0 0.0
      %1866 = vmatpush1.msra.mxu0 0.0
      %1867 = vmatprep.subr.mxu0 0.0
      %1868 = vmatpush1.msra.mxu0 0.0
      %1869 = vmatprep.subr.mxu0 0.0
      %1870 = vmatpush1.msra.mxu0 0.0
      %1871 = vmatprep.subr.mxu0 0.0
      %1872 = vmatpush1.msra.mxu0 0.0
      %1873 = vmatprep.subr.mxu0 0.0
      %1874 = vmatpush1.msra.mxu0 %v1838
      %1875 = vmatprep.subr.mxu0 0.0
      %1876 = vmatpush2.msra.mxu0 0.0
      %1877 = vmatprep.subr.mxu0 0.0
      %1878 = vmatpush2.msra.mxu0 0.0
      %1879 = vmatprep.subr.mxu0 0.0
      %1880 = vmatpush2.msra.mxu0 0.0
      %1881 = vmatprep.subr.mxu0 0.0
      %1882 = vmatpush2.msra.mxu0 0.0
      %1883 = vmatprep.subr.mxu0 0.0
      %1884 = vmatpush2.msra.mxu0 0.0
      %1885 = vmatprep.subr.mxu0 0.0
      %1886 = vmatpush2.msra.mxu0 0.0
      %1887 = vmatprep.subr.mxu0 0.0
      %1888 = vmatpush2.msra.mxu0 0.0
      %1889 = vmatprep.subr.mxu0 0.0
      %1890 = vmatpush2.msra.mxu0 0.0
      %1891 = vmatprep.subr.mxu0 0.0
      %1892 = vmatpush2.msra.mxu0 0.0
      %1893 = vmatprep.subr.mxu0 0.0
      %1894 = vmatpush2.msra.mxu0 0.0
      %1895 = vmatprep.subr.mxu0 0.0
      %1896 = vmatpush2.msra.mxu0 0.0
      %1897 = vmatprep.subr.mxu0 0.0
      %1898 = vmatpush2.msra.mxu0 0.0
      %1899 = vmatprep.subr.mxu0 0.0
      %1900 = vmatpush2.msra.mxu0 0.0
      %1901 = vmatprep.subr.mxu0 0.0
      %1902 = vmatpush2.msra.mxu0 0.0
      %1903 = vmatprep.subr.mxu0 0.0
      %1904 = vmatpush2.msra.mxu0 0.0
      %1905 = vmatprep.subr.mxu0 0.0
      %1906 = vmatpush2.msra.mxu0 0.0
      %1907 = vmatprep.mubr.f32.mxu0 0.0
      %1908 = vmatmul.mubr.f32.gmra.mxu0 %v1841
      %v1909 = vpop.f32.mrf.mxu0
      %v1910 = vadd.f32 0.0, %v1909
      %v1911 = vpop.f32.mrf.mxu0
      %1912 = vdwg.mxu0
      %v1913 = vrcp.pop %v1757
      %v1914 = vrcp.pop %v1760
      %v1915 = vmul.f32 %v1834, %v1913
      %v1916 = vmul.f32 %v1910, %v1914
      %v1918 = vsel %vm1256, %v1915, 0
      %v1921 = vsel %vm1256, %v1916, 0
      %1923 = vmatprep.subr.mxu0 0.0
      %1924 = vmatpush1.msra.mxu0 0.0
      %1925 = vmatprep.subr.mxu0 0.0
      %1926 = vmatpush1.msra.mxu0 0.0
      %1927 = vmatprep.subr.mxu0 0.0
      %1928 = vmatpush1.msra.mxu0 0.0
      %1929 = vmatprep.subr.mxu0 0.0
      %1930 = vmatpush1.msra.mxu0 0.0
      %1931 = vmatprep.subr.mxu0 0.0
      %1932 = vmatpush1.msra.mxu0 0.0
      %1933 = vmatprep.subr.mxu0 0.0
      %1934 = vmatpush1.msra.mxu0 0.0
      %1935 = vmatprep.subr.mxu0 0.0
      %1936 = vmatpush1.msra.mxu0 0.0
      %1937 = vmatprep.subr.mxu0 0.0
      %1938 = vmatpush1.msra.mxu0 0.0
      %1939 = vmatprep.subr.mxu0 0.0
      %1940 = vmatpush1.msra.mxu0 0.0
      %1941 = vmatprep.subr.mxu0 0.0
      %1942 = vmatpush1.msra.mxu0 0.0
      %1943 = vmatprep.subr.mxu0 0.0
      %1944 = vmatpush1.msra.mxu0 0.0
      %1945 = vmatprep.subr.mxu0 0.0
      %1946 = vmatpush1.msra.mxu0 0.0
      %1947 = vmatprep.subr.mxu0 0.0
      %1948 = vmatpush1.msra.mxu0 0.0
      %1949 = vmatprep.subr.mxu0 0.0
      %1950 = vmatpush1.msra.mxu0 0.0
      %1951 = vmatprep.subr.mxu0 0.0
      %1952 = vmatpush1.msra.mxu0 0.0
      %1953 = vmatprep.subr.mxu0 0.0
      %1954 = vmatpush1.msra.mxu0 %v1083
      %1955 = vmatprep.subr.mxu0 0.0
      %1956 = vmatpush2.msra.mxu0 0.0
      %1957 = vmatprep.subr.mxu0 0.0
      %1958 = vmatpush2.msra.mxu0 0.0
      %1959 = vmatprep.subr.mxu0 0.0
      %1960 = vmatpush2.msra.mxu0 0.0
      %1961 = vmatprep.subr.mxu0 0.0
      %1962 = vmatpush2.msra.mxu0 0.0
      %1963 = vmatprep.subr.mxu0 0.0
      %1964 = vmatpush2.msra.mxu0 0.0
      %1965 = vmatprep.subr.mxu0 0.0
      %1966 = vmatpush2.msra.mxu0 0.0
      %1967 = vmatprep.subr.mxu0 0.0
      %1968 = vmatpush2.msra.mxu0 0.0
      %1969 = vmatprep.subr.mxu0 0.0
      %1970 = vmatpush2.msra.mxu0 0.0
      %1971 = vmatprep.subr.mxu0 0.0
      %1972 = vmatpush2.msra.mxu0 0.0
      %1973 = vmatprep.subr.mxu0 0.0
      %1974 = vmatpush2.msra.mxu0 0.0
      %1975 = vmatprep.subr.mxu0 0.0
      %1976 = vmatpush2.msra.mxu0 0.0
      %1977 = vmatprep.subr.mxu0 0.0
      %1978 = vmatpush2.msra.mxu0 0.0
      %1979 = vmatprep.subr.mxu0 0.0
      %1980 = vmatpush2.msra.mxu0 0.0
      %1981 = vmatprep.subr.mxu0 0.0
      %1982 = vmatpush2.msra.mxu0 0.0
      %1983 = vmatprep.subr.mxu0 0.0
      %1984 = vmatpush2.msra.mxu0 0.0
      %1985 = vmatprep.subr.mxu0 0.0
      %1986 = vmatpush2.msra.mxu0 0.0
      %1987 = vmatprep.mubr.f32.mxu0 0.0
      %1988 = vmatmul.mubr.f32.gmra.mxu0 %v1918
      %v1989 = vpop.f32.mrf.mxu0
      %v1990 = vadd.f32 0.0, %v1989
      %v1991 = vpop.f32.mrf.mxu0
      %1992 = vmatprep.mubr.f32.mxu0 0.0
      %1993 = vmatmul.mubr.f32.gmra.mxu0 %v1921
      %v1994 = vpop.f32.mrf.mxu0
      %v1995 = vadd.f32 0.0, %v1994
      %v1996 = vpop.f32.mrf.mxu0
      %1997 = vdwg.mxu0
      %v1999 = vsel %vm1256, %v1583, 0
      %v2002 = vsel %vm1256, %v1584, 0
      %2004 = vmatprep.subr.mxu0 0.0
      %2005 = vmatpush1.msra.mxu0 0.0
      %2006 = vmatprep.subr.mxu0 0.0
      %2007 = vmatpush1.msra.mxu0 0.0
      %2008 = vmatprep.subr.mxu0 0.0
      %2009 = vmatpush1.msra.mxu0 0.0
      %2010 = vmatprep.subr.mxu0 0.0
      %2011 = vmatpush1.msra.mxu0 0.0
      %2012 = vmatprep.subr.mxu0 0.0
      %2013 = vmatpush1.msra.mxu0 0.0
      %2014 = vmatprep.subr.mxu0 0.0
      %2015 = vmatpush1.msra.mxu0 0.0
      %2016 = vmatprep.subr.mxu0 0.0
      %2017 = vmatpush1.msra.mxu0 0.0
      %2018 = vmatprep.subr.mxu0 0.0
      %2019 = vmatpush1.msra.mxu0 0.0
      %2020 = vmatprep.subr.mxu0 0.0
      %2021 = vmatpush1.msra.mxu0 0.0
      %2022 = vmatprep.subr.mxu0 0.0
      %2023 = vmatpush1.msra.mxu0 0.0
      %2024 = vmatprep.subr.mxu0 0.0
      %2025 = vmatpush1.msra.mxu0 0.0
      %2026 = vmatprep.subr.mxu0 0.0
      %2027 = vmatpush1.msra.mxu0 0.0
      %2028 = vmatprep.subr.mxu0 0.0
      %2029 = vmatpush1.msra.mxu0 0.0
      %2030 = vmatprep.subr.mxu0 0.0
      %2031 = vmatpush1.msra.mxu0 0.0
      %2032 = vmatprep.subr.mxu0 0.0
      %2033 = vmatpush1.msra.mxu0 0.0
      %2034 = vmatprep.subr.mxu0 0.0
      %2035 = vmatpush1.msra.mxu0 %v1082
      %2036 = vmatprep.subr.mxu0 0.0
      %2037 = vmatpush2.msra.mxu0 0.0
      %2038 = vmatprep.subr.mxu0 0.0
      %2039 = vmatpush2.msra.mxu0 0.0
      %2040 = vmatprep.subr.mxu0 0.0
      %2041 = vmatpush2.msra.mxu0 0.0
      %2042 = vmatprep.subr.mxu0 0.0
      %2043 = vmatpush2.msra.mxu0 0.0
      %2044 = vmatprep.subr.mxu0 0.0
      %2045 = vmatpush2.msra.mxu0 0.0
      %2046 = vmatprep.subr.mxu0 0.0
      %2047 = vmatpush2.msra.mxu0 0.0
      %2048 = vmatprep.subr.mxu0 0.0
      %2049 = vmatpush2.msra.mxu0 0.0
      %2050 = vmatprep.subr.mxu0 0.0
      %2051 = vmatpush2.msra.mxu0 0.0
      %2052 = vmatprep.subr.mxu0 0.0
      %2053 = vmatpush2.msra.mxu0 0.0
      %2054 = vmatprep.subr.mxu0 0.0
      %2055 = vmatpush2.msra.mxu0 0.0
      %2056 = vmatprep.subr.mxu0 0.0
      %2057 = vmatpush2.msra.mxu0 0.0
      %2058 = vmatprep.subr.mxu0 0.0
      %2059 = vmatpush2.msra.mxu0 0.0
      %2060 = vmatprep.subr.mxu0 0.0
      %2061 = vmatpush2.msra.mxu0 0.0
      %2062 = vmatprep.subr.mxu0 0.0
      %2063 = vmatpush2.msra.mxu0 0.0
      %2064 = vmatprep.subr.mxu0 0.0
      %2065 = vmatpush2.msra.mxu0 0.0
      %2066 = vmatprep.subr.mxu0 0.0
      %2067 = vmatpush2.msra.mxu0 0.0
      %2068 = vmatprep.mubr.f32.mxu0 0.0
      %2069 = vmatmul.mubr.f32.gmra.mxu0 %v1999
      %v2070 = vpop.f32.mrf.mxu0
      %v2071 = vadd.f32 %v1990, %v2070
      %v2072 = vpop.f32.mrf.mxu0
      %2073 = vmatprep.mubr.f32.mxu0 0.0
      %2074 = vmatmul.mubr.f32.gmra.mxu0 %v2002
      %v2075 = vpop.f32.mrf.mxu0
      %v2076 = vadd.f32 %v1995, %v2075
      %v2077 = vpop.f32.mrf.mxu0
      %2078 = vdwg.mxu0
      %2079 = vrot.lane.b32.xlu0 %v1167, 112
      %v2080 = vpop.permute.xlu0 %2079
      %2081 = vrot.lane.b32.xlu0 %v1248, 112
      %v2082 = vpop.permute.xlu0 %2081
      %v2083 = vsel %vm1256, %v2080, 0
      %v2085 = vsel %vm1256, %v2082, 0
      %2087 = vmatprep.subr.mxu0 0.0
      %2088 = vmatpush1.xpose.msra.mxu0 0.0
      %2089 = vmatprep.subr.mxu0 0.0
      %2090 = vmatpush1.xpose.msra.mxu0 0.0
      %2091 = vmatprep.subr.mxu0 0.0
      %2092 = vmatpush1.xpose.msra.mxu0 0.0
      %2093 = vmatprep.subr.mxu0 0.0
      %2094 = vmatpush1.xpose.msra.mxu0 0.0
      %2095 = vmatprep.subr.mxu0 0.0
      %2096 = vmatpush1.xpose.msra.mxu0 0.0
      %2097 = vmatprep.subr.mxu0 0.0
      %2098 = vmatpush1.xpose.msra.mxu0 0.0
      %2099 = vmatprep.subr.mxu0 0.0
      %2100 = vmatpush1.xpose.msra.mxu0 0.0
      %2101 = vmatprep.subr.mxu0 0.0
      %2102 = vmatpush1.xpose.msra.mxu0 0.0
      %2103 = vmatprep.subr.mxu0 0.0
      %2104 = vmatpush1.xpose.msra.mxu0 0.0
      %2105 = vmatprep.subr.mxu0 0.0
      %2106 = vmatpush1.xpose.msra.mxu0 0.0
      %2107 = vmatprep.subr.mxu0 0.0
      %2108 = vmatpush1.xpose.msra.mxu0 0.0
      %2109 = vmatprep.subr.mxu0 0.0
      %2110 = vmatpush1.xpose.msra.mxu0 0.0
      %2111 = vmatprep.subr.mxu0 0.0
      %2112 = vmatpush1.xpose.msra.mxu0 0.0
      %2113 = vmatprep.subr.mxu0 0.0
      %2114 = vmatpush1.xpose.msra.mxu0 0.0
      %2115 = vmatprep.subr.mxu0 0.0
      %2116 = vmatpush1.xpose.msra.mxu0 0.0
      %2117 = vmatprep.subr.mxu0 0.0
      %2118 = vmatpush1.xpose.msra.mxu0 %v2085
      %2119 = vmatprep.subr.mxu0 0.0
      %2120 = vmatpush2.xpose.msra.mxu0 0.0
      %2121 = vmatprep.subr.mxu0 0.0
      %2122 = vmatpush2.xpose.msra.mxu0 0.0
      %2123 = vmatprep.subr.mxu0 0.0
      %2124 = vmatpush2.xpose.msra.mxu0 0.0
      %2125 = vmatprep.subr.mxu0 0.0
      %2126 = vmatpush2.xpose.msra.mxu0 0.0
      %2127 = vmatprep.subr.mxu0 0.0
      %2128 = vmatpush2.xpose.msra.mxu0 0.0
      %2129 = vmatprep.subr.mxu0 0.0
      %2130 = vmatpush2.xpose.msra.mxu0 0.0
      %2131 = vmatprep.subr.mxu0 0.0
      %2132 = vmatpush2.xpose.msra.mxu0 0.0
      %2133 = vmatprep.subr.mxu0 0.0
      %2134 = vmatpush2.xpose.msra.mxu0 0.0
      %2135 = vmatprep.subr.mxu0 0.0
      %2136 = vmatpush2.xpose.msra.mxu0 0.0
      %2137 = vmatprep.subr.mxu0 0.0
      %2138 = vmatpush2.xpose.msra.mxu0 0.0
      %2139 = vmatprep.subr.mxu0 0.0
      %2140 = vmatpush2.xpose.msra.mxu0 0.0
      %2141 = vmatprep.subr.mxu0 0.0
      %2142 = vmatpush2.xpose.msra.mxu0 0.0
      %2143 = vmatprep.subr.mxu0 0.0
      %2144 = vmatpush2.xpose.msra.mxu0 0.0
      %2145 = vmatprep.subr.mxu0 0.0
      %2146 = vmatpush2.xpose.msra.mxu0 0.0
      %2147 = vmatprep.subr.mxu0 0.0
      %2148 = vmatpush2.xpose.msra.mxu0 0.0
      %2149 = vmatprep.subr.mxu0 0.0
      %2150 = vmatpush2.xpose.msra.mxu0 0.0
      %2151 = vmatprep.mubr.f32.mxu0 0.0
      %2152 = vmatmul.mubr.f32.gmra.mxu0 %v2083
      %v2153 = vpop.f32.mrf.mxu0
      %v2154 = vadd.f32 0.0, %v2153
      %v2155 = vpop.f32.mrf.mxu0
      %2156 = vdwg.mxu0
      %2157 = vrot.lane.b32.xlu0 %v1172, 112
      %v2158 = vpop.permute.xlu0 %2157
      %2159 = vrot.lane.b32.xlu0 %v1253, 112
      %v2160 = vpop.permute.xlu0 %2159
      %v2161 = vsel %vm1256, %v2158, 0
      %v2163 = vsel %vm1256, %v2160, 0
      %2165 = vmatprep.subr.mxu0 0.0
      %2166 = vmatpush1.xpose.msra.mxu0 0.0
      %2167 = vmatprep.subr.mxu0 0.0
      %2168 = vmatpush1.xpose.msra.mxu0 0.0
      %2169 = vmatprep.subr.mxu0 0.0
      %2170 = vmatpush1.xpose.msra.mxu0 0.0
      %2171 = vmatprep.subr.mxu0 0.0
      %2172 = vmatpush1.xpose.msra.mxu0 0.0
      %2173 = vmatprep.subr.mxu0 0.0
      %2174 = vmatpush1.xpose.msra.mxu0 0.0
      %2175 = vmatprep.subr.mxu0 0.0
      %2176 = vmatpush1.xpose.msra.mxu0 0.0
      %2177 = vmatprep.subr.mxu0 0.0
      %2178 = vmatpush1.xpose.msra.mxu0 0.0
      %2179 = vmatprep.subr.mxu0 0.0
      %2180 = vmatpush1.xpose.msra.mxu0 0.0
      %2181 = vmatprep.subr.mxu0 0.0
      %2182 = vmatpush1.xpose.msra.mxu0 0.0
      %2183 = vmatprep.subr.mxu0 0.0
      %2184 = vmatpush1.xpose.msra.mxu0 0.0
      %2185 = vmatprep.subr.mxu0 0.0
      %2186 = vmatpush1.xpose.msra.mxu0 0.0
      %2187 = vmatprep.subr.mxu0 0.0
      %2188 = vmatpush1.xpose.msra.mxu0 0.0
      %2189 = vmatprep.subr.mxu0 0.0
      %2190 = vmatpush1.xpose.msra.mxu0 0.0
      %2191 = vmatprep.subr.mxu0 0.0
      %2192 = vmatpush1.xpose.msra.mxu0 0.0
      %2193 = vmatprep.subr.mxu0 0.0
      %2194 = vmatpush1.xpose.msra.mxu0 0.0
      %2195 = vmatprep.subr.mxu0 0.0
      %2196 = vmatpush1.xpose.msra.mxu0 %v2163
      %2197 = vmatprep.subr.mxu0 0.0
      %2198 = vmatpush2.xpose.msra.mxu0 0.0
      %2199 = vmatprep.subr.mxu0 0.0
      %2200 = vmatpush2.xpose.msra.mxu0 0.0
      %2201 = vmatprep.subr.mxu0 0.0
      %2202 = vmatpush2.xpose.msra.mxu0 0.0
      %2203 = vmatprep.subr.mxu0 0.0
      %2204 = vmatpush2.xpose.msra.mxu0 0.0
      %2205 = vmatprep.subr.mxu0 0.0
      %2206 = vmatpush2.xpose.msra.mxu0 0.0
      %2207 = vmatprep.subr.mxu0 0.0
      %2208 = vmatpush2.xpose.msra.mxu0 0.0
      %2209 = vmatprep.subr.mxu0 0.0
      %2210 = vmatpush2.xpose.msra.mxu0 0.0
      %2211 = vmatprep.subr.mxu0 0.0
      %2212 = vmatpush2.xpose.msra.mxu0 0.0
      %2213 = vmatprep.subr.mxu0 0.0
      %2214 = vmatpush2.xpose.msra.mxu0 0.0
      %2215 = vmatprep.subr.mxu0 0.0
      %2216 = vmatpush2.xpose.msra.mxu0 0.0
      %2217 = vmatprep.subr.mxu0 0.0
      %2218 = vmatpush2.xpose.msra.mxu0 0.0
      %2219 = vmatprep.subr.mxu0 0.0
      %2220 = vmatpush2.xpose.msra.mxu0 0.0
      %2221 = vmatprep.subr.mxu0 0.0
      %2222 = vmatpush2.xpose.msra.mxu0 0.0
      %2223 = vmatprep.subr.mxu0 0.0
      %2224 = vmatpush2.xpose.msra.mxu0 0.0
      %2225 = vmatprep.subr.mxu0 0.0
      %2226 = vmatpush2.xpose.msra.mxu0 0.0
      %2227 = vmatprep.subr.mxu0 0.0
      %2228 = vmatpush2.xpose.msra.mxu0 0.0
      %2229 = vmatprep.mubr.f32.mxu0 0.0
      %2230 = vmatmul.mubr.f32.gmra.mxu0 %v2161
      %v2231 = vpop.f32.mrf.mxu0
      %v2232 = vadd.f32 0.0, %v2231
      %v2233 = vpop.f32.mrf.mxu0
      %2234 = vdwg.mxu0
      %v2235 = vmul.f32 %v2154, 0.35355338
      %v2236 = vmul.f32 %v2232, 0.35355338
      %v2237 = vsel %vm1256, %v2235, -inf
      %2238 = vmax.xlane.f32.xlu0 %v2237
      %v2239 = vpop.xlane.xlu0 %2238
      %v2240 = vsel %vm1256, %v2236, -inf
      %2241 = vmax.xlane.f32.xlu0 %v2240
      %v2242 = vpop.xlane.xlu0 %2241
      %v2243 = vsub.f32 %v2235, %v2239
      %v2244 = vsub.f32 %v2236, %v2242
      %v2245 = vmul.f32 %v2243, 1.442695
      %v2246 = vpow.pop %v2245
      %v2247 = vmul.f32 %v2244, 1.442695
      %v2248 = vpow.pop %v2247
      %v2249 = vsel %vm1256, %v2246, 0.0
      %2250 = vadd.xlane.f32.xlu0 %v2249
      %v2251 = vpop.xlane.xlu0 %2250
      %v2252 = vsel %vm1256, %v2248, 0.0
      %2253 = vadd.xlane.f32.xlu0 %v2252
      %v2254 = vpop.xlane.xlu0 %2253
      %2255 = vrot.lane.b32.xlu0 %v1248, 80
      %v2256 = vpop.permute.xlu0 %2255
      %v2259 = vsel %vm1256, %v2246, 0
      %2261 = vmatprep.subr.mxu0 0.0
      %2262 = vmatpush1.msra.mxu0 0.0
      %2263 = vmatprep.subr.mxu0 0.0
      %2264 = vmatpush1.msra.mxu0 0.0
      %2265 = vmatprep.subr.mxu0 0.0
      %2266 = vmatpush1.msra.mxu0 0.0
      %2267 = vmatprep.subr.mxu0 0.0
      %2268 = vmatpush1.msra.mxu0 0.0
      %2269 = vmatprep.subr.mxu0 0.0
      %2270 = vmatpush1.msra.mxu0 0.0
      %2271 = vmatprep.subr.mxu0 0.0
      %2272 = vmatpush1.msra.mxu0 0.0
      %2273 = vmatprep.subr.mxu0 0.0
      %2274 = vmatpush1.msra.mxu0 0.0
      %2275 = vmatprep.subr.mxu0 0.0
      %2276 = vmatpush1.msra.mxu0 0.0
      %2277 = vmatprep.subr.mxu0 0.0
      %2278 = vmatpush1.msra.mxu0 0.0
      %2279 = vmatprep.subr.mxu0 0.0
      %2280 = vmatpush1.msra.mxu0 0.0
      %2281 = vmatprep.subr.mxu0 0.0
      %2282 = vmatpush1.msra.mxu0 0.0
      %2283 = vmatprep.subr.mxu0 0.0
      %2284 = vmatpush1.msra.mxu0 0.0
      %2285 = vmatprep.subr.mxu0 0.0
      %2286 = vmatpush1.msra.mxu0 0.0
      %2287 = vmatprep.subr.mxu0 0.0
      %2288 = vmatpush1.msra.mxu0 0.0
      %2289 = vmatprep.subr.mxu0 0.0
      %2290 = vmatpush1.msra.mxu0 0.0
      %2291 = vmatprep.subr.mxu0 0.0
      %2292 = vmatpush1.msra.mxu0 %v2256
      %2293 = vmatprep.subr.mxu0 0.0
      %2294 = vmatpush2.msra.mxu0 0.0
      %2295 = vmatprep.subr.mxu0 0.0
      %2296 = vmatpush2.msra.mxu0 0.0
      %2297 = vmatprep.subr.mxu0 0.0
      %2298 = vmatpush2.msra.mxu0 0.0
      %2299 = vmatprep.subr.mxu0 0.0
      %2300 = vmatpush2.msra.mxu0 0.0
      %2301 = vmatprep.subr.mxu0 0.0
      %2302 = vmatpush2.msra.mxu0 0.0
      %2303 = vmatprep.subr.mxu0 0.0
      %2304 = vmatpush2.msra.mxu0 0.0
      %2305 = vmatprep.subr.mxu0 0.0
      %2306 = vmatpush2.msra.mxu0 0.0
      %2307 = vmatprep.subr.mxu0 0.0
      %2308 = vmatpush2.msra.mxu0 0.0
      %2309 = vmatprep.subr.mxu0 0.0
      %2310 = vmatpush2.msra.mxu0 0.0
      %2311 = vmatprep.subr.mxu0 0.0
      %2312 = vmatpush2.msra.mxu0 0.0
      %2313 = vmatprep.subr.mxu0 0.0
      %2314 = vmatpush2.msra.mxu0 0.0
      %2315 = vmatprep.subr.mxu0 0.0
      %2316 = vmatpush2.msra.mxu0 0.0
      %2317 = vmatprep.subr.mxu0 0.0
      %2318 = vmatpush2.msra.mxu0 0.0
      %2319 = vmatprep.subr.mxu0 0.0
      %2320 = vmatpush2.msra.mxu0 0.0
      %2321 = vmatprep.subr.mxu0 0.0
      %2322 = vmatpush2.msra.mxu0 0.0
      %2323 = vmatprep.subr.mxu0 0.0
      %2324 = vmatpush2.msra.mxu0 0.0
      %2325 = vmatprep.mubr.f32.mxu0 0.0
      %2326 = vmatmul.mubr.f32.gmra.mxu0 %v2259
      %v2327 = vpop.f32.mrf.mxu0
      %v2328 = vadd.f32 0.0, %v2327
      %v2329 = vpop.f32.mrf.mxu0
      %2330 = vdwg.mxu0
      %2331 = vrot.lane.b32.xlu0 %v1253, 80
      %v2332 = vpop.permute.xlu0 %2331
      %v2335 = vsel %vm1256, %v2248, 0
      %2337 = vmatprep.subr.mxu0 0.0
      %2338 = vmatpush1.msra.mxu0 0.0
      %2339 = vmatprep.subr.mxu0 0.0
      %2340 = vmatpush1.msra.mxu0 0.0
      %2341 = vmatprep.subr.mxu0 0.0
      %2342 = vmatpush1.msra.mxu0 0.0
      %2343 = vmatprep.subr.mxu0 0.0
      %2344 = vmatpush1.msra.mxu0 0.0
      %2345 = vmatprep.subr.mxu0 0.0
      %2346 = vmatpush1.msra.mxu0 0.0
      %2347 = vmatprep.subr.mxu0 0.0
      %2348 = vmatpush1.msra.mxu0 0.0
      %2349 = vmatprep.subr.mxu0 0.0
      %2350 = vmatpush1.msra.mxu0 0.0
      %2351 = vmatprep.subr.mxu0 0.0
      %2352 = vmatpush1.msra.mxu0 0.0
      %2353 = vmatprep.subr.mxu0 0.0
      %2354 = vmatpush1.msra.mxu0 0.0
      %2355 = vmatprep.subr.mxu0 0.0
      %2356 = vmatpush1.msra.mxu0 0.0
      %2357 = vmatprep.subr.mxu0 0.0
      %2358 = vmatpush1.msra.mxu0 0.0
      %2359 = vmatprep.subr.mxu0 0.0
      %2360 = vmatpush1.msra.mxu0 0.0
      %2361 = vmatprep.subr.mxu0 0.0
      %2362 = vmatpush1.msra.mxu0 0.0
      %2363 = vmatprep.subr.mxu0 0.0
      %2364 = vmatpush1.msra.mxu0 0.0
      %2365 = vmatprep.subr.mxu0 0.0
      %2366 = vmatpush1.msra.mxu0 0.0
      %2367 = vmatprep.subr.mxu0 0.0
      %2368 = vmatpush1.msra.mxu0 %v2332
      %2369 = vmatprep.subr.mxu0 0.0
      %2370 = vmatpush2.msra.mxu0 0.0
      %2371 = vmatprep.subr.mxu0 0.0
      %2372 = vmatpush2.msra.mxu0 0.0
      %2373 = vmatprep.subr.mxu0 0.0
      %2374 = vmatpush2.msra.mxu0 0.0
      %2375 = vmatprep.subr.mxu0 0.0
      %2376 = vmatpush2.msra.mxu0 0.0
      %2377 = vmatprep.subr.mxu0 0.0
      %2378 = vmatpush2.msra.mxu0 0.0
      %2379 = vmatprep.subr.mxu0 0.0
      %2380 = vmatpush2.msra.mxu0 0.0
      %2381 = vmatprep.subr.mxu0 0.0
      %2382 = vmatpush2.msra.mxu0 0.0
      %2383 = vmatprep.subr.mxu0 0.0
      %2384 = vmatpush2.msra.mxu0 0.0
      %2385 = vmatprep.subr.mxu0 0.0
      %2386 = vmatpush2.msra.mxu0 0.0
      %2387 = vmatprep.subr.mxu0 0.0
      %2388 = vmatpush2.msra.mxu0 0.0
      %2389 = vmatprep.subr.mxu0 0.0
      %2390 = vmatpush2.msra.mxu0 0.0
      %2391 = vmatprep.subr.mxu0 0.0
      %2392 = vmatpush2.msra.mxu0 0.0
      %2393 = vmatprep.subr.mxu0 0.0
      %2394 = vmatpush2.msra.mxu0 0.0
      %2395 = vmatprep.subr.mxu0 0.0
      %2396 = vmatpush2.msra.mxu0 0.0
      %2397 = vmatprep.subr.mxu0 0.0
      %2398 = vmatpush2.msra.mxu0 0.0
      %2399 = vmatprep.subr.mxu0 0.0
      %2400 = vmatpush2.msra.mxu0 0.0
      %2401 = vmatprep.mubr.f32.mxu0 0.0
      %2402 = vmatmul.mubr.f32.gmra.mxu0 %v2335
      %v2403 = vpop.f32.mrf.mxu0
      %v2404 = vadd.f32 0.0, %v2403
      %v2405 = vpop.f32.mrf.mxu0
      %2406 = vdwg.mxu0
      %v2407 = vrcp.pop %v2251
      %v2408 = vrcp.pop %v2254
      %v2409 = vmul.f32 %v2328, %v2407
      %v2410 = vmul.f32 %v2404, %v2408
      %v2412 = vsel %vm1256, %v2409, 0
      %v2415 = vsel %vm1256, %v2410, 0
      %2417 = vmatprep.subr.mxu0 0.0
      %2418 = vmatpush1.msra.mxu0 0.0
      %2419 = vmatprep.subr.mxu0 0.0
      %2420 = vmatpush1.msra.mxu0 0.0
      %2421 = vmatprep.subr.mxu0 0.0
      %2422 = vmatpush1.msra.mxu0 0.0
      %2423 = vmatprep.subr.mxu0 0.0
      %2424 = vmatpush1.msra.mxu0 0.0
      %2425 = vmatprep.subr.mxu0 0.0
      %2426 = vmatpush1.msra.mxu0 0.0
      %2427 = vmatprep.subr.mxu0 0.0
      %2428 = vmatpush1.msra.mxu0 0.0
      %2429 = vmatprep.subr.mxu0 0.0
      %2430 = vmatpush1.msra.mxu0 0.0
      %2431 = vmatprep.subr.mxu0 0.0
      %2432 = vmatpush1.msra.mxu0 0.0
      %2433 = vmatprep.subr.mxu0 0.0
      %2434 = vmatpush1.msra.mxu0 0.0
      %2435 = vmatprep.subr.mxu0 0.0
      %2436 = vmatpush1.msra.mxu0 0.0
      %2437 = vmatprep.subr.mxu0 0.0
      %2438 = vmatpush1.msra.mxu0 0.0
      %2439 = vmatprep.subr.mxu0 0.0
      %2440 = vmatpush1.msra.mxu0 0.0
      %2441 = vmatprep.subr.mxu0 0.0
      %2442 = vmatpush1.msra.mxu0 0.0
      %2443 = vmatprep.subr.mxu0 0.0
      %2444 = vmatpush1.msra.mxu0 0.0
      %2445 = vmatprep.subr.mxu0 0.0
      %2446 = vmatpush1.msra.mxu0 0.0
      %2447 = vmatprep.subr.mxu0 0.0
      %2448 = vmatpush1.msra.mxu0 %v1084
      %2449 = vmatprep.subr.mxu0 0.0
      %2450 = vmatpush2.msra.mxu0 0.0
      %2451 = vmatprep.subr.mxu0 0.0
      %2452 = vmatpush2.msra.mxu0 0.0
      %2453 = vmatprep.subr.mxu0 0.0
      %2454 = vmatpush2.msra.mxu0 0.0
      %2455 = vmatprep.subr.mxu0 0.0
      %2456 = vmatpush2.msra.mxu0 0.0
      %2457 = vmatprep.subr.mxu0 0.0
      %2458 = vmatpush2.msra.mxu0 0.0
      %2459 = vmatprep.subr.mxu0 0.0
      %2460 = vmatpush2.msra.mxu0 0.0
      %2461 = vmatprep.subr.mxu0 0.0
      %2462 = vmatpush2.msra.mxu0 0.0
      %2463 = vmatprep.subr.mxu0 0.0
      %2464 = vmatpush2.msra.mxu0 0.0
      %2465 = vmatprep.subr.mxu0 0.0
      %2466 = vmatpush2.msra.mxu0 0.0
      %2467 = vmatprep.subr.mxu0 0.0
      %2468 = vmatpush2.msra.mxu0 0.0
      %2469 = vmatprep.subr.mxu0 0.0
      %2470 = vmatpush2.msra.mxu0 0.0
      %2471 = vmatprep.subr.mxu0 0.0
      %2472 = vmatpush2.msra.mxu0 0.0
      %2473 = vmatprep.subr.mxu0 0.0
      %2474 = vmatpush2.msra.mxu0 0.0
      %2475 = vmatprep.subr.mxu0 0.0
      %2476 = vmatpush2.msra.mxu0 0.0
      %2477 = vmatprep.subr.mxu0 0.0
      %2478 = vmatpush2.msra.mxu0 0.0
      %2479 = vmatprep.subr.mxu0 0.0
      %2480 = vmatpush2.msra.mxu0 0.0
      %2481 = vmatprep.mubr.f32.mxu0 0.0
      %2482 = vmatmul.mubr.f32.gmra.mxu0 %v2412
      %v2483 = vpop.f32.mrf.mxu0
      %v2484 = vadd.f32 0.0, %v2483
      %v2485 = vpop.f32.mrf.mxu0
      %2486 = vmatprep.mubr.f32.mxu0 0.0
      %2487 = vmatmul.mubr.f32.gmra.mxu0 %v2415
      %v2488 = vpop.f32.mrf.mxu0
      %v2489 = vadd.f32 0.0, %v2488
      %v2490 = vpop.f32.mrf.mxu0
      %2491 = vdwg.mxu0
      %v2492 = vadd.f32 %v2071, %v2484
      %v2493 = vadd.f32 %v2076, %v2489
      %2494 = vrot.lane.b32.xlu0 %v1167, 104
      %v2495 = vpop.permute.xlu0 %2494
      %2496 = vrot.lane.b32.xlu0 %v1248, 104
      %v2497 = vpop.permute.xlu0 %2496
      %v2498 = vsel %vm1256, %v2495, 0
      %v2500 = vsel %vm1256, %v2497, 0
      %2502 = vmatprep.subr.mxu0 0.0
      %2503 = vmatpush1.xpose.msra.mxu0 0.0
      %2504 = vmatprep.subr.mxu0 0.0
      %2505 = vmatpush1.xpose.msra.mxu0 0.0
      %2506 = vmatprep.subr.mxu0 0.0
      %2507 = vmatpush1.xpose.msra.mxu0 0.0
      %2508 = vmatprep.subr.mxu0 0.0
      %2509 = vmatpush1.xpose.msra.mxu0 0.0
      %2510 = vmatprep.subr.mxu0 0.0
      %2511 = vmatpush1.xpose.msra.mxu0 0.0
      %2512 = vmatprep.subr.mxu0 0.0
      %2513 = vmatpush1.xpose.msra.mxu0 0.0
      %2514 = vmatprep.subr.mxu0 0.0
      %2515 = vmatpush1.xpose.msra.mxu0 0.0
      %2516 = vmatprep.subr.mxu0 0.0
      %2517 = vmatpush1.xpose.msra.mxu0 0.0
      %2518 = vmatprep.subr.mxu0 0.0
      %2519 = vmatpush1.xpose.msra.mxu0 0.0
      %2520 = vmatprep.subr.mxu0 0.0
      %2521 = vmatpush1.xpose.msra.mxu0 0.0
      %2522 = vmatprep.subr.mxu0 0.0
      %2523 = vmatpush1.xpose.msra.mxu0 0.0
      %2524 = vmatprep.subr.mxu0 0.0
      %2525 = vmatpush1.xpose.msra.mxu0 0.0
      %2526 = vmatprep.subr.mxu0 0.0
      %2527 = vmatpush1.xpose.msra.mxu0 0.0
      %2528 = vmatprep.subr.mxu0 0.0
      %2529 = vmatpush1.xpose.msra.mxu0 0.0
      %2530 = vmatprep.subr.mxu0 0.0
      %2531 = vmatpush1.xpose.msra.mxu0 0.0
      %2532 = vmatprep.subr.mxu0 0.0
      %2533 = vmatpush1.xpose.msra.mxu0 %v2500
      %2534 = vmatprep.subr.mxu0 0.0
      %2535 = vmatpush2.xpose.msra.mxu0 0.0
      %2536 = vmatprep.subr.mxu0 0.0
      %2537 = vmatpush2.xpose.msra.mxu0 0.0
      %2538 = vmatprep.subr.mxu0 0.0
      %2539 = vmatpush2.xpose.msra.mxu0 0.0
      %2540 = vmatprep.subr.mxu0 0.0
      %2541 = vmatpush2.xpose.msra.mxu0 0.0
      %2542 = vmatprep.subr.mxu0 0.0
      %2543 = vmatpush2.xpose.msra.mxu0 0.0
      %2544 = vmatprep.subr.mxu0 0.0
      %2545 = vmatpush2.xpose.msra.mxu0 0.0
      %2546 = vmatprep.subr.mxu0 0.0
      %2547 = vmatpush2.xpose.msra.mxu0 0.0
      %2548 = vmatprep.subr.mxu0 0.0
      %2549 = vmatpush2.xpose.msra.mxu0 0.0
      %2550 = vmatprep.subr.mxu0 0.0
      %2551 = vmatpush2.xpose.msra.mxu0 0.0
      %2552 = vmatprep.subr.mxu0 0.0
      %2553 = vmatpush2.xpose.msra.mxu0 0.0
      %2554 = vmatprep.subr.mxu0 0.0
      %2555 = vmatpush2.xpose.msra.mxu0 0.0
      %2556 = vmatprep.subr.mxu0 0.0
      %2557 = vmatpush2.xpose.msra.mxu0 0.0
      %2558 = vmatprep.subr.mxu0 0.0
      %2559 = vmatpush2.xpose.msra.mxu0 0.0
      %2560 = vmatprep.subr.mxu0 0.0
      %2561 = vmatpush2.xpose.msra.mxu0 0.0
      %2562 = vmatprep.subr.mxu0 0.0
      %2563 = vmatpush2.xpose.msra.mxu0 0.0
      %2564 = vmatprep.subr.mxu0 0.0
      %2565 = vmatpush2.xpose.msra.mxu0 0.0
      %2566 = vmatprep.mubr.f32.mxu0 0.0
      %2567 = vmatmul.mubr.f32.gmra.mxu0 %v2498
      %v2568 = vpop.f32.mrf.mxu0
      %v2569 = vadd.f32 0.0, %v2568
      %v2570 = vpop.f32.mrf.mxu0
      %2571 = vdwg.mxu0
      %2572 = vrot.lane.b32.xlu0 %v1172, 104
      %v2573 = vpop.permute.xlu0 %2572
      %2574 = vrot.lane.b32.xlu0 %v1253, 104
      %v2575 = vpop.permute.xlu0 %2574
      %v2576 = vsel %vm1256, %v2573, 0
      %v2578 = vsel %vm1256, %v2575, 0
      %2580 = vmatprep.subr.mxu0 0.0
      %2581 = vmatpush1.xpose.msra.mxu0 0.0
      %2582 = vmatprep.subr.mxu0 0.0
      %2583 = vmatpush1.xpose.msra.mxu0 0.0
      %2584 = vmatprep.subr.mxu0 0.0
      %2585 = vmatpush1.xpose.msra.mxu0 0.0
      %2586 = vmatprep.subr.mxu0 0.0
      %2587 = vmatpush1.xpose.msra.mxu0 0.0
      %2588 = vmatprep.subr.mxu0 0.0
      %2589 = vmatpush1.xpose.msra.mxu0 0.0
      %2590 = vmatprep.subr.mxu0 0.0
      %2591 = vmatpush1.xpose.msra.mxu0 0.0
      %2592 = vmatprep.subr.mxu0 0.0
      %2593 = vmatpush1.xpose.msra.mxu0 0.0
      %2594 = vmatprep.subr.mxu0 0.0
      %2595 = vmatpush1.xpose.msra.mxu0 0.0
      %2596 = vmatprep.subr.mxu0 0.0
      %2597 = vmatpush1.xpose.msra.mxu0 0.0
      %2598 = vmatprep.subr.mxu0 0.0
      %2599 = vmatpush1.xpose.msra.mxu0 0.0
      %2600 = vmatprep.subr.mxu0 0.0
      %2601 = vmatpush1.xpose.msra.mxu0 0.0
      %2602 = vmatprep.subr.mxu0 0.0
      %2603 = vmatpush1.xpose.msra.mxu0 0.0
      %2604 = vmatprep.subr.mxu0 0.0
      %2605 = vmatpush1.xpose.msra.mxu0 0.0
      %2606 = vmatprep.subr.mxu0 0.0
      %2607 = vmatpush1.xpose.msra.mxu0 0.0
      %2608 = vmatprep.subr.mxu0 0.0
      %2609 = vmatpush1.xpose.msra.mxu0 0.0
      %2610 = vmatprep.subr.mxu0 0.0
      %2611 = vmatpush1.xpose.msra.mxu0 %v2578
      %2612 = vmatprep.subr.mxu0 0.0
      %2613 = vmatpush2.xpose.msra.mxu0 0.0
      %2614 = vmatprep.subr.mxu0 0.0
      %2615 = vmatpush2.xpose.msra.mxu0 0.0
      %2616 = vmatprep.subr.mxu0 0.0
      %2617 = vmatpush2.xpose.msra.mxu0 0.0
      %2618 = vmatprep.subr.mxu0 0.0
      %2619 = vmatpush2.xpose.msra.mxu0 0.0
      %2620 = vmatprep.subr.mxu0 0.0
      %2621 = vmatpush2.xpose.msra.mxu0 0.0
      %2622 = vmatprep.subr.mxu0 0.0
      %2623 = vmatpush2.xpose.msra.mxu0 0.0
      %2624 = vmatprep.subr.mxu0 0.0
      %2625 = vmatpush2.xpose.msra.mxu0 0.0
      %2626 = vmatprep.subr.mxu0 0.0
      %2627 = vmatpush2.xpose.msra.mxu0 0.0
      %2628 = vmatprep.subr.mxu0 0.0
      %2629 = vmatpush2.xpose.msra.mxu0 0.0
      %2630 = vmatprep.subr.mxu0 0.0
      %2631 = vmatpush2.xpose.msra.mxu0 0.0
      %2632 = vmatprep.subr.mxu0 0.0
      %2633 = vmatpush2.xpose.msra.mxu0 0.0
      %2634 = vmatprep.subr.mxu0 0.0
      %2635 = vmatpush2.xpose.msra.mxu0 0.0
      %2636 = vmatprep.subr.mxu0 0.0
      %2637 = vmatpush2.xpose.msra.mxu0 0.0
      %2638 = vmatprep.subr.mxu0 0.0
      %2639 = vmatpush2.xpose.msra.mxu0 0.0
      %2640 = vmatprep.subr.mxu0 0.0
      %2641 = vmatpush2.xpose.msra.mxu0 0.0
      %2642 = vmatprep.subr.mxu0 0.0
      %2643 = vmatpush2.xpose.msra.mxu0 0.0
      %2644 = vmatprep.mubr.f32.mxu0 0.0
      %2645 = vmatmul.mubr.f32.gmra.mxu0 %v2576
      %v2646 = vpop.f32.mrf.mxu0
      %v2647 = vadd.f32 0.0, %v2646
      %v2648 = vpop.f32.mrf.mxu0
      %2649 = vdwg.mxu0
      %v2650 = vmul.f32 %v2569, 0.35355338
      %v2651 = vmul.f32 %v2647, 0.35355338
      %v2652 = vsel %vm1256, %v2650, -inf
      %2653 = vmax.xlane.f32.xlu0 %v2652
      %v2654 = vpop.xlane.xlu0 %2653
      %v2655 = vsel %vm1256, %v2651, -inf
      %2656 = vmax.xlane.f32.xlu0 %v2655
      %v2657 = vpop.xlane.xlu0 %2656
      %v2658 = vsub.f32 %v2650, %v2654
      %v2659 = vsub.f32 %v2651, %v2657
      %v2660 = vmul.f32 %v2658, 1.442695
      %v2661 = vpow.pop %v2660
      %v2662 = vmul.f32 %v2659, 1.442695
      %v2663 = vpow.pop %v2662
      %v2664 = vsel %vm1256, %v2661, 0.0
      %2665 = vadd.xlane.f32.xlu0 %v2664
      %v2666 = vpop.xlane.xlu0 %2665
      %v2667 = vsel %vm1256, %v2663, 0.0
      %2668 = vadd.xlane.f32.xlu0 %v2667
      %v2669 = vpop.xlane.xlu0 %2668
      %2670 = vrot.lane.b32.xlu0 %v1248, 72
      %v2671 = vpop.permute.xlu0 %2670
      %v2674 = vsel %vm1256, %v2661, 0
      %2676 = vmatprep.subr.mxu0 0.0
      %2677 = vmatpush1.msra.mxu0 0.0
      %2678 = vmatprep.subr.mxu0 0.0
      %2679 = vmatpush1.msra.mxu0 0.0
      %2680 = vmatprep.subr.mxu0 0.0
      %2681 = vmatpush1.msra.mxu0 0.0
      %2682 = vmatprep.subr.mxu0 0.0
      %2683 = vmatpush1.msra.mxu0 0.0
      %2684 = vmatprep.subr.mxu0 0.0
      %2685 = vmatpush1.msra.mxu0 0.0
      %2686 = vmatprep.subr.mxu0 0.0
      %2687 = vmatpush1.msra.mxu0 0.0
      %2688 = vmatprep.subr.mxu0 0.0
      %2689 = vmatpush1.msra.mxu0 0.0
      %2690 = vmatprep.subr.mxu0 0.0
      %2691 = vmatpush1.msra.mxu0 0.0
      %2692 = vmatprep.subr.mxu0 0.0
      %2693 = vmatpush1.msra.mxu0 0.0
      %2694 = vmatprep.subr.mxu0 0.0
      %2695 = vmatpush1.msra.mxu0 0.0
      %2696 = vmatprep.subr.mxu0 0.0
      %2697 = vmatpush1.msra.mxu0 0.0
      %2698 = vmatprep.subr.mxu0 0.0
      %2699 = vmatpush1.msra.mxu0 0.0
      %2700 = vmatprep.subr.mxu0 0.0
      %2701 = vmatpush1.msra.mxu0 0.0
      %2702 = vmatprep.subr.mxu0 0.0
      %2703 = vmatpush1.msra.mxu0 0.0
      %2704 = vmatprep.subr.mxu0 0.0
      %2705 = vmatpush1.msra.mxu0 0.0
      %2706 = vmatprep.subr.mxu0 0.0
      %2707 = vmatpush1.msra.mxu0 %v2671
      %2708 = vmatprep.subr.mxu0 0.0
      %2709 = vmatpush2.msra.mxu0 0.0
      %2710 = vmatprep.subr.mxu0 0.0
      %2711 = vmatpush2.msra.mxu0 0.0
      %2712 = vmatprep.subr.mxu0 0.0
      %2713 = vmatpush2.msra.mxu0 0.0
      %2714 = vmatprep.subr.mxu0 0.0
      %2715 = vmatpush2.msra.mxu0 0.0
      %2716 = vmatprep.subr.mxu0 0.0
      %2717 = vmatpush2.msra.mxu0 0.0
      %2718 = vmatprep.subr.mxu0 0.0
      %2719 = vmatpush2.msra.mxu0 0.0
      %2720 = vmatprep.subr.mxu0 0.0
      %2721 = vmatpush2.msra.mxu0 0.0
      %2722 = vmatprep.subr.mxu0 0.0
      %2723 = vmatpush2.msra.mxu0 0.0
      %2724 = vmatprep.subr.mxu0 0.0
      %2725 = vmatpush2.msra.mxu0 0.0
      %2726 = vmatprep.subr.mxu0 0.0
      %2727 = vmatpush2.msra.mxu0 0.0
      %2728 = vmatprep.subr.mxu0 0.0
      %2729 = vmatpush2.msra.mxu0 0.0
      %2730 = vmatprep.subr.mxu0 0.0
      %2731 = vmatpush2.msra.mxu0 0.0
      %2732 = vmatprep.subr.mxu0 0.0
      %2733 = vmatpush2.msra.mxu0 0.0
      %2734 = vmatprep.subr.mxu0 0.0
      %2735 = vmatpush2.msra.mxu0 0.0
      %2736 = vmatprep.subr.mxu0 0.0
      %2737 = vmatpush2.msra.mxu0 0.0
      %2738 = vmatprep.subr.mxu0 0.0
      %2739 = vmatpush2.msra.mxu0 0.0
      %2740 = vmatprep.mubr.f32.mxu0 0.0
      %2741 = vmatmul.mubr.f32.gmra.mxu0 %v2674
      %v2742 = vpop.f32.mrf.mxu0
      %v2743 = vadd.f32 0.0, %v2742
      %v2744 = vpop.f32.mrf.mxu0
      %2745 = vdwg.mxu0
      %2746 = vrot.lane.b32.xlu0 %v1253, 72
      %v2747 = vpop.permute.xlu0 %2746
      %v2750 = vsel %vm1256, %v2663, 0
      %2752 = vmatprep.subr.mxu0 0.0
      %2753 = vmatpush1.msra.mxu0 0.0
      %2754 = vmatprep.subr.mxu0 0.0
      %2755 = vmatpush1.msra.mxu0 0.0
      %2756 = vmatprep.subr.mxu0 0.0
      %2757 = vmatpush1.msra.mxu0 0.0
      %2758 = vmatprep.subr.mxu0 0.0
      %2759 = vmatpush1.msra.mxu0 0.0
      %2760 = vmatprep.subr.mxu0 0.0
      %2761 = vmatpush1.msra.mxu0 0.0
      %2762 = vmatprep.subr.mxu0 0.0
      %2763 = vmatpush1.msra.mxu0 0.0
      %2764 = vmatprep.subr.mxu0 0.0
      %2765 = vmatpush1.msra.mxu0 0.0
      %2766 = vmatprep.subr.mxu0 0.0
      %2767 = vmatpush1.msra.mxu0 0.0
      %2768 = vmatprep.subr.mxu0 0.0
      %2769 = vmatpush1.msra.mxu0 0.0
      %2770 = vmatprep.subr.mxu0 0.0
      %2771 = vmatpush1.msra.mxu0 0.0
      %2772 = vmatprep.subr.mxu0 0.0
      %2773 = vmatpush1.msra.mxu0 0.0
      %2774 = vmatprep.subr.mxu0 0.0
      %2775 = vmatpush1.msra.mxu0 0.0
      %2776 = vmatprep.subr.mxu0 0.0
      %2777 = vmatpush1.msra.mxu0 0.0
      %2778 = vmatprep.subr.mxu0 0.0
      %2779 = vmatpush1.msra.mxu0 0.0
      %2780 = vmatprep.subr.mxu0 0.0
      %2781 = vmatpush1.msra.mxu0 0.0
      %2782 = vmatprep.subr.mxu0 0.0
      %2783 = vmatpush1.msra.mxu0 %v2747
      %2784 = vmatprep.subr.mxu0 0.0
      %2785 = vmatpush2.msra.mxu0 0.0
      %2786 = vmatprep.subr.mxu0 0.0
      %2787 = vmatpush2.msra.mxu0 0.0
      %2788 = vmatprep.subr.mxu0 0.0
      %2789 = vmatpush2.msra.mxu0 0.0
      %2790 = vmatprep.subr.mxu0 0.0
      %2791 = vmatpush2.msra.mxu0 0.0
      %2792 = vmatprep.subr.mxu0 0.0
      %2793 = vmatpush2.msra.mxu0 0.0
      %2794 = vmatprep.subr.mxu0 0.0
      %2795 = vmatpush2.msra.mxu0 0.0
      %2796 = vmatprep.subr.mxu0 0.0
      %2797 = vmatpush2.msra.mxu0 0.0
      %2798 = vmatprep.subr.mxu0 0.0
      %2799 = vmatpush2.msra.mxu0 0.0
      %2800 = vmatprep.subr.mxu0 0.0
      %2801 = vmatpush2.msra.mxu0 0.0
      %2802 = vmatprep.subr.mxu0 0.0
      %2803 = vmatpush2.msra.mxu0 0.0
      %2804 = vmatprep.subr.mxu0 0.0
      %2805 = vmatpush2.msra.mxu0 0.0
      %2806 = vmatprep.subr.mxu0 0.0
      %2807 = vmatpush2.msra.mxu0 0.0
      %2808 = vmatprep.subr.mxu0 0.0
      %2809 = vmatpush2.msra.mxu0 0.0
      %2810 = vmatprep.subr.mxu0 0.0
      %2811 = vmatpush2.msra.mxu0 0.0
      %2812 = vmatprep.subr.mxu0 0.0
      %2813 = vmatpush2.msra.mxu0 0.0
      %2814 = vmatprep.subr.mxu0 0.0
      %2815 = vmatpush2.msra.mxu0 0.0
      %2816 = vmatprep.mubr.f32.mxu0 0.0
      %2817 = vmatmul.mubr.f32.gmra.mxu0 %v2750
      %v2818 = vpop.f32.mrf.mxu0
      %v2819 = vadd.f32 0.0, %v2818
      %v2820 = vpop.f32.mrf.mxu0
      %2821 = vdwg.mxu0
      %v2822 = vrcp.pop %v2666
      %v2823 = vrcp.pop %v2669
      %v2824 = vmul.f32 %v2743, %v2822
      %v2825 = vmul.f32 %v2819, %v2823
      %v2827 = vsel %vm1256, %v2824, 0
      %v2830 = vsel %vm1256, %v2825, 0
      %2832 = vmatprep.subr.mxu0 0.0
      %2833 = vmatpush1.msra.mxu0 0.0
      %2834 = vmatprep.subr.mxu0 0.0
      %2835 = vmatpush1.msra.mxu0 0.0
      %2836 = vmatprep.subr.mxu0 0.0
      %2837 = vmatpush1.msra.mxu0 0.0
      %2838 = vmatprep.subr.mxu0 0.0
      %2839 = vmatpush1.msra.mxu0 0.0
      %2840 = vmatprep.subr.mxu0 0.0
      %2841 = vmatpush1.msra.mxu0 0.0
      %2842 = vmatprep.subr.mxu0 0.0
      %2843 = vmatpush1.msra.mxu0 0.0
      %2844 = vmatprep.subr.mxu0 0.0
      %2845 = vmatpush1.msra.mxu0 0.0
      %2846 = vmatprep.subr.mxu0 0.0
      %2847 = vmatpush1.msra.mxu0 0.0
      %2848 = vmatprep.subr.mxu0 0.0
      %2849 = vmatpush1.msra.mxu0 0.0
      %2850 = vmatprep.subr.mxu0 0.0
      %2851 = vmatpush1.msra.mxu0 0.0
      %2852 = vmatprep.subr.mxu0 0.0
      %2853 = vmatpush1.msra.mxu0 0.0
      %2854 = vmatprep.subr.mxu0 0.0
      %2855 = vmatpush1.msra.mxu0 0.0
      %2856 = vmatprep.subr.mxu0 0.0
      %2857 = vmatpush1.msra.mxu0 0.0
      %2858 = vmatprep.subr.mxu0 0.0
      %2859 = vmatpush1.msra.mxu0 0.0
      %2860 = vmatprep.subr.mxu0 0.0
      %2861 = vmatpush1.msra.mxu0 0.0
      %2862 = vmatprep.subr.mxu0 0.0
      %2863 = vmatpush1.msra.mxu0 %v1085
      %2864 = vmatprep.subr.mxu0 0.0
      %2865 = vmatpush2.msra.mxu0 0.0
      %2866 = vmatprep.subr.mxu0 0.0
      %2867 = vmatpush2.msra.mxu0 0.0
      %2868 = vmatprep.subr.mxu0 0.0
      %2869 = vmatpush2.msra.mxu0 0.0
      %2870 = vmatprep.subr.mxu0 0.0
      %2871 = vmatpush2.msra.mxu0 0.0
      %2872 = vmatprep.subr.mxu0 0.0
      %2873 = vmatpush2.msra.mxu0 0.0
      %2874 = vmatprep.subr.mxu0 0.0
      %2875 = vmatpush2.msra.mxu0 0.0
      %2876 = vmatprep.subr.mxu0 0.0
      %2877 = vmatpush2.msra.mxu0 0.0
      %2878 = vmatprep.subr.mxu0 0.0
      %2879 = vmatpush2.msra.mxu0 0.0
      %2880 = vmatprep.subr.mxu0 0.0
      %2881 = vmatpush2.msra.mxu0 0.0
      %2882 = vmatprep.subr.mxu0 0.0
      %2883 = vmatpush2.msra.mxu0 0.0
      %2884 = vmatprep.subr.mxu0 0.0
      %2885 = vmatpush2.msra.mxu0 0.0
      %2886 = vmatprep.subr.mxu0 0.0
      %2887 = vmatpush2.msra.mxu0 0.0
      %2888 = vmatprep.subr.mxu0 0.0
      %2889 = vmatpush2.msra.mxu0 0.0
      %2890 = vmatprep.subr.mxu0 0.0
      %2891 = vmatpush2.msra.mxu0 0.0
      %2892 = vmatprep.subr.mxu0 0.0
      %2893 = vmatpush2.msra.mxu0 0.0
      %2894 = vmatprep.subr.mxu0 0.0
      %2895 = vmatpush2.msra.mxu0 0.0
      %2896 = vmatprep.mubr.f32.mxu0 0.0
      %2897 = vmatmul.mubr.f32.gmra.mxu0 %v2827
      %v2898 = vpop.f32.mrf.mxu0
      %v2899 = vadd.f32 0.0, %v2898
      %v2900 = vpop.f32.mrf.mxu0
      %2901 = vmatprep.mubr.f32.mxu0 0.0
      %2902 = vmatmul.mubr.f32.gmra.mxu0 %v2830
      %v2903 = vpop.f32.mrf.mxu0
      %v2904 = vadd.f32 0.0, %v2903
      %v2905 = vpop.f32.mrf.mxu0
      %2906 = vdwg.mxu0
      %v2907 = vadd.f32 %v2492, %v2899
      %v2908 = vadd.f32 %v2493, %v2904
      %v2910 = vlaneseq
      %v2911 = vshrl.u32 %v2910, 7
      %v2912 = vsub.s32 0, %v2911
      %v2913 = vrot.slane %v1086, %v2912
      %v2915 = vadd.f32 %v2907, %v2913
      %v2916 = vadd.f32 %v2908, %v2913
      %v2917 = vadd.f32 %v1068, %v2915
      %v2918 = vadd.f32 %v1069, %v2916
      %v2919 = vld [vmem:[%s1003] sm:$0x1]
      %v2920 = vld [vmem:[%s1006] sm:$0x1]
      %v2921 = vsel %vm1093, %v2917, 0.0
      %2922 = vadd.xlane.f32.xlu0 %v2921
      %v2923 = vpop.xlane.xlu0 %2922
      %v2924 = vsel %vm1093, %v2918, 0.0
      %2925 = vadd.xlane.f32.xlu0 %v2924
      %v2926 = vpop.xlane.xlu0 %2925
      %v2927 = vrcp.pop 32.0
      %v2928 = vmul.f32 %v2923, %v2927
      %v2929 = vmul.f32 %v2926, %v2927
      %v2930 = vsub.f32 %v2917, %v2928
      %v2931 = vsub.f32 %v2918, %v2929
      %v2932 = vmul.f32 %v2930, %v2930
      %v2933 = vmul.f32 %v2931, %v2931
      %v2934 = vsel %vm1093, %v2932, 0.0
      %2935 = vadd.xlane.f32.xlu0 %v2934
      %v2936 = vpop.xlane.xlu0 %2935
      %v2937 = vsel %vm1093, %v2933, 0.0
      %2938 = vadd.xlane.f32.xlu0 %v2937
      %v2939 = vpop.xlane.xlu0 %2938
      %v2940 = vmul.f32 %v2936, %v2927
      %v2941 = vmul.f32 %v2939, %v2927
      %v2942 = vadd.f32 %v2940, 1e-05
      %v2943 = vadd.f32 %v2941, 1e-05
      %v2944 = vrsqrt.pop %v2942
      %v2945 = vrsqrt.pop %v2943
      %v2946 = vmul.f32 %v2930, %v2944
      %v2947 = vmul.f32 %v2931, %v2945
      %v2949 = vlaneseq
      %v2950 = vshrl.u32 %v2949, 7
      %v2951 = vsub.s32 0, %v2950
      %v2952 = vrot.slane %v2919, %v2951
      %v2954 = vmul.f32 %v2946, %v2952
      %v2955 = vmul.f32 %v2947, %v2952
      %v2957 = vlaneseq
      %v2958 = vshrl.u32 %v2957, 7
      %v2959 = vsub.s32 0, %v2958
      %v2960 = vrot.slane %v2920, %v2959
      %v2962 = vadd.f32 %v2954, %v2960
      %v2963 = vadd.f32 %v2955, %v2960
      %v2964 = vld [vmem:[%s1011] sm:$0xff]
      %v2965 = vld [vmem:[%s1011 + $0x8] sm:$0xff]
      %v2966 = vld [vmem:[%s1011 + $0x10] sm:$0xff]
      %v2967 = vld [vmem:[%s1011 + $0x18] sm:$0xff]
      %v2968 = vld [vmem:[%s1014] sm:$0x1]
      %v2969 = vld [vmem:[%s1019] sm:$0xff]
      %v2970 = vld [vmem:[%s1019 + $0x8] sm:$0xff]
      %v2971 = vld [vmem:[%s1019 + $0x10] sm:$0xff]
      %v2972 = vld [vmem:[%s1019 + $0x18] sm:$0xff]
      %v2973 = vld [vmem:[%s1022] sm:$0x1]
      %v2974 = vld [vmem:[%s1027] sm:$0xff]
      %v2975 = vld [vmem:[%s1027 + $0x8] sm:$0xff]
      %v2976 = vld [vmem:[%s1027 + $0x10] sm:$0xff]
      %v2977 = vld [vmem:[%s1027 + $0x18] sm:$0xff]
      %v2978 = vld [vmem:[%s1030] sm:$0x1]
      %v2980 = vlaneseq
      %v2981 = vshrl.u32 %v2980, 7
      %v2982 = vsub.s32 0, %v2981
      %v2983 = vrot.slane %v2968, %v2982
      %v2986 = vsel %vm1093, %v2962, 0
      %v2989 = vsel %vm1093, %v2963, 0
      %2991 = vmatprep.subr.mxu0 0.0
      %2992 = vmatpush1.msra.mxu0 0.0
      %2993 = vmatprep.subr.mxu0 0.0
      %2994 = vmatpush1.msra.mxu0 0.0
      %2995 = vmatprep.subr.mxu0 0.0
      %2996 = vmatpush1.msra.mxu0 0.0
      %2997 = vmatprep.subr.mxu0 0.0
      %2998 = vmatpush1.msra.mxu0 0.0
      %2999 = vmatprep.subr.mxu0 0.0
      %3000 = vmatpush1.msra.mxu0 0.0
      %3001 = vmatprep.subr.mxu0 0.0
      %3002 = vmatpush1.msra.mxu0 0.0
      %3003 = vmatprep.subr.mxu0 0.0
      %3004 = vmatpush1.msra.mxu0 0.0
      %3005 = vmatprep.subr.mxu0 0.0
      %3006 = vmatpush1.msra.mxu0 0.0
      %3007 = vmatprep.subr.mxu0 0.0
      %3008 = vmatpush1.msra.mxu0 0.0
      %3009 = vmatprep.subr.mxu0 0.0
      %3010 = vmatpush1.msra.mxu0 0.0
      %3011 = vmatprep.subr.mxu0 0.0
      %3012 = vmatpush1.msra.mxu0 0.0
      %3013 = vmatprep.subr.mxu0 0.0
      %3014 = vmatpush1.msra.mxu0 0.0
      %3015 = vmatprep.subr.mxu0 0.0
      %3016 = vmatpush1.msra.mxu0 %v2967
      %3017 = vmatprep.subr.mxu0 0.0
      %3018 = vmatpush1.msra.mxu0 %v2966
      %3019 = vmatprep.subr.mxu0 0.0
      %3020 = vmatpush1.msra.mxu0 %v2965
      %3021 = vmatprep.subr.mxu0 0.0
      %3022 = vmatpush1.msra.mxu0 %v2964
      %3023 = vmatprep.subr.mxu0 0.0
      %3024 = vmatpush2.msra.mxu0 0.0
      %3025 = vmatprep.subr.mxu0 0.0
      %3026 = vmatpush2.msra.mxu0 0.0
      %3027 = vmatprep.subr.mxu0 0.0
      %3028 = vmatpush2.msra.mxu0 0.0
      %3029 = vmatprep.subr.mxu0 0.0
      %3030 = vmatpush2.msra.mxu0 0.0
      %3031 = vmatprep.subr.mxu0 0.0
      %3032 = vmatpush2.msra.mxu0 0.0
      %3033 = vmatprep.subr.mxu0 0.0
      %3034 = vmatpush2.msra.mxu0 0.0
      %3035 = vmatprep.subr.mxu0 0.0
      %3036 = vmatpush2.msra.mxu0 0.0
      %3037 = vmatprep.subr.mxu0 0.0
      %3038 = vmatpush2.msra.mxu0 0.0
      %3039 = vmatprep.subr.mxu0 0.0
      %3040 = vmatpush2.msra.mxu0 0.0
      %3041 = vmatprep.subr.mxu0 0.0
      %3042 = vmatpush2.msra.mxu0 0.0
      %3043 = vmatprep.subr.mxu0 0.0
      %3044 = vmatpush2.msra.mxu0 0.0
      %3045 = vmatprep.subr.mxu0 0.0
      %3046 = vmatpush2.msra.mxu0 0.0
      %3047 = vmatprep.subr.mxu0 0.0
      %3048 = vmatpush2.msra.mxu0 0.0
      %3049 = vmatprep.subr.mxu0 0.0
      %3050 = vmatpush2.msra.mxu0 0.0
      %3051 = vmatprep.subr.mxu0 0.0
      %3052 = vmatpush2.msra.mxu0 0.0
      %3053 = vmatprep.subr.mxu0 0.0
      %3054 = vmatpush2.msra.mxu0 0.0
      %3055 = vmatprep.mubr.f32.mxu0 0.0
      %3056 = vmatmul.mubr.f32.gmra.mxu0 %v2986
      %v3057 = vpop.f32.mrf.mxu0
      %v3058 = vadd.f32 %v2983, %v3057
      %v3059 = vpop.f32.mrf.mxu0
      %3060 = vmatprep.mubr.f32.mxu0 0.0
      %3061 = vmatmul.mubr.f32.gmra.mxu0 %v2989
      %v3062 = vpop.f32.mrf.mxu0
      %v3063 = vadd.f32 %v2983, %v3062
      %v3064 = vpop.f32.mrf.mxu0
      %3065 = vdwg.mxu0
      %v3067 = vlaneseq
      %v3068 = vshrl.u32 %v3067, 7
      %v3069 = vsub.s32 0, %v3068
      %v3070 = vrot.slane %v2973, %v3069
      %v3073 = vsel %vm1093, %v1070, 0
      %v3076 = vsel %vm1093, %v1071, 0
      %3078 = vmatprep.subr.mxu0 0.0
      %3079 = vmatpush1.msra.mxu0 0.0
      %3080 = vmatprep.subr.mxu0 0.0
      %3081 = vmatpush1.msra.mxu0 0.0
      %3082 = vmatprep.subr.mxu0 0.0
      %3083 = vmatpush1.msra.mxu0 0.0
      %3084 = vmatprep.subr.mxu0 0.0
      %3085 = vmatpush1.msra.mxu0 0.0
      %3086 = vmatprep.subr.mxu0 0.0
      %3087 = vmatpush1.msra.mxu0 0.0
      %3088 = vmatprep.subr.mxu0 0.0
      %3089 = vmatpush1.msra.mxu0 0.0
      %3090 = vmatprep.subr.mxu0 0.0
      %3091 = vmatpush1.msra.mxu0 0.0
      %3092 = vmatprep.subr.mxu0 0.0
      %3093 = vmatpush1.msra.mxu0 0.0
      %3094 = vmatprep.subr.mxu0 0.0
      %3095 = vmatpush1.msra.mxu0 0.0
      %3096 = vmatprep.subr.mxu0 0.0
      %3097 = vmatpush1.msra.mxu0 0.0
      %3098 = vmatprep.subr.mxu0 0.0
      %3099 = vmatpush1.msra.mxu0 0.0
      %3100 = vmatprep.subr.mxu0 0.0
      %3101 = vmatpush1.msra.mxu0 0.0
      %3102 = vmatprep.subr.mxu0 0.0
      %3103 = vmatpush1.msra.mxu0 %v2972
      %3104 = vmatprep.subr.mxu0 0.0
      %3105 = vmatpush1.msra.mxu0 %v2971
      %3106 = vmatprep.subr.mxu0 0.0
      %3107 = vmatpush1.msra.mxu0 %v2970
      %3108 = vmatprep.subr.mxu0 0.0
      %3109 = vmatpush1.msra.mxu0 %v2969
      %3110 = vmatprep.subr.mxu0 0.0
      %3111 = vmatpush2.msra.mxu0 0.0
      %3112 = vmatprep.subr.mxu0 0.0
      %3113 = vmatpush2.msra.mxu0 0.0
      %3114 = vmatprep.subr.mxu0 0.0
      %3115 = vmatpush2.msra.mxu0 0.0
      %3116 = vmatprep.subr.mxu0 0.0
      %3117 = vmatpush2.msra.mxu0 0.0
      %3118 = vmatprep.subr.mxu0 0.0
      %3119 = vmatpush2.msra.mxu0 0.0
      %3120 = vmatprep.subr.mxu0 0.0
      %3121 = vmatpush2.msra.mxu0 0.0
      %3122 = vmatprep.subr.mxu0 0.0
      %3123 = vmatpush2.msra.mxu0 0.0
      %3124 = vmatprep.subr.mxu0 0.0
      %3125 = vmatpush2.msra.mxu0 0.0
      %3126 = vmatprep.subr.mxu0 0.0
      %3127 = vmatpush2.msra.mxu0 0.0
      %3128 = vmatprep.subr.mxu0 0.0
      %3129 = vmatpush2.msra.mxu0 0.0
      %3130 = vmatprep.subr.mxu0 0.0
      %3131 = vmatpush2.msra.mxu0 0.0
      %3132 = vmatprep.subr.mxu0 0.0
      %3133 = vmatpush2.msra.mxu0 0.0
      %3134 = vmatprep.subr.mxu0 0.0
      %3135 = vmatpush2.msra.mxu0 0.0
      %3136 = vmatprep.subr.mxu0 0.0
      %3137 = vmatpush2.msra.mxu0 0.0
      %3138 = vmatprep.subr.mxu0 0.0
      %3139 = vmatpush2.msra.mxu0 0.0
      %3140 = vmatprep.subr.mxu0 0.0
      %3141 = vmatpush2.msra.mxu0 0.0
      %3142 = vmatprep.mubr.f32.mxu0 0.0
      %3143 = vmatmul.mubr.f32.gmra.mxu0 %v3073
      %v3144 = vpop.f32.mrf.mxu0
      %v3145 = vadd.f32 %v3070, %v3144
      %v3146 = vpop.f32.mrf.mxu0
      %3147 = vmatprep.mubr.f32.mxu0 0.0
      %3148 = vmatmul.mubr.f32.gmra.mxu0 %v3076
      %v3149 = vpop.f32.mrf.mxu0
      %v3150 = vadd.f32 %v3070, %v3149
      %v3151 = vpop.f32.mrf.mxu0
      %3152 = vdwg.mxu0
      %v3154 = vsel %vm1256, %v3058, 0
      %v3157 = vsel %vm1256, %v3145, 0
      %3159 = vmatprep.subr.mxu0 0.0
      %3160 = vmatpush1.xpose.msra.mxu0 0.0
      %3161 = vmatprep.subr.mxu0 0.0
      %3162 = vmatpush1.xpose.msra.mxu0 0.0
      %3163 = vmatprep.subr.mxu0 0.0
      %3164 = vmatpush1.xpose.msra.mxu0 0.0
      %3165 = vmatprep.subr.mxu0 0.0
      %3166 = vmatpush1.xpose.msra.mxu0 0.0
      %3167 = vmatprep.subr.mxu0 0.0
      %3168 = vmatpush1.xpose.msra.mxu0 0.0
      %3169 = vmatprep.subr.mxu0 0.0
      %3170 = vmatpush1.xpose.msra.mxu0 0.0
      %3171 = vmatprep.subr.mxu0 0.0
      %3172 = vmatpush1.xpose.msra.mxu0 0.0
      %3173 = vmatprep.subr.mxu0 0.0
      %3174 = vmatpush1.xpose.msra.mxu0 0.0
      %3175 = vmatprep.subr.mxu0 0.0
      %3176 = vmatpush1.xpose.msra.mxu0 0.0
      %3177 = vmatprep.subr.mxu0 0.0
      %3178 = vmatpush1.xpose.msra.mxu0 0.0
      %3179 = vmatprep.subr.mxu0 0.0
      %3180 = vmatpush1.xpose.msra.mxu0 0.0
      %3181 = vmatprep.subr.mxu0 0.0
      %3182 = vmatpush1.xpose.msra.mxu0 0.0
      %3183 = vmatprep.subr.mxu0 0.0
      %3184 = vmatpush1.xpose.msra.mxu0 0.0
      %3185 = vmatprep.subr.mxu0 0.0
      %3186 = vmatpush1.xpose.msra.mxu0 0.0
      %3187 = vmatprep.subr.mxu0 0.0
      %3188 = vmatpush1.xpose.msra.mxu0 0.0
      %3189 = vmatprep.subr.mxu0 0.0
      %3190 = vmatpush1.xpose.msra.mxu0 %v3157
      %3191 = vmatprep.subr.mxu0 0.0
      %3192 = vmatpush2.xpose.msra.mxu0 0.0
      %3193 = vmatprep.subr.mxu0 0.0
      %3194 = vmatpush2.xpose.msra.mxu0 0.0
      %3195 = vmatprep.subr.mxu0 0.0
      %3196 = vmatpush2.xpose.msra.mxu0 0.0
      %3197 = vmatprep.subr.mxu0 0.0
      %3198 = vmatpush2.xpose.msra.mxu0 0.0
      %3199 = vmatprep.subr.mxu0 0.0
      %3200 = vmatpush2.xpose.msra.mxu0 0.0
      %3201 = vmatprep.subr.mxu0 0.0
      %3202 = vmatpush2.xpose.msra.mxu0 0.0
      %3203 = vmatprep.subr.mxu0 0.0
      %3204 = vmatpush2.xpose.msra.mxu0 0.0
      %3205 = vmatprep.subr.mxu0 0.0
      %3206 = vmatpush2.xpose.msra.mxu0 0.0
      %3207 = vmatprep.subr.mxu0 0.0
      %3208 = vmatpush2.xpose.msra.mxu0 0.0
      %3209 = vmatprep.subr.mxu0 0.0
      %3210 = vmatpush2.xpose.msra.mxu0 0.0
      %3211 = vmatprep.subr.mxu0 0.0
      %3212 = vmatpush2.xpose.msra.mxu0 0.0
      %3213 = vmatprep.subr.mxu0 0.0
      %3214 = vmatpush2.xpose.msra.mxu0 0.0
      %3215 = vmatprep.subr.mxu0 0.0
      %3216 = vmatpush2.xpose.msra.mxu0 0.0
      %3217 = vmatprep.subr.mxu0 0.0
      %3218 = vmatpush2.xpose.msra.mxu0 0.0
      %3219 = vmatprep.subr.mxu0 0.0
      %3220 = vmatpush2.xpose.msra.mxu0 0.0
      %3221 = vmatprep.subr.mxu0 0.0
      %3222 = vmatpush2.xpose.msra.mxu0 0.0
      %3223 = vmatprep.mubr.f32.mxu0 0.0
      %3224 = vmatmul.mubr.f32.gmra.mxu0 %v3154
      %v3225 = vpop.f32.mrf.mxu0
      %v3226 = vadd.f32 0.0, %v3225
      %v3227 = vpop.f32.mrf.mxu0
      %3228 = vdwg.mxu0
      %v3230 = vsel %vm1256, %v3063, 0
      %v3233 = vsel %vm1256, %v3150, 0
      %3235 = vmatprep.subr.mxu0 0.0
      %3236 = vmatpush1.xpose.msra.mxu0 0.0
      %3237 = vmatprep.subr.mxu0 0.0
      %3238 = vmatpush1.xpose.msra.mxu0 0.0
      %3239 = vmatprep.subr.mxu0 0.0
      %3240 = vmatpush1.xpose.msra.mxu0 0.0
      %3241 = vmatprep.subr.mxu0 0.0
      %3242 = vmatpush1.xpose.msra.mxu0 0.0
      %3243 = vmatprep.subr.mxu0 0.0
      %3244 = vmatpush1.xpose.msra.mxu0 0.0
      %3245 = vmatprep.subr.mxu0 0.0
      %3246 = vmatpush1.xpose.msra.mxu0 0.0
      %3247 = vmatprep.subr.mxu0 0.0
      %3248 = vmatpush1.xpose.msra.mxu0 0.0
      %3249 = vmatprep.subr.mxu0 0.0
      %3250 = vmatpush1.xpose.msra.mxu0 0.0
      %3251 = vmatprep.subr.mxu0 0.0
      %3252 = vmatpush1.xpose.msra.mxu0 0.0
      %3253 = vmatprep.subr.mxu0 0.0
      %3254 = vmatpush1.xpose.msra.mxu0 0.0
      %3255 = vmatprep.subr.mxu0 0.0
      %3256 = vmatpush1.xpose.msra.mxu0 0.0
      %3257 = vmatprep.subr.mxu0 0.0
      %3258 = vmatpush1.xpose.msra.mxu0 0.0
      %3259 = vmatprep.subr.mxu0 0.0
      %3260 = vmatpush1.xpose.msra.mxu0 0.0
      %3261 = vmatprep.subr.mxu0 0.0
      %3262 = vmatpush1.xpose.msra.mxu0 0.0
      %3263 = vmatprep.subr.mxu0 0.0
      %3264 = vmatpush1.xpose.msra.mxu0 0.0
      %3265 = vmatprep.subr.mxu0 0.0
      %3266 = vmatpush1.xpose.msra.mxu0 %v3233
      %3267 = vmatprep.subr.mxu0 0.0
      %3268 = vmatpush2.xpose.msra.mxu0 0.0
      %3269 = vmatprep.subr.mxu0 0.0
      %3270 = vmatpush2.xpose.msra.mxu0 0.0
      %3271 = vmatprep.subr.mxu0 0.0
      %3272 = vmatpush2.xpose.msra.mxu0 0.0
      %3273 = vmatprep.subr.mxu0 0.0
      %3274 = vmatpush2.xpose.msra.mxu0 0.0
      %3275 = vmatprep.subr.mxu0 0.0
      %3276 = vmatpush2.xpose.msra.mxu0 0.0
      %3277 = vmatprep.subr.mxu0 0.0
      %3278 = vmatpush2.xpose.msra.mxu0 0.0
      %3279 = vmatprep.subr.mxu0 0.0
      %3280 = vmatpush2.xpose.msra.mxu0 0.0
      %3281 = vmatprep.subr.mxu0 0.0
      %3282 = vmatpush2.xpose.msra.mxu0 0.0
      %3283 = vmatprep.subr.mxu0 0.0
      %3284 = vmatpush2.xpose.msra.mxu0 0.0
      %3285 = vmatprep.subr.mxu0 0.0
      %3286 = vmatpush2.xpose.msra.mxu0 0.0
      %3287 = vmatprep.subr.mxu0 0.0
      %3288 = vmatpush2.xpose.msra.mxu0 0.0
      %3289 = vmatprep.subr.mxu0 0.0
      %3290 = vmatpush2.xpose.msra.mxu0 0.0
      %3291 = vmatprep.subr.mxu0 0.0
      %3292 = vmatpush2.xpose.msra.mxu0 0.0
      %3293 = vmatprep.subr.mxu0 0.0
      %3294 = vmatpush2.xpose.msra.mxu0 0.0
      %3295 = vmatprep.subr.mxu0 0.0
      %3296 = vmatpush2.xpose.msra.mxu0 0.0
      %3297 = vmatprep.subr.mxu0 0.0
      %3298 = vmatpush2.xpose.msra.mxu0 0.0
      %3299 = vmatprep.mubr.f32.mxu0 0.0
      %3300 = vmatmul.mubr.f32.gmra.mxu0 %v3230
      %v3301 = vpop.f32.mrf.mxu0
      %v3302 = vadd.f32 0.0, %v3301
      %v3303 = vpop.f32.mrf.mxu0
      %3304 = vdwg.mxu0
      %v3305 = vmul.f32 %v3226, 0.35355338
      %v3306 = vmul.f32 %v3302, 0.35355338
      %v3307 = vsel %vm1256, %v3305, -inf
      %3308 = vmax.xlane.f32.xlu0 %v3307
      %v3309 = vpop.xlane.xlu0 %3308
      %v3310 = vsel %vm1256, %v3306, -inf
      %3311 = vmax.xlane.f32.xlu0 %v3310
      %v3312 = vpop.xlane.xlu0 %3311
      %v3313 = vsub.f32 %v3305, %v3309
      %v3314 = vsub.f32 %v3306, %v3312
      %v3315 = vmul.f32 %v3313, 1.442695
      %v3316 = vpow.pop %v3315
      %v3317 = vmul.f32 %v3314, 1.442695
      %v3318 = vpow.pop %v3317
      %v3319 = vsel %vm1256, %v3316, 0.0
      %3320 = vadd.xlane.f32.xlu0 %v3319
      %v3321 = vpop.xlane.xlu0 %3320
      %v3322 = vsel %vm1256, %v3318, 0.0
      %3323 = vadd.xlane.f32.xlu0 %v3322
      %v3324 = vpop.xlane.xlu0 %3323
      %3325 = vrot.lane.b32.xlu0 %v3145, 96
      %v3326 = vpop.permute.xlu0 %3325
      %v3329 = vsel %vm1256, %v3316, 0
      %3331 = vmatprep.subr.mxu0 0.0
      %3332 = vmatpush1.msra.mxu0 0.0
      %3333 = vmatprep.subr.mxu0 0.0
      %3334 = vmatpush1.msra.mxu0 0.0
      %3335 = vmatprep.subr.mxu0 0.0
      %3336 = vmatpush1.msra.mxu0 0.0
      %3337 = vmatprep.subr.mxu0 0.0
      %3338 = vmatpush1.msra.mxu0 0.0
      %3339 = vmatprep.subr.mxu0 0.0
      %3340 = vmatpush1.msra.mxu0 0.0
      %3341 = vmatprep.subr.mxu0 0.0
      %3342 = vmatpush1.msra.mxu0 0.0
      %3343 = vmatprep.subr.mxu0 0.0
      %3344 = vmatpush1.msra.mxu0 0.0
      %3345 = vmatprep.subr.mxu0 0.0
      %3346 = vmatpush1.msra.mxu0 0.0
      %3347 = vmatprep.subr.mxu0 0.0
      %3348 = vmatpush1.msra.mxu0 0.0
      %3349 = vmatprep.subr.mxu0 0.0
      %3350 = vmatpush1.msra.mxu0 0.0
      %3351 = vmatprep.subr.mxu0 0.0
      %3352 = vmatpush1.msra.mxu0 0.0
      %3353 = vmatprep.subr.mxu0 0.0
      %3354 = vmatpush1.msra.mxu0 0.0
      %3355 = vmatprep.subr.mxu0 0.0
      %3356 = vmatpush1.msra.mxu0 0.0
      %3357 = vmatprep.subr.mxu0 0.0
      %3358 = vmatpush1.msra.mxu0 0.0
      %3359 = vmatprep.subr.mxu0 0.0
      %3360 = vmatpush1.msra.mxu0 0.0
      %3361 = vmatprep.subr.mxu0 0.0
      %3362 = vmatpush1.msra.mxu0 %v3326
      %3363 = vmatprep.subr.mxu0 0.0
      %3364 = vmatpush2.msra.mxu0 0.0
      %3365 = vmatprep.subr.mxu0 0.0
      %3366 = vmatpush2.msra.mxu0 0.0
      %3367 = vmatprep.subr.mxu0 0.0
      %3368 = vmatpush2.msra.mxu0 0.0
      %3369 = vmatprep.subr.mxu0 0.0
      %3370 = vmatpush2.msra.mxu0 0.0
      %3371 = vmatprep.subr.mxu0 0.0
      %3372 = vmatpush2.msra.mxu0 0.0
      %3373 = vmatprep.subr.mxu0 0.0
      %3374 = vmatpush2.msra.mxu0 0.0
      %3375 = vmatprep.subr.mxu0 0.0
      %3376 = vmatpush2.msra.mxu0 0.0
      %3377 = vmatprep.subr.mxu0 0.0
      %3378 = vmatpush2.msra.mxu0 0.0
      %3379 = vmatprep.subr.mxu0 0.0
      %3380 = vmatpush2.msra.mxu0 0.0
      %3381 = vmatprep.subr.mxu0 0.0
      %3382 = vmatpush2.msra.mxu0 0.0
      %3383 = vmatprep.subr.mxu0 0.0
      %3384 = vmatpush2.msra.mxu0 0.0
      %3385 = vmatprep.subr.mxu0 0.0
      %3386 = vmatpush2.msra.mxu0 0.0
      %3387 = vmatprep.subr.mxu0 0.0
      %3388 = vmatpush2.msra.mxu0 0.0
      %3389 = vmatprep.subr.mxu0 0.0
      %3390 = vmatpush2.msra.mxu0 0.0
      %3391 = vmatprep.subr.mxu0 0.0
      %3392 = vmatpush2.msra.mxu0 0.0
      %3393 = vmatprep.subr.mxu0 0.0
      %3394 = vmatpush2.msra.mxu0 0.0
      %3395 = vmatprep.mubr.f32.mxu0 0.0
      %3396 = vmatmul.mubr.f32.gmra.mxu0 %v3329
      %v3397 = vpop.f32.mrf.mxu0
      %v3398 = vadd.f32 0.0, %v3397
      %v3399 = vpop.f32.mrf.mxu0
      %3400 = vdwg.mxu0
      %3401 = vrot.lane.b32.xlu0 %v3150, 96
      %v3402 = vpop.permute.xlu0 %3401
      %v3405 = vsel %vm1256, %v3318, 0
      %3407 = vmatprep.subr.mxu0 0.0
      %3408 = vmatpush1.msra.mxu0 0.0
      %3409 = vmatprep.subr.mxu0 0.0
      %3410 = vmatpush1.msra.mxu0 0.0
      %3411 = vmatprep.subr.mxu0 0.0
      %3412 = vmatpush1.msra.mxu0 0.0
      %3413 = vmatprep.subr.mxu0 0.0
      %3414 = vmatpush1.msra.mxu0 0.0
      %3415 = vmatprep.subr.mxu0 0.0
      %3416 = vmatpush1.msra.mxu0 0.0
      %3417 = vmatprep.subr.mxu0 0.0
      %3418 = vmatpush1.msra.mxu0 0.0
      %3419 = vmatprep.subr.mxu0 0.0
      %3420 = vmatpush1.msra.mxu0 0.0
      %3421 = vmatprep.subr.mxu0 0.0
      %3422 = vmatpush1.msra.mxu0 0.0
      %3423 = vmatprep.subr.mxu0 0.0
      %3424 = vmatpush1.msra.mxu0 0.0
      %3425 = vmatprep.subr.mxu0 0.0
      %3426 = vmatpush1.msra.mxu0 0.0
      %3427 = vmatprep.subr.mxu0 0.0
      %3428 = vmatpush1.msra.mxu0 0.0
      %3429 = vmatprep.subr.mxu0 0.0
      %3430 = vmatpush1.msra.mxu0 0.0
      %3431 = vmatprep.subr.mxu0 0.0
      %3432 = vmatpush1.msra.mxu0 0.0
      %3433 = vmatprep.subr.mxu0 0.0
      %3434 = vmatpush1.msra.mxu0 0.0
      %3435 = vmatprep.subr.mxu0 0.0
      %3436 = vmatpush1.msra.mxu0 0.0
      %3437 = vmatprep.subr.mxu0 0.0
      %3438 = vmatpush1.msra.mxu0 %v3402
      %3439 = vmatprep.subr.mxu0 0.0
      %3440 = vmatpush2.msra.mxu0 0.0
      %3441 = vmatprep.subr.mxu0 0.0
      %3442 = vmatpush2.msra.mxu0 0.0
      %3443 = vmatprep.subr.mxu0 0.0
      %3444 = vmatpush2.msra.mxu0 0.0
      %3445 = vmatprep.subr.mxu0 0.0
      %3446 = vmatpush2.msra.mxu0 0.0
      %3447 = vmatprep.subr.mxu0 0.0
      %3448 = vmatpush2.msra.mxu0 0.0
      %3449 = vmatprep.subr.mxu0 0.0
      %3450 = vmatpush2.msra.mxu0 0.0
      %3451 = vmatprep.subr.mxu0 0.0
      %3452 = vmatpush2.msra.mxu0 0.0
      %3453 = vmatprep.subr.mxu0 0.0
      %3454 = vmatpush2.msra.mxu0 0.0
      %3455 = vmatprep.subr.mxu0 0.0
      %3456 = vmatpush2.msra.mxu0 0.0
      %3457 = vmatprep.subr.mxu0 0.0
      %3458 = vmatpush2.msra.mxu0 0.0
      %3459 = vmatprep.subr.mxu0 0.0
      %3460 = vmatpush2.msra.mxu0 0.0
      %3461 = vmatprep.subr.mxu0 0.0
      %3462 = vmatpush2.msra.mxu0 0.0
      %3463 = vmatprep.subr.mxu0 0.0
      %3464 = vmatpush2.msra.mxu0 0.0
      %3465 = vmatprep.subr.mxu0 0.0
      %3466 = vmatpush2.msra.mxu0 0.0
      %3467 = vmatprep.subr.mxu0 0.0
      %3468 = vmatpush2.msra.mxu0 0.0
      %3469 = vmatprep.subr.mxu0 0.0
      %3470 = vmatpush2.msra.mxu0 0.0
      %3471 = vmatprep.mubr.f32.mxu0 0.0
      %3472 = vmatmul.mubr.f32.gmra.mxu0 %v3405
      %v3473 = vpop.f32.mrf.mxu0
      %v3474 = vadd.f32 0.0, %v3473
      %v3475 = vpop.f32.mrf.mxu0
      %3476 = vdwg.mxu0
      %v3477 = vrcp.pop %v3321
      %v3478 = vrcp.pop %v3324
      %v3479 = vmul.f32 %v3398, %v3477
      %v3480 = vmul.f32 %v3474, %v3478
      %3481 = vrot.lane.b32.xlu0 %v3058, 120
      %v3482 = vpop.permute.xlu0 %3481
      %3483 = vrot.lane.b32.xlu0 %v3145, 120
      %v3484 = vpop.permute.xlu0 %3483
      %v3485 = vsel %vm1256, %v3482, 0
      %v3487 = vsel %vm1256, %v3484, 0
      %3489 = vmatprep.subr.mxu0 0.0
      %3490 = vmatpush1.xpose.msra.mxu0 0.0
      %3491 = vmatprep.subr.mxu0 0.0
      %3492 = vmatpush1.xpose.msra.mxu0 0.0
      %3493 = vmatprep.subr.mxu0 0.0
      %3494 = vmatpush1.xpose.msra.mxu0 0.0
      %3495 = vmatprep.subr.mxu0 0.0
      %3496 = vmatpush1.xpose.msra.mxu0 0.0
      %3497 = vmatprep.subr.mxu0 0.0
      %3498 = vmatpush1.xpose.msra.mxu0 0.0
      %3499 = vmatprep.subr.mxu0 0.0
      %3500 = vmatpush1.xpose.msra.mxu0 0.0
      %3501 = vmatprep.subr.mxu0 0.0
      %3502 = vmatpush1.xpose.msra.mxu0 0.0
      %3503 = vmatprep.subr.mxu0 0.0
      %3504 = vmatpush1.xpose.msra.mxu0 0.0
      %3505 = vmatprep.subr.mxu0 0.0
      %3506 = vmatpush1.xpose.msra.mxu0 0.0
      %3507 = vmatprep.subr.mxu0 0.0
      %3508 = vmatpush1.xpose.msra.mxu0 0.0
      %3509 = vmatprep.subr.mxu0 0.0
      %3510 = vmatpush1.xpose.msra.mxu0 0.0
      %3511 = vmatprep.subr.mxu0 0.0
      %3512 = vmatpush1.xpose.msra.mxu0 0.0
      %3513 = vmatprep.subr.mxu0 0.0
      %3514 = vmatpush1.xpose.msra.mxu0 0.0
      %3515 = vmatprep.subr.mxu0 0.0
      %3516 = vmatpush1.xpose.msra.mxu0 0.0
      %3517 = vmatprep.subr.mxu0 0.0
      %3518 = vmatpush1.xpose.msra.mxu0 0.0
      %3519 = vmatprep.subr.mxu0 0.0
      %3520 = vmatpush1.xpose.msra.mxu0 %v3487
      %3521 = vmatprep.subr.mxu0 0.0
      %3522 = vmatpush2.xpose.msra.mxu0 0.0
      %3523 = vmatprep.subr.mxu0 0.0
      %3524 = vmatpush2.xpose.msra.mxu0 0.0
      %3525 = vmatprep.subr.mxu0 0.0
      %3526 = vmatpush2.xpose.msra.mxu0 0.0
      %3527 = vmatprep.subr.mxu0 0.0
      %3528 = vmatpush2.xpose.msra.mxu0 0.0
      %3529 = vmatprep.subr.mxu0 0.0
      %3530 = vmatpush2.xpose.msra.mxu0 0.0
      %3531 = vmatprep.subr.mxu0 0.0
      %3532 = vmatpush2.xpose.msra.mxu0 0.0
      %3533 = vmatprep.subr.mxu0 0.0
      %3534 = vmatpush2.xpose.msra.mxu0 0.0
      %3535 = vmatprep.subr.mxu0 0.0
      %3536 = vmatpush2.xpose.msra.mxu0 0.0
      %3537 = vmatprep.subr.mxu0 0.0
      %3538 = vmatpush2.xpose.msra.mxu0 0.0
      %3539 = vmatprep.subr.mxu0 0.0
      %3540 = vmatpush2.xpose.msra.mxu0 0.0
      %3541 = vmatprep.subr.mxu0 0.0
      %3542 = vmatpush2.xpose.msra.mxu0 0.0
      %3543 = vmatprep.subr.mxu0 0.0
      %3544 = vmatpush2.xpose.msra.mxu0 0.0
      %3545 = vmatprep.subr.mxu0 0.0
      %3546 = vmatpush2.xpose.msra.mxu0 0.0
      %3547 = vmatprep.subr.mxu0 0.0
      %3548 = vmatpush2.xpose.msra.mxu0 0.0
      %3549 = vmatprep.subr.mxu0 0.0
      %3550 = vmatpush2.xpose.msra.mxu0 0.0
      %3551 = vmatprep.subr.mxu0 0.0
      %3552 = vmatpush2.xpose.msra.mxu0 0.0
      %3553 = vmatprep.mubr.f32.mxu0 0.0
      %3554 = vmatmul.mubr.f32.gmra.mxu0 %v3485
      %v3555 = vpop.f32.mrf.mxu0
      %v3556 = vadd.f32 0.0, %v3555
      %v3557 = vpop.f32.mrf.mxu0
      %3558 = vdwg.mxu0
      %3559 = vrot.lane.b32.xlu0 %v3063, 120
      %v3560 = vpop.permute.xlu0 %3559
      %3561 = vrot.lane.b32.xlu0 %v3150, 120
      %v3562 = vpop.permute.xlu0 %3561
      %v3563 = vsel %vm1256, %v3560, 0
      %v3565 = vsel %vm1256, %v3562, 0
      %3567 = vmatprep.subr.mxu0 0.0
      %3568 = vmatpush1.xpose.msra.mxu0 0.0
      %3569 = vmatprep.subr.mxu0 0.0
      %3570 = vmatpush1.xpose.msra.mxu0 0.0
      %3571 = vmatprep.subr.mxu0 0.0
      %3572 = vmatpush1.xpose.msra.mxu0 0.0
      %3573 = vmatprep.subr.mxu0 0.0
      %3574 = vmatpush1.xpose.msra.mxu0 0.0
      %3575 = vmatprep.subr.mxu0 0.0
      %3576 = vmatpush1.xpose.msra.mxu0 0.0
      %3577 = vmatprep.subr.mxu0 0.0
      %3578 = vmatpush1.xpose.msra.mxu0 0.0
      %3579 = vmatprep.subr.mxu0 0.0
      %3580 = vmatpush1.xpose.msra.mxu0 0.0
      %3581 = vmatprep.subr.mxu0 0.0
      %3582 = vmatpush1.xpose.msra.mxu0 0.0
      %3583 = vmatprep.subr.mxu0 0.0
      %3584 = vmatpush1.xpose.msra.mxu0 0.0
      %3585 = vmatprep.subr.mxu0 0.0
      %3586 = vmatpush1.xpose.msra.mxu0 0.0
      %3587 = vmatprep.subr.mxu0 0.0
      %3588 = vmatpush1.xpose.msra.mxu0 0.0
      %3589 = vmatprep.subr.mxu0 0.0
      %3590 = vmatpush1.xpose.msra.mxu0 0.0
      %3591 = vmatprep.subr.mxu0 0.0
      %3592 = vmatpush1.xpose.msra.mxu0 0.0
      %3593 = vmatprep.subr.mxu0 0.0
      %3594 = vmatpush1.xpose.msra.mxu0 0.0
      %3595 = vmatprep.subr.mxu0 0.0
      %3596 = vmatpush1.xpose.msra.mxu0 0.0
      %3597 = vmatprep.subr.mxu0 0.0
      %3598 = vmatpush1.xpose.msra.mxu0 %v3565
      %3599 = vmatprep.subr.mxu0 0.0
      %3600 = vmatpush2.xpose.msra.mxu0 0.0
      %3601 = vmatprep.subr.mxu0 0.0
      %3602 = vmatpush2.xpose.msra.mxu0 0.0
      %3603 = vmatprep.subr.mxu0 0.0
      %3604 = vmatpush2.xpose.msra.mxu0 0.0
      %3605 = vmatprep.subr.mxu0 0.0
      %3606 = vmatpush2.xpose.msra.mxu0 0.0
      %3607 = vmatprep.subr.mxu0 0.0
      %3608 = vmatpush2.xpose.msra.mxu0 0.0
      %3609 = vmatprep.subr.mxu0 0.0
      %3610 = vmatpush2.xpose.msra.mxu0 0.0
      %3611 = vmatprep.subr.mxu0 0.0
      %3612 = vmatpush2.xpose.msra.mxu0 0.0
      %3613 = vmatprep.subr.mxu0 0.0
      %3614 = vmatpush2.xpose.msra.mxu0 0.0
      %3615 = vmatprep.subr.mxu0 0.0
      %3616 = vmatpush2.xpose.msra.mxu0 0.0
      %3617 = vmatprep.subr.mxu0 0.0
      %3618 = vmatpush2.xpose.msra.mxu0 0.0
      %3619 = vmatprep.subr.mxu0 0.0
      %3620 = vmatpush2.xpose.msra.mxu0 0.0
      %3621 = vmatprep.subr.mxu0 0.0
      %3622 = vmatpush2.xpose.msra.mxu0 0.0
      %3623 = vmatprep.subr.mxu0 0.0
      %3624 = vmatpush2.xpose.msra.mxu0 0.0
      %3625 = vmatprep.subr.mxu0 0.0
      %3626 = vmatpush2.xpose.msra.mxu0 0.0
      %3627 = vmatprep.subr.mxu0 0.0
      %3628 = vmatpush2.xpose.msra.mxu0 0.0
      %3629 = vmatprep.subr.mxu0 0.0
      %3630 = vmatpush2.xpose.msra.mxu0 0.0
      %3631 = vmatprep.mubr.f32.mxu0 0.0
      %3632 = vmatmul.mubr.f32.gmra.mxu0 %v3563
      %v3633 = vpop.f32.mrf.mxu0
      %v3634 = vadd.f32 0.0, %v3633
      %v3635 = vpop.f32.mrf.mxu0
      %3636 = vdwg.mxu0
      %v3637 = vmul.f32 %v3556, 0.35355338
      %v3638 = vmul.f32 %v3634, 0.35355338
      %v3639 = vsel %vm1256, %v3637, -inf
      %3640 = vmax.xlane.f32.xlu0 %v3639
      %v3641 = vpop.xlane.xlu0 %3640
      %v3642 = vsel %vm1256, %v3638, -inf
      %3643 = vmax.xlane.f32.xlu0 %v3642
      %v3644 = vpop.xlane.xlu0 %3643
      %v3645 = vsub.f32 %v3637, %v3641
      %v3646 = vsub.f32 %v3638, %v3644
      %v3647 = vmul.f32 %v3645, 1.442695
      %v3648 = vpow.pop %v3647
      %v3649 = vmul.f32 %v3646, 1.442695
      %v3650 = vpow.pop %v3649
      %v3651 = vsel %vm1256, %v3648, 0.0
      %3652 = vadd.xlane.f32.xlu0 %v3651
      %v3653 = vpop.xlane.xlu0 %3652
      %v3654 = vsel %vm1256, %v3650, 0.0
      %3655 = vadd.xlane.f32.xlu0 %v3654
      %v3656 = vpop.xlane.xlu0 %3655
      %3657 = vrot.lane.b32.xlu0 %v3145, 88
      %v3658 = vpop.permute.xlu0 %3657
      %v3661 = vsel %vm1256, %v3648, 0
      %3663 = vmatprep.subr.mxu0 0.0
      %3664 = vmatpush1.msra.mxu0 0.0
      %3665 = vmatprep.subr.mxu0 0.0
      %3666 = vmatpush1.msra.mxu0 0.0
      %3667 = vmatprep.subr.mxu0 0.0
      %3668 = vmatpush1.msra.mxu0 0.0
      %3669 = vmatprep.subr.mxu0 0.0
      %3670 = vmatpush1.msra.mxu0 0.0
      %3671 = vmatprep.subr.mxu0 0.0
      %3672 = vmatpush1.msra.mxu0 0.0
      %3673 = vmatprep.subr.mxu0 0.0
      %3674 = vmatpush1.msra.mxu0 0.0
      %3675 = vmatprep.subr.mxu0 0.0
      %3676 = vmatpush1.msra.mxu0 0.0
      %3677 = vmatprep.subr.mxu0 0.0
      %3678 = vmatpush1.msra.mxu0 0.0
      %3679 = vmatprep.subr.mxu0 0.0
      %3680 = vmatpush1.msra.mxu0 0.0
      %3681 = vmatprep.subr.mxu0 0.0
      %3682 = vmatpush1.msra.mxu0 0.0
      %3683 = vmatprep.subr.mxu0 0.0
      %3684 = vmatpush1.msra.mxu0 0.0
      %3685 = vmatprep.subr.mxu0 0.0
      %3686 = vmatpush1.msra.mxu0 0.0
      %3687 = vmatprep.subr.mxu0 0.0
      %3688 = vmatpush1.msra.mxu0 0.0
      %3689 = vmatprep.subr.mxu0 0.0
      %3690 = vmatpush1.msra.mxu0 0.0
      %3691 = vmatprep.subr.mxu0 0.0
      %3692 = vmatpush1.msra.mxu0 0.0
      %3693 = vmatprep.subr.mxu0 0.0
      %3694 = vmatpush1.msra.mxu0 %v3658
      %3695 = vmatprep.subr.mxu0 0.0
      %3696 = vmatpush2.msra.mxu0 0.0
      %3697 = vmatprep.subr.mxu0 0.0
      %3698 = vmatpush2.msra.mxu0 0.0
      %3699 = vmatprep.subr.mxu0 0.0
      %3700 = vmatpush2.msra.mxu0 0.0
      %3701 = vmatprep.subr.mxu0 0.0
      %3702 = vmatpush2.msra.mxu0 0.0
      %3703 = vmatprep.subr.mxu0 0.0
      %3704 = vmatpush2.msra.mxu0 0.0
      %3705 = vmatprep.subr.mxu0 0.0
      %3706 = vmatpush2.msra.mxu0 0.0
      %3707 = vmatprep.subr.mxu0 0.0
      %3708 = vmatpush2.msra.mxu0 0.0
      %3709 = vmatprep.subr.mxu0 0.0
      %3710 = vmatpush2.msra.mxu0 0.0
      %3711 = vmatprep.subr.mxu0 0.0
      %3712 = vmatpush2.msra.mxu0 0.0
      %3713 = vmatprep.subr.mxu0 0.0
      %3714 = vmatpush2.msra.mxu0 0.0
      %3715 = vmatprep.subr.mxu0 0.0
      %3716 = vmatpush2.msra.mxu0 0.0
      %3717 = vmatprep.subr.mxu0 0.0
      %3718 = vmatpush2.msra.mxu0 0.0
      %3719 = vmatprep.subr.mxu0 0.0
      %3720 = vmatpush2.msra.mxu0 0.0
      %3721 = vmatprep.subr.mxu0 0.0
      %3722 = vmatpush2.msra.mxu0 0.0
      %3723 = vmatprep.subr.mxu0 0.0
      %3724 = vmatpush2.msra.mxu0 0.0
      %3725 = vmatprep.subr.mxu0 0.0
      %3726 = vmatpush2.msra.mxu0 0.0
      %3727 = vmatprep.mubr.f32.mxu0 0.0
      %3728 = vmatmul.mubr.f32.gmra.mxu0 %v3661
      %v3729 = vpop.f32.mrf.mxu0
      %v3730 = vadd.f32 0.0, %v3729
      %v3731 = vpop.f32.mrf.mxu0
      %3732 = vdwg.mxu0
      %3733 = vrot.lane.b32.xlu0 %v3150, 88
      %v3734 = vpop.permute.xlu0 %3733
      %v3737 = vsel %vm1256, %v3650, 0
      %3739 = vmatprep.subr.mxu0 0.0
      %3740 = vmatpush1.msra.mxu0 0.0
      %3741 = vmatprep.subr.mxu0 0.0
      %3742 = vmatpush1.msra.mxu0 0.0
      %3743 = vmatprep.subr.mxu0 0.0
      %3744 = vmatpush1.msra.mxu0 0.0
      %3745 = vmatprep.subr.mxu0 0.0
      %3746 = vmatpush1.msra.mxu0 0.0
      %3747 = vmatprep.subr.mxu0 0.0
      %3748 = vmatpush1.msra.mxu0 0.0
      %3749 = vmatprep.subr.mxu0 0.0
      %3750 = vmatpush1.msra.mxu0 0.0
      %3751 = vmatprep.subr.mxu0 0.0
      %3752 = vmatpush1.msra.mxu0 0.0
      %3753 = vmatprep.subr.mxu0 0.0
      %3754 = vmatpush1.msra.mxu0 0.0
      %3755 = vmatprep.subr.mxu0 0.0
      %3756 = vmatpush1.msra.mxu0 0.0
      %3757 = vmatprep.subr.mxu0 0.0
      %3758 = vmatpush1.msra.mxu0 0.0
      %3759 = vmatprep.subr.mxu0 0.0
      %3760 = vmatpush1.msra.mxu0 0.0
      %3761 = vmatprep.subr.mxu0 0.0
      %3762 = vmatpush1.msra.mxu0 0.0
      %3763 = vmatprep.subr.mxu0 0.0
      %3764 = vmatpush1.msra.mxu0 0.0
      %3765 = vmatprep.subr.mxu0 0.0
      %3766 = vmatpush1.msra.mxu0 0.0
      %3767 = vmatprep.subr.mxu0 0.0
      %3768 = vmatpush1.msra.mxu0 0.0
      %3769 = vmatprep.subr.mxu0 0.0
      %3770 = vmatpush1.msra.mxu0 %v3734
      %3771 = vmatprep.subr.mxu0 0.0
      %3772 = vmatpush2.msra.mxu0 0.0
      %3773 = vmatprep.subr.mxu0 0.0
      %3774 = vmatpush2.msra.mxu0 0.0
      %3775 = vmatprep.subr.mxu0 0.0
      %3776 = vmatpush2.msra.mxu0 0.0
      %3777 = vmatprep.subr.mxu0 0.0
      %3778 = vmatpush2.msra.mxu0 0.0
      %3779 = vmatprep.subr.mxu0 0.0
      %3780 = vmatpush2.msra.mxu0 0.0
      %3781 = vmatprep.subr.mxu0 0.0
      %3782 = vmatpush2.msra.mxu0 0.0
      %3783 = vmatprep.subr.mxu0 0.0
      %3784 = vmatpush2.msra.mxu0 0.0
      %3785 = vmatprep.subr.mxu0 0.0
      %3786 = vmatpush2.msra.mxu0 0.0
      %3787 = vmatprep.subr.mxu0 0.0
      %3788 = vmatpush2.msra.mxu0 0.0
      %3789 = vmatprep.subr.mxu0 0.0
      %3790 = vmatpush2.msra.mxu0 0.0
      %3791 = vmatprep.subr.mxu0 0.0
      %3792 = vmatpush2.msra.mxu0 0.0
      %3793 = vmatprep.subr.mxu0 0.0
      %3794 = vmatpush2.msra.mxu0 0.0
      %3795 = vmatprep.subr.mxu0 0.0
      %3796 = vmatpush2.msra.mxu0 0.0
      %3797 = vmatprep.subr.mxu0 0.0
      %3798 = vmatpush2.msra.mxu0 0.0
      %3799 = vmatprep.subr.mxu0 0.0
      %3800 = vmatpush2.msra.mxu0 0.0
      %3801 = vmatprep.subr.mxu0 0.0
      %3802 = vmatpush2.msra.mxu0 0.0
      %3803 = vmatprep.mubr.f32.mxu0 0.0
      %3804 = vmatmul.mubr.f32.gmra.mxu0 %v3737
      %v3805 = vpop.f32.mrf.mxu0
      %v3806 = vadd.f32 0.0, %v3805
      %v3807 = vpop.f32.mrf.mxu0
      %3808 = vdwg.mxu0
      %v3809 = vrcp.pop %v3653
      %v3810 = vrcp.pop %v3656
      %v3811 = vmul.f32 %v3730, %v3809
      %v3812 = vmul.f32 %v3806, %v3810
      %v3814 = vsel %vm1256, %v3811, 0
      %v3817 = vsel %vm1256, %v3812, 0
      %3819 = vmatprep.subr.mxu0 0.0
      %3820 = vmatpush1.msra.mxu0 0.0
      %3821 = vmatprep.subr.mxu0 0.0
      %3822 = vmatpush1.msra.mxu0 0.0
      %3823 = vmatprep.subr.mxu0 0.0
      %3824 = vmatpush1.msra.mxu0 0.0
      %3825 = vmatprep.subr.mxu0 0.0
      %3826 = vmatpush1.msra.mxu0 0.0
      %3827 = vmatprep.subr.mxu0 0.0
      %3828 = vmatpush1.msra.mxu0 0.0
      %3829 = vmatprep.subr.mxu0 0.0
      %3830 = vmatpush1.msra.mxu0 0.0
      %3831 = vmatprep.subr.mxu0 0.0
      %3832 = vmatpush1.msra.mxu0 0.0
      %3833 = vmatprep.subr.mxu0 0.0
      %3834 = vmatpush1.msra.mxu0 0.0
      %3835 = vmatprep.subr.mxu0 0.0
      %3836 = vmatpush1.msra.mxu0 0.0
      %3837 = vmatprep.subr.mxu0 0.0
      %3838 = vmatpush1.msra.mxu0 0.0
      %3839 = vmatprep.subr.mxu0 0.0
      %3840 = vmatpush1.msra.mxu0 0.0
      %3841 = vmatprep.subr.mxu0 0.0
      %3842 = vmatpush1.msra.mxu0 0.0
      %3843 = vmatprep.subr.mxu0 0.0
      %3844 = vmatpush1.msra.mxu0 0.0
      %3845 = vmatprep.subr.mxu0 0.0
      %3846 = vmatpush1.msra.mxu0 0.0
      %3847 = vmatprep.subr.mxu0 0.0
      %3848 = vmatpush1.msra.mxu0 0.0
      %3849 = vmatprep.subr.mxu0 0.0
      %3850 = vmatpush1.msra.mxu0 %v2975
      %3851 = vmatprep.subr.mxu0 0.0
      %3852 = vmatpush2.msra.mxu0 0.0
      %3853 = vmatprep.subr.mxu0 0.0
      %3854 = vmatpush2.msra.mxu0 0.0
      %3855 = vmatprep.subr.mxu0 0.0
      %3856 = vmatpush2.msra.mxu0 0.0
      %3857 = vmatprep.subr.mxu0 0.0
      %3858 = vmatpush2.msra.mxu0 0.0
      %3859 = vmatprep.subr.mxu0 0.0
      %3860 = vmatpush2.msra.mxu0 0.0
      %3861 = vmatprep.subr.mxu0 0.0
      %3862 = vmatpush2.msra.mxu0 0.0
      %3863 = vmatprep.subr.mxu0 0.0
      %3864 = vmatpush2.msra.mxu0 0.0
      %3865 = vmatprep.subr.mxu0 0.0
      %3866 = vmatpush2.msra.mxu0 0.0
      %3867 = vmatprep.subr.mxu0 0.0
      %3868 = vmatpush2.msra.mxu0 0.0
      %3869 = vmatprep.subr.mxu0 0.0
      %3870 = vmatpush2.msra.mxu0 0.0
      %3871 = vmatprep.subr.mxu0 0.0
      %3872 = vmatpush2.msra.mxu0 0.0
      %3873 = vmatprep.subr.mxu0 0.0
      %3874 = vmatpush2.msra.mxu0 0.0
      %3875 = vmatprep.subr.mxu0 0.0
      %3876 = vmatpush2.msra.mxu0 0.0
      %3877 = vmatprep.subr.mxu0 0.0
      %3878 = vmatpush2.msra.mxu0 0.0
      %3879 = vmatprep.subr.mxu0 0.0
      %3880 = vmatpush2.msra.mxu0 0.0
      %3881 = vmatprep.subr.mxu0 0.0
      %3882 = vmatpush2.msra.mxu0 0.0
      %3883 = vmatprep.mubr.f32.mxu0 0.0
      %3884 = vmatmul.mubr.f32.gmra.mxu0 %v3814
      %v3885 = vpop.f32.mrf.mxu0
      %v3886 = vadd.f32 0.0, %v3885
      %v3887 = vpop.f32.mrf.mxu0
      %3888 = vmatprep.mubr.f32.mxu0 0.0
      %3889 = vmatmul.mubr.f32.gmra.mxu0 %v3817
      %v3890 = vpop.f32.mrf.mxu0
      %v3891 = vadd.f32 0.0, %v3890
      %v3892 = vpop.f32.mrf.mxu0
      %3893 = vdwg.mxu0
      %v3895 = vsel %vm1256, %v3479, 0
      %v3898 = vsel %vm1256, %v3480, 0
      %3900 = vmatprep.subr.mxu0 0.0
      %3901 = vmatpush1.msra.mxu0 0.0
      %3902 = vmatprep.subr.mxu0 0.0
      %3903 = vmatpush1.msra.mxu0 0.0
      %3904 = vmatprep.subr.mxu0 0.0
      %3905 = vmatpush1.msra.mxu0 0.0
      %3906 = vmatprep.subr.mxu0 0.0
      %3907 = vmatpush1.msra.mxu0 0.0
      %3908 = vmatprep.subr.mxu0 0.0
      %3909 = vmatpush1.msra.mxu0 0.0
      %3910 = vmatprep.subr.mxu0 0.0
      %3911 = vmatpush1.msra.mxu0 0.0
      %3912 = vmatprep.subr.mxu0 0.0
      %3913 = vmatpush1.msra.mxu0 0.0
      %3914 = vmatprep.subr.mxu0 0.0
      %3915 = vmatpush1.msra.mxu0 0.0
      %3916 = vmatprep.subr.mxu0 0.0
      %3917 = vmatpush1.msra.mxu0 0.0
      %3918 = vmatprep.subr.mxu0 0.0
      %3919 = vmatpush1.msra.mxu0 0.0
      %3920 = vmatprep.subr.mxu0 0.0
      %3921 = vmatpush1.msra.mxu0 0.0
      %3922 = vmatprep.subr.mxu0 0.0
      %3923 = vmatpush1.msra.mxu0 0.0
      %3924 = vmatprep.subr.mxu0 0.0
      %3925 = vmatpush1.msra.mxu0 0.0
      %3926 = vmatprep.subr.mxu0 0.0
      %3927 = vmatpush1.msra.mxu0 0.0
      %3928 = vmatprep.subr.mxu0 0.0
      %3929 = vmatpush1.msra.mxu0 0.0
      %3930 = vmatprep.subr.mxu0 0.0
      %3931 = vmatpush1.msra.mxu0 %v2974
      %3932 = vmatprep.subr.mxu0 0.0
      %3933 = vmatpush2.msra.mxu0 0.0
      %3934 = vmatprep.subr.mxu0 0.0
      %3935 = vmatpush2.msra.mxu0 0.0
      %3936 = vmatprep.subr.mxu0 0.0
      %3937 = vmatpush2.msra.mxu0 0.0
      %3938 = vmatprep.subr.mxu0 0.0
      %3939 = vmatpush2.msra.mxu0 0.0
      %3940 = vmatprep.subr.mxu0 0.0
      %3941 = vmatpush2.msra.mxu0 0.0
      %3942 = vmatprep.subr.mxu0 0.0
      %3943 = vmatpush2.msra.mxu0 0.0
      %3944 = vmatprep.subr.mxu0 0.0
      %3945 = vmatpush2.msra.mxu0 0.0
      %3946 = vmatprep.subr.mxu0 0.0
      %3947 = vmatpush2.msra.mxu0 0.0
      %3948 = vmatprep.subr.mxu0 0.0
      %3949 = vmatpush2.msra.mxu0 0.0
      %3950 = vmatprep.subr.mxu0 0.0
      %3951 = vmatpush2.msra.mxu0 0.0
      %3952 = vmatprep.subr.mxu0 0.0
      %3953 = vmatpush2.msra.mxu0 0.0
      %3954 = vmatprep.subr.mxu0 0.0
      %3955 = vmatpush2.msra.mxu0 0.0
      %3956 = vmatprep.subr.mxu0 0.0
      %3957 = vmatpush2.msra.mxu0 0.0
      %3958 = vmatprep.subr.mxu0 0.0
      %3959 = vmatpush2.msra.mxu0 0.0
      %3960 = vmatprep.subr.mxu0 0.0
      %3961 = vmatpush2.msra.mxu0 0.0
      %3962 = vmatprep.subr.mxu0 0.0
      %3963 = vmatpush2.msra.mxu0 0.0
      %3964 = vmatprep.mubr.f32.mxu0 0.0
      %3965 = vmatmul.mubr.f32.gmra.mxu0 %v3895
      %v3966 = vpop.f32.mrf.mxu0
      %v3967 = vadd.f32 %v3886, %v3966
      %v3968 = vpop.f32.mrf.mxu0
      %3969 = vmatprep.mubr.f32.mxu0 0.0
      %3970 = vmatmul.mubr.f32.gmra.mxu0 %v3898
      %v3971 = vpop.f32.mrf.mxu0
      %v3972 = vadd.f32 %v3891, %v3971
      %v3973 = vpop.f32.mrf.mxu0
      %3974 = vdwg.mxu0
      %3975 = vrot.lane.b32.xlu0 %v3058, 112
      %v3976 = vpop.permute.xlu0 %3975
      %3977 = vrot.lane.b32.xlu0 %v3145, 112
      %v3978 = vpop.permute.xlu0 %3977
      %v3979 = vsel %vm1256, %v3976, 0
      %v3981 = vsel %vm1256, %v3978, 0
      %3983 = vmatprep.subr.mxu0 0.0
      %3984 = vmatpush1.xpose.msra.mxu0 0.0
      %3985 = vmatprep.subr.mxu0 0.0
      %3986 = vmatpush1.xpose.msra.mxu0 0.0
      %3987 = vmatprep.subr.mxu0 0.0
      %3988 = vmatpush1.xpose.msra.mxu0 0.0
      %3989 = vmatprep.subr.mxu0 0.0
      %3990 = vmatpush1.xpose.msra.mxu0 0.0
      %3991 = vmatprep.subr.mxu0 0.0
      %3992 = vmatpush1.xpose.msra.mxu0 0.0
      %3993 = vmatprep.subr.mxu0 0.0
      %3994 = vmatpush1.xpose.msra.mxu0 0.0
      %3995 = vmatprep.subr.mxu0 0.0
      %3996 = vmatpush1.xpose.msra.mxu0 0.0
      %3997 = vmatprep.subr.mxu0 0.0
      %3998 = vmatpush1.xpose.msra.mxu0 0.0
      %3999 = vmatprep.subr.mxu0 0.0
      %4000 = vmatpush1.xpose.msra.mxu0 0.0
      %4001 = vmatprep.subr.mxu0 0.0
      %4002 = vmatpush1.xpose.msra.mxu0 0.0
      %4003 = vmatprep.subr.mxu0 0.0
      %4004 = vmatpush1.xpose.msra.mxu0 0.0
      %4005 = vmatprep.subr.mxu0 0.0
      %4006 = vmatpush1.xpose.msra.mxu0 0.0
      %4007 = vmatprep.subr.mxu0 0.0
      %4008 = vmatpush1.xpose.msra.mxu0 0.0
      %4009 = vmatprep.subr.mxu0 0.0
      %4010 = vmatpush1.xpose.msra.mxu0 0.0
      %4011 = vmatprep.subr.mxu0 0.0
      %4012 = vmatpush1.xpose.msra.mxu0 0.0
      %4013 = vmatprep.subr.mxu0 0.0
      %4014 = vmatpush1.xpose.msra.mxu0 %v3981
      %4015 = vmatprep.subr.mxu0 0.0
      %4016 = vmatpush2.xpose.msra.mxu0 0.0
      %4017 = vmatprep.subr.mxu0 0.0
      %4018 = vmatpush2.xpose.msra.mxu0 0.0
      %4019 = vmatprep.subr.mxu0 0.0
      %4020 = vmatpush2.xpose.msra.mxu0 0.0
      %4021 = vmatprep.subr.mxu0 0.0
      %4022 = vmatpush2.xpose.msra.mxu0 0.0
      %4023 = vmatprep.subr.mxu0 0.0
      %4024 = vmatpush2.xpose.msra.mxu0 0.0
      %4025 = vmatprep.subr.mxu0 0.0
      %4026 = vmatpush2.xpose.msra.mxu0 0.0
      %4027 = vmatprep.subr.mxu0 0.0
      %4028 = vmatpush2.xpose.msra.mxu0 0.0
      %4029 = vmatprep.subr.mxu0 0.0
      %4030 = vmatpush2.xpose.msra.mxu0 0.0
      %4031 = vmatprep.subr.mxu0 0.0
      %4032 = vmatpush2.xpose.msra.mxu0 0.0
      %4033 = vmatprep.subr.mxu0 0.0
      %4034 = vmatpush2.xpose.msra.mxu0 0.0
      %4035 = vmatprep.subr.mxu0 0.0
      %4036 = vmatpush2.xpose.msra.mxu0 0.0
      %4037 = vmatprep.subr.mxu0 0.0
      %4038 = vmatpush2.xpose.msra.mxu0 0.0
      %4039 = vmatprep.subr.mxu0 0.0
      %4040 = vmatpush2.xpose.msra.mxu0 0.0
      %4041 = vmatprep.subr.mxu0 0.0
      %4042 = vmatpush2.xpose.msra.mxu0 0.0
      %4043 = vmatprep.subr.mxu0 0.0
      %4044 = vmatpush2.xpose.msra.mxu0 0.0
      %4045 = vmatprep.subr.mxu0 0.0
      %4046 = vmatpush2.xpose.msra.mxu0 0.0
      %4047 = vmatprep.mubr.f32.mxu0 0.0
      %4048 = vmatmul.mubr.f32.gmra.mxu0 %v3979
      %v4049 = vpop.f32.mrf.mxu0
      %v4050 = vadd.f32 0.0, %v4049
      %v4051 = vpop.f32.mrf.mxu0
      %4052 = vdwg.mxu0
      %4053 = vrot.lane.b32.xlu0 %v3063, 112
      %v4054 = vpop.permute.xlu0 %4053
      %4055 = vrot.lane.b32.xlu0 %v3150, 112
      %v4056 = vpop.permute.xlu0 %4055
      %v4057 = vsel %vm1256, %v4054, 0
      %v4059 = vsel %vm1256, %v4056, 0
      %4061 = vmatprep.subr.mxu0 0.0
      %4062 = vmatpush1.xpose.msra.mxu0 0.0
      %4063 = vmatprep.subr.mxu0 0.0
      %4064 = vmatpush1.xpose.msra.mxu0 0.0
      %4065 = vmatprep.subr.mxu0 0.0
      %4066 = vmatpush1.xpose.msra.mxu0 0.0
      %4067 = vmatprep.subr.mxu0 0.0
      %4068 = vmatpush1.xpose.msra.mxu0 0.0
      %4069 = vmatprep.subr.mxu0 0.0
      %4070 = vmatpush1.xpose.msra.mxu0 0.0
      %4071 = vmatprep.subr.mxu0 0.0
      %4072 = vmatpush1.xpose.msra.mxu0 0.0
      %4073 = vmatprep.subr.mxu0 0.0
      %4074 = vmatpush1.xpose.msra.mxu0 0.0
      %4075 = vmatprep.subr.mxu0 0.0
      %4076 = vmatpush1.xpose.msra.mxu0 0.0
      %4077 = vmatprep.subr.mxu0 0.0
      %4078 = vmatpush1.xpose.msra.mxu0 0.0
      %4079 = vmatprep.subr.mxu0 0.0
      %4080 = vmatpush1.xpose.msra.mxu0 0.0
      %4081 = vmatprep.subr.mxu0 0.0
      %4082 = vmatpush1.xpose.msra.mxu0 0.0
      %4083 = vmatprep.subr.mxu0 0.0
      %4084 = vmatpush1.xpose.msra.mxu0 0.0
      %4085 = vmatprep.subr.mxu0 0.0
      %4086 = vmatpush1.xpose.msra.mxu0 0.0
      %4087 = vmatprep.subr.mxu0 0.0
      %4088 = vmatpush1.xpose.msra.mxu0 0.0
      %4089 = vmatprep.subr.mxu0 0.0
      %4090 = vmatpush1.xpose.msra.mxu0 0.0
      %4091 = vmatprep.subr.mxu0 0.0
      %4092 = vmatpush1.xpose.msra.mxu0 %v4059
      %4093 = vmatprep.subr.mxu0 0.0
      %4094 = vmatpush2.xpose.msra.mxu0 0.0
      %4095 = vmatprep.subr.mxu0 0.0
      %4096 = vmatpush2.xpose.msra.mxu0 0.0
      %4097 = vmatprep.subr.mxu0 0.0
      %4098 = vmatpush2.xpose.msra.mxu0 0.0
      %4099 = vmatprep.subr.mxu0 0.0
      %4100 = vmatpush2.xpose.msra.mxu0 0.0
      %4101 = vmatprep.subr.mxu0 0.0
      %4102 = vmatpush2.xpose.msra.mxu0 0.0
      %4103 = vmatprep.subr.mxu0 0.0
      %4104 = vmatpush2.xpose.msra.mxu0 0.0
      %4105 = vmatprep.subr.mxu0 0.0
      %4106 = vmatpush2.xpose.msra.mxu0 0.0
      %4107 = vmatprep.subr.mxu0 0.0
      %4108 = vmatpush2.xpose.msra.mxu0 0.0
      %4109 = vmatprep.subr.mxu0 0.0
      %4110 = vmatpush2.xpose.msra.mxu0 0.0
      %4111 = vmatprep.subr.mxu0 0.0
      %4112 = vmatpush2.xpose.msra.mxu0 0.0
      %4113 = vmatprep.subr.mxu0 0.0
      %4114 = vmatpush2.xpose.msra.mxu0 0.0
      %4115 = vmatprep.subr.mxu0 0.0
      %4116 = vmatpush2.xpose.msra.mxu0 0.0
      %4117 = vmatprep.subr.mxu0 0.0
      %4118 = vmatpush2.xpose.msra.mxu0 0.0
      %4119 = vmatprep.subr.mxu0 0.0
      %4120 = vmatpush2.xpose.msra.mxu0 0.0
      %4121 = vmatprep.subr.mxu0 0.0
      %4122 = vmatpush2.xpose.msra.mxu0 0.0
      %4123 = vmatprep.subr.mxu0 0.0
      %4124 = vmatpush2.xpose.msra.mxu0 0.0
      %4125 = vmatprep.mubr.f32.mxu0 0.0
      %4126 = vmatmul.mubr.f32.gmra.mxu0 %v4057
      %v4127 = vpop.f32.mrf.mxu0
      %v4128 = vadd.f32 0.0, %v4127
      %v4129 = vpop.f32.mrf.mxu0
      %4130 = vdwg.mxu0
      %v4131 = vmul.f32 %v4050, 0.35355338
      %v4132 = vmul.f32 %v4128, 0.35355338
      %v4133 = vsel %vm1256, %v4131, -inf
      %4134 = vmax.xlane.f32.xlu0 %v4133
      %v4135 = vpop.xlane.xlu0 %4134
      %v4136 = vsel %vm1256, %v4132, -inf
      %4137 = vmax.xlane.f32.xlu0 %v4136
      %v4138 = vpop.xlane.xlu0 %4137
      %v4139 = vsub.f32 %v4131, %v4135
      %v4140 = vsub.f32 %v4132, %v4138
      %v4141 = vmul.f32 %v4139, 1.442695
      %v4142 = vpow.pop %v4141
      %v4143 = vmul.f32 %v4140, 1.442695
      %v4144 = vpow.pop %v4143
      %v4145 = vsel %vm1256, %v4142, 0.0
      %4146 = vadd.xlane.f32.xlu0 %v4145
      %v4147 = vpop.xlane.xlu0 %4146
      %v4148 = vsel %vm1256, %v4144, 0.0
      %4149 = vadd.xlane.f32.xlu0 %v4148
      %v4150 = vpop.xlane.xlu0 %4149
      %4151 = vrot.lane.b32.xlu0 %v3145, 80
      %v4152 = vpop.permute.xlu0 %4151
      %v4155 = vsel %vm1256, %v4142, 0
      %4157 = vmatprep.subr.mxu0 0.0
      %4158 = vmatpush1.msra.mxu0 0.0
      %4159 = vmatprep.subr.mxu0 0.0
      %4160 = vmatpush1.msra.mxu0 0.0
      %4161 = vmatprep.subr.mxu0 0.0
      %4162 = vmatpush1.msra.mxu0 0.0
      %4163 = vmatprep.subr.mxu0 0.0
      %4164 = vmatpush1.msra.mxu0 0.0
      %4165 = vmatprep.subr.mxu0 0.0
      %4166 = vmatpush1.msra.mxu0 0.0
      %4167 = vmatprep.subr.mxu0 0.0
      %4168 = vmatpush1.msra.mxu0 0.0
      %4169 = vmatprep.subr.mxu0 0.0
      %4170 = vmatpush1.msra.mxu0 0.0
      %4171 = vmatprep.subr.mxu0 0.0
      %4172 = vmatpush1.msra.mxu0 0.0
      %4173 = vmatprep.subr.mxu0 0.0
      %4174 = vmatpush1.msra.mxu0 0.0
      %4175 = vmatprep.subr.mxu0 0.0
      %4176 = vmatpush1.msra.mxu0 0.0
      %4177 = vmatprep.subr.mxu0 0.0
      %4178 = vmatpush1.msra.mxu0 0.0
      %4179 = vmatprep.subr.mxu0 0.0
      %4180 = vmatpush1.msra.mxu0 0.0
      %4181 = vmatprep.subr.mxu0 0.0
      %4182 = vmatpush1.msra.mxu0 0.0
      %4183 = vmatprep.subr.mxu0 0.0
      %4184 = vmatpush1.msra.mxu0 0.0
      %4185 = vmatprep.subr.mxu0 0.0
      %4186 = vmatpush1.msra.mxu0 0.0
      %4187 = vmatprep.subr.mxu0 0.0
      %4188 = vmatpush1.msra.mxu0 %v4152
      %4189 = vmatprep.subr.mxu0 0.0
      %4190 = vmatpush2.msra.mxu0 0.0
      %4191 = vmatprep.subr.mxu0 0.0
      %4192 = vmatpush2.msra.mxu0 0.0
      %4193 = vmatprep.subr.mxu0 0.0
      %4194 = vmatpush2.msra.mxu0 0.0
      %4195 = vmatprep.subr.mxu0 0.0
      %4196 = vmatpush2.msra.mxu0 0.0
      %4197 = vmatprep.subr.mxu0 0.0
      %4198 = vmatpush2.msra.mxu0 0.0
      %4199 = vmatprep.subr.mxu0 0.0
      %4200 = vmatpush2.msra.mxu0 0.0
      %4201 = vmatprep.subr.mxu0 0.0
      %4202 = vmatpush2.msra.mxu0 0.0
      %4203 = vmatprep.subr.mxu0 0.0
      %4204 = vmatpush2.msra.mxu0 0.0
      %4205 = vmatprep.subr.mxu0 0.0
      %4206 = vmatpush2.msra.mxu0 0.0
      %4207 = vmatprep.subr.mxu0 0.0
      %4208 = vmatpush2.msra.mxu0 0.0
      %4209 = vmatprep.subr.mxu0 0.0
      %4210 = vmatpush2.msra.mxu0 0.0
      %4211 = vmatprep.subr.mxu0 0.0
      %4212 = vmatpush2.msra.mxu0 0.0
      %4213 = vmatprep.subr.mxu0 0.0
      %4214 = vmatpush2.msra.mxu0 0.0
      %4215 = vmatprep.subr.mxu0 0.0
      %4216 = vmatpush2.msra.mxu0 0.0
      %4217 = vmatprep.subr.mxu0 0.0
      %4218 = vmatpush2.msra.mxu0 0.0
      %4219 = vmatprep.subr.mxu0 0.0
      %4220 = vmatpush2.msra.mxu0 0.0
      %4221 = vmatprep.mubr.f32.mxu0 0.0
      %4222 = vmatmul.mubr.f32.gmra.mxu0 %v4155
      %v4223 = vpop.f32.mrf.mxu0
      %v4224 = vadd.f32 0.0, %v4223
      %v4225 = vpop.f32.mrf.mxu0
      %4226 = vdwg.mxu0
      %4227 = vrot.lane.b32.xlu0 %v3150, 80
      %v4228 = vpop.permute.xlu0 %4227
      %v4231 = vsel %vm1256, %v4144, 0
      %4233 = vmatprep.subr.mxu0 0.0
      %4234 = vmatpush1.msra.mxu0 0.0
      %4235 = vmatprep.subr.mxu0 0.0
      %4236 = vmatpush1.msra.mxu0 0.0
      %4237 = vmatprep.subr.mxu0 0.0
      %4238 = vmatpush1.msra.mxu0 0.0
      %4239 = vmatprep.subr.mxu0 0.0
      %4240 = vmatpush1.msra.mxu0 0.0
      %4241 = vmatprep.subr.mxu0 0.0
      %4242 = vmatpush1.msra.mxu0 0.0
      %4243 = vmatprep.subr.mxu0 0.0
      %4244 = vmatpush1.msra.mxu0 0.0
      %4245 = vmatprep.subr.mxu0 0.0
      %4246 = vmatpush1.msra.mxu0 0.0
      %4247 = vmatprep.subr.mxu0 0.0
      %4248 = vmatpush1.msra.mxu0 0.0
      %4249 = vmatprep.subr.mxu0 0.0
      %4250 = vmatpush1.msra.mxu0 0.0
      %4251 = vmatprep.subr.mxu0 0.0
      %4252 = vmatpush1.msra.mxu0 0.0
      %4253 = vmatprep.subr.mxu0 0.0
      %4254 = vmatpush1.msra.mxu0 0.0
      %4255 = vmatprep.subr.mxu0 0.0
      %4256 = vmatpush1.msra.mxu0 0.0
      %4257 = vmatprep.subr.mxu0 0.0
      %4258 = vmatpush1.msra.mxu0 0.0
      %4259 = vmatprep.subr.mxu0 0.0
      %4260 = vmatpush1.msra.mxu0 0.0
      %4261 = vmatprep.subr.mxu0 0.0
      %4262 = vmatpush1.msra.mxu0 0.0
      %4263 = vmatprep.subr.mxu0 0.0
      %4264 = vmatpush1.msra.mxu0 %v4228
      %4265 = vmatprep.subr.mxu0 0.0
      %4266 = vmatpush2.msra.mxu0 0.0
      %4267 = vmatprep.subr.mxu0 0.0
      %4268 = vmatpush2.msra.mxu0 0.0
      %4269 = vmatprep.subr.mxu0 0.0
      %4270 = vmatpush2.msra.mxu0 0.0
      %4271 = vmatprep.subr.mxu0 0.0
      %4272 = vmatpush2.msra.mxu0 0.0
      %4273 = vmatprep.subr.mxu0 0.0
      %4274 = vmatpush2.msra.mxu0 0.0
      %4275 = vmatprep.subr.mxu0 0.0
      %4276 = vmatpush2.msra.mxu0 0.0
      %4277 = vmatprep.subr.mxu0 0.0
      %4278 = vmatpush2.msra.mxu0 0.0
      %4279 = vmatprep.subr.mxu0 0.0
      %4280 = vmatpush2.msra.mxu0 0.0
      %4281 = vmatprep.subr.mxu0 0.0
      %4282 = vmatpush2.msra.mxu0 0.0
      %4283 = vmatprep.subr.mxu0 0.0
      %4284 = vmatpush2.msra.mxu0 0.0
      %4285 = vmatprep.subr.mxu0 0.0
      %4286 = vmatpush2.msra.mxu0 0.0
      %4287 = vmatprep.subr.mxu0 0.0
      %4288 = vmatpush2.msra.mxu0 0.0
      %4289 = vmatprep.subr.mxu0 0.0
      %4290 = vmatpush2.msra.mxu0 0.0
      %4291 = vmatprep.subr.mxu0 0.0
      %4292 = vmatpush2.msra.mxu0 0.0
      %4293 = vmatprep.subr.mxu0 0.0
      %4294 = vmatpush2.msra.mxu0 0.0
      %4295 = vmatprep.subr.mxu0 0.0
      %4296 = vmatpush2.msra.mxu0 0.0
      %4297 = vmatprep.mubr.f32.mxu0 0.0
      %4298 = vmatmul.mubr.f32.gmra.mxu0 %v4231
      %v4299 = vpop.f32.mrf.mxu0
      %v4300 = vadd.f32 0.0, %v4299
      %v4301 = vpop.f32.mrf.mxu0
      %4302 = vdwg.mxu0
      %v4303 = vrcp.pop %v4147
      %v4304 = vrcp.pop %v4150
      %v4305 = vmul.f32 %v4224, %v4303
      %v4306 = vmul.f32 %v4300, %v4304
      %v4308 = vsel %vm1256, %v4305, 0
      %v4311 = vsel %vm1256, %v4306, 0
      %4313 = vmatprep.subr.mxu0 0.0
      %4314 = vmatpush1.msra.mxu0 0.0
      %4315 = vmatprep.subr.mxu0 0.0
      %4316 = vmatpush1.msra.mxu0 0.0
      %4317 = vmatprep.subr.mxu0 0.0
      %4318 = vmatpush1.msra.mxu0 0.0
      %4319 = vmatprep.subr.mxu0 0.0
      %4320 = vmatpush1.msra.mxu0 0.0
      %4321 = vmatprep.subr.mxu0 0.0
      %4322 = vmatpush1.msra.mxu0 0.0
      %4323 = vmatprep.subr.mxu0 0.0
      %4324 = vmatpush1.msra.mxu0 0.0
      %4325 = vmatprep.subr.mxu0 0.0
      %4326 = vmatpush1.msra.mxu0 0.0
      %4327 = vmatprep.subr.mxu0 0.0
      %4328 = vmatpush1.msra.mxu0 0.0
      %4329 = vmatprep.subr.mxu0 0.0
      %4330 = vmatpush1.msra.mxu0 0.0
      %4331 = vmatprep.subr.mxu0 0.0
      %4332 = vmatpush1.msra.mxu0 0.0
      %4333 = vmatprep.subr.mxu0 0.0
      %4334 = vmatpush1.msra.mxu0 0.0
      %4335 = vmatprep.subr.mxu0 0.0
      %4336 = vmatpush1.msra.mxu0 0.0
      %4337 = vmatprep.subr.mxu0 0.0
      %4338 = vmatpush1.msra.mxu0 0.0
      %4339 = vmatprep.subr.mxu0 0.0
      %4340 = vmatpush1.msra.mxu0 0.0
      %4341 = vmatprep.subr.mxu0 0.0
      %4342 = vmatpush1.msra.mxu0 0.0
      %4343 = vmatprep.subr.mxu0 0.0
      %4344 = vmatpush1.msra.mxu0 %v2976
      %4345 = vmatprep.subr.mxu0 0.0
      %4346 = vmatpush2.msra.mxu0 0.0
      %4347 = vmatprep.subr.mxu0 0.0
      %4348 = vmatpush2.msra.mxu0 0.0
      %4349 = vmatprep.subr.mxu0 0.0
      %4350 = vmatpush2.msra.mxu0 0.0
      %4351 = vmatprep.subr.mxu0 0.0
      %4352 = vmatpush2.msra.mxu0 0.0
      %4353 = vmatprep.subr.mxu0 0.0
      %4354 = vmatpush2.msra.mxu0 0.0
      %4355 = vmatprep.subr.mxu0 0.0
      %4356 = vmatpush2.msra.mxu0 0.0
      %4357 = vmatprep.subr.mxu0 0.0
      %4358 = vmatpush2.msra.mxu0 0.0
      %4359 = vmatprep.subr.mxu0 0.0
      %4360 = vmatpush2.msra.mxu0 0.0
      %4361 = vmatprep.subr.mxu0 0.0
      %4362 = vmatpush2.msra.mxu0 0.0
      %4363 = vmatprep.subr.mxu0 0.0
      %4364 = vmatpush2.msra.mxu0 0.0
      %4365 = vmatprep.subr.mxu0 0.0
      %4366 = vmatpush2.msra.mxu0 0.0
      %4367 = vmatprep.subr.mxu0 0.0
      %4368 = vmatpush2.msra.mxu0 0.0
      %4369 = vmatprep.subr.mxu0 0.0
      %4370 = vmatpush2.msra.mxu0 0.0
      %4371 = vmatprep.subr.mxu0 0.0
      %4372 = vmatpush2.msra.mxu0 0.0
      %4373 = vmatprep.subr.mxu0 0.0
      %4374 = vmatpush2.msra.mxu0 0.0
      %4375 = vmatprep.subr.mxu0 0.0
      %4376 = vmatpush2.msra.mxu0 0.0
      %4377 = vmatprep.mubr.f32.mxu0 0.0
      %4378 = vmatmul.mubr.f32.gmra.mxu0 %v4308
      %v4379 = vpop.f32.mrf.mxu0
      %v4380 = vadd.f32 0.0, %v4379
      %v4381 = vpop.f32.mrf.mxu0
      %4382 = vmatprep.mubr.f32.mxu0 0.0
      %4383 = vmatmul.mubr.f32.gmra.mxu0 %v4311
      %v4384 = vpop.f32.mrf.mxu0
      %v4385 = vadd.f32 0.0, %v4384
      %v4386 = vpop.f32.mrf.mxu0
      %4387 = vdwg.mxu0
      %v4388 = vadd.f32 %v3967, %v4380
      %v4389 = vadd.f32 %v3972, %v4385
      %4390 = vrot.lane.b32.xlu0 %v3058, 104
      %v4391 = vpop.permute.xlu0 %4390
      %4392 = vrot.lane.b32.xlu0 %v3145, 104
      %v4393 = vpop.permute.xlu0 %4392
      %v4394 = vsel %vm1256, %v4391, 0
      %v4396 = vsel %vm1256, %v4393, 0
      %4398 = vmatprep.subr.mxu0 0.0
      %4399 = vmatpush1.xpose.msra.mxu0 0.0
      %4400 = vmatprep.subr.mxu0 0.0
      %4401 = vmatpush1.xpose.msra.mxu0 0.0
      %4402 = vmatprep.subr.mxu0 0.0
      %4403 = vmatpush1.xpose.msra.mxu0 0.0
      %4404 = vmatprep.subr.mxu0 0.0
      %4405 = vmatpush1.xpose.msra.mxu0 0.0
      %4406 = vmatprep.subr.mxu0 0.0
      %4407 = vmatpush1.xpose.msra.mxu0 0.0
      %4408 = vmatprep.subr.mxu0 0.0
      %4409 = vmatpush1.xpose.msra.mxu0 0.0
      %4410 = vmatprep.subr.mxu0 0.0
      %4411 = vmatpush1.xpose.msra.mxu0 0.0
      %4412 = vmatprep.subr.mxu0 0.0
      %4413 = vmatpush1.xpose.msra.mxu0 0.0
      %4414 = vmatprep.subr.mxu0 0.0
      %4415 = vmatpush1.xpose.msra.mxu0 0.0
      %4416 = vmatprep.subr.mxu0 0.0
      %4417 = vmatpush1.xpose.msra.mxu0 0.0
      %4418 = vmatprep.subr.mxu0 0.0
      %4419 = vmatpush1.xpose.msra.mxu0 0.0
      %4420 = vmatprep.subr.mxu0 0.0
      %4421 = vmatpush1.xpose.msra.mxu0 0.0
      %4422 = vmatprep.subr.mxu0 0.0
      %4423 = vmatpush1.xpose.msra.mxu0 0.0
      %4424 = vmatprep.subr.mxu0 0.0
      %4425 = vmatpush1.xpose.msra.mxu0 0.0
      %4426 = vmatprep.subr.mxu0 0.0
      %4427 = vmatpush1.xpose.msra.mxu0 0.0
      %4428 = vmatprep.subr.mxu0 0.0
      %4429 = vmatpush1.xpose.msra.mxu0 %v4396
      %4430 = vmatprep.subr.mxu0 0.0
      %4431 = vmatpush2.xpose.msra.mxu0 0.0
      %4432 = vmatprep.subr.mxu0 0.0
      %4433 = vmatpush2.xpose.msra.mxu0 0.0
      %4434 = vmatprep.subr.mxu0 0.0
      %4435 = vmatpush2.xpose.msra.mxu0 0.0
      %4436 = vmatprep.subr.mxu0 0.0
      %4437 = vmatpush2.xpose.msra.mxu0 0.0
      %4438 = vmatprep.subr.mxu0 0.0
      %4439 = vmatpush2.xpose.msra.mxu0 0.0
      %4440 = vmatprep.subr.mxu0 0.0
      %4441 = vmatpush2.xpose.msra.mxu0 0.0
      %4442 = vmatprep.subr.mxu0 0.0
      %4443 = vmatpush2.xpose.msra.mxu0 0.0
      %4444 = vmatprep.subr.mxu0 0.0
      %4445 = vmatpush2.xpose.msra.mxu0 0.0
      %4446 = vmatprep.subr.mxu0 0.0
      %4447 = vmatpush2.xpose.msra.mxu0 0.0
      %4448 = vmatprep.subr.mxu0 0.0
      %4449 = vmatpush2.xpose.msra.mxu0 0.0
      %4450 = vmatprep.subr.mxu0 0.0
      %4451 = vmatpush2.xpose.msra.mxu0 0.0
      %4452 = vmatprep.subr.mxu0 0.0
      %4453 = vmatpush2.xpose.msra.mxu0 0.0
      %4454 = vmatprep.subr.mxu0 0.0
      %4455 = vmatpush2.xpose.msra.mxu0 0.0
      %4456 = vmatprep.subr.mxu0 0.0
      %4457 = vmatpush2.xpose.msra.mxu0 0.0
      %4458 = vmatprep.subr.mxu0 0.0
      %4459 = vmatpush2.xpose.msra.mxu0 0.0
      %4460 = vmatprep.subr.mxu0 0.0
      %4461 = vmatpush2.xpose.msra.mxu0 0.0
      %4462 = vmatprep.mubr.f32.mxu0 0.0
      %4463 = vmatmul.mubr.f32.gmra.mxu0 %v4394
      %v4464 = vpop.f32.mrf.mxu0
      %v4465 = vadd.f32 0.0, %v4464
      %v4466 = vpop.f32.mrf.mxu0
      %4467 = vdwg.mxu0
      %4468 = vrot.lane.b32.xlu0 %v3063, 104
      %v4469 = vpop.permute.xlu0 %4468
      %4470 = vrot.lane.b32.xlu0 %v3150, 104
      %v4471 = vpop.permute.xlu0 %4470
      %v4472 = vsel %vm1256, %v4469, 0
      %v4474 = vsel %vm1256, %v4471, 0
      %4476 = vmatprep.subr.mxu0 0.0
      %4477 = vmatpush1.xpose.msra.mxu0 0.0
      %4478 = vmatprep.subr.mxu0 0.0
      %4479 = vmatpush1.xpose.msra.mxu0 0.0
      %4480 = vmatprep.subr.mxu0 0.0
      %4481 = vmatpush1.xpose.msra.mxu0 0.0
      %4482 = vmatprep.subr.mxu0 0.0
      %4483 = vmatpush1.xpose.msra.mxu0 0.0
      %4484 = vmatprep.subr.mxu0 0.0
      %4485 = vmatpush1.xpose.msra.mxu0 0.0
      %4486 = vmatprep.subr.mxu0 0.0
      %4487 = vmatpush1.xpose.msra.mxu0 0.0
      %4488 = vmatprep.subr.mxu0 0.0
      %4489 = vmatpush1.xpose.msra.mxu0 0.0
      %4490 = vmatprep.subr.mxu0 0.0
      %4491 = vmatpush1.xpose.msra.mxu0 0.0
      %4492 = vmatprep.subr.mxu0 0.0
      %4493 = vmatpush1.xpose.msra.mxu0 0.0
      %4494 = vmatprep.subr.mxu0 0.0
      %4495 = vmatpush1.xpose.msra.mxu0 0.0
      %4496 = vmatprep.subr.mxu0 0.0
      %4497 = vmatpush1.xpose.msra.mxu0 0.0
      %4498 = vmatprep.subr.mxu0 0.0
      %4499 = vmatpush1.xpose.msra.mxu0 0.0
      %4500 = vmatprep.subr.mxu0 0.0
      %4501 = vmatpush1.xpose.msra.mxu0 0.0
      %4502 = vmatprep.subr.mxu0 0.0
      %4503 = vmatpush1.xpose.msra.mxu0 0.0
      %4504 = vmatprep.subr.mxu0 0.0
      %4505 = vmatpush1.xpose.msra.mxu0 0.0
      %4506 = vmatprep.subr.mxu0 0.0
      %4507 = vmatpush1.xpose.msra.mxu0 %v4474
      %4508 = vmatprep.subr.mxu0 0.0
      %4509 = vmatpush2.xpose.msra.mxu0 0.0
      %4510 = vmatprep.subr.mxu0 0.0
      %4511 = vmatpush2.xpose.msra.mxu0 0.0
      %4512 = vmatprep.subr.mxu0 0.0
      %4513 = vmatpush2.xpose.msra.mxu0 0.0
      %4514 = vmatprep.subr.mxu0 0.0
      %4515 = vmatpush2.xpose.msra.mxu0 0.0
      %4516 = vmatprep.subr.mxu0 0.0
      %4517 = vmatpush2.xpose.msra.mxu0 0.0
      %4518 = vmatprep.subr.mxu0 0.0
      %4519 = vmatpush2.xpose.msra.mxu0 0.0
      %4520 = vmatprep.subr.mxu0 0.0
      %4521 = vmatpush2.xpose.msra.mxu0 0.0
      %4522 = vmatprep.subr.mxu0 0.0
      %4523 = vmatpush2.xpose.msra.mxu0 0.0
      %4524 = vmatprep.subr.mxu0 0.0
      %4525 = vmatpush2.xpose.msra.mxu0 0.0
      %4526 = vmatprep.subr.mxu0 0.0
      %4527 = vmatpush2.xpose.msra.mxu0 0.0
      %4528 = vmatprep.subr.mxu0 0.0
      %4529 = vmatpush2.xpose.msra.mxu0 0.0
      %4530 = vmatprep.subr.mxu0 0.0
      %4531 = vmatpush2.xpose.msra.mxu0 0.0
      %4532 = vmatprep.subr.mxu0 0.0
      %4533 = vmatpush2.xpose.msra.mxu0 0.0
      %4534 = vmatprep.subr.mxu0 0.0
      %4535 = vmatpush2.xpose.msra.mxu0 0.0
      %4536 = vmatprep.subr.mxu0 0.0
      %4537 = vmatpush2.xpose.msra.mxu0 0.0
      %4538 = vmatprep.subr.mxu0 0.0
      %4539 = vmatpush2.xpose.msra.mxu0 0.0
      %4540 = vmatprep.mubr.f32.mxu0 0.0
      %4541 = vmatmul.mubr.f32.gmra.mxu0 %v4472
      %v4542 = vpop.f32.mrf.mxu0
      %v4543 = vadd.f32 0.0, %v4542
      %v4544 = vpop.f32.mrf.mxu0
      %4545 = vdwg.mxu0
      %v4546 = vmul.f32 %v4465, 0.35355338
      %v4547 = vmul.f32 %v4543, 0.35355338
      %v4548 = vsel %vm1256, %v4546, -inf
      %4549 = vmax.xlane.f32.xlu0 %v4548
      %v4550 = vpop.xlane.xlu0 %4549
      %v4551 = vsel %vm1256, %v4547, -inf
      %4552 = vmax.xlane.f32.xlu0 %v4551
      %v4553 = vpop.xlane.xlu0 %4552
      %v4554 = vsub.f32 %v4546, %v4550
      %v4555 = vsub.f32 %v4547, %v4553
      %v4556 = vmul.f32 %v4554, 1.442695
      %v4557 = vpow.pop %v4556
      %v4558 = vmul.f32 %v4555, 1.442695
      %v4559 = vpow.pop %v4558
      %v4560 = vsel %vm1256, %v4557, 0.0
      %4561 = vadd.xlane.f32.xlu0 %v4560
      %v4562 = vpop.xlane.xlu0 %4561
      %v4563 = vsel %vm1256, %v4559, 0.0
      %4564 = vadd.xlane.f32.xlu0 %v4563
      %v4565 = vpop.xlane.xlu0 %4564
      %4566 = vrot.lane.b32.xlu0 %v3145, 72
      %v4567 = vpop.permute.xlu0 %4566
      %v4570 = vsel %vm1256, %v4557, 0
      %4572 = vmatprep.subr.mxu0 0.0
      %4573 = vmatpush1.msra.mxu0 0.0
      %4574 = vmatprep.subr.mxu0 0.0
      %4575 = vmatpush1.msra.mxu0 0.0
      %4576 = vmatprep.subr.mxu0 0.0
      %4577 = vmatpush1.msra.mxu0 0.0
      %4578 = vmatprep.subr.mxu0 0.0
      %4579 = vmatpush1.msra.mxu0 0.0
      %4580 = vmatprep.subr.mxu0 0.0
      %4581 = vmatpush1.msra.mxu0 0.0
      %4582 = vmatprep.subr.mxu0 0.0
      %4583 = vmatpush1.msra.mxu0 0.0
      %4584 = vmatprep.subr.mxu0 0.0
      %4585 = vmatpush1.msra.mxu0 0.0
      %4586 = vmatprep.subr.mxu0 0.0
      %4587 = vmatpush1.msra.mxu0 0.0
      %4588 = vmatprep.subr.mxu0 0.0
      %4589 = vmatpush1.msra.mxu0 0.0
      %4590 = vmatprep.subr.mxu0 0.0
      %4591 = vmatpush1.msra.mxu0 0.0
      %4592 = vmatprep.subr.mxu0 0.0
      %4593 = vmatpush1.msra.mxu0 0.0
      %4594 = vmatprep.subr.mxu0 0.0
      %4595 = vmatpush1.msra.mxu0 0.0
      %4596 = vmatprep.subr.mxu0 0.0
      %4597 = vmatpush1.msra.mxu0 0.0
      %4598 = vmatprep.subr.mxu0 0.0
      %4599 = vmatpush1.msra.mxu0 0.0
      %4600 = vmatprep.subr.mxu0 0.0
      %4601 = vmatpush1.msra.mxu0 0.0
      %4602 = vmatprep.subr.mxu0 0.0
      %4603 = vmatpush1.msra.mxu0 %v4567
      %4604 = vmatprep.subr.mxu0 0.0
      %4605 = vmatpush2.msra.mxu0 0.0
      %4606 = vmatprep.subr.mxu0 0.0
      %4607 = vmatpush2.msra.mxu0 0.0
      %4608 = vmatprep.subr.mxu0 0.0
      %4609 = vmatpush2.msra.mxu0 0.0
      %4610 = vmatprep.subr.mxu0 0.0
      %4611 = vmatpush2.msra.mxu0 0.0
      %4612 = vmatprep.subr.mxu0 0.0
      %4613 = vmatpush2.msra.mxu0 0.0
      %4614 = vmatprep.subr.mxu0 0.0
      %4615 = vmatpush2.msra.mxu0 0.0
      %4616 = vmatprep.subr.mxu0 0.0
      %4617 = vmatpush2.msra.mxu0 0.0
      %4618 = vmatprep.subr.mxu0 0.0
      %4619 = vmatpush2.msra.mxu0 0.0
      %4620 = vmatprep.subr.mxu0 0.0
      %4621 = vmatpush2.msra.mxu0 0.0
      %4622 = vmatprep.subr.mxu0 0.0
      %4623 = vmatpush2.msra.mxu0 0.0
      %4624 = vmatprep.subr.mxu0 0.0
      %4625 = vmatpush2.msra.mxu0 0.0
      %4626 = vmatprep.subr.mxu0 0.0
      %4627 = vmatpush2.msra.mxu0 0.0
      %4628 = vmatprep.subr.mxu0 0.0
      %4629 = vmatpush2.msra.mxu0 0.0
      %4630 = vmatprep.subr.mxu0 0.0
      %4631 = vmatpush2.msra.mxu0 0.0
      %4632 = vmatprep.subr.mxu0 0.0
      %4633 = vmatpush2.msra.mxu0 0.0
      %4634 = vmatprep.subr.mxu0 0.0
      %4635 = vmatpush2.msra.mxu0 0.0
      %4636 = vmatprep.mubr.f32.mxu0 0.0
      %4637 = vmatmul.mubr.f32.gmra.mxu0 %v4570
      %v4638 = vpop.f32.mrf.mxu0
      %v4639 = vadd.f32 0.0, %v4638
      %v4640 = vpop.f32.mrf.mxu0
      %4641 = vdwg.mxu0
      %4642 = vrot.lane.b32.xlu0 %v3150, 72
      %v4643 = vpop.permute.xlu0 %4642
      %v4646 = vsel %vm1256, %v4559, 0
      %4648 = vmatprep.subr.mxu0 0.0
      %4649 = vmatpush1.msra.mxu0 0.0
      %4650 = vmatprep.subr.mxu0 0.0
      %4651 = vmatpush1.msra.mxu0 0.0
      %4652 = vmatprep.subr.mxu0 0.0
      %4653 = vmatpush1.msra.mxu0 0.0
      %4654 = vmatprep.subr.mxu0 0.0
      %4655 = vmatpush1.msra.mxu0 0.0
      %4656 = vmatprep.subr.mxu0 0.0
      %4657 = vmatpush1.msra.mxu0 0.0
      %4658 = vmatprep.subr.mxu0 0.0
      %4659 = vmatpush1.msra.mxu0 0.0
      %4660 = vmatprep.subr.mxu0 0.0
      %4661 = vmatpush1.msra.mxu0 0.0
      %4662 = vmatprep.subr.mxu0 0.0
      %4663 = vmatpush1.msra.mxu0 0.0
      %4664 = vmatprep.subr.mxu0 0.0
      %4665 = vmatpush1.msra.mxu0 0.0
      %4666 = vmatprep.subr.mxu0 0.0
      %4667 = vmatpush1.msra.mxu0 0.0
      %4668 = vmatprep.subr.mxu0 0.0
      %4669 = vmatpush1.msra.mxu0 0.0
      %4670 = vmatprep.subr.mxu0 0.0
      %4671 = vmatpush1.msra.mxu0 0.0
      %4672 = vmatprep.subr.mxu0 0.0
      %4673 = vmatpush1.msra.mxu0 0.0
      %4674 = vmatprep.subr.mxu0 0.0
      %4675 = vmatpush1.msra.mxu0 0.0
      %4676 = vmatprep.subr.mxu0 0.0
      %4677 = vmatpush1.msra.mxu0 0.0
      %4678 = vmatprep.subr.mxu0 0.0
      %4679 = vmatpush1.msra.mxu0 %v4643
      %4680 = vmatprep.subr.mxu0 0.0
      %4681 = vmatpush2.msra.mxu0 0.0
      %4682 = vmatprep.subr.mxu0 0.0
      %4683 = vmatpush2.msra.mxu0 0.0
      %4684 = vmatprep.subr.mxu0 0.0
      %4685 = vmatpush2.msra.mxu0 0.0
      %4686 = vmatprep.subr.mxu0 0.0
      %4687 = vmatpush2.msra.mxu0 0.0
      %4688 = vmatprep.subr.mxu0 0.0
      %4689 = vmatpush2.msra.mxu0 0.0
      %4690 = vmatprep.subr.mxu0 0.0
      %4691 = vmatpush2.msra.mxu0 0.0
      %4692 = vmatprep.subr.mxu0 0.0
      %4693 = vmatpush2.msra.mxu0 0.0
      %4694 = vmatprep.subr.mxu0 0.0
      %4695 = vmatpush2.msra.mxu0 0.0
      %4696 = vmatprep.subr.mxu0 0.0
      %4697 = vmatpush2.msra.mxu0 0.0
      %4698 = vmatprep.subr.mxu0 0.0
      %4699 = vmatpush2.msra.mxu0 0.0
      %4700 = vmatprep.subr.mxu0 0.0
      %4701 = vmatpush2.msra.mxu0 0.0
      %4702 = vmatprep.subr.mxu0 0.0
      %4703 = vmatpush2.msra.mxu0 0.0
      %4704 = vmatprep.subr.mxu0 0.0
      %4705 = vmatpush2.msra.mxu0 0.0
      %4706 = vmatprep.subr.mxu0 0.0
      %4707 = vmatpush2.msra.mxu0 0.0
      %4708 = vmatprep.subr.mxu0 0.0
      %4709 = vmatpush2.msra.mxu0 0.0
      %4710 = vmatprep.subr.mxu0 0.0
      %4711 = vmatpush2.msra.mxu0 0.0
      %4712 = vmatprep.mubr.f32.mxu0 0.0
      %4713 = vmatmul.mubr.f32.gmra.mxu0 %v4646
      %v4714 = vpop.f32.mrf.mxu0
      %v4715 = vadd.f32 0.0, %v4714
      %v4716 = vpop.f32.mrf.mxu0
      %4717 = vdwg.mxu0
      %v4718 = vrcp.pop %v4562
      %v4719 = vrcp.pop %v4565
      %v4720 = vmul.f32 %v4639, %v4718
      %v4721 = vmul.f32 %v4715, %v4719
      %v4723 = vsel %vm1256, %v4720, 0
      %v4726 = vsel %vm1256, %v4721, 0
      %4728 = vmatprep.subr.mxu0 0.0
      %4729 = vmatpush1.msra.mxu0 0.0
      %4730 = vmatprep.subr.mxu0 0.0
      %4731 = vmatpush1.msra.mxu0 0.0
      %4732 = vmatprep.subr.mxu0 0.0
      %4733 = vmatpush1.msra.mxu0 0.0
      %4734 = vmatprep.subr.mxu0 0.0
      %4735 = vmatpush1.msra.mxu0 0.0
      %4736 = vmatprep.subr.mxu0 0.0
      %4737 = vmatpush1.msra.mxu0 0.0
      %4738 = vmatprep.subr.mxu0 0.0
      %4739 = vmatpush1.msra.mxu0 0.0
      %4740 = vmatprep.subr.mxu0 0.0
      %4741 = vmatpush1.msra.mxu0 0.0
      %4742 = vmatprep.subr.mxu0 0.0
      %4743 = vmatpush1.msra.mxu0 0.0
      %4744 = vmatprep.subr.mxu0 0.0
      %4745 = vmatpush1.msra.mxu0 0.0
      %4746 = vmatprep.subr.mxu0 0.0
      %4747 = vmatpush1.msra.mxu0 0.0
      %4748 = vmatprep.subr.mxu0 0.0
      %4749 = vmatpush1.msra.mxu0 0.0
      %4750 = vmatprep.subr.mxu0 0.0
      %4751 = vmatpush1.msra.mxu0 0.0
      %4752 = vmatprep.subr.mxu0 0.0
      %4753 = vmatpush1.msra.mxu0 0.0
      %4754 = vmatprep.subr.mxu0 0.0
      %4755 = vmatpush1.msra.mxu0 0.0
      %4756 = vmatprep.subr.mxu0 0.0
      %4757 = vmatpush1.msra.mxu0 0.0
      %4758 = vmatprep.subr.mxu0 0.0
      %4759 = vmatpush1.msra.mxu0 %v2977
      %4760 = vmatprep.subr.mxu0 0.0
      %4761 = vmatpush2.msra.mxu0 0.0
      %4762 = vmatprep.subr.mxu0 0.0
      %4763 = vmatpush2.msra.mxu0 0.0
      %4764 = vmatprep.subr.mxu0 0.0
      %4765 = vmatpush2.msra.mxu0 0.0
      %4766 = vmatprep.subr.mxu0 0.0
      %4767 = vmatpush2.msra.mxu0 0.0
      %4768 = vmatprep.subr.mxu0 0.0
      %4769 = vmatpush2.msra.mxu0 0.0
      %4770 = vmatprep.subr.mxu0 0.0
      %4771 = vmatpush2.msra.mxu0 0.0
      %4772 = vmatprep.subr.mxu0 0.0
      %4773 = vmatpush2.msra.mxu0 0.0
      %4774 = vmatprep.subr.mxu0 0.0
      %4775 = vmatpush2.msra.mxu0 0.0
      %4776 = vmatprep.subr.mxu0 0.0
      %4777 = vmatpush2.msra.mxu0 0.0
      %4778 = vmatprep.subr.mxu0 0.0
      %4779 = vmatpush2.msra.mxu0 0.0
      %4780 = vmatprep.subr.mxu0 0.0
      %4781 = vmatpush2.msra.mxu0 0.0
      %4782 = vmatprep.subr.mxu0 0.0
      %4783 = vmatpush2.msra.mxu0 0.0
      %4784 = vmatprep.subr.mxu0 0.0
      %4785 = vmatpush2.msra.mxu0 0.0
      %4786 = vmatprep.subr.mxu0 0.0
      %4787 = vmatpush2.msra.mxu0 0.0
      %4788 = vmatprep.subr.mxu0 0.0
      %4789 = vmatpush2.msra.mxu0 0.0
      %4790 = vmatprep.subr.mxu0 0.0
      %4791 = vmatpush2.msra.mxu0 0.0
      %4792 = vmatprep.mubr.f32.mxu0 0.0
      %4793 = vmatmul.mubr.f32.gmra.mxu0 %v4723
      %v4794 = vpop.f32.mrf.mxu0
      %v4795 = vadd.f32 0.0, %v4794
      %v4796 = vpop.f32.mrf.mxu0
      %4797 = vmatprep.mubr.f32.mxu0 0.0
      %4798 = vmatmul.mubr.f32.gmra.mxu0 %v4726
      %v4799 = vpop.f32.mrf.mxu0
      %v4800 = vadd.f32 0.0, %v4799
      %v4801 = vpop.f32.mrf.mxu0
      %4802 = vdwg.mxu0
      %v4803 = vadd.f32 %v4388, %v4795
      %v4804 = vadd.f32 %v4389, %v4800
      %v4806 = vlaneseq
      %v4807 = vshrl.u32 %v4806, 7
      %v4808 = vsub.s32 0, %v4807
      %v4809 = vrot.slane %v2978, %v4808
      %v4811 = vadd.f32 %v4803, %v4809
      %v4812 = vadd.f32 %v4804, %v4809
      %v4813 = vadd.f32 %v2962, %v4811
      %v4814 = vadd.f32 %v2963, %v4812
      %v4815 = vld [vmem:[%s1033] sm:$0x1]
      %v4816 = vld [vmem:[%s1036] sm:$0x1]
      %v4817 = vsel %vm1093, %v4813, 0.0
      %4818 = vadd.xlane.f32.xlu0 %v4817
      %v4819 = vpop.xlane.xlu0 %4818
      %v4820 = vsel %vm1093, %v4814, 0.0
      %4821 = vadd.xlane.f32.xlu0 %v4820
      %v4822 = vpop.xlane.xlu0 %4821
      %v4823 = vmul.f32 %v4819, %v2927
      %v4824 = vmul.f32 %v4822, %v2927
      %v4825 = vsub.f32 %v4813, %v4823
      %v4826 = vsub.f32 %v4814, %v4824
      %v4827 = vmul.f32 %v4825, %v4825
      %v4828 = vmul.f32 %v4826, %v4826
      %v4829 = vsel %vm1093, %v4827, 0.0
      %4830 = vadd.xlane.f32.xlu0 %v4829
      %v4831 = vpop.xlane.xlu0 %4830
      %v4832 = vsel %vm1093, %v4828, 0.0
      %4833 = vadd.xlane.f32.xlu0 %v4832
      %v4834 = vpop.xlane.xlu0 %4833
      %v4835 = vmul.f32 %v4831, %v2927
      %v4836 = vmul.f32 %v4834, %v2927
      %v4837 = vadd.f32 %v4835, 1e-05
      %v4838 = vadd.f32 %v4836, 1e-05
      %v4839 = vrsqrt.pop %v4837
      %v4840 = vrsqrt.pop %v4838
      %v4841 = vmul.f32 %v4825, %v4839
      %v4842 = vmul.f32 %v4826, %v4840
      %v4844 = vlaneseq
      %v4845 = vshrl.u32 %v4844, 7
      %v4846 = vsub.s32 0, %v4845
      %v4847 = vrot.slane %v4815, %v4846
      %v4849 = vmul.f32 %v4841, %v4847
      %v4850 = vmul.f32 %v4842, %v4847
      %v4852 = vlaneseq
      %v4853 = vshrl.u32 %v4852, 7
      %v4854 = vsub.s32 0, %v4853
      %v4855 = vrot.slane %v4816, %v4854
      %v4857 = vadd.f32 %v4849, %v4855
      %v4858 = vadd.f32 %v4850, %v4855
      %v4859 = vld [vmem:[%s1041] sm:$0xff]
      %v4860 = vld [vmem:[%s1041 + $0x8] sm:$0xff]
      %v4861 = vld [vmem:[%s1041 + $0x10] sm:$0xff]
      %v4862 = vld [vmem:[%s1041 + $0x18] sm:$0xff]
      %v4863 = vld [vmem:[%s1044] sm:$0x1]
      %v4864 = vld [vmem:[%s1049] sm:$0xff]
      %v4865 = vld [vmem:[%s1049 + $0x8] sm:$0xff]
      %v4866 = vld [vmem:[%s1049 + $0x10] sm:$0xff]
      %v4867 = vld [vmem:[%s1049 + $0x18] sm:$0xff]
      %v4868 = vld [vmem:[%s1049 + $0x20] sm:$0xff]
      %v4869 = vld [vmem:[%s1049 + $0x28] sm:$0xff]
      %v4870 = vld [vmem:[%s1049 + $0x30] sm:$0xff]
      %v4871 = vld [vmem:[%s1049 + $0x38] sm:$0xff]
      %v4872 = vld [vmem:[%s1049 + $0x40] sm:$0xff]
      %v4873 = vld [vmem:[%s1049 + $0x48] sm:$0xff]
      %v4874 = vld [vmem:[%s1049 + $0x50] sm:$0xff]
      %v4875 = vld [vmem:[%s1049 + $0x58] sm:$0xff]
      %v4876 = vld [vmem:[%s1049 + $0x60] sm:$0xff]
      %v4877 = vld [vmem:[%s1049 + $0x68] sm:$0xff]
      %v4878 = vld [vmem:[%s1049 + $0x70] sm:$0xff]
      %v4879 = vld [vmem:[%s1049 + $0x78] sm:$0xff]
      %v4880 = vld [vmem:[%s1052] sm:$0x1]
      %v4882 = vlaneseq
      %v4883 = vshrl.u32 %v4882, 7
      %v4884 = vsub.s32 0, %v4883
      %v4885 = vrot.slane %v4863, %v4884
      %v4888 = vsel %vm1093, %v4857, 0
      %v4891 = vsel %vm1093, %v4858, 0
      %4893 = vmatprep.subr.mxu0 0.0
      %4894 = vmatpush1.msra.mxu0 0.0
      %4895 = vmatprep.subr.mxu0 0.0
      %4896 = vmatpush1.msra.mxu0 0.0
      %4897 = vmatprep.subr.mxu0 0.0
      %4898 = vmatpush1.msra.mxu0 0.0
      %4899 = vmatprep.subr.mxu0 0.0
      %4900 = vmatpush1.msra.mxu0 0.0
      %4901 = vmatprep.subr.mxu0 0.0
      %4902 = vmatpush1.msra.mxu0 0.0
      %4903 = vmatprep.subr.mxu0 0.0
      %4904 = vmatpush1.msra.mxu0 0.0
      %4905 = vmatprep.subr.mxu0 0.0
      %4906 = vmatpush1.msra.mxu0 0.0
      %4907 = vmatprep.subr.mxu0 0.0
      %4908 = vmatpush1.msra.mxu0 0.0
      %4909 = vmatprep.subr.mxu0 0.0
      %4910 = vmatpush1.msra.mxu0 0.0
      %4911 = vmatprep.subr.mxu0 0.0
      %4912 = vmatpush1.msra.mxu0 0.0
      %4913 = vmatprep.subr.mxu0 0.0
      %4914 = vmatpush1.msra.mxu0 0.0
      %4915 = vmatprep.subr.mxu0 0.0
      %4916 = vmatpush1.msra.mxu0 0.0
      %4917 = vmatprep.subr.mxu0 0.0
      %4918 = vmatpush1.msra.mxu0 %v4862
      %4919 = vmatprep.subr.mxu0 0.0
      %4920 = vmatpush1.msra.mxu0 %v4861
      %4921 = vmatprep.subr.mxu0 0.0
      %4922 = vmatpush1.msra.mxu0 %v4860
      %4923 = vmatprep.subr.mxu0 0.0
      %4924 = vmatpush1.msra.mxu0 %v4859
      %4925 = vmatprep.subr.mxu0 0.0
      %4926 = vmatpush2.msra.mxu0 0.0
      %4927 = vmatprep.subr.mxu0 0.0
      %4928 = vmatpush2.msra.mxu0 0.0
      %4929 = vmatprep.subr.mxu0 0.0
      %4930 = vmatpush2.msra.mxu0 0.0
      %4931 = vmatprep.subr.mxu0 0.0
      %4932 = vmatpush2.msra.mxu0 0.0
      %4933 = vmatprep.subr.mxu0 0.0
      %4934 = vmatpush2.msra.mxu0 0.0
      %4935 = vmatprep.subr.mxu0 0.0
      %4936 = vmatpush2.msra.mxu0 0.0
      %4937 = vmatprep.subr.mxu0 0.0
      %4938 = vmatpush2.msra.mxu0 0.0
      %4939 = vmatprep.subr.mxu0 0.0
      %4940 = vmatpush2.msra.mxu0 0.0
      %4941 = vmatprep.subr.mxu0 0.0
      %4942 = vmatpush2.msra.mxu0 0.0
      %4943 = vmatprep.subr.mxu0 0.0
      %4944 = vmatpush2.msra.mxu0 0.0
      %4945 = vmatprep.subr.mxu0 0.0
      %4946 = vmatpush2.msra.mxu0 0.0
      %4947 = vmatprep.subr.mxu0 0.0
      %4948 = vmatpush2.msra.mxu0 0.0
      %4949 = vmatprep.subr.mxu0 0.0
      %4950 = vmatpush2.msra.mxu0 0.0
      %4951 = vmatprep.subr.mxu0 0.0
      %4952 = vmatpush2.msra.mxu0 0.0
      %4953 = vmatprep.subr.mxu0 0.0
      %4954 = vmatpush2.msra.mxu0 0.0
      %4955 = vmatprep.subr.mxu0 0.0
      %4956 = vmatpush2.msra.mxu0 0.0
      %4957 = vmatprep.mubr.f32.mxu0 0.0
      %4958 = vmatmul.mubr.f32.gmra.mxu0 %v4888
      %v4959 = vpop.f32.mrf.mxu0
      %v4960 = vadd.f32 %v4885, %v4959
      %v4961 = vpop.f32.mrf.mxu0
      %4962 = vmatprep.mubr.f32.mxu0 0.0
      %4963 = vmatmul.mubr.f32.gmra.mxu0 %v4891
      %v4964 = vpop.f32.mrf.mxu0
      %v4965 = vadd.f32 %v4885, %v4964
      %v4966 = vpop.f32.mrf.mxu0
      %4967 = vdwg.mxu0
      %v4968 = vmax.f32 %v4960, 0.0
      %v4969 = vmax.f32 %v4965, 0.0
      %v4971 = vlaneseq
      %v4972 = vshrl.u32 %v4971, 7
      %v4973 = vsub.s32 0, %v4972
      %v4974 = vrot.slane %v4880, %v4973
      %4976 = vmatprep.subr.mxu0 0.0
      %4977 = vmatpush1.msra.mxu0 %v4879
      %4978 = vmatprep.subr.mxu0 0.0
      %4979 = vmatpush1.msra.mxu0 %v4878
      %4980 = vmatprep.subr.mxu0 0.0
      %4981 = vmatpush1.msra.mxu0 %v4877
      %4982 = vmatprep.subr.mxu0 0.0
      %4983 = vmatpush1.msra.mxu0 %v4876
      %4984 = vmatprep.subr.mxu0 0.0
      %4985 = vmatpush1.msra.mxu0 %v4875
      %4986 = vmatprep.subr.mxu0 0.0
      %4987 = vmatpush1.msra.mxu0 %v4874
      %4988 = vmatprep.subr.mxu0 0.0
      %4989 = vmatpush1.msra.mxu0 %v4873
      %4990 = vmatprep.subr.mxu0 0.0
      %4991 = vmatpush1.msra.mxu0 %v4872
      %4992 = vmatprep.subr.mxu0 0.0
      %4993 = vmatpush1.msra.mxu0 %v4871
      %4994 = vmatprep.subr.mxu0 0.0
      %4995 = vmatpush1.msra.mxu0 %v4870
      %4996 = vmatprep.subr.mxu0 0.0
      %4997 = vmatpush1.msra.mxu0 %v4869
      %4998 = vmatprep.subr.mxu0 0.0
      %4999 = vmatpush1.msra.mxu0 %v4868
      %5000 = vmatprep.subr.mxu0 0.0
      %5001 = vmatpush1.msra.mxu0 %v4867
      %5002 = vmatprep.subr.mxu0 0.0
      %5003 = vmatpush1.msra.mxu0 %v4866
      %5004 = vmatprep.subr.mxu0 0.0
      %5005 = vmatpush1.msra.mxu0 %v4865
      %5006 = vmatprep.subr.mxu0 0.0
      %5007 = vmatpush1.msra.mxu0 %v4864
      %5008 = vmatprep.subr.mxu0 0.0
      %5009 = vmatpush2.msra.mxu0 0.0
      %5010 = vmatprep.subr.mxu0 0.0
      %5011 = vmatpush2.msra.mxu0 0.0
      %5012 = vmatprep.subr.mxu0 0.0
      %5013 = vmatpush2.msra.mxu0 0.0
      %5014 = vmatprep.subr.mxu0 0.0
      %5015 = vmatpush2.msra.mxu0 0.0
      %5016 = vmatprep.subr.mxu0 0.0
      %5017 = vmatpush2.msra.mxu0 0.0
      %5018 = vmatprep.subr.mxu0 0.0
      %5019 = vmatpush2.msra.mxu0 0.0
      %5020 = vmatprep.subr.mxu0 0.0
      %5021 = vmatpush2.msra.mxu0 0.0
      %5022 = vmatprep.subr.mxu0 0.0
      %5023 = vmatpush2.msra.mxu0 0.0
      %5024 = vmatprep.subr.mxu0 0.0
      %5025 = vmatpush2.msra.mxu0 0.0
      %5026 = vmatprep.subr.mxu0 0.0
      %5027 = vmatpush2.msra.mxu0 0.0
      %5028 = vmatprep.subr.mxu0 0.0
      %5029 = vmatpush2.msra.mxu0 0.0
      %5030 = vmatprep.subr.mxu0 0.0
      %5031 = vmatpush2.msra.mxu0 0.0
      %5032 = vmatprep.subr.mxu0 0.0
      %5033 = vmatpush2.msra.mxu0 0.0
      %5034 = vmatprep.subr.mxu0 0.0
      %5035 = vmatpush2.msra.mxu0 0.0
      %5036 = vmatprep.subr.mxu0 0.0
      %5037 = vmatpush2.msra.mxu0 0.0
      %5038 = vmatprep.subr.mxu0 0.0
      %5039 = vmatpush2.msra.mxu0 0.0
      %5040 = vmatprep.mubr.f32.mxu0 0.0
      %5041 = vmatmul.mubr.f32.gmra.mxu0 %v4968
      %v5042 = vpop.f32.mrf.mxu0
      %v5043 = vadd.f32 %v4974, %v5042
      %v5044 = vpop.f32.mrf.mxu0
      %5045 = vmatprep.mubr.f32.mxu0 0.0
      %5046 = vmatmul.mubr.f32.gmra.mxu0 %v4969
      %v5047 = vpop.f32.mrf.mxu0
      %v5048 = vadd.f32 %v4974, %v5047
      %v5049 = vpop.f32.mrf.mxu0
      %5050 = vdwg.mxu0
      %v5051 = vadd.f32 %v4857, %v5043
      %v5052 = vadd.f32 %v4858, %v5048
      %v5053 = vld [vmem:[%s1055] sm:$0x1]
      %v5054 = vld [vmem:[%s1058] sm:$0x1]
      %v5055 = vsel %vm1093, %v5051, 0.0
      %5056 = vadd.xlane.f32.xlu0 %v5055
      %v5057 = vpop.xlane.xlu0 %5056
      %v5058 = vsel %vm1093, %v5052, 0.0
      %5059 = vadd.xlane.f32.xlu0 %v5058
      %v5060 = vpop.xlane.xlu0 %5059
      %v5061 = vmul.f32 %v5057, %v2927
      %v5062 = vmul.f32 %v5060, %v2927
      %v5063 = vsub.f32 %v5051, %v5061
      %v5064 = vsub.f32 %v5052, %v5062
      %v5065 = vmul.f32 %v5063, %v5063
      %v5066 = vmul.f32 %v5064, %v5064
      %v5067 = vsel %vm1093, %v5065, 0.0
      %5068 = vadd.xlane.f32.xlu0 %v5067
      %v5069 = vpop.xlane.xlu0 %5068
      %v5070 = vsel %vm1093, %v5066, 0.0
      %5071 = vadd.xlane.f32.xlu0 %v5070
      %v5072 = vpop.xlane.xlu0 %5071
      %v5073 = vmul.f32 %v5069, %v2927
      %v5074 = vmul.f32 %v5072, %v2927
      %v5075 = vadd.f32 %v5073, 1e-05
      %v5076 = vadd.f32 %v5074, 1e-05
      %v5077 = vrsqrt.pop %v5075
      %v5078 = vrsqrt.pop %v5076
      %v5079 = vmul.f32 %v5063, %v5077
      %v5080 = vmul.f32 %v5064, %v5078
      %v5082 = vlaneseq
      %v5083 = vshrl.u32 %v5082, 7
      %v5084 = vsub.s32 0, %v5083
      %v5085 = vrot.slane %v5053, %v5084
      %v5087 = vmul.f32 %v5079, %v5085
      %v5088 = vmul.f32 %v5080, %v5085
      %v5090 = vlaneseq
      %v5091 = vshrl.u32 %v5090, 7
      %v5092 = vsub.s32 0, %v5091
      %v5093 = vrot.slane %v5054, %v5092
      %v5095 = vadd.f32 %v5087, %v5093
      %v5096 = vadd.f32 %v5088, %v5093
      %5097 = vst.msk [vmem:[#allocation2] sm:$0xff] %vm1093, %v5095
      %5098 = vst.msk [vmem:[#allocation2 + $0x8] sm:$0xff] %vm1093, %v5096
      %p5099 = scmp.eq.s32.totalorder %s35, 1
      // Predicated region
      $region121: #{transformer_forward.4} parent=115 // pred_check
        %p5100 = pneg %p5099
      $region122: #{transformer_forward.4} parent=115 // pred_check_branch
        %5102 = sbr.rel (%p5100) target = $region124
      $region123: #{transformer_forward.4} parent=115 // pred_region
        %v5103 = vld [vmem:[#allocation2] sm:$0xff]
        %v5104 = vld [vmem:[#allocation2 + $0x8] sm:$0xff]
        %5105 = vst.msk [vmem:[%s24] sm:$0xff] %vm1093, %v5103
        %5106 = vst.msk [vmem:[%s24 + $0x8] sm:$0xff] %vm1093, %v5104
      $region124: #{transformer_forward.4} parent=115 // pred_fallthru
        _
      // Predicated region
      $region125: #{transformer_forward.4} parent=115 // pred_check
        %p5107 = pneg %p662
      $region126: #{transformer_forward.4} parent=115 // pred_check_branch
        %5109 = sbr.rel (%p5107) target = $region128
      $region127: #{transformer_forward.4} parent=115 // pred_region
        _
      $region128: #{transformer_forward.4} parent=115 // pred_fallthru
        _
      // Predicated region
      $region129: #{transformer_forward.4} parent=115 // pred_check
        %p5110 = pneg %p662
      $region130: #{transformer_forward.4} parent=115 // pred_check_branch
        %5112 = sbr.rel (%p5110) target = $region132
      $region131: #{transformer_forward.4} parent=115 // pred_region
        _
      $region132: #{transformer_forward.4} parent=115 // pred_fallthru
        _
    $region116: #{transformer_forward.4} parent=5 // pred_fallthru
      _
    %p5113 = scmp.le.s32.totalorder 2, %s30
    // Predicated region
    $region133: #{transformer_forward.4} parent=5 // pred_check
      %p5114 = pneg %p5113
    $region134: #{transformer_forward.4} parent=5 // pred_check_branch
      %5116 = sbr.rel (%p5114) target = $region136
    $region135: #{transformer_forward.4} parent=5 // pred_region
      %s5117 = ssub.s32 %s30, 2
    $region136: #{transformer_forward.4} parent=5 // pred_fallthru
      _
  $region6: #{transformer_forward.4} parent=0 // loop_footer
    %s34 = sadd.s32 1, %s30
  $region7: #{transformer_forward.4} parent=0 // loop_footer_branch
    %29 = sbr.rel target = $region3
  $region8: #{transformer_forward.4} parent=0 // loop_exit
    _

</llo_original>
